<compile_context>
chip_gen: v7x
topology: tpu7x:2x2x1
jax: 0.10.0
libtpu: 0.0.40
codegen_flags: <defaults>
</compile_context>

<pallas_src>
import functools

import jax
import jax.numpy as jnp
from jax import lax
from jax.experimental import pallas as pl
from jax.experimental.pallas import tpu as pltpu

HIDDEN = 64
OUTPUT_DIMS = 320
DEPTH = 10       # number of identical 64->64 blocks; final 64->320 block follows
KSIZE = 3


def _gelu(x):
    # exact (erf) GELU, matching torch.nn.functional.gelu default
    return 0.5 * x * (1.0 + lax.erf(x * 0.7071067811865476))


def _mm(a, b):
    return jnp.dot(a, b, preferred_element_type=jnp.float32)


def _conv_same(h, get_w, bias, dilation, bsz, seq_len):
    """x -> gelu -> SamePadConv(kernel=3, dilation).  h: (B, T, Cin) -> (B, T, Cout)."""
    cin = h.shape[-1]
    gx = _gelu(h)
    if dilation >= seq_len:
        # Side taps only ever see the zero padding (gelu(0)*W == 0) -> skip them.
        acc = _mm(gx.reshape(bsz * seq_len, cin), get_w(1)) + bias
        return acc.reshape(bsz, seq_len, acc.shape[-1])
    z = jnp.zeros((bsz, dilation, cin), jnp.float32)
    gp = jnp.concatenate([z, gx, z], axis=1)          # in-VMEM "same" padding
    acc = bias
    for k in range(KSIZE):
        xs = lax.slice_in_dim(gp, k * dilation, k * dilation + seq_len, axis=1)
        acc = acc + _mm(xs.reshape(bsz * seq_len, cin), get_w(k))
    return acc.reshape(bsz, seq_len, acc.shape[-1])


# ------------------------------ fused kernel ------------------------------- #

def _model_kernel(x_ref, ifc_w_ref, ifc_b_ref,
                  c1w_ref, c1b_ref, c2w_ref, c2b_ref,
                  pw_ref, pb_ref, f1w_ref, f1b_ref, f2w_ref, f2b_ref,
                  rw_ref, rb_ref, y_ref, *, bsz, seq_len, depth):
    B, T = bsz, seq_len

    # TSEncoder preamble: NaN-row handling + input_fc + (mask='all_true' & nan_mask).
    x = x_ref[...]                                              # (B, T, Cin)
    nan_row = jnp.any(jnp.isnan(x), axis=-1, keepdims=True)     # (B, T, 1)
    x = jnp.where(nan_row, 0.0, x)                              # x[~nan_mask] = 0
    h = _mm(x.reshape(B * T, -1), ifc_w_ref[...]) + ifc_b_ref[...]
    h = jnp.where(nan_row.reshape(B * T, 1), 0.0, h)            # x[~mask] = 0
    h = h.reshape(B, T, HIDDEN)

    # 10 identical 64->64 ConvBlocks, dilation 2^i, identity residual.
    for i in range(depth):
        d = 2 ** i
        res = h
        h1 = _conv_same(h, lambda k, i=i: c1w_ref[i, k], c1b_ref[i], d, B, T)
        h = _conv_same(h1, lambda k, i=i: c2w_ref[i, k], c2b_ref[i], d, B, T) + res

    # Final 64->320 ConvBlock (dilation 2^depth) with 1x1-conv projector residual.
    d = 2 ** depth
    res = (_mm(h.reshape(B * T, HIDDEN), pw_ref[...]) + pb_ref[...]).reshape(B, T, -1)
    h1 = _conv_same(h, lambda k: f1w_ref[k], f1b_ref[...], d, B, T)
    h = _conv_same(h1, lambda k: f2w_ref[k], f2b_ref[...], d, B, T) + res

    # TODO(synk): repr_dropout(p=0.1) is identity at inference time (eval mode); omitted.

    # TS2VecEncoderWrapper [:, -1] + regression head, fused as the epilogue.
    rep = h[:, T - 1, :]                                        # (B, 320)
    y_ref[...] = _mm(rep, rw_ref[...]) + rb_ref[...]            # (B, dim)


# -------------------------------- wrapper ----------------------------------- #

def model_forward(params, x, x_mark, dec_inp, batch_y_mark, *, pred_len,
                  time_feature_dims):
    del dec_inp, batch_y_mark  # unused, as in the PyTorch forward
    bsz, seq_len, _ = x.shape
    if x_mark is None:
        x_mark = jnp.zeros((bsz, seq_len, time_feature_dims), x.dtype)
    xcat = jnp.concatenate([x, x_mark], axis=-1).astype(jnp.float32)
    dim = params["reg_w"].shape[1]

    kernel = functools.partial(_model_kernel, bsz=bsz, seq_len=seq_len, depth=DEPTH)
    vmem = pl.BlockSpec(memory_space=pltpu.MemorySpace.VMEM)
    y = pl.pallas_call(
        kernel,
        out_shape=jax.ShapeDtypeStruct((bsz, dim), jnp.float32),
        in_specs=[vmem] * 15,
        out_specs=vmem,
    )(xcat,
      params["input_fc_w"], params["input_fc_b"],
      params["c1w"], params["c1b"], params["c2w"], params["c2b"],
      params["proj_w"], params["proj_b"],
      params["f1w"], params["f1b"], params["f2w"], params["f2b"],
      params["reg_w"], params["reg_b"])
    return y.reshape(bsz, pred_len, -1)


# ------------------------------ parameters --------------------------------- #

def _uniform(key, shape, fan_in):
    bound = 1.0 / float(fan_in) ** 0.5
    return jax.random.uniform(key, shape, jnp.float32, -bound, bound)


def init_params(key, input_dims, dim):
    keys = iter(jax.random.split(key, 64))
    params = {
        "input_fc_w": _uniform(next(keys), (input_dims, HIDDEN), input_dims),
        "input_fc_b": _uniform(next(keys), (1, HIDDEN), input_dims),
    }
    c1w, c1b, c2w, c2b = [], [], [], []
    for _ in range(DEPTH):  # 64 -> 64 blocks (no projector)
        c1w.append(_uniform(next(keys), (KSIZE, HIDDEN, HIDDEN), HIDDEN * KSIZE))
        c1b.append(_uniform(next(keys), (1, HIDDEN), HIDDEN * KSIZE))
        c2w.append(_uniform(next(keys), (KSIZE, HIDDEN, HIDDEN), HIDDEN * KSIZE))
        c2b.append(_uniform(next(keys), (1, HIDDEN), HIDDEN * KSIZE))
    params["c1w"] = jnp.stack(c1w)   # (10, 3, 64, 64)
    params["c1b"] = jnp.stack(c1b)   # (10, 1, 64)
    params["c2w"] = jnp.stack(c2w)
    params["c2b"] = jnp.stack(c2b)
    # final block: 64 -> 320, dilation 2**DEPTH, with 1x1-conv projector residual
    params["proj_w"] = _uniform(next(keys), (HIDDEN, OUTPUT_DIMS), HIDDEN)
    params["proj_b"] = _uniform(next(keys), (1, OUTPUT_DIMS), HIDDEN)
    params["f1w"] = _uniform(next(keys), (KSIZE, HIDDEN, OUTPUT_DIMS), HIDDEN * KSIZE)
    params["f1b"] = _uniform(next(keys), (1, OUTPUT_DIMS), HIDDEN * KSIZE)
    params["f2w"] = _uniform(next(keys), (KSIZE, OUTPUT_DIMS, OUTPUT_DIMS),
                             OUTPUT_DIMS * KSIZE)
    params["f2b"] = _uniform(next(keys), (1, OUTPUT_DIMS), OUTPUT_DIMS * KSIZE)
    # regression head Linear(320, c_out * pred_len)
    params["reg_w"] = _uniform(next(keys), (OUTPUT_DIMS, dim), OUTPUT_DIMS)
    params["reg_b"] = _uniform(next(keys), (1, dim), OUTPUT_DIMS)
    return params


# --------------------------------- main ------------------------------------ #

if __name__ == "__main__":
    # args: embed='timeF' -> time_feature_dims=4; enc_in=7; c_out=7; pred_len=4
    enc_in, c_out, pred_len, time_feature_dims = 7, 7, 4, 4
    dim = c_out * pred_len
    batch, seq_len = 2, 16

    key = jax.random.PRNGKey(0)
    kp, kx, km = jax.random.split(key, 3)
    params = init_params(kp, input_dims=enc_in + time_feature_dims, dim=dim)

    x = jax.random.normal(kx, (batch, seq_len, enc_in), jnp.float32)
    x_mark = jax.random.normal(km, (batch, seq_len, time_feature_dims), jnp.float32)
    dec_inp = jnp.zeros((batch, pred_len, enc_in), jnp.float32)
    batch_y_mark = jnp.zeros((batch, pred_len, time_feature_dims), jnp.float32)

    y = model_forward(params, x, x_mark, dec_inp, batch_y_mark,
                      pred_len=pred_len, time_feature_dims=time_feature_dims)
    y = jax.block_until_ready(y)

    assert y.shape == (batch, pred_len, c_out), y.shape
    assert bool(jnp.all(jnp.isfinite(y)))
    print("KERNEL_OK")
</pallas_src>

<mosaic_0001>
module attributes {stable_mosaic.version = 11 : i64} {
  func.func @_model_kernel(%arg0: memref<2x16x11xf32, #tpu.memory_space<vmem>>, %arg1: memref<11x64xf32, #tpu.memory_space<vmem>>, %arg2: memref<1x64xf32, #tpu.memory_space<vmem>>, %arg3: memref<10x3x64x64xf32, #tpu.memory_space<vmem>>, %arg4: memref<10x1x64xf32, #tpu.memory_space<vmem>>, %arg5: memref<10x3x64x64xf32, #tpu.memory_space<vmem>>, %arg6: memref<10x1x64xf32, #tpu.memory_space<vmem>>, %arg7: memref<64x320xf32, #tpu.memory_space<vmem>>, %arg8: memref<1x320xf32, #tpu.memory_space<vmem>>, %arg9: memref<3x64x320xf32, #tpu.memory_space<vmem>>, %arg10: memref<1x320xf32, #tpu.memory_space<vmem>>, %arg11: memref<3x320x320xf32, #tpu.memory_space<vmem>>, %arg12: memref<1x320xf32, #tpu.memory_space<vmem>>, %arg13: memref<320x28xf32, #tpu.memory_space<vmem>>, %arg14: memref<1x28xf32, #tpu.memory_space<vmem>>, %arg15: memref<2x28xf32, #tpu.memory_space<vmem>>) attributes {dimension_semantics = [], scalar_prefetch = 0 : i64, scratch_operands = 0 : i64, tpu.core_type = #tpu.core_type<tc>} {
    %c0 = arith.constant 0 : index
    %c0_0 = arith.constant 0 : index
    %c0_1 = arith.constant 0 : index
    %0 = vector.load %arg0[%c0, %c0_0, %c0_1] : memref<2x16x11xf32, #tpu.memory_space<vmem>>, vector<2x16x11xf32>
    %1 = arith.cmpf one, %0, %0 : vector<2x16x11xf32>
    %cst = arith.constant 1.000000e+00 : f32
    %cst_2 = arith.constant 0.000000e+00 : f32
    %2 = vector.broadcast %cst : f32 to vector<2x16x11xf32>
    %3 = vector.broadcast %cst_2 : f32 to vector<2x16x11xf32>
    %4 = arith.select %1, %2, %3 : vector<2x16x11xi1>, vector<2x16x11xf32>
    %cst_3 = arith.constant dense<0xFF800000> : vector<2x16xf32>
    %5 = vector.multi_reduction <maximumf>, %4, %cst_3 [2] : vector<2x16x11xf32> to vector<2x16xf32>
    %cst_4 = arith.constant 0.000000e+00 : f32
    %6 = vector.broadcast %cst_4 : f32 to vector<2x16xf32>
    %7 = arith.cmpf ogt, %5, %6 : vector<2x16xf32>
    %8 = vector.shape_cast %7 : vector<2x16xi1> to vector<2x16x1xi1>
    %cst_5 = arith.constant 0.000000e+00 : f32
    %9 = vector.shape_cast %8 : vector<2x16x1xi1> to vector<2x16x1xi1>
    %10 = vector.broadcast %9 : vector<2x16x1xi1> to vector<2x16x11xi1>
    %11 = vector.broadcast %cst_5 : f32 to vector<2x16x11xf32>
    %12 = arith.select %10, %11, %0 : vector<2x16x11xi1>, vector<2x16x11xf32>
    %13 = vector.shape_cast %12 : vector<2x16x11xf32> to vector<32x11xf32>
    %c0_6 = arith.constant 0 : index
    %c0_7 = arith.constant 0 : index
    %14 = vector.load %arg1[%c0_6, %c0_7] : memref<11x64xf32, #tpu.memory_space<vmem>>, vector<11x64xf32>
    %cst_8 = arith.constant dense<0.000000e+00> : vector<32x64xf32>
    %15 = tpu.matmul %13, %14, %cst_8 {dimension_numbers = #tpu.dot_dimension_numbers<[1], [0], [0], [1], [0, 0, 1, 1], [], []>} : vector<32x11xf32>, vector<11x64xf32>, vector<32x64xf32> -> vector<32x64xf32>
    %c0_9 = arith.constant 0 : index
    %c0_10 = arith.constant 0 : index
    %16 = vector.load %arg2[%c0_9, %c0_10] : memref<1x64xf32, #tpu.memory_space<vmem>>, vector<1x64xf32>
    %17 = vector.broadcast %16 : vector<1x64xf32> to vector<32x64xf32>
    %18 = arith.addf %15, %17 : vector<32x64xf32>
    %19 = vector.shape_cast %8 : vector<2x16x1xi1> to vector<32x1xi1>
    %cst_11 = arith.constant 0.000000e+00 : f32
    %20 = vector.shape_cast %19 : vector<32x1xi1> to vector<32x1xi1>
    %21 = vector.broadcast %20 : vector<32x1xi1> to vector<32x64xi1>
    %22 = vector.broadcast %cst_11 : f32 to vector<32x64xf32>
    %23 = arith.select %21, %22, %18 : vector<32x64xi1>, vector<32x64xf32>
    %24 = vector.shape_cast %23 : vector<32x64xf32> to vector<2x16x64xf32>
    %c0_12 = arith.constant 0 : index
    %c0_13 = arith.constant 0 : index
    %c0_14 = arith.constant 0 : index
    %25 = vector.load %arg4[%c0_12, %c0_13, %c0_14] : memref<10x1x64xf32, #tpu.memory_space<vmem>>, vector<1x1x64xf32>
    %26 = vector.shape_cast %25 : vector<1x1x64xf32> to vector<1x64xf32>
    %cst_15 = arith.constant 5.000000e-01 : f32
    %27 = vector.broadcast %cst_15 : f32 to vector<2x16x64xf32>
    %28 = arith.mulf %27, %24 : vector<2x16x64xf32>
    %cst_16 = arith.constant 0.707106769 : f32
    %29 = vector.broadcast %cst_16 : f32 to vector<2x16x64xf32>
    %30 = arith.mulf %24, %29 : vector<2x16x64xf32>
    %31 = math.erf %30 : vector<2x16x64xf32>
    %cst_17 = arith.constant 1.000000e+00 : f32
    %32 = vector.broadcast %cst_17 : f32 to vector<2x16x64xf32>
    %33 = arith.addf %32, %31 : vector<2x16x64xf32>
    %34 = arith.mulf %28, %33 : vector<2x16x64xf32>
    %cst_18 = arith.constant 0.000000e+00 : f32
    %35 = vector.broadcast %cst_18 : f32 to vector<2x1x64xf32>
    %36 = tpu.concatenate %35, %34, %35 in 1 : vector<2x1x64xf32>, vector<2x16x64xf32>, vector<2x1x64xf32> -> vector<2x18x64xf32>
    %37 = vector.extract_strided_slice %36 {offsets = [0, 0, 0], sizes = [2, 16, 64], strides = [1, 1, 1]} : vector<2x18x64xf32> to vector<2x16x64xf32>
    %38 = vector.shape_cast %37 : vector<2x16x64xf32> to vector<32x64xf32>
    %c0_19 = arith.constant 0 : index
    %c0_20 = arith.constant 0 : index
    %c0_21 = arith.constant 0 : index
    %c0_22 = arith.constant 0 : index
    %39 = vector.load %arg3[%c0_19, %c0_20, %c0_21, %c0_22] : memref<10x3x64x64xf32, #tpu.memory_space<vmem>>, vector<1x1x64x64xf32>
    %40 = vector.shape_cast %39 : vector<1x1x64x64xf32> to vector<64x64xf32>
    %cst_23 = arith.constant dense<0.000000e+00> : vector<32x64xf32>
    %41 = tpu.matmul %38, %40, %cst_23 {dimension_numbers = #tpu.dot_dimension_numbers<[1], [0], [0], [1], [0, 0, 1, 1], [], []>} : vector<32x64xf32>, vector<64x64xf32>, vector<32x64xf32> -> vector<32x64xf32>
    %42 = vector.broadcast %26 : vector<1x64xf32> to vector<32x64xf32>
    %43 = arith.addf %42, %41 : vector<32x64xf32>
    %44 = vector.extract_strided_slice %36 {offsets = [0, 1, 0], sizes = [2, 16, 64], strides = [1, 1, 1]} : vector<2x18x64xf32> to vector<2x16x64xf32>
    %45 = vector.shape_cast %44 : vector<2x16x64xf32> to vector<32x64xf32>
    %c0_24 = arith.constant 0 : index
    %c1 = arith.constant 1 : index
    %c0_25 = arith.constant 0 : index
    %c0_26 = arith.constant 0 : index
    %46 = vector.load %arg3[%c0_24, %c1, %c0_25, %c0_26] : memref<10x3x64x64xf32, #tpu.memory_space<vmem>>, vector<1x1x64x64xf32>
    %47 = vector.shape_cast %46 : vector<1x1x64x64xf32> to vector<64x64xf32>
    %cst_27 = arith.constant dense<0.000000e+00> : vector<32x64xf32>
    %48 = tpu.matmul %45, %47, %cst_27 {dimension_numbers = #tpu.dot_dimension_numbers<[1], [0], [0], [1], [0, 0, 1, 1], [], []>} : vector<32x64xf32>, vector<64x64xf32>, vector<32x64xf32> -> vector<32x64xf32>
    %49 = arith.addf %43, %48 : vector<32x64xf32>
    %50 = vector.extract_strided_slice %36 {offsets = [0, 2, 0], sizes = [2, 16, 64], strides = [1, 1, 1]} : vector<2x18x64xf32> to vector<2x16x64xf32>
    %51 = vector.shape_cast %50 : vector<2x16x64xf32> to vector<32x64xf32>
    %c0_28 = arith.constant 0 : index
    %c2 = arith.constant 2 : index
    %c0_29 = arith.constant 0 : index
    %c0_30 = arith.constant 0 : index
    %52 = vector.load %arg3[%c0_28, %c2, %c0_29, %c0_30] : memref<10x3x64x64xf32, #tpu.memory_space<vmem>>, vector<1x1x64x64xf32>
    %53 = vector.shape_cast %52 : vector<1x1x64x64xf32> to vector<64x64xf32>
    %cst_31 = arith.constant dense<0.000000e+00> : vector<32x64xf32>
    %54 = tpu.matmul %51, %53, %cst_31 {dimension_numbers = #tpu.dot_dimension_numbers<[1], [0], [0], [1], [0, 0, 1, 1], [], []>} : vector<32x64xf32>, vector<64x64xf32>, vector<32x64xf32> -> vector<32x64xf32>
    %55 = arith.addf %49, %54 : vector<32x64xf32>
    %56 = vector.shape_cast %55 : vector<32x64xf32> to vector<2x16x64xf32>
    %c0_32 = arith.constant 0 : index
    %c0_33 = arith.constant 0 : index
    %c0_34 = arith.constant 0 : index
    %57 = vector.load %arg6[%c0_32, %c0_33, %c0_34] : memref<10x1x64xf32, #tpu.memory_space<vmem>>, vector<1x1x64xf32>
    %58 = vector.shape_cast %57 : vector<1x1x64xf32> to vector<1x64xf32>
    %cst_35 = arith.constant 5.000000e-01 : f32
    %59 = vector.broadcast %cst_35 : f32 to vector<2x16x64xf32>
    %60 = arith.mulf %59, %56 : vector<2x16x64xf32>
    %cst_36 = arith.constant 0.707106769 : f32
    %61 = vector.broadcast %cst_36 : f32 to vector<2x16x64xf32>
    %62 = arith.mulf %56, %61 : vector<2x16x64xf32>
    %63 = math.erf %62 : vector<2x16x64xf32>
    %cst_37 = arith.constant 1.000000e+00 : f32
    %64 = vector.broadcast %cst_37 : f32 to vector<2x16x64xf32>
    %65 = arith.addf %64, %63 : vector<2x16x64xf32>
    %66 = arith.mulf %60, %65 : vector<2x16x64xf32>
    %cst_38 = arith.constant 0.000000e+00 : f32
    %67 = vector.broadcast %cst_38 : f32 to vector<2x1x64xf32>
    %68 = tpu.concatenate %67, %66, %67 in 1 : vector<2x1x64xf32>, vector<2x16x64xf32>, vector<2x1x64xf32> -> vector<2x18x64xf32>
    %69 = vector.extract_strided_slice %68 {offsets = [0, 0, 0], sizes = [2, 16, 64], strides = [1, 1, 1]} : vector<2x18x64xf32> to vector<2x16x64xf32>
    %70 = vector.shape_cast %69 : vector<2x16x64xf32> to vector<32x64xf32>
    %c0_39 = arith.constant 0 : index
    %c0_40 = arith.constant 0 : index
    %c0_41 = arith.constant 0 : index
    %c0_42 = arith.constant 0 : index
    %71 = vector.load %arg5[%c0_39, %c0_40, %c0_41, %c0_42] : memref<10x3x64x64xf32, #tpu.memory_space<vmem>>, vector<1x1x64x64xf32>
    %72 = vector.shape_cast %71 : vector<1x1x64x64xf32> to vector<64x64xf32>
    %cst_43 = arith.constant dense<0.000000e+00> : vector<32x64xf32>
    %73 = tpu.matmul %70, %72, %cst_43 {dimension_numbers = #tpu.dot_dimension_numbers<[1], [0], [0], [1], [0, 0, 1, 1], [], []>} : vector<32x64xf32>, vector<64x64xf32>, vector<32x64xf32> -> vector<32x64xf32>
    %74 = vector.broadcast %58 : vector<1x64xf32> to vector<32x64xf32>
    %75 = arith.addf %74, %73 : vector<32x64xf32>
    %76 = vector.extract_strided_slice %68 {offsets = [0, 1, 0], sizes = [2, 16, 64], strides = [1, 1, 1]} : vector<2x18x64xf32> to vector<2x16x64xf32>
    %77 = vector.shape_cast %76 : vector<2x16x64xf32> to vector<32x64xf32>
    %c0_44 = arith.constant 0 : index
    %c1_45 = arith.constant 1 : index
    %c0_46 = arith.constant 0 : index
    %c0_47 = arith.constant 0 : index
    %78 = vector.load %arg5[%c0_44, %c1_45, %c0_46, %c0_47] : memref<10x3x64x64xf32, #tpu.memory_space<vmem>>, vector<1x1x64x64xf32>
    %79 = vector.shape_cast %78 : vector<1x1x64x64xf32> to vector<64x64xf32>
    %cst_48 = arith.constant dense<0.000000e+00> : vector<32x64xf32>
    %80 = tpu.matmul %77, %79, %cst_48 {dimension_numbers = #tpu.dot_dimension_numbers<[1], [0], [0], [1], [0, 0, 1, 1], [], []>} : vector<32x64xf32>, vector<64x64xf32>, vector<32x64xf32> -> vector<32x64xf32>
    %81 = arith.addf %75, %80 : vector<32x64xf32>
    %82 = vector.extract_strided_slice %68 {offsets = [0, 2, 0], sizes = [2, 16, 64], strides = [1, 1, 1]} : vector<2x18x64xf32> to vector<2x16x64xf32>
    %83 = vector.shape_cast %82 : vector<2x16x64xf32> to vector<32x64xf32>
    %c0_49 = arith.constant 0 : index
    %c2_50 = arith.constant 2 : index
    %c0_51 = arith.constant 0 : index
    %c0_52 = arith.constant 0 : index
    %84 = vector.load %arg5[%c0_49, %c2_50, %c0_51, %c0_52] : memref<10x3x64x64xf32, #tpu.memory_space<vmem>>, vector<1x1x64x64xf32>
    %85 = vector.shape_cast %84 : vector<1x1x64x64xf32> to vector<64x64xf32>
    %cst_53 = arith.constant dense<0.000000e+00> : vector<32x64xf32>
    %86 = tpu.matmul %83, %85, %cst_53 {dimension_numbers = #tpu.dot_dimension_numbers<[1], [0], [0], [1], [0, 0, 1, 1], [], []>} : vector<32x64xf32>, vector<64x64xf32>, vector<32x64xf32> -> vector<32x64xf32>
    %87 = arith.addf %81, %86 : vector<32x64xf32>
    %88 = vector.shape_cast %87 : vector<32x64xf32> to vector<2x16x64xf32>
    %89 = arith.addf %88, %24 : vector<2x16x64xf32>
    %c1_54 = arith.constant 1 : index
    %c0_55 = arith.constant 0 : index
    %c0_56 = arith.constant 0 : index
    %90 = vector.load %arg4[%c1_54, %c0_55, %c0_56] : memref<10x1x64xf32, #tpu.memory_space<vmem>>, vector<1x1x64xf32>
    %91 = vector.shape_cast %90 : vector<1x1x64xf32> to vector<1x64xf32>
    %cst_57 = arith.constant 5.000000e-01 : f32
    %92 = vector.broadcast %cst_57 : f32 to vector<2x16x64xf32>
    %93 = arith.mulf %92, %89 : vector<2x16x64xf32>
    %cst_58 = arith.constant 0.707106769 : f32
    %94 = vector.broadcast %cst_58 : f32 to vector<2x16x64xf32>
    %95 = arith.mulf %89, %94 : vector<2x16x64xf32>
    %96 = math.erf %95 : vector<2x16x64xf32>
    %cst_59 = arith.constant 1.000000e+00 : f32
    %97 = vector.broadcast %cst_59 : f32 to vector<2x16x64xf32>
    %98 = arith.addf %97, %96 : vector<2x16x64xf32>
    %99 = arith.mulf %93, %98 : vector<2x16x64xf32>
    %cst_60 = arith.constant 0.000000e+00 : f32
    %100 = vector.broadcast %cst_60 : f32 to vector<2x2x64xf32>
    %101 = tpu.concatenate %100, %99, %100 in 1 : vector<2x2x64xf32>, vector<2x16x64xf32>, vector<2x2x64xf32> -> vector<2x20x64xf32>
    %102 = vector.extract_strided_slice %101 {offsets = [0, 0, 0], sizes = [2, 16, 64], strides = [1, 1, 1]} : vector<2x20x64xf32> to vector<2x16x64xf32>
    %103 = vector.shape_cast %102 : vector<2x16x64xf32> to vector<32x64xf32>
    %c1_61 = arith.constant 1 : index
    %c0_62 = arith.constant 0 : index
    %c0_63 = arith.constant 0 : index
    %c0_64 = arith.constant 0 : index
    %104 = vector.load %arg3[%c1_61, %c0_62, %c0_63, %c0_64] : memref<10x3x64x64xf32, #tpu.memory_space<vmem>>, vector<1x1x64x64xf32>
    %105 = vector.shape_cast %104 : vector<1x1x64x64xf32> to vector<64x64xf32>
    %cst_65 = arith.constant dense<0.000000e+00> : vector<32x64xf32>
    %106 = tpu.matmul %103, %105, %cst_65 {dimension_numbers = #tpu.dot_dimension_numbers<[1], [0], [0], [1], [0, 0, 1, 1], [], []>} : vector<32x64xf32>, vector<64x64xf32>, vector<32x64xf32> -> vector<32x64xf32>
    %107 = vector.broadcast %91 : vector<1x64xf32> to vector<32x64xf32>
    %108 = arith.addf %107, %106 : vector<32x64xf32>
    %109 = vector.extract_strided_slice %101 {offsets = [0, 2, 0], sizes = [2, 16, 64], strides = [1, 1, 1]} : vector<2x20x64xf32> to vector<2x16x64xf32>
    %110 = vector.shape_cast %109 : vector<2x16x64xf32> to vector<32x64xf32>
    %c1_66 = arith.constant 1 : index
    %c1_67 = arith.constant 1 : index
    %c0_68 = arith.constant 0 : index
    %c0_69 = arith.constant 0 : index
    %111 = vector.load %arg3[%c1_66, %c1_67, %c0_68, %c0_69] : memref<10x3x64x64xf32, #tpu.memory_space<vmem>>, vector<1x1x64x64xf32>
    %112 = vector.shape_cast %111 : vector<1x1x64x64xf32> to vector<64x64xf32>
    %cst_70 = arith.constant dense<0.000000e+00> : vector<32x64xf32>
    %113 = tpu.matmul %110, %112, %cst_70 {dimension_numbers = #tpu.dot_dimension_numbers<[1], [0], [0], [1], [0, 0, 1, 1], [], []>} : vector<32x64xf32>, vector<64x64xf32>, vector<32x64xf32> -> vector<32x64xf32>
    %114 = arith.addf %108, %113 : vector<32x64xf32>
    %115 = vector.extract_strided_slice %101 {offsets = [0, 4, 0], sizes = [2, 16, 64], strides = [1, 1, 1]} : vector<2x20x64xf32> to vector<2x16x64xf32>
    %116 = vector.shape_cast %115 : vector<2x16x64xf32> to vector<32x64xf32>
    %c1_71 = arith.constant 1 : index
    %c2_72 = arith.constant 2 : index
    %c0_73 = arith.constant 0 : index
    %c0_74 = arith.constant 0 : index
    %117 = vector.load %arg3[%c1_71, %c2_72, %c0_73, %c0_74] : memref<10x3x64x64xf32, #tpu.memory_space<vmem>>, vector<1x1x64x64xf32>
    %118 = vector.shape_cast %117 : vector<1x1x64x64xf32> to vector<64x64xf32>
    %cst_75 = arith.constant dense<0.000000e+00> : vector<32x64xf32>
    %119 = tpu.matmul %116, %118, %cst_75 {dimension_numbers = #tpu.dot_dimension_numbers<[1], [0], [0], [1], [0, 0, 1, 1], [], []>} : vector<32x64xf32>, vector<64x64xf32>, vector<32x64xf32> -> vector<32x64xf32>
    %120 = arith.addf %114, %119 : vector<32x64xf32>
    %121 = vector.shape_cast %120 : vector<32x64xf32> to vector<2x16x64xf32>
    %c1_76 = arith.constant 1 : index
    %c0_77 = arith.constant 0 : index
    %c0_78 = arith.constant 0 : index
    %122 = vector.load %arg6[%c1_76, %c0_77, %c0_78] : memref<10x1x64xf32, #tpu.memory_space<vmem>>, vector<1x1x64xf32>
    %123 = vector.shape_cast %122 : vector<1x1x64xf32> to vector<1x64xf32>
    %cst_79 = arith.constant 5.000000e-01 : f32
    %124 = vector.broadcast %cst_79 : f32 to vector<2x16x64xf32>
    %125 = arith.mulf %124, %121 : vector<2x16x64xf32>
    %cst_80 = arith.constant 0.707106769 : f32
    %126 = vector.broadcast %cst_80 : f32 to vector<2x16x64xf32>
    %127 = arith.mulf %121, %126 : vector<2x16x64xf32>
    %128 = math.erf %127 : vector<2x16x64xf32>
    %cst_81 = arith.constant 1.000000e+00 : f32
    %129 = vector.broadcast %cst_81 : f32 to vector<2x16x64xf32>
    %130 = arith.addf %129, %128 : vector<2x16x64xf32>
    %131 = arith.mulf %125, %130 : vector<2x16x64xf32>
    %cst_82 = arith.constant 0.000000e+00 : f32
    %132 = vector.broadcast %cst_82 : f32 to vector<2x2x64xf32>
    %133 = tpu.concatenate %132, %131, %132 in 1 : vector<2x2x64xf32>, vector<2x16x64xf32>, vector<2x2x64xf32> -> vector<2x20x64xf32>
    %134 = vector.extract_strided_slice %133 {offsets = [0, 0, 0], sizes = [2, 16, 64], strides = [1, 1, 1]} : vector<2x20x64xf32> to vector<2x16x64xf32>
    %135 = vector.shape_cast %134 : vector<2x16x64xf32> to vector<32x64xf32>
    %c1_83 = arith.constant 1 : index
    %c0_84 = arith.constant 0 : index
    %c0_85 = arith.constant 0 : index
    %c0_86 = arith.constant 0 : index
    %136 = vector.load %arg5[%c1_83, %c0_84, %c0_85, %c0_86] : memref<10x3x64x64xf32, #tpu.memory_space<vmem>>, vector<1x1x64x64xf32>
    %137 = vector.shape_cast %136 : vector<1x1x64x64xf32> to vector<64x64xf32>
    %cst_87 = arith.constant dense<0.000000e+00> : vector<32x64xf32>
    %138 = tpu.matmul %135, %137, %cst_87 {dimension_numbers = #tpu.dot_dimension_numbers<[1], [0], [0], [1], [0, 0, 1, 1], [], []>} : vector<32x64xf32>, vector<64x64xf32>, vector<32x64xf32> -> vector<32x64xf32>
    %139 = vector.broadcast %123 : vector<1x64xf32> to vector<32x64xf32>
    %140 = arith.addf %139, %138 : vector<32x64xf32>
    %141 = vector.extract_strided_slice %133 {offsets = [0, 2, 0], sizes = [2, 16, 64], strides = [1, 1, 1]} : vector<2x20x64xf32> to vector<2x16x64xf32>
    %142 = vector.shape_cast %141 : vector<2x16x64xf32> to vector<32x64xf32>
    %c1_88 = arith.constant 1 : index
    %c1_89 = arith.constant 1 : index
    %c0_90 = arith.constant 0 : index
    %c0_91 = arith.constant 0 : index
    %143 = vector.load %arg5[%c1_88, %c1_89, %c0_90, %c0_91] : memref<10x3x64x64xf32, #tpu.memory_space<vmem>>, vector<1x1x64x64xf32>
    %144 = vector.shape_cast %143 : vector<1x1x64x64xf32> to vector<64x64xf32>
    %cst_92 = arith.constant dense<0.000000e+00> : vector<32x64xf32>
    %145 = tpu.matmul %142, %144, %cst_92 {dimension_numbers = #tpu.dot_dimension_numbers<[1], [0], [0], [1], [0, 0, 1, 1], [], []>} : vector<32x64xf32>, vector<64x64xf32>, vector<32x64xf32> -> vector<32x64xf32>
    %146 = arith.addf %140, %145 : vector<32x64xf32>
    %147 = vector.extract_strided_slice %133 {offsets = [0, 4, 0], sizes = [2, 16, 64], strides = [1, 1, 1]} : vector<2x20x64xf32> to vector<2x16x64xf32>
    %148 = vector.shape_cast %147 : vector<2x16x64xf32> to vector<32x64xf32>
    %c1_93 = arith.constant 1 : index
    %c2_94 = arith.constant 2 : index
    %c0_95 = arith.constant 0 : index
    %c0_96 = arith.constant 0 : index
    %149 = vector.load %arg5[%c1_93, %c2_94, %c0_95, %c0_96] : memref<10x3x64x64xf32, #tpu.memory_space<vmem>>, vector<1x1x64x64xf32>
    %150 = vector.shape_cast %149 : vector<1x1x64x64xf32> to vector<64x64xf32>
    %cst_97 = arith.constant dense<0.000000e+00> : vector<32x64xf32>
    %151 = tpu.matmul %148, %150, %cst_97 {dimension_numbers = #tpu.dot_dimension_numbers<[1], [0], [0], [1], [0, 0, 1, 1], [], []>} : vector<32x64xf32>, vector<64x64xf32>, vector<32x64xf32> -> vector<32x64xf32>
    %152 = arith.addf %146, %151 : vector<32x64xf32>
    %153 = vector.shape_cast %152 : vector<32x64xf32> to vector<2x16x64xf32>
    %154 = arith.addf %153, %89 : vector<2x16x64xf32>
    %c2_98 = arith.constant 2 : index
    %c0_99 = arith.constant 0 : index
    %c0_100 = arith.constant 0 : index
    %155 = vector.load %arg4[%c2_98, %c0_99, %c0_100] : memref<10x1x64xf32, #tpu.memory_space<vmem>>, vector<1x1x64xf32>
    %156 = vector.shape_cast %155 : vector<1x1x64xf32> to vector<1x64xf32>
    %cst_101 = arith.constant 5.000000e-01 : f32
    %157 = vector.broadcast %cst_101 : f32 to vector<2x16x64xf32>
    %158 = arith.mulf %157, %154 : vector<2x16x64xf32>
    %cst_102 = arith.constant 0.707106769 : f32
    %159 = vector.broadcast %cst_102 : f32 to vector<2x16x64xf32>
    %160 = arith.mulf %154, %159 : vector<2x16x64xf32>
    %161 = math.erf %160 : vector<2x16x64xf32>
    %cst_103 = arith.constant 1.000000e+00 : f32
    %162 = vector.broadcast %cst_103 : f32 to vector<2x16x64xf32>
    %163 = arith.addf %162, %161 : vector<2x16x64xf32>
    %164 = arith.mulf %158, %163 : vector<2x16x64xf32>
    %cst_104 = arith.constant 0.000000e+00 : f32
    %165 = vector.broadcast %cst_104 : f32 to vector<2x4x64xf32>
    %166 = tpu.concatenate %165, %164, %165 in 1 : vector<2x4x64xf32>, vector<2x16x64xf32>, vector<2x4x64xf32> -> vector<2x24x64xf32>
    %167 = vector.extract_strided_slice %166 {offsets = [0, 0, 0], sizes = [2, 16, 64], strides = [1, 1, 1]} : vector<2x24x64xf32> to vector<2x16x64xf32>
    %168 = vector.shape_cast %167 : vector<2x16x64xf32> to vector<32x64xf32>
    %c2_105 = arith.constant 2 : index
    %c0_106 = arith.constant 0 : index
    %c0_107 = arith.constant 0 : index
    %c0_108 = arith.constant 0 : index
    %169 = vector.load %arg3[%c2_105, %c0_106, %c0_107, %c0_108] : memref<10x3x64x64xf32, #tpu.memory_space<vmem>>, vector<1x1x64x64xf32>
    %170 = vector.shape_cast %169 : vector<1x1x64x64xf32> to vector<64x64xf32>
    %cst_109 = arith.constant dense<0.000000e+00> : vector<32x64xf32>
    %171 = tpu.matmul %168, %170, %cst_109 {dimension_numbers = #tpu.dot_dimension_numbers<[1], [0], [0], [1], [0, 0, 1, 1], [], []>} : vector<32x64xf32>, vector<64x64xf32>, vector<32x64xf32> -> vector<32x64xf32>
    %172 = vector.broadcast %156 : vector<1x64xf32> to vector<32x64xf32>
    %173 = arith.addf %172, %171 : vector<32x64xf32>
    %174 = vector.extract_strided_slice %166 {offsets = [0, 4, 0], sizes = [2, 16, 64], strides = [1, 1, 1]} : vector<2x24x64xf32> to vector<2x16x64xf32>
    %175 = vector.shape_cast %174 : vector<2x16x64xf32> to vector<32x64xf32>
    %c2_110 = arith.constant 2 : index
    %c1_111 = arith.constant 1 : index
    %c0_112 = arith.constant 0 : index
    %c0_113 = arith.constant 0 : index
    %176 = vector.load %arg3[%c2_110, %c1_111, %c0_112, %c0_113] : memref<10x3x64x64xf32, #tpu.memory_space<vmem>>, vector<1x1x64x64xf32>
    %177 = vector.shape_cast %176 : vector<1x1x64x64xf32> to vector<64x64xf32>
    %cst_114 = arith.constant dense<0.000000e+00> : vector<32x64xf32>
    %178 = tpu.matmul %175, %177, %cst_114 {dimension_numbers = #tpu.dot_dimension_numbers<[1], [0], [0], [1], [0, 0, 1, 1], [], []>} : vector<32x64xf32>, vector<64x64xf32>, vector<32x64xf32> -> vector<32x64xf32>
    %179 = arith.addf %173, %178 : vector<32x64xf32>
    %180 = vector.extract_strided_slice %166 {offsets = [0, 8, 0], sizes = [2, 16, 64], strides = [1, 1, 1]} : vector<2x24x64xf32> to vector<2x16x64xf32>
    %181 = vector.shape_cast %180 : vector<2x16x64xf32> to vector<32x64xf32>
    %c2_115 = arith.constant 2 : index
    %c2_116 = arith.constant 2 : index
    %c0_117 = arith.constant 0 : index
    %c0_118 = arith.constant 0 : index
    %182 = vector.load %arg3[%c2_115, %c2_116, %c0_117, %c0_118] : memref<10x3x64x64xf32, #tpu.memory_space<vmem>>, vector<1x1x64x64xf32>
    %183 = vector.shape_cast %182 : vector<1x1x64x64xf32> to vector<64x64xf32>
    %cst_119 = arith.constant dense<0.000000e+00> : vector<32x64xf32>
    %184 = tpu.matmul %181, %183, %cst_119 {dimension_numbers = #tpu.dot_dimension_numbers<[1], [0], [0], [1], [0, 0, 1, 1], [], []>} : vector<32x64xf32>, vector<64x64xf32>, vector<32x64xf32> -> vector<32x64xf32>
    %185 = arith.addf %179, %184 : vector<32x64xf32>
    %186 = vector.shape_cast %185 : vector<32x64xf32> to vector<2x16x64xf32>
    %c2_120 = arith.constant 2 : index
    %c0_121 = arith.constant 0 : index
    %c0_122 = arith.constant 0 : index
    %187 = vector.load %arg6[%c2_120, %c0_121, %c0_122] : memref<10x1x64xf32, #tpu.memory_space<vmem>>, vector<1x1x64xf32>
    %188 = vector.shape_cast %187 : vector<1x1x64xf32> to vector<1x64xf32>
    %cst_123 = arith.constant 5.000000e-01 : f32
    %189 = vector.broadcast %cst_123 : f32 to vector<2x16x64xf32>
    %190 = arith.mulf %189, %186 : vector<2x16x64xf32>
    %cst_124 = arith.constant 0.707106769 : f32
    %191 = vector.broadcast %cst_124 : f32 to vector<2x16x64xf32>
    %192 = arith.mulf %186, %191 : vector<2x16x64xf32>
    %193 = math.erf %192 : vector<2x16x64xf32>
    %cst_125 = arith.constant 1.000000e+00 : f32
    %194 = vector.broadcast %cst_125 : f32 to vector<2x16x64xf32>
    %195 = arith.addf %194, %193 : vector<2x16x64xf32>
    %196 = arith.mulf %190, %195 : vector<2x16x64xf32>
    %cst_126 = arith.constant 0.000000e+00 : f32
    %197 = vector.broadcast %cst_126 : f32 to vector<2x4x64xf32>
    %198 = tpu.concatenate %197, %196, %197 in 1 : vector<2x4x64xf32>, vector<2x16x64xf32>, vector<2x4x64xf32> -> vector<2x24x64xf32>
    %199 = vector.extract_strided_slice %198 {offsets = [0, 0, 0], sizes = [2, 16, 64], strides = [1, 1, 1]} : vector<2x24x64xf32> to vector<2x16x64xf32>
    %200 = vector.shape_cast %199 : vector<2x16x64xf32> to vector<32x64xf32>
    %c2_127 = arith.constant 2 : index
    %c0_128 = arith.constant 0 : index
    %c0_129 = arith.constant 0 : index
    %c0_130 = arith.constant 0 : index
    %201 = vector.load %arg5[%c2_127, %c0_128, %c0_129, %c0_130] : memref<10x3x64x64xf32, #tpu.memory_space<vmem>>, vector<1x1x64x64xf32>
    %202 = vector.shape_cast %201 : vector<1x1x64x64xf32> to vector<64x64xf32>
    %cst_131 = arith.constant dense<0.000000e+00> : vector<32x64xf32>
    %203 = tpu.matmul %200, %202, %cst_131 {dimension_numbers = #tpu.dot_dimension_numbers<[1], [0], [0], [1], [0, 0, 1, 1], [], []>} : vector<32x64xf32>, vector<64x64xf32>, vector<32x64xf32> -> vector<32x64xf32>
    %204 = vector.broadcast %188 : vector<1x64xf32> to vector<32x64xf32>
    %205 = arith.addf %204, %203 : vector<32x64xf32>
    %206 = vector.extract_strided_slice %198 {offsets = [0, 4, 0], sizes = [2, 16, 64], strides = [1, 1, 1]} : vector<2x24x64xf32> to vector<2x16x64xf32>
    %207 = vector.shape_cast %206 : vector<2x16x64xf32> to vector<32x64xf32>
    %c2_132 = arith.constant 2 : index
    %c1_133 = arith.constant 1 : index
    %c0_134 = arith.constant 0 : index
    %c0_135 = arith.constant 0 : index
    %208 = vector.load %arg5[%c2_132, %c1_133, %c0_134, %c0_135] : memref<10x3x64x64xf32, #tpu.memory_space<vmem>>, vector<1x1x64x64xf32>
    %209 = vector.shape_cast %208 : vector<1x1x64x64xf32> to vector<64x64xf32>
    %cst_136 = arith.constant dense<0.000000e+00> : vector<32x64xf32>
    %210 = tpu.matmul %207, %209, %cst_136 {dimension_numbers = #tpu.dot_dimension_numbers<[1], [0], [0], [1], [0, 0, 1, 1], [], []>} : vector<32x64xf32>, vector<64x64xf32>, vector<32x64xf32> -> vector<32x64xf32>
    %211 = arith.addf %205, %210 : vector<32x64xf32>
    %212 = vector.extract_strided_slice %198 {offsets = [0, 8, 0], sizes = [2, 16, 64], strides = [1, 1, 1]} : vector<2x24x64xf32> to vector<2x16x64xf32>
    %213 = vector.shape_cast %212 : vector<2x16x64xf32> to vector<32x64xf32>
    %c2_137 = arith.constant 2 : index
    %c2_138 = arith.constant 2 : index
    %c0_139 = arith.constant 0 : index
    %c0_140 = arith.constant 0 : index
    %214 = vector.load %arg5[%c2_137, %c2_138, %c0_139, %c0_140] : memref<10x3x64x64xf32, #tpu.memory_space<vmem>>, vector<1x1x64x64xf32>
    %215 = vector.shape_cast %214 : vector<1x1x64x64xf32> to vector<64x64xf32>
    %cst_141 = arith.constant dense<0.000000e+00> : vector<32x64xf32>
    %216 = tpu.matmul %213, %215, %cst_141 {dimension_numbers = #tpu.dot_dimension_numbers<[1], [0], [0], [1], [0, 0, 1, 1], [], []>} : vector<32x64xf32>, vector<64x64xf32>, vector<32x64xf32> -> vector<32x64xf32>
    %217 = arith.addf %211, %216 : vector<32x64xf32>
    %218 = vector.shape_cast %217 : vector<32x64xf32> to vector<2x16x64xf32>
    %219 = arith.addf %218, %154 : vector<2x16x64xf32>
    %c3 = arith.constant 3 : index
    %c0_142 = arith.constant 0 : index
    %c0_143 = arith.constant 0 : index
    %220 = vector.load %arg4[%c3, %c0_142, %c0_143] : memref<10x1x64xf32, #tpu.memory_space<vmem>>, vector<1x1x64xf32>
    %221 = vector.shape_cast %220 : vector<1x1x64xf32> to vector<1x64xf32>
    %cst_144 = arith.constant 5.000000e-01 : f32
    %222 = vector.broadcast %cst_144 : f32 to vector<2x16x64xf32>
    %223 = arith.mulf %222, %219 : vector<2x16x64xf32>
    %cst_145 = arith.constant 0.707106769 : f32
    %224 = vector.broadcast %cst_145 : f32 to vector<2x16x64xf32>
    %225 = arith.mulf %219, %224 : vector<2x16x64xf32>
    %226 = math.erf %225 : vector<2x16x64xf32>
    %cst_146 = arith.constant 1.000000e+00 : f32
    %227 = vector.broadcast %cst_146 : f32 to vector<2x16x64xf32>
    %228 = arith.addf %227, %226 : vector<2x16x64xf32>
    %229 = arith.mulf %223, %228 : vector<2x16x64xf32>
    %cst_147 = arith.constant 0.000000e+00 : f32
    %230 = vector.broadcast %cst_147 : f32 to vector<2x8x64xf32>
    %231 = tpu.concatenate %230, %229, %230 in 1 : vector<2x8x64xf32>, vector<2x16x64xf32>, vector<2x8x64xf32> -> vector<2x32x64xf32>
    %232 = vector.extract_strided_slice %231 {offsets = [0, 0, 0], sizes = [2, 16, 64], strides = [1, 1, 1]} : vector<2x32x64xf32> to vector<2x16x64xf32>
    %233 = vector.shape_cast %232 : vector<2x16x64xf32> to vector<32x64xf32>
    %c3_148 = arith.constant 3 : index
    %c0_149 = arith.constant 0 : index
    %c0_150 = arith.constant 0 : index
    %c0_151 = arith.constant 0 : index
    %234 = vector.load %arg3[%c3_148, %c0_149, %c0_150, %c0_151] : memref<10x3x64x64xf32, #tpu.memory_space<vmem>>, vector<1x1x64x64xf32>
    %235 = vector.shape_cast %234 : vector<1x1x64x64xf32> to vector<64x64xf32>
    %cst_152 = arith.constant dense<0.000000e+00> : vector<32x64xf32>
    %236 = tpu.matmul %233, %235, %cst_152 {dimension_numbers = #tpu.dot_dimension_numbers<[1], [0], [0], [1], [0, 0, 1, 1], [], []>} : vector<32x64xf32>, vector<64x64xf32>, vector<32x64xf32> -> vector<32x64xf32>
    %237 = vector.broadcast %221 : vector<1x64xf32> to vector<32x64xf32>
    %238 = arith.addf %237, %236 : vector<32x64xf32>
    %239 = vector.extract_strided_slice %231 {offsets = [0, 8, 0], sizes = [2, 16, 64], strides = [1, 1, 1]} : vector<2x32x64xf32> to vector<2x16x64xf32>
    %240 = vector.shape_cast %239 : vector<2x16x64xf32> to vector<32x64xf32>
    %c3_153 = arith.constant 3 : index
    %c1_154 = arith.constant 1 : index
    %c0_155 = arith.constant 0 : index
    %c0_156 = arith.constant 0 : index
    %241 = vector.load %arg3[%c3_153, %c1_154, %c0_155, %c0_156] : memref<10x3x64x64xf32, #tpu.memory_space<vmem>>, vector<1x1x64x64xf32>
    %242 = vector.shape_cast %241 : vector<1x1x64x64xf32> to vector<64x64xf32>
    %cst_157 = arith.constant dense<0.000000e+00> : vector<32x64xf32>
    %243 = tpu.matmul %240, %242, %cst_157 {dimension_numbers = #tpu.dot_dimension_numbers<[1], [0], [0], [1], [0, 0, 1, 1], [], []>} : vector<32x64xf32>, vector<64x64xf32>, vector<32x64xf32> -> vector<32x64xf32>
    %244 = arith.addf %238, %243 : vector<32x64xf32>
    %245 = vector.extract_strided_slice %231 {offsets = [0, 16, 0], sizes = [2, 16, 64], strides = [1, 1, 1]} : vector<2x32x64xf32> to vector<2x16x64xf32>
    %246 = vector.shape_cast %245 : vector<2x16x64xf32> to vector<32x64xf32>
    %c3_158 = arith.constant 3 : index
    %c2_159 = arith.constant 2 : index
    %c0_160 = arith.constant 0 : index
    %c0_161 = arith.constant 0 : index
    %247 = vector.load %arg3[%c3_158, %c2_159, %c0_160, %c0_161] : memref<10x3x64x64xf32, #tpu.memory_space<vmem>>, vector<1x1x64x64xf32>
    %248 = vector.shape_cast %247 : vector<1x1x64x64xf32> to vector<64x64xf32>
    %cst_162 = arith.constant dense<0.000000e+00> : vector<32x64xf32>
    %249 = tpu.matmul %246, %248, %cst_162 {dimension_numbers = #tpu.dot_dimension_numbers<[1], [0], [0], [1], [0, 0, 1, 1], [], []>} : vector<32x64xf32>, vector<64x64xf32>, vector<32x64xf32> -> vector<32x64xf32>
    %250 = arith.addf %244, %249 : vector<32x64xf32>
    %251 = vector.shape_cast %250 : vector<32x64xf32> to vector<2x16x64xf32>
    %c3_163 = arith.constant 3 : index
    %c0_164 = arith.constant 0 : index
    %c0_165 = arith.constant 0 : index
    %252 = vector.load %arg6[%c3_163, %c0_164, %c0_165] : memref<10x1x64xf32, #tpu.memory_space<vmem>>, vector<1x1x64xf32>
    %253 = vector.shape_cast %252 : vector<1x1x64xf32> to vector<1x64xf32>
    %cst_166 = arith.constant 5.000000e-01 : f32
    %254 = vector.broadcast %cst_166 : f32 to vector<2x16x64xf32>
    %255 = arith.mulf %254, %251 : vector<2x16x64xf32>
    %cst_167 = arith.constant 0.707106769 : f32
    %256 = vector.broadcast %cst_167 : f32 to vector<2x16x64xf32>
    %257 = arith.mulf %251, %256 : vector<2x16x64xf32>
    %258 = math.erf %257 : vector<2x16x64xf32>
    %cst_168 = arith.constant 1.000000e+00 : f32
    %259 = vector.broadcast %cst_168 : f32 to vector<2x16x64xf32>
    %260 = arith.addf %259, %258 : vector<2x16x64xf32>
    %261 = arith.mulf %255, %260 : vector<2x16x64xf32>
    %cst_169 = arith.constant 0.000000e+00 : f32
    %262 = vector.broadcast %cst_169 : f32 to vector<2x8x64xf32>
    %263 = tpu.concatenate %262, %261, %262 in 1 : vector<2x8x64xf32>, vector<2x16x64xf32>, vector<2x8x64xf32> -> vector<2x32x64xf32>
    %264 = vector.extract_strided_slice %263 {offsets = [0, 0, 0], sizes = [2, 16, 64], strides = [1, 1, 1]} : vector<2x32x64xf32> to vector<2x16x64xf32>
    %265 = vector.shape_cast %264 : vector<2x16x64xf32> to vector<32x64xf32>
    %c3_170 = arith.constant 3 : index
    %c0_171 = arith.constant 0 : index
    %c0_172 = arith.constant 0 : index
    %c0_173 = arith.constant 0 : index
    %266 = vector.load %arg5[%c3_170, %c0_171, %c0_172, %c0_173] : memref<10x3x64x64xf32, #tpu.memory_space<vmem>>, vector<1x1x64x64xf32>
    %267 = vector.shape_cast %266 : vector<1x1x64x64xf32> to vector<64x64xf32>
    %cst_174 = arith.constant dense<0.000000e+00> : vector<32x64xf32>
    %268 = tpu.matmul %265, %267, %cst_174 {dimension_numbers = #tpu.dot_dimension_numbers<[1], [0], [0], [1], [0, 0, 1, 1], [], []>} : vector<32x64xf32>, vector<64x64xf32>, vector<32x64xf32> -> vector<32x64xf32>
    %269 = vector.broadcast %253 : vector<1x64xf32> to vector<32x64xf32>
    %270 = arith.addf %269, %268 : vector<32x64xf32>
    %271 = vector.extract_strided_slice %263 {offsets = [0, 8, 0], sizes = [2, 16, 64], strides = [1, 1, 1]} : vector<2x32x64xf32> to vector<2x16x64xf32>
    %272 = vector.shape_cast %271 : vector<2x16x64xf32> to vector<32x64xf32>
    %c3_175 = arith.constant 3 : index
    %c1_176 = arith.constant 1 : index
    %c0_177 = arith.constant 0 : index
    %c0_178 = arith.constant 0 : index
    %273 = vector.load %arg5[%c3_175, %c1_176, %c0_177, %c0_178] : memref<10x3x64x64xf32, #tpu.memory_space<vmem>>, vector<1x1x64x64xf32>
    %274 = vector.shape_cast %273 : vector<1x1x64x64xf32> to vector<64x64xf32>
    %cst_179 = arith.constant dense<0.000000e+00> : vector<32x64xf32>
    %275 = tpu.matmul %272, %274, %cst_179 {dimension_numbers = #tpu.dot_dimension_numbers<[1], [0], [0], [1], [0, 0, 1, 1], [], []>} : vector<32x64xf32>, vector<64x64xf32>, vector<32x64xf32> -> vector<32x64xf32>
    %276 = arith.addf %270, %275 : vector<32x64xf32>
    %277 = vector.extract_strided_slice %263 {offsets = [0, 16, 0], sizes = [2, 16, 64], strides = [1, 1, 1]} : vector<2x32x64xf32> to vector<2x16x64xf32>
    %278 = vector.shape_cast %277 : vector<2x16x64xf32> to vector<32x64xf32>
    %c3_180 = arith.constant 3 : index
    %c2_181 = arith.constant 2 : index
    %c0_182 = arith.constant 0 : index
    %c0_183 = arith.constant 0 : index
    %279 = vector.load %arg5[%c3_180, %c2_181, %c0_182, %c0_183] : memref<10x3x64x64xf32, #tpu.memory_space<vmem>>, vector<1x1x64x64xf32>
    %280 = vector.shape_cast %279 : vector<1x1x64x64xf32> to vector<64x64xf32>
    %cst_184 = arith.constant dense<0.000000e+00> : vector<32x64xf32>
    %281 = tpu.matmul %278, %280, %cst_184 {dimension_numbers = #tpu.dot_dimension_numbers<[1], [0], [0], [1], [0, 0, 1, 1], [], []>} : vector<32x64xf32>, vector<64x64xf32>, vector<32x64xf32> -> vector<32x64xf32>
    %282 = arith.addf %276, %281 : vector<32x64xf32>
    %283 = vector.shape_cast %282 : vector<32x64xf32> to vector<2x16x64xf32>
    %284 = arith.addf %283, %219 : vector<2x16x64xf32>
    %c4 = arith.constant 4 : index
    %c0_185 = arith.constant 0 : index
    %c0_186 = arith.constant 0 : index
    %285 = vector.load %arg4[%c4, %c0_185, %c0_186] : memref<10x1x64xf32, #tpu.memory_space<vmem>>, vector<1x1x64xf32>
    %286 = vector.shape_cast %285 : vector<1x1x64xf32> to vector<1x64xf32>
    %cst_187 = arith.constant 5.000000e-01 : f32
    %287 = vector.broadcast %cst_187 : f32 to vector<2x16x64xf32>
    %288 = arith.mulf %287, %284 : vector<2x16x64xf32>
    %cst_188 = arith.constant 0.707106769 : f32
    %289 = vector.broadcast %cst_188 : f32 to vector<2x16x64xf32>
    %290 = arith.mulf %284, %289 : vector<2x16x64xf32>
    %291 = math.erf %290 : vector<2x16x64xf32>
    %cst_189 = arith.constant 1.000000e+00 : f32
    %292 = vector.broadcast %cst_189 : f32 to vector<2x16x64xf32>
    %293 = arith.addf %292, %291 : vector<2x16x64xf32>
    %294 = arith.mulf %288, %293 : vector<2x16x64xf32>
    %295 = vector.shape_cast %294 : vector<2x16x64xf32> to vector<32x64xf32>
    %c4_190 = arith.constant 4 : index
    %c1_191 = arith.constant 1 : index
    %c0_192 = arith.constant 0 : index
    %c0_193 = arith.constant 0 : index
    %296 = vector.load %arg3[%c4_190, %c1_191, %c0_192, %c0_193] : memref<10x3x64x64xf32, #tpu.memory_space<vmem>>, vector<1x1x64x64xf32>
    %297 = vector.shape_cast %296 : vector<1x1x64x64xf32> to vector<64x64xf32>
    %cst_194 = arith.constant dense<0.000000e+00> : vector<32x64xf32>
    %298 = tpu.matmul %295, %297, %cst_194 {dimension_numbers = #tpu.dot_dimension_numbers<[1], [0], [0], [1], [0, 0, 1, 1], [], []>} : vector<32x64xf32>, vector<64x64xf32>, vector<32x64xf32> -> vector<32x64xf32>
    %299 = vector.broadcast %286 : vector<1x64xf32> to vector<32x64xf32>
    %300 = arith.addf %298, %299 : vector<32x64xf32>
    %301 = vector.shape_cast %300 : vector<32x64xf32> to vector<2x16x64xf32>
    %c4_195 = arith.constant 4 : index
    %c0_196 = arith.constant 0 : index
    %c0_197 = arith.constant 0 : index
    %302 = vector.load %arg6[%c4_195, %c0_196, %c0_197] : memref<10x1x64xf32, #tpu.memory_space<vmem>>, vector<1x1x64xf32>
    %303 = vector.shape_cast %302 : vector<1x1x64xf32> to vector<1x64xf32>
    %cst_198 = arith.constant 5.000000e-01 : f32
    %304 = vector.broadcast %cst_198 : f32 to vector<2x16x64xf32>
    %305 = arith.mulf %304, %301 : vector<2x16x64xf32>
    %cst_199 = arith.constant 0.707106769 : f32
    %306 = vector.broadcast %cst_199 : f32 to vector<2x16x64xf32>
    %307 = arith.mulf %301, %306 : vector<2x16x64xf32>
    %308 = math.erf %307 : vector<2x16x64xf32>
    %cst_200 = arith.constant 1.000000e+00 : f32
    %309 = vector.broadcast %cst_200 : f32 to vector<2x16x64xf32>
    %310 = arith.addf %309, %308 : vector<2x16x64xf32>
    %311 = arith.mulf %305, %310 : vector<2x16x64xf32>
    %312 = vector.shape_cast %311 : vector<2x16x64xf32> to vector<32x64xf32>
    %c4_201 = arith.constant 4 : index
    %c1_202 = arith.constant 1 : index
    %c0_203 = arith.constant 0 : index
    %c0_204 = arith.constant 0 : index
    %313 = vector.load %arg5[%c4_201, %c1_202, %c0_203, %c0_204] : memref<10x3x64x64xf32, #tpu.memory_space<vmem>>, vector<1x1x64x64xf32>
    %314 = vector.shape_cast %313 : vector<1x1x64x64xf32> to vector<64x64xf32>
    %cst_205 = arith.constant dense<0.000000e+00> : vector<32x64xf32>
    %315 = tpu.matmul %312, %314, %cst_205 {dimension_numbers = #tpu.dot_dimension_numbers<[1], [0], [0], [1], [0, 0, 1, 1], [], []>} : vector<32x64xf32>, vector<64x64xf32>, vector<32x64xf32> -> vector<32x64xf32>
    %316 = vector.broadcast %303 : vector<1x64xf32> to vector<32x64xf32>
    %317 = arith.addf %315, %316 : vector<32x64xf32>
    %318 = vector.shape_cast %317 : vector<32x64xf32> to vector<2x16x64xf32>
    %319 = arith.addf %318, %284 : vector<2x16x64xf32>
    %c5 = arith.constant 5 : index
    %c0_206 = arith.constant 0 : index
    %c0_207 = arith.constant 0 : index
    %320 = vector.load %arg4[%c5, %c0_206, %c0_207] : memref<10x1x64xf32, #tpu.memory_space<vmem>>, vector<1x1x64xf32>
    %321 = vector.shape_cast %320 : vector<1x1x64xf32> to vector<1x64xf32>
    %cst_208 = arith.constant 5.000000e-01 : f32
    %322 = vector.broadcast %cst_208 : f32 to vector<2x16x64xf32>
    %323 = arith.mulf %322, %319 : vector<2x16x64xf32>
    %cst_209 = arith.constant 0.707106769 : f32
    %324 = vector.broadcast %cst_209 : f32 to vector<2x16x64xf32>
    %325 = arith.mulf %319, %324 : vector<2x16x64xf32>
    %326 = math.erf %325 : vector<2x16x64xf32>
    %cst_210 = arith.constant 1.000000e+00 : f32
    %327 = vector.broadcast %cst_210 : f32 to vector<2x16x64xf32>
    %328 = arith.addf %327, %326 : vector<2x16x64xf32>
    %329 = arith.mulf %323, %328 : vector<2x16x64xf32>
    %330 = vector.shape_cast %329 : vector<2x16x64xf32> to vector<32x64xf32>
    %c5_211 = arith.constant 5 : index
    %c1_212 = arith.constant 1 : index
    %c0_213 = arith.constant 0 : index
    %c0_214 = arith.constant 0 : index
    %331 = vector.load %arg3[%c5_211, %c1_212, %c0_213, %c0_214] : memref<10x3x64x64xf32, #tpu.memory_space<vmem>>, vector<1x1x64x64xf32>
    %332 = vector.shape_cast %331 : vector<1x1x64x64xf32> to vector<64x64xf32>
    %cst_215 = arith.constant dense<0.000000e+00> : vector<32x64xf32>
    %333 = tpu.matmul %330, %332, %cst_215 {dimension_numbers = #tpu.dot_dimension_numbers<[1], [0], [0], [1], [0, 0, 1, 1], [], []>} : vector<32x64xf32>, vector<64x64xf32>, vector<32x64xf32> -> vector<32x64xf32>
    %334 = vector.broadcast %321 : vector<1x64xf32> to vector<32x64xf32>
    %335 = arith.addf %333, %334 : vector<32x64xf32>
    %336 = vector.shape_cast %335 : vector<32x64xf32> to vector<2x16x64xf32>
    %c5_216 = arith.constant 5 : index
    %c0_217 = arith.constant 0 : index
    %c0_218 = arith.constant 0 : index
    %337 = vector.load %arg6[%c5_216, %c0_217, %c0_218] : memref<10x1x64xf32, #tpu.memory_space<vmem>>, vector<1x1x64xf32>
    %338 = vector.shape_cast %337 : vector<1x1x64xf32> to vector<1x64xf32>
    %cst_219 = arith.constant 5.000000e-01 : f32
    %339 = vector.broadcast %cst_219 : f32 to vector<2x16x64xf32>
    %340 = arith.mulf %339, %336 : vector<2x16x64xf32>
    %cst_220 = arith.constant 0.707106769 : f32
    %341 = vector.broadcast %cst_220 : f32 to vector<2x16x64xf32>
    %342 = arith.mulf %336, %341 : vector<2x16x64xf32>
    %343 = math.erf %342 : vector<2x16x64xf32>
    %cst_221 = arith.constant 1.000000e+00 : f32
    %344 = vector.broadcast %cst_221 : f32 to vector<2x16x64xf32>
    %345 = arith.addf %344, %343 : vector<2x16x64xf32>
    %346 = arith.mulf %340, %345 : vector<2x16x64xf32>
    %347 = vector.shape_cast %346 : vector<2x16x64xf32> to vector<32x64xf32>
    %c5_222 = arith.constant 5 : index
    %c1_223 = arith.constant 1 : index
    %c0_224 = arith.constant 0 : index
    %c0_225 = arith.constant 0 : index
    %348 = vector.load %arg5[%c5_222, %c1_223, %c0_224, %c0_225] : memref<10x3x64x64xf32, #tpu.memory_space<vmem>>, vector<1x1x64x64xf32>
    %349 = vector.shape_cast %348 : vector<1x1x64x64xf32> to vector<64x64xf32>
    %cst_226 = arith.constant dense<0.000000e+00> : vector<32x64xf32>
    %350 = tpu.matmul %347, %349, %cst_226 {dimension_numbers = #tpu.dot_dimension_numbers<[1], [0], [0], [1], [0, 0, 1, 1], [], []>} : vector<32x64xf32>, vector<64x64xf32>, vector<32x64xf32> -> vector<32x64xf32>
    %351 = vector.broadcast %338 : vector<1x64xf32> to vector<32x64xf32>
    %352 = arith.addf %350, %351 : vector<32x64xf32>
    %353 = vector.shape_cast %352 : vector<32x64xf32> to vector<2x16x64xf32>
    %354 = arith.addf %353, %319 : vector<2x16x64xf32>
    %c6 = arith.constant 6 : index
    %c0_227 = arith.constant 0 : index
    %c0_228 = arith.constant 0 : index
    %355 = vector.load %arg4[%c6, %c0_227, %c0_228] : memref<10x1x64xf32, #tpu.memory_space<vmem>>, vector<1x1x64xf32>
    %356 = vector.shape_cast %355 : vector<1x1x64xf32> to vector<1x64xf32>
    %cst_229 = arith.constant 5.000000e-01 : f32
    %357 = vector.broadcast %cst_229 : f32 to vector<2x16x64xf32>
    %358 = arith.mulf %357, %354 : vector<2x16x64xf32>
    %cst_230 = arith.constant 0.707106769 : f32
    %359 = vector.broadcast %cst_230 : f32 to vector<2x16x64xf32>
    %360 = arith.mulf %354, %359 : vector<2x16x64xf32>
    %361 = math.erf %360 : vector<2x16x64xf32>
    %cst_231 = arith.constant 1.000000e+00 : f32
    %362 = vector.broadcast %cst_231 : f32 to vector<2x16x64xf32>
    %363 = arith.addf %362, %361 : vector<2x16x64xf32>
    %364 = arith.mulf %358, %363 : vector<2x16x64xf32>
    %365 = vector.shape_cast %364 : vector<2x16x64xf32> to vector<32x64xf32>
    %c6_232 = arith.constant 6 : index
    %c1_233 = arith.constant 1 : index
    %c0_234 = arith.constant 0 : index
    %c0_235 = arith.constant 0 : index
    %366 = vector.load %arg3[%c6_232, %c1_233, %c0_234, %c0_235] : memref<10x3x64x64xf32, #tpu.memory_space<vmem>>, vector<1x1x64x64xf32>
    %367 = vector.shape_cast %366 : vector<1x1x64x64xf32> to vector<64x64xf32>
    %cst_236 = arith.constant dense<0.000000e+00> : vector<32x64xf32>
    %368 = tpu.matmul %365, %367, %cst_236 {dimension_numbers = #tpu.dot_dimension_numbers<[1], [0], [0], [1], [0, 0, 1, 1], [], []>} : vector<32x64xf32>, vector<64x64xf32>, vector<32x64xf32> -> vector<32x64xf32>
    %369 = vector.broadcast %356 : vector<1x64xf32> to vector<32x64xf32>
    %370 = arith.addf %368, %369 : vector<32x64xf32>
    %371 = vector.shape_cast %370 : vector<32x64xf32> to vector<2x16x64xf32>
    %c6_237 = arith.constant 6 : index
    %c0_238 = arith.constant 0 : index
    %c0_239 = arith.constant 0 : index
    %372 = vector.load %arg6[%c6_237, %c0_238, %c0_239] : memref<10x1x64xf32, #tpu.memory_space<vmem>>, vector<1x1x64xf32>
    %373 = vector.shape_cast %372 : vector<1x1x64xf32> to vector<1x64xf32>
    %cst_240 = arith.constant 5.000000e-01 : f32
    %374 = vector.broadcast %cst_240 : f32 to vector<2x16x64xf32>
    %375 = arith.mulf %374, %371 : vector<2x16x64xf32>
    %cst_241 = arith.constant 0.707106769 : f32
    %376 = vector.broadcast %cst_241 : f32 to vector<2x16x64xf32>
    %377 = arith.mulf %371, %376 : vector<2x16x64xf32>
    %378 = math.erf %377 : vector<2x16x64xf32>
    %cst_242 = arith.constant 1.000000e+00 : f32
    %379 = vector.broadcast %cst_242 : f32 to vector<2x16x64xf32>
    %380 = arith.addf %379, %378 : vector<2x16x64xf32>
    %381 = arith.mulf %375, %380 : vector<2x16x64xf32>
    %382 = vector.shape_cast %381 : vector<2x16x64xf32> to vector<32x64xf32>
    %c6_243 = arith.constant 6 : index
    %c1_244 = arith.constant 1 : index
    %c0_245 = arith.constant 0 : index
    %c0_246 = arith.constant 0 : index
    %383 = vector.load %arg5[%c6_243, %c1_244, %c0_245, %c0_246] : memref<10x3x64x64xf32, #tpu.memory_space<vmem>>, vector<1x1x64x64xf32>
    %384 = vector.shape_cast %383 : vector<1x1x64x64xf32> to vector<64x64xf32>
    %cst_247 = arith.constant dense<0.000000e+00> : vector<32x64xf32>
    %385 = tpu.matmul %382, %384, %cst_247 {dimension_numbers = #tpu.dot_dimension_numbers<[1], [0], [0], [1], [0, 0, 1, 1], [], []>} : vector<32x64xf32>, vector<64x64xf32>, vector<32x64xf32> -> vector<32x64xf32>
    %386 = vector.broadcast %373 : vector<1x64xf32> to vector<32x64xf32>
    %387 = arith.addf %385, %386 : vector<32x64xf32>
    %388 = vector.shape_cast %387 : vector<32x64xf32> to vector<2x16x64xf32>
    %389 = arith.addf %388, %354 : vector<2x16x64xf32>
    %c7 = arith.constant 7 : index
    %c0_248 = arith.constant 0 : index
    %c0_249 = arith.constant 0 : index
    %390 = vector.load %arg4[%c7, %c0_248, %c0_249] : memref<10x1x64xf32, #tpu.memory_space<vmem>>, vector<1x1x64xf32>
    %391 = vector.shape_cast %390 : vector<1x1x64xf32> to vector<1x64xf32>
    %cst_250 = arith.constant 5.000000e-01 : f32
    %392 = vector.broadcast %cst_250 : f32 to vector<2x16x64xf32>
    %393 = arith.mulf %392, %389 : vector<2x16x64xf32>
    %cst_251 = arith.constant 0.707106769 : f32
    %394 = vector.broadcast %cst_251 : f32 to vector<2x16x64xf32>
    %395 = arith.mulf %389, %394 : vector<2x16x64xf32>
    %396 = math.erf %395 : vector<2x16x64xf32>
    %cst_252 = arith.constant 1.000000e+00 : f32
    %397 = vector.broadcast %cst_252 : f32 to vector<2x16x64xf32>
    %398 = arith.addf %397, %396 : vector<2x16x64xf32>
    %399 = arith.mulf %393, %398 : vector<2x16x64xf32>
    %400 = vector.shape_cast %399 : vector<2x16x64xf32> to vector<32x64xf32>
    %c7_253 = arith.constant 7 : index
    %c1_254 = arith.constant 1 : index
    %c0_255 = arith.constant 0 : index
    %c0_256 = arith.constant 0 : index
    %401 = vector.load %arg3[%c7_253, %c1_254, %c0_255, %c0_256] : memref<10x3x64x64xf32, #tpu.memory_space<vmem>>, vector<1x1x64x64xf32>
    %402 = vector.shape_cast %401 : vector<1x1x64x64xf32> to vector<64x64xf32>
    %cst_257 = arith.constant dense<0.000000e+00> : vector<32x64xf32>
    %403 = tpu.matmul %400, %402, %cst_257 {dimension_numbers = #tpu.dot_dimension_numbers<[1], [0], [0], [1], [0, 0, 1, 1], [], []>} : vector<32x64xf32>, vector<64x64xf32>, vector<32x64xf32> -> vector<32x64xf32>
    %404 = vector.broadcast %391 : vector<1x64xf32> to vector<32x64xf32>
    %405 = arith.addf %403, %404 : vector<32x64xf32>
    %406 = vector.shape_cast %405 : vector<32x64xf32> to vector<2x16x64xf32>
    %c7_258 = arith.constant 7 : index
    %c0_259 = arith.constant 0 : index
    %c0_260 = arith.constant 0 : index
    %407 = vector.load %arg6[%c7_258, %c0_259, %c0_260] : memref<10x1x64xf32, #tpu.memory_space<vmem>>, vector<1x1x64xf32>
    %408 = vector.shape_cast %407 : vector<1x1x64xf32> to vector<1x64xf32>
    %cst_261 = arith.constant 5.000000e-01 : f32
    %409 = vector.broadcast %cst_261 : f32 to vector<2x16x64xf32>
    %410 = arith.mulf %409, %406 : vector<2x16x64xf32>
    %cst_262 = arith.constant 0.707106769 : f32
    %411 = vector.broadcast %cst_262 : f32 to vector<2x16x64xf32>
    %412 = arith.mulf %406, %411 : vector<2x16x64xf32>
    %413 = math.erf %412 : vector<2x16x64xf32>
    %cst_263 = arith.constant 1.000000e+00 : f32
    %414 = vector.broadcast %cst_263 : f32 to vector<2x16x64xf32>
    %415 = arith.addf %414, %413 : vector<2x16x64xf32>
    %416 = arith.mulf %410, %415 : vector<2x16x64xf32>
    %417 = vector.shape_cast %416 : vector<2x16x64xf32> to vector<32x64xf32>
    %c7_264 = arith.constant 7 : index
    %c1_265 = arith.constant 1 : index
    %c0_266 = arith.constant 0 : index
    %c0_267 = arith.constant 0 : index
    %418 = vector.load %arg5[%c7_264, %c1_265, %c0_266, %c0_267] : memref<10x3x64x64xf32, #tpu.memory_space<vmem>>, vector<1x1x64x64xf32>
    %419 = vector.shape_cast %418 : vector<1x1x64x64xf32> to vector<64x64xf32>
    %cst_268 = arith.constant dense<0.000000e+00> : vector<32x64xf32>
    %420 = tpu.matmul %417, %419, %cst_268 {dimension_numbers = #tpu.dot_dimension_numbers<[1], [0], [0], [1], [0, 0, 1, 1], [], []>} : vector<32x64xf32>, vector<64x64xf32>, vector<32x64xf32> -> vector<32x64xf32>
    %421 = vector.broadcast %408 : vector<1x64xf32> to vector<32x64xf32>
    %422 = arith.addf %420, %421 : vector<32x64xf32>
    %423 = vector.shape_cast %422 : vector<32x64xf32> to vector<2x16x64xf32>
    %424 = arith.addf %423, %389 : vector<2x16x64xf32>
    %c8 = arith.constant 8 : index
    %c0_269 = arith.constant 0 : index
    %c0_270 = arith.constant 0 : index
    %425 = vector.load %arg4[%c8, %c0_269, %c0_270] : memref<10x1x64xf32, #tpu.memory_space<vmem>>, vector<1x1x64xf32>
    %426 = vector.shape_cast %425 : vector<1x1x64xf32> to vector<1x64xf32>
    %cst_271 = arith.constant 5.000000e-01 : f32
    %427 = vector.broadcast %cst_271 : f32 to vector<2x16x64xf32>
    %428 = arith.mulf %427, %424 : vector<2x16x64xf32>
    %cst_272 = arith.constant 0.707106769 : f32
    %429 = vector.broadcast %cst_272 : f32 to vector<2x16x64xf32>
    %430 = arith.mulf %424, %429 : vector<2x16x64xf32>
    %431 = math.erf %430 : vector<2x16x64xf32>
    %cst_273 = arith.constant 1.000000e+00 : f32
    %432 = vector.broadcast %cst_273 : f32 to vector<2x16x64xf32>
    %433 = arith.addf %432, %431 : vector<2x16x64xf32>
    %434 = arith.mulf %428, %433 : vector<2x16x64xf32>
    %435 = vector.shape_cast %434 : vector<2x16x64xf32> to vector<32x64xf32>
    %c8_274 = arith.constant 8 : index
    %c1_275 = arith.constant 1 : index
    %c0_276 = arith.constant 0 : index
    %c0_277 = arith.constant 0 : index
    %436 = vector.load %arg3[%c8_274, %c1_275, %c0_276, %c0_277] : memref<10x3x64x64xf32, #tpu.memory_space<vmem>>, vector<1x1x64x64xf32>
    %437 = vector.shape_cast %436 : vector<1x1x64x64xf32> to vector<64x64xf32>
    %cst_278 = arith.constant dense<0.000000e+00> : vector<32x64xf32>
    %438 = tpu.matmul %435, %437, %cst_278 {dimension_numbers = #tpu.dot_dimension_numbers<[1], [0], [0], [1], [0, 0, 1, 1], [], []>} : vector<32x64xf32>, vector<64x64xf32>, vector<32x64xf32> -> vector<32x64xf32>
    %439 = vector.broadcast %426 : vector<1x64xf32> to vector<32x64xf32>
    %440 = arith.addf %438, %439 : vector<32x64xf32>
    %441 = vector.shape_cast %440 : vector<32x64xf32> to vector<2x16x64xf32>
    %c8_279 = arith.constant 8 : index
    %c0_280 = arith.constant 0 : index
    %c0_281 = arith.constant 0 : index
    %442 = vector.load %arg6[%c8_279, %c0_280, %c0_281] : memref<10x1x64xf32, #tpu.memory_space<vmem>>, vector<1x1x64xf32>
    %443 = vector.shape_cast %442 : vector<1x1x64xf32> to vector<1x64xf32>
    %cst_282 = arith.constant 5.000000e-01 : f32
    %444 = vector.broadcast %cst_282 : f32 to vector<2x16x64xf32>
    %445 = arith.mulf %444, %441 : vector<2x16x64xf32>
    %cst_283 = arith.constant 0.707106769 : f32
    %446 = vector.broadcast %cst_283 : f32 to vector<2x16x64xf32>
    %447 = arith.mulf %441, %446 : vector<2x16x64xf32>
    %448 = math.erf %447 : vector<2x16x64xf32>
    %cst_284 = arith.constant 1.000000e+00 : f32
    %449 = vector.broadcast %cst_284 : f32 to vector<2x16x64xf32>
    %450 = arith.addf %449, %448 : vector<2x16x64xf32>
    %451 = arith.mulf %445, %450 : vector<2x16x64xf32>
    %452 = vector.shape_cast %451 : vector<2x16x64xf32> to vector<32x64xf32>
    %c8_285 = arith.constant 8 : index
    %c1_286 = arith.constant 1 : index
    %c0_287 = arith.constant 0 : index
    %c0_288 = arith.constant 0 : index
    %453 = vector.load %arg5[%c8_285, %c1_286, %c0_287, %c0_288] : memref<10x3x64x64xf32, #tpu.memory_space<vmem>>, vector<1x1x64x64xf32>
    %454 = vector.shape_cast %453 : vector<1x1x64x64xf32> to vector<64x64xf32>
    %cst_289 = arith.constant dense<0.000000e+00> : vector<32x64xf32>
    %455 = tpu.matmul %452, %454, %cst_289 {dimension_numbers = #tpu.dot_dimension_numbers<[1], [0], [0], [1], [0, 0, 1, 1], [], []>} : vector<32x64xf32>, vector<64x64xf32>, vector<32x64xf32> -> vector<32x64xf32>
    %456 = vector.broadcast %443 : vector<1x64xf32> to vector<32x64xf32>
    %457 = arith.addf %455, %456 : vector<32x64xf32>
    %458 = vector.shape_cast %457 : vector<32x64xf32> to vector<2x16x64xf32>
    %459 = arith.addf %458, %424 : vector<2x16x64xf32>
    %c9 = arith.constant 9 : index
    %c0_290 = arith.constant 0 : index
    %c0_291 = arith.constant 0 : index
    %460 = vector.load %arg4[%c9, %c0_290, %c0_291] : memref<10x1x64xf32, #tpu.memory_space<vmem>>, vector<1x1x64xf32>
    %461 = vector.shape_cast %460 : vector<1x1x64xf32> to vector<1x64xf32>
    %cst_292 = arith.constant 5.000000e-01 : f32
    %462 = vector.broadcast %cst_292 : f32 to vector<2x16x64xf32>
    %463 = arith.mulf %462, %459 : vector<2x16x64xf32>
    %cst_293 = arith.constant 0.707106769 : f32
    %464 = vector.broadcast %cst_293 : f32 to vector<2x16x64xf32>
    %465 = arith.mulf %459, %464 : vector<2x16x64xf32>
    %466 = math.erf %465 : vector<2x16x64xf32>
    %cst_294 = arith.constant 1.000000e+00 : f32
    %467 = vector.broadcast %cst_294 : f32 to vector<2x16x64xf32>
    %468 = arith.addf %467, %466 : vector<2x16x64xf32>
    %469 = arith.mulf %463, %468 : vector<2x16x64xf32>
    %470 = vector.shape_cast %469 : vector<2x16x64xf32> to vector<32x64xf32>
    %c9_295 = arith.constant 9 : index
    %c1_296 = arith.constant 1 : index
    %c0_297 = arith.constant 0 : index
    %c0_298 = arith.constant 0 : index
    %471 = vector.load %arg3[%c9_295, %c1_296, %c0_297, %c0_298] : memref<10x3x64x64xf32, #tpu.memory_space<vmem>>, vector<1x1x64x64xf32>
    %472 = vector.shape_cast %471 : vector<1x1x64x64xf32> to vector<64x64xf32>
    %cst_299 = arith.constant dense<0.000000e+00> : vector<32x64xf32>
    %473 = tpu.matmul %470, %472, %cst_299 {dimension_numbers = #tpu.dot_dimension_numbers<[1], [0], [0], [1], [0, 0, 1, 1], [], []>} : vector<32x64xf32>, vector<64x64xf32>, vector<32x64xf32> -> vector<32x64xf32>
    %474 = vector.broadcast %461 : vector<1x64xf32> to vector<32x64xf32>
    %475 = arith.addf %473, %474 : vector<32x64xf32>
    %476 = vector.shape_cast %475 : vector<32x64xf32> to vector<2x16x64xf32>
    %c9_300 = arith.constant 9 : index
    %c0_301 = arith.constant 0 : index
    %c0_302 = arith.constant 0 : index
    %477 = vector.load %arg6[%c9_300, %c0_301, %c0_302] : memref<10x1x64xf32, #tpu.memory_space<vmem>>, vector<1x1x64xf32>
    %478 = vector.shape_cast %477 : vector<1x1x64xf32> to vector<1x64xf32>
    %cst_303 = arith.constant 5.000000e-01 : f32
    %479 = vector.broadcast %cst_303 : f32 to vector<2x16x64xf32>
    %480 = arith.mulf %479, %476 : vector<2x16x64xf32>
    %cst_304 = arith.constant 0.707106769 : f32
    %481 = vector.broadcast %cst_304 : f32 to vector<2x16x64xf32>
    %482 = arith.mulf %476, %481 : vector<2x16x64xf32>
    %483 = math.erf %482 : vector<2x16x64xf32>
    %cst_305 = arith.constant 1.000000e+00 : f32
    %484 = vector.broadcast %cst_305 : f32 to vector<2x16x64xf32>
    %485 = arith.addf %484, %483 : vector<2x16x64xf32>
    %486 = arith.mulf %480, %485 : vector<2x16x64xf32>
    %487 = vector.shape_cast %486 : vector<2x16x64xf32> to vector<32x64xf32>
    %c9_306 = arith.constant 9 : index
    %c1_307 = arith.constant 1 : index
    %c0_308 = arith.constant 0 : index
    %c0_309 = arith.constant 0 : index
    %488 = vector.load %arg5[%c9_306, %c1_307, %c0_308, %c0_309] : memref<10x3x64x64xf32, #tpu.memory_space<vmem>>, vector<1x1x64x64xf32>
    %489 = vector.shape_cast %488 : vector<1x1x64x64xf32> to vector<64x64xf32>
    %cst_310 = arith.constant dense<0.000000e+00> : vector<32x64xf32>
    %490 = tpu.matmul %487, %489, %cst_310 {dimension_numbers = #tpu.dot_dimension_numbers<[1], [0], [0], [1], [0, 0, 1, 1], [], []>} : vector<32x64xf32>, vector<64x64xf32>, vector<32x64xf32> -> vector<32x64xf32>
    %491 = vector.broadcast %478 : vector<1x64xf32> to vector<32x64xf32>
    %492 = arith.addf %490, %491 : vector<32x64xf32>
    %493 = vector.shape_cast %492 : vector<32x64xf32> to vector<2x16x64xf32>
    %494 = arith.addf %493, %459 : vector<2x16x64xf32>
    %495 = vector.shape_cast %494 : vector<2x16x64xf32> to vector<32x64xf32>
    %c0_311 = arith.constant 0 : index
    %c0_312 = arith.constant 0 : index
    %496 = vector.load %arg7[%c0_311, %c0_312] : memref<64x320xf32, #tpu.memory_space<vmem>>, vector<64x320xf32>
    %cst_313 = arith.constant dense<0.000000e+00> : vector<32x320xf32>
    %497 = tpu.matmul %495, %496, %cst_313 {dimension_numbers = #tpu.dot_dimension_numbers<[1], [0], [0], [1], [0, 0, 1, 1], [], []>} : vector<32x64xf32>, vector<64x320xf32>, vector<32x320xf32> -> vector<32x320xf32>
    %c0_314 = arith.constant 0 : index
    %c0_315 = arith.constant 0 : index
    %498 = vector.load %arg8[%c0_314, %c0_315] : memref<1x320xf32, #tpu.memory_space<vmem>>, vector<1x320xf32>
    %499 = vector.broadcast %498 : vector<1x320xf32> to vector<32x320xf32>
    %500 = arith.addf %497, %499 : vector<32x320xf32>
    %501 = vector.shape_cast %500 : vector<32x320xf32> to vector<2x16x320xf32>
    %c0_316 = arith.constant 0 : index
    %c0_317 = arith.constant 0 : index
    %502 = vector.load %arg10[%c0_316, %c0_317] : memref<1x320xf32, #tpu.memory_space<vmem>>, vector<1x320xf32>
    %cst_318 = arith.constant 5.000000e-01 : f32
    %503 = vector.broadcast %cst_318 : f32 to vector<2x16x64xf32>
    %504 = arith.mulf %503, %494 : vector<2x16x64xf32>
    %cst_319 = arith.constant 0.707106769 : f32
    %505 = vector.broadcast %cst_319 : f32 to vector<2x16x64xf32>
    %506 = arith.mulf %494, %505 : vector<2x16x64xf32>
    %507 = math.erf %506 : vector<2x16x64xf32>
    %cst_320 = arith.constant 1.000000e+00 : f32
    %508 = vector.broadcast %cst_320 : f32 to vector<2x16x64xf32>
    %509 = arith.addf %508, %507 : vector<2x16x64xf32>
    %510 = arith.mulf %504, %509 : vector<2x16x64xf32>
    %511 = vector.shape_cast %510 : vector<2x16x64xf32> to vector<32x64xf32>
    %c1_321 = arith.constant 1 : index
    %c0_322 = arith.constant 0 : index
    %c0_323 = arith.constant 0 : index
    %512 = vector.load %arg9[%c1_321, %c0_322, %c0_323] : memref<3x64x320xf32, #tpu.memory_space<vmem>>, vector<1x64x320xf32>
    %513 = vector.shape_cast %512 : vector<1x64x320xf32> to vector<64x320xf32>
    %cst_324 = arith.constant dense<0.000000e+00> : vector<32x320xf32>
    %514 = tpu.matmul %511, %513, %cst_324 {dimension_numbers = #tpu.dot_dimension_numbers<[1], [0], [0], [1], [0, 0, 1, 1], [], []>} : vector<32x64xf32>, vector<64x320xf32>, vector<32x320xf32> -> vector<32x320xf32>
    %515 = vector.broadcast %502 : vector<1x320xf32> to vector<32x320xf32>
    %516 = arith.addf %514, %515 : vector<32x320xf32>
    %517 = vector.shape_cast %516 : vector<32x320xf32> to vector<2x16x320xf32>
    %c0_325 = arith.constant 0 : index
    %c0_326 = arith.constant 0 : index
    %518 = vector.load %arg12[%c0_325, %c0_326] : memref<1x320xf32, #tpu.memory_space<vmem>>, vector<1x320xf32>
    %cst_327 = arith.constant 5.000000e-01 : f32
    %519 = vector.broadcast %cst_327 : f32 to vector<2x16x320xf32>
    %520 = arith.mulf %519, %517 : vector<2x16x320xf32>
    %cst_328 = arith.constant 0.707106769 : f32
    %521 = vector.broadcast %cst_328 : f32 to vector<2x16x320xf32>
    %522 = arith.mulf %517, %521 : vector<2x16x320xf32>
    %523 = math.erf %522 : vector<2x16x320xf32>
    %cst_329 = arith.constant 1.000000e+00 : f32
    %524 = vector.broadcast %cst_329 : f32 to vector<2x16x320xf32>
    %525 = arith.addf %524, %523 : vector<2x16x320xf32>
    %526 = arith.mulf %520, %525 : vector<2x16x320xf32>
    %527 = vector.shape_cast %526 : vector<2x16x320xf32> to vector<32x320xf32>
    %c1_330 = arith.constant 1 : index
    %c0_331 = arith.constant 0 : index
    %c0_332 = arith.constant 0 : index
    %528 = vector.load %arg11[%c1_330, %c0_331, %c0_332] : memref<3x320x320xf32, #tpu.memory_space<vmem>>, vector<1x320x320xf32>
    %529 = vector.shape_cast %528 : vector<1x320x320xf32> to vector<320x320xf32>
    %cst_333 = arith.constant dense<0.000000e+00> : vector<32x320xf32>
    %530 = tpu.matmul %527, %529, %cst_333 {dimension_numbers = #tpu.dot_dimension_numbers<[1], [0], [0], [1], [0, 0, 1, 1], [], []>} : vector<32x320xf32>, vector<320x320xf32>, vector<32x320xf32> -> vector<32x320xf32>
    %531 = vector.broadcast %518 : vector<1x320xf32> to vector<32x320xf32>
    %532 = arith.addf %530, %531 : vector<32x320xf32>
    %533 = vector.shape_cast %532 : vector<32x320xf32> to vector<2x16x320xf32>
    %534 = arith.addf %533, %501 : vector<2x16x320xf32>
    %535 = vector.extract_strided_slice %534 {offsets = [0, 15, 0], sizes = [2, 1, 320], strides = [1, 1, 1]} : vector<2x16x320xf32> to vector<2x1x320xf32>
    %536 = vector.shape_cast %535 : vector<2x1x320xf32> to vector<2x320xf32>
    %c0_334 = arith.constant 0 : index
    %c0_335 = arith.constant 0 : index
    %537 = vector.load %arg13[%c0_334, %c0_335] : memref<320x28xf32, #tpu.memory_space<vmem>>, vector<320x28xf32>
    %cst_336 = arith.constant dense<0.000000e+00> : vector<2x28xf32>
    %538 = tpu.matmul %536, %537, %cst_336 {dimension_numbers = #tpu.dot_dimension_numbers<[1], [0], [0], [1], [0, 0, 1, 1], [], []>} : vector<2x320xf32>, vector<320x28xf32>, vector<2x28xf32> -> vector<2x28xf32>
    %c0_337 = arith.constant 0 : index
    %c0_338 = arith.constant 0 : index
    %539 = vector.load %arg14[%c0_337, %c0_338] : memref<1x28xf32, #tpu.memory_space<vmem>>, vector<1x28xf32>
    %540 = vector.broadcast %539 : vector<1x28xf32> to vector<2x28xf32>
    %541 = arith.addf %538, %540 : vector<2x28xf32>
    %c0_339 = arith.constant 0 : index
    %c0_340 = arith.constant 0 : index
    %542 = vector.load %arg15[%c0_339, %c0_340] : memref<2x28xf32, #tpu.memory_space<vmem>>, vector<2x28xf32>
    tpu.vector_store %arg15[%c0_339, %c0_340], %541 {strides = array<i32>} : memref<2x28xf32, #tpu.memory_space<vmem>>, vector<2x28xf32>,
    return
  }
}

</mosaic_0001>

<llo_original>
// kernel: tpu_custom_call.1
$region0: #{tpu_custom_call.1}
  #allocation0 [shape = 'u32[]', space=smem, size = 0x4, offset = 0x4, fixed_abs, tag = 'smem constant byte address 0x4 - core index']
  #allocation1 [shape = 'u32[144,128]{1,0:T(1,128)}', space=vmem, size = 0x12000, scoped, tag = 'internal scratch']
  %s0 = inlined_call_operand.vmem [shape: f32[2,16,11], index: 0, kind: input, shape index: {}]
  %s1 = inlined_call_operand.hbm [shape: f32[11,64], index: 1, kind: input, shape index: {}]
  %s2 = inlined_call_operand.hbm [shape: f32[1,64], index: 2, kind: input, shape index: {}]
  %s3 = inlined_call_operand.hbm [shape: f32[10,3,64,64], index: 3, kind: input, shape index: {}]
  %s4 = inlined_call_operand.hbm [shape: f32[10,1,64], index: 4, kind: input, shape index: {}]
  %s5 = inlined_call_operand.hbm [shape: f32[10,3,64,64], index: 5, kind: input, shape index: {}]
  %s6 = inlined_call_operand.hbm [shape: f32[10,1,64], index: 6, kind: input, shape index: {}]
  %s7 = inlined_call_operand.hbm [shape: f32[64,320], index: 7, kind: input, shape index: {}]
  %s8 = inlined_call_operand.hbm [shape: f32[1,320], index: 8, kind: input, shape index: {}]
  %s9 = inlined_call_operand.hbm [shape: f32[3,64,320], index: 9, kind: input, shape index: {}]
  %s10 = inlined_call_operand.hbm [shape: f32[1,320], index: 10, kind: input, shape index: {}]
  %s11 = inlined_call_operand.hbm [shape: f32[3,320,320], index: 11, kind: input, shape index: {}]
  %s12 = inlined_call_operand.hbm [shape: f32[1,320], index: 12, kind: input, shape index: {}]
  %s13 = inlined_call_operand.vmem [shape: f32[320,28], index: 13, kind: input, shape index: {}]
  %s14 = inlined_call_operand.hbm [shape: f32[1,28], index: 14, kind: input, shape index: {}]
  %s15 = inlined_call_operand.hbm [shape: f32[2,28], index: 15, kind: output, shape index: {}]
  %s16 = sld [smem:[#allocation0]]
  $region122: #{tpu_custom_call.1} parent=0
    _
  %s18 = ssub.s32 1, %s16
  %s19 = scalar_select 0, %s18, %s16
  $region1: #{tpu_custom_call.1} parent=0
    #allocation2 [shape = 'u8[8192]{0}', space=vmem, size = 0x2000, scoped, tag = 'input window, operand 1, single buffered']
    #allocation3 [shape = 's32[1]{0}', space=sflag, size = 0x4, scoped, tag = 'scoped memory for tpu_custom_call.1']
    #allocation4 [shape = 's32[1]{0}', space=sflag, size = 0x4, scoped, tag = 'scoped memory for tpu_custom_call.1']
    #allocation5 [shape = 'u8[512]{0}', space=vmem, size = 0x400, scoped, tag = 'input window, operand 2, single buffered']
    #allocation6 [shape = 's32[1]{0}', space=sflag, size = 0x4, scoped, tag = 'scoped memory for tpu_custom_call.1']
    #allocation7 [shape = 'u8[983040]{0}', space=vmem, size = 0xf0000, scoped, tag = 'input window, operand 3, single buffered']
    #allocation8 [shape = 'u8[5120]{0}', space=vmem, size = 0x1400, scoped, tag = 'input window, operand 4, single buffered']
    #allocation9 [shape = 's32[1]{0}', space=sflag, size = 0x4, scoped, tag = 'scoped memory for tpu_custom_call.1']
    #allocation10 [shape = 'u8[983040]{0}', space=vmem, size = 0xf0000, scoped, tag = 'input window, operand 5, single buffered']
    #allocation11 [shape = 'u8[5120]{0}', space=vmem, size = 0x1400, scoped, tag = 'input window, operand 6, single buffered']
    #allocation12 [shape = 's32[1]{0}', space=sflag, size = 0x4, scoped, tag = 'scoped memory for tpu_custom_call.1']
    #allocation13 [shape = 'u8[98304]{0}', space=vmem, size = 0x18000, scoped, tag = 'input window, operand 7, single buffered']
    #allocation14 [shape = 'u8[1536]{0}', space=vmem, size = 0x800, scoped, tag = 'input window, operand 8, single buffered']
    #allocation15 [shape = 's32[1]{0}', space=sflag, size = 0x4, scoped, tag = 'scoped memory for tpu_custom_call.1']
    #allocation16 [shape = 'u8[294912]{0}', space=vmem, size = 0x48000, scoped, tag = 'input window, operand 9, single buffered']
    #allocation17 [shape = 'u8[1536]{0}', space=vmem, size = 0x800, scoped, tag = 'input window, operand 10, single buffered']
    #allocation18 [shape = 's32[1]{0}', space=sflag, size = 0x4, scoped, tag = 'scoped memory for tpu_custom_call.1']
    #allocation19 [shape = 'u8[1474560]{0}', space=vmem, size = 0x168000, scoped, tag = 'input window, operand 11, single buffered']
    #allocation20 [shape = 'u8[1536]{0}', space=vmem, size = 0x800, scoped, tag = 'input window, operand 12, single buffered']
    #allocation21 [shape = 's32[1]{0}', space=sflag, size = 0x4, scoped, tag = 'scoped memory for tpu_custom_call.1']
    #allocation22 [shape = 'u8[512]{0}', space=vmem, size = 0x400, scoped, tag = 'input window, operand 14, single buffered']
    #allocation23 [shape = 'u8[1024]{0}', space=vmem, size = 0x400, scoped, tag = 'output window, operand 0, single buffered']
    %20 = vsyncpa [#allocation3], 0
    %21 = vsyncpa [#allocation6], 0
    %22 = vsyncpa [#allocation9], 0
    %23 = vsyncpa [#allocation12], 0
    %24 = vsyncpa [#allocation15], 0
    %25 = vsyncpa [#allocation18], 0
    %26 = vsyncpa [#allocation21], 0
    %27 = vsyncpa [#allocation4], 0
    // Predicated region
    $region2: #{tpu_custom_call.1} parent=1 // pred_check
      _
    $region3: #{tpu_custom_call.1} parent=1 // pred_check_branch
      %29 = sbr.rel (0) target = $region5
    $region4: #{tpu_custom_call.1} parent=1 // pred_region
      _
    $region5: #{tpu_custom_call.1} parent=1 // pred_fallthru
      _
    // Predicated region
    $region6: #{tpu_custom_call.1} parent=1 // pred_check
      _
    $region7: #{tpu_custom_call.1} parent=1 // pred_check_branch
      %31 = sbr.rel (0) target = $region9
    $region8: #{tpu_custom_call.1} parent=1 // pred_region
      %s33 = ssub.s32 256, 256
      %34 = vsyncadd [#allocation3], %s33
      %s35 = sshll.u32 [#allocation2], 4
      %s36 = int_to_ptr.vmem [resolvable:$true] %s35
      %41 = dma.hbm_to_vmem [thread:$0]  %s1, 256, %s36, [#allocation3], 128, 128, 8
    $region9: #{tpu_custom_call.1} parent=1 // pred_fallthru
      _
    // Predicated region
    $region10: #{tpu_custom_call.1} parent=1 // pred_check
      _
    $region11: #{tpu_custom_call.1} parent=1 // pred_check_branch
      %43 = sbr.rel (0) target = $region13
    $region12: #{tpu_custom_call.1} parent=1 // pred_region
      %s45 = ssub.s32 16, 16
      %46 = vsyncadd [#allocation6], %s45
      %s48 = sshll.u32 [#allocation5], 4
      %s49 = int_to_ptr.vmem [resolvable:$true] %s48
      %51 = dma.hbm_to_vmem [thread:$0]  %s2, 16, %s49, [#allocation6]
    $region13: #{tpu_custom_call.1} parent=1 // pred_fallthru
      _
    // Predicated region
    $region14: #{tpu_custom_call.1} parent=1 // pred_check
      _
    $region15: #{tpu_custom_call.1} parent=1 // pred_check_branch
      %53 = sbr.rel (0) target = $region17
    $region16: #{tpu_custom_call.1} parent=1 // pred_region
      %s55 = ssub.s32 30720, 30720
      %56 = vsyncadd [#allocation6], %s55
      %s57 = sshll.u32 [#allocation7], 4
      %s58 = int_to_ptr.vmem [resolvable:$true] %s57
      %63 = dma.hbm_to_vmem [thread:$0]  %s3, 30720, %s58, [#allocation6], 128, 128, 8
    $region17: #{tpu_custom_call.1} parent=1 // pred_fallthru
      _
    // Predicated region
    $region18: #{tpu_custom_call.1} parent=1 // pred_check
      _
    $region19: #{tpu_custom_call.1} parent=1 // pred_check_branch
      %65 = sbr.rel (0) target = $region21
    $region20: #{tpu_custom_call.1} parent=1 // pred_region
      %s67 = ssub.s32 160, 160
      %68 = vsyncadd [#allocation9], %s67
      %s69 = sshll.u32 [#allocation8], 4
      %s70 = int_to_ptr.vmem [resolvable:$true] %s69
      %75 = dma.hbm_to_vmem [thread:$0]  %s4, 160, %s70, [#allocation9], 16, 16, 1
    $region21: #{tpu_custom_call.1} parent=1 // pred_fallthru
      _
    // Predicated region
    $region22: #{tpu_custom_call.1} parent=1 // pred_check
      _
    $region23: #{tpu_custom_call.1} parent=1 // pred_check_branch
      %77 = sbr.rel (0) target = $region25
    $region24: #{tpu_custom_call.1} parent=1 // pred_region
      %s79 = ssub.s32 30720, 30720
      %80 = vsyncadd [#allocation9], %s79
      %s81 = sshll.u32 [#allocation10], 4
      %s82 = int_to_ptr.vmem [resolvable:$true] %s81
      %87 = dma.hbm_to_vmem [thread:$0]  %s5, 30720, %s82, [#allocation9], 128, 128, 8
    $region25: #{tpu_custom_call.1} parent=1 // pred_fallthru
      _
    // Predicated region
    $region26: #{tpu_custom_call.1} parent=1 // pred_check
      _
    $region27: #{tpu_custom_call.1} parent=1 // pred_check_branch
      %89 = sbr.rel (0) target = $region29
    $region28: #{tpu_custom_call.1} parent=1 // pred_region
      %s91 = ssub.s32 160, 160
      %92 = vsyncadd [#allocation12], %s91
      %s93 = sshll.u32 [#allocation11], 4
      %s94 = int_to_ptr.vmem [resolvable:$true] %s93
      %99 = dma.hbm_to_vmem [thread:$0]  %s6, 160, %s94, [#allocation12], 16, 16, 1
    $region29: #{tpu_custom_call.1} parent=1 // pred_fallthru
      _
    // Predicated region
    $region30: #{tpu_custom_call.1} parent=1 // pred_check
      _
    $region31: #{tpu_custom_call.1} parent=1 // pred_check_branch
      %101 = sbr.rel (0) target = $region33
    $region32: #{tpu_custom_call.1} parent=1 // pred_region
      %s103 = ssub.s32 3072, 3072
      %104 = vsyncadd [#allocation12], %s103
      %s105 = sshll.u32 [#allocation13], 4
      %s106 = int_to_ptr.vmem [resolvable:$true] %s105
      %111 = dma.hbm_to_vmem [thread:$0]  %s7, 3072, %s106, [#allocation12], 384, 384, 24
    $region33: #{tpu_custom_call.1} parent=1 // pred_fallthru
      _
    // Predicated region
    $region34: #{tpu_custom_call.1} parent=1 // pred_check
      _
    $region35: #{tpu_custom_call.1} parent=1 // pred_check_branch
      %113 = sbr.rel (0) target = $region37
    $region36: #{tpu_custom_call.1} parent=1 // pred_region
      %s115 = ssub.s32 48, 48
      %116 = vsyncadd [#allocation15], %s115
      %s118 = sshll.u32 [#allocation14], 4
      %s119 = int_to_ptr.vmem [resolvable:$true] %s118
      %121 = dma.hbm_to_vmem [thread:$0]  %s8, 48, %s119, [#allocation15]
    $region37: #{tpu_custom_call.1} parent=1 // pred_fallthru
      _
    // Predicated region
    $region38: #{tpu_custom_call.1} parent=1 // pred_check
      _
    $region39: #{tpu_custom_call.1} parent=1 // pred_check_branch
      %123 = sbr.rel (0) target = $region41
    $region40: #{tpu_custom_call.1} parent=1 // pred_region
      %s125 = ssub.s32 9216, 9216
      %126 = vsyncadd [#allocation15], %s125
      %s127 = sshll.u32 [#allocation16], 4
      %s128 = int_to_ptr.vmem [resolvable:$true] %s127
      %133 = dma.hbm_to_vmem [thread:$0]  %s9, 9216, %s128, [#allocation15], 384, 384, 24
    $region41: #{tpu_custom_call.1} parent=1 // pred_fallthru
      _
    // Predicated region
    $region42: #{tpu_custom_call.1} parent=1 // pred_check
      _
    $region43: #{tpu_custom_call.1} parent=1 // pred_check_branch
      %135 = sbr.rel (0) target = $region45
    $region44: #{tpu_custom_call.1} parent=1 // pred_region
      %s137 = ssub.s32 48, 48
      %138 = vsyncadd [#allocation18], %s137
      %s140 = sshll.u32 [#allocation17], 4
      %s141 = int_to_ptr.vmem [resolvable:$true] %s140
      %143 = dma.hbm_to_vmem [thread:$0]  %s10, 48, %s141, [#allocation18]
    $region45: #{tpu_custom_call.1} parent=1 // pred_fallthru
      _
    // Predicated region
    $region46: #{tpu_custom_call.1} parent=1 // pred_check
      _
    $region47: #{tpu_custom_call.1} parent=1 // pred_check_branch
      %145 = sbr.rel (0) target = $region49
    $region48: #{tpu_custom_call.1} parent=1 // pred_region
      %s147 = ssub.s32 46080, 46080
      %148 = vsyncadd [#allocation18], %s147
      %s149 = sshll.u32 [#allocation19], 4
      %s150 = int_to_ptr.vmem [resolvable:$true] %s149
      %155 = dma.hbm_to_vmem [thread:$0]  %s11, 46080, %s150, [#allocation18], 384, 384, 24
    $region49: #{tpu_custom_call.1} parent=1 // pred_fallthru
      _
    // Predicated region
    $region50: #{tpu_custom_call.1} parent=1 // pred_check
      _
    $region51: #{tpu_custom_call.1} parent=1 // pred_check_branch
      %157 = sbr.rel (0) target = $region53
    $region52: #{tpu_custom_call.1} parent=1 // pred_region
      %s159 = ssub.s32 48, 48
      %160 = vsyncadd [#allocation21], %s159
      %s162 = sshll.u32 [#allocation20], 4
      %s163 = int_to_ptr.vmem [resolvable:$true] %s162
      %165 = dma.hbm_to_vmem [thread:$0]  %s12, 48, %s163, [#allocation21]
    $region53: #{tpu_custom_call.1} parent=1 // pred_fallthru
      _
    // Predicated region
    $region54: #{tpu_custom_call.1} parent=1 // pred_check
      _
    $region55: #{tpu_custom_call.1} parent=1 // pred_check_branch
      %167 = sbr.rel (0) target = $region57
    $region56: #{tpu_custom_call.1} parent=1 // pred_region
      _
    $region57: #{tpu_custom_call.1} parent=1 // pred_fallthru
      _
    // Predicated region
    $region58: #{tpu_custom_call.1} parent=1 // pred_check
      _
    $region59: #{tpu_custom_call.1} parent=1 // pred_check_branch
      %169 = sbr.rel (0) target = $region61
    $region60: #{tpu_custom_call.1} parent=1 // pred_region
      %s171 = ssub.s32 16, 16
      %172 = vsyncadd [#allocation21], %s171
      %s174 = sshll.u32 [#allocation22], 4
      %s175 = int_to_ptr.vmem [resolvable:$true] %s174
      %177 = dma.hbm_to_vmem [thread:$0]  %s14, 16, %s175, [#allocation21]
    $region61: #{tpu_custom_call.1} parent=1 // pred_fallthru
      _
    // Predicated region
    $region62: #{tpu_custom_call.1} parent=1 // pred_check
      _
    $region63: #{tpu_custom_call.1} parent=1 // pred_check_branch
      %179 = sbr.rel (0) target = $region65
    $region64: #{tpu_custom_call.1} parent=1 // pred_region
      %180 = dma.done [#allocation3], 256
    $region65: #{tpu_custom_call.1} parent=1 // pred_fallthru
      _
    // Predicated region
    $region66: #{tpu_custom_call.1} parent=1 // pred_check
      _
    $region67: #{tpu_custom_call.1} parent=1 // pred_check_branch
      %182 = sbr.rel (0) target = $region69
    $region68: #{tpu_custom_call.1} parent=1 // pred_region
      %183 = dma.done [#allocation6], 16
    $region69: #{tpu_custom_call.1} parent=1 // pred_fallthru
      _
    // Predicated region
    $region70: #{tpu_custom_call.1} parent=1 // pred_check
      _
    $region71: #{tpu_custom_call.1} parent=1 // pred_check_branch
      %185 = sbr.rel (0) target = $region73
    $region72: #{tpu_custom_call.1} parent=1 // pred_region
      %186 = dma.done [#allocation6], 30720
    $region73: #{tpu_custom_call.1} parent=1 // pred_fallthru
      _
    // Predicated region
    $region74: #{tpu_custom_call.1} parent=1 // pred_check
      _
    $region75: #{tpu_custom_call.1} parent=1 // pred_check_branch
      %188 = sbr.rel (0) target = $region77
    $region76: #{tpu_custom_call.1} parent=1 // pred_region
      %189 = dma.done [#allocation9], 160
    $region77: #{tpu_custom_call.1} parent=1 // pred_fallthru
      _
    // Predicated region
    $region78: #{tpu_custom_call.1} parent=1 // pred_check
      _
    $region79: #{tpu_custom_call.1} parent=1 // pred_check_branch
      %191 = sbr.rel (0) target = $region81
    $region80: #{tpu_custom_call.1} parent=1 // pred_region
      %192 = dma.done [#allocation9], 30720
    $region81: #{tpu_custom_call.1} parent=1 // pred_fallthru
      _
    // Predicated region
    $region82: #{tpu_custom_call.1} parent=1 // pred_check
      _
    $region83: #{tpu_custom_call.1} parent=1 // pred_check_branch
      %194 = sbr.rel (0) target = $region85
    $region84: #{tpu_custom_call.1} parent=1 // pred_region
      %195 = dma.done [#allocation12], 160
    $region85: #{tpu_custom_call.1} parent=1 // pred_fallthru
      _
    // Predicated region
    $region86: #{tpu_custom_call.1} parent=1 // pred_check
      _
    $region87: #{tpu_custom_call.1} parent=1 // pred_check_branch
      %197 = sbr.rel (0) target = $region89
    $region88: #{tpu_custom_call.1} parent=1 // pred_region
      %198 = dma.done [#allocation12], 3072
    $region89: #{tpu_custom_call.1} parent=1 // pred_fallthru
      _
    // Predicated region
    $region90: #{tpu_custom_call.1} parent=1 // pred_check
      _
    $region91: #{tpu_custom_call.1} parent=1 // pred_check_branch
      %200 = sbr.rel (0) target = $region93
    $region92: #{tpu_custom_call.1} parent=1 // pred_region
      %201 = dma.done [#allocation15], 48
    $region93: #{tpu_custom_call.1} parent=1 // pred_fallthru
      _
    // Predicated region
    $region94: #{tpu_custom_call.1} parent=1 // pred_check
      _
    $region95: #{tpu_custom_call.1} parent=1 // pred_check_branch
      %203 = sbr.rel (0) target = $region97
    $region96: #{tpu_custom_call.1} parent=1 // pred_region
      %204 = dma.done [#allocation15], 9216
    $region97: #{tpu_custom_call.1} parent=1 // pred_fallthru
      _
    // Predicated region
    $region98: #{tpu_custom_call.1} parent=1 // pred_check
      _
    $region99: #{tpu_custom_call.1} parent=1 // pred_check_branch
      %206 = sbr.rel (0) target = $region101
    $region100: #{tpu_custom_call.1} parent=1 // pred_region
      %207 = dma.done [#allocation18], 48
    $region101: #{tpu_custom_call.1} parent=1 // pred_fallthru
      _
    // Predicated region
    $region102: #{tpu_custom_call.1} parent=1 // pred_check
      _
    $region103: #{tpu_custom_call.1} parent=1 // pred_check_branch
      %209 = sbr.rel (0) target = $region105
    $region104: #{tpu_custom_call.1} parent=1 // pred_region
      %210 = dma.done [#allocation18], 46080
    $region105: #{tpu_custom_call.1} parent=1 // pred_fallthru
      _
    // Predicated region
    $region106: #{tpu_custom_call.1} parent=1 // pred_check
      _
    $region107: #{tpu_custom_call.1} parent=1 // pred_check_branch
      %212 = sbr.rel (0) target = $region109
    $region108: #{tpu_custom_call.1} parent=1 // pred_region
      %213 = dma.done [#allocation21], 48
    $region109: #{tpu_custom_call.1} parent=1 // pred_fallthru
      _
    // Predicated region
    $region110: #{tpu_custom_call.1} parent=1 // pred_check
      _
    $region111: #{tpu_custom_call.1} parent=1 // pred_check_branch
      %215 = sbr.rel (0) target = $region113
    $region112: #{tpu_custom_call.1} parent=1 // pred_region
      %216 = dma.done [#allocation21], 16
    $region113: #{tpu_custom_call.1} parent=1 // pred_fallthru
      _
    %v217 = vld [vmem:[%s0] sm:$0xff]
    %v218 = vld [vmem:[%s0 + $0x8] sm:$0xff]
    %v219 = vld [vmem:[%s0 + $0x10] sm:$0xff]
    %v220 = vld [vmem:[%s0 + $0x18] sm:$0xff]
    %vm221 = vcmp.ne.f32.partialorder %v217, %v217
    %vm222 = vcmp.ne.f32.partialorder %v218, %v218
    %vm223 = vcmp.ne.f32.partialorder %v219, %v219
    %vm224 = vcmp.ne.f32.partialorder %v220, %v220
    %v225 = vsel %vm221, 1.0, 0.0
    %v226 = vsel %vm222, 1.0, 0.0
    %v227 = vsel %vm223, 1.0, 0.0
    %v228 = vsel %vm224, 1.0, 0.0
    %vm229 = vcmask 89088
    %v230 = vsel %vm229, %v225, -inf
    %231 = vmax.xlane.f32.xlu0 %v230
    %v232 = vpop.xlane.xlu0 %231
    %v233 = vsel %vm229, %v226, -inf
    %234 = vmax.xlane.f32.xlu0 %v233
    %v235 = vpop.xlane.xlu0 %234
    %v236 = vsel %vm229, %v227, -inf
    %237 = vmax.xlane.f32.xlu0 %v236
    %v238 = vpop.xlane.xlu0 %237
    %v239 = vsel %vm229, %v228, -inf
    %240 = vmax.xlane.f32.xlu0 %v239
    %v241 = vpop.xlane.xlu0 %240
    %vm242 = vcmp.gt.f32.partialorder %v232, 0.0
    %vm243 = vcmp.gt.f32.partialorder %v235, 0.0
    %vm244 = vcmp.gt.f32.partialorder %v238, 0.0
    %vm245 = vcmp.gt.f32.partialorder %v241, 0.0
    %v246 = vsel %vm242, 1, 0
    %v247 = vsel %vm243, 1, 0
    %v248 = vsel %vm244, 1, 0
    %v249 = vsel %vm245, 1, 0
    %vm250 = vcmp.eq.s32.totalorder %v246, 1
    %vm251 = vcmp.eq.s32.totalorder %v247, 1
    %vm252 = vcmp.eq.s32.totalorder %v248, 1
    %vm253 = vcmp.eq.s32.totalorder %v249, 1
    %v254 = vsel %vm250, 0.0, %v217
    %v255 = vsel %vm251, 0.0, %v218
    %v256 = vsel %vm252, 0.0, %v219
    %v257 = vsel %vm253, 0.0, %v220
    %v258 = vld [vmem:[#allocation2] sm:$0xff]
    %v259 = vld [vmem:[#allocation2 + $0x8] sm:$0x7]
    %v260 = vld [vmem:[#allocation5] sm:$0x1]
    %v262 = vlaneseq
    %v263 = vshrl.u32 %v262, 7
    %v264 = vsub.s32 0, %v263
    %v265 = vrot.slane %v260, %v264
    %v268 = vsel %vm229, %v254, 0
    %v271 = vsel %vm229, %v255, 0
    %v274 = vsel %vm229, %v256, 0
    %v277 = vsel %vm229, %v257, 0
    %vm279 = vcmask 1042432
    %v281 = vsel %vm279, %v259, 0
    %283 = vmatprep.subr.mxu0 0.0
    %284 = vmatpush1.msra.mxu0 %v258
    %285 = vmatprep.subr.mxu0 0.0
    %286 = vmatpush1.msra.mxu0 %v281
    %287 = vmatprep.subr.mxu0 0.0
    %288 = vmatpush1.msra.mxu0 0.0
    %289 = vmatprep.subr.mxu0 0.0
    %290 = vmatpush1.msra.mxu0 0.0
    %291 = vmatprep.subr.mxu0 0.0
    %292 = vmatpush1.msra.mxu0 0.0
    %293 = vmatprep.subr.mxu0 0.0
    %294 = vmatpush1.msra.mxu0 0.0
    %295 = vmatprep.subr.mxu0 0.0
    %296 = vmatpush1.msra.mxu0 0.0
    %297 = vmatprep.subr.mxu0 0.0
    %298 = vmatpush1.msra.mxu0 0.0
    %299 = vmatprep.subr.mxu0 0.0
    %300 = vmatpush1.msra.mxu0 0.0
    %301 = vmatprep.subr.mxu0 0.0
    %302 = vmatpush1.msra.mxu0 0.0
    %303 = vmatprep.subr.mxu0 0.0
    %304 = vmatpush1.msra.mxu0 0.0
    %305 = vmatprep.subr.mxu0 0.0
    %306 = vmatpush1.msra.mxu0 0.0
    %307 = vmatprep.subr.mxu0 0.0
    %308 = vmatpush1.msra.mxu0 0.0
    %309 = vmatprep.subr.mxu0 0.0
    %310 = vmatpush1.msra.mxu0 0.0
    %311 = vmatprep.subr.mxu0 0.0
    %312 = vmatpush1.msra.mxu0 0.0
    %313 = vmatprep.subr.mxu0 0.0
    %314 = vmatpush1.msra.mxu0 0.0
    %315 = vmatprep.subr.mxu0 0.0
    %316 = vmatpush1.msra.mxu0 0.0
    %317 = vmatprep.subr.mxu0 0.0
    %318 = vmatpush1.msra.mxu0 0.0
    %319 = vmatprep.subr.mxu0 0.0
    %320 = vmatpush1.msra.mxu0 0.0
    %321 = vmatprep.subr.mxu0 0.0
    %322 = vmatpush1.msra.mxu0 0.0
    %323 = vmatprep.subr.mxu0 0.0
    %324 = vmatpush1.msra.mxu0 0.0
    %325 = vmatprep.subr.mxu0 0.0
    %326 = vmatpush1.msra.mxu0 0.0
    %327 = vmatprep.subr.mxu0 0.0
    %328 = vmatpush1.msra.mxu0 0.0
    %329 = vmatprep.subr.mxu0 0.0
    %330 = vmatpush1.msra.mxu0 0.0
    %331 = vmatprep.subr.mxu0 0.0
    %332 = vmatpush1.msra.mxu0 0.0
    %333 = vmatprep.subr.mxu0 0.0
    %334 = vmatpush1.msra.mxu0 0.0
    %335 = vmatprep.subr.mxu0 0.0
    %336 = vmatpush1.msra.mxu0 0.0
    %337 = vmatprep.subr.mxu0 0.0
    %338 = vmatpush1.msra.mxu0 0.0
    %339 = vmatprep.subr.mxu0 0.0
    %340 = vmatpush1.msra.mxu0 0.0
    %341 = vmatprep.subr.mxu0 0.0
    %342 = vmatpush1.msra.mxu0 0.0
    %343 = vmatprep.subr.mxu0 0.0
    %344 = vmatpush1.msra.mxu0 0.0
    %345 = vmatprep.subr.mxu0 0.0
    %346 = vmatpush1.msra.mxu0 0.0
    %347 = vmatprep.mubr.f32.mxu0 0.0
    %348 = vmatmul.mubr.f32.gmra.mrb[0].mxu0 %v268
    %v349 = vpop.f32.mrb[0].mxu0
    %v350 = vadd.f32 %v265, %v349
    %v351 = vpop.f32.mrb[0].mxu0
    %352 = vmatprep.mubr.f32.mxu0 0.0
    %353 = vmatmul.mubr.f32.gmra.mrb[0].mxu0 %v271
    %v354 = vpop.f32.mrb[0].mxu0
    %v355 = vadd.f32 %v265, %v354
    %v356 = vpop.f32.mrb[0].mxu0
    %357 = vmatprep.mubr.f32.mxu0 0.0
    %358 = vmatmul.mubr.f32.gmra.mrb[0].mxu0 %v274
    %v359 = vpop.f32.mrb[0].mxu0
    %v360 = vadd.f32 %v265, %v359
    %v361 = vpop.f32.mrb[0].mxu0
    %362 = vmatprep.mubr.f32.mxu0 0.0
    %363 = vmatmul.mubr.f32.gmra.mrb[0].mxu0 %v277
    %v364 = vpop.f32.mrb[0].mxu0
    %v365 = vadd.f32 %v265, %v364
    %v366 = vpop.f32.mrb[0].mxu0
    %367 = vdwg.mxu0
    %v368 = vsel %vm250, 0.0, %v350
    %v369 = vsel %vm251, 0.0, %v355
    %v370 = vsel %vm252, 0.0, %v360
    %v371 = vsel %vm253, 0.0, %v365
    %v372 = vld [vmem:[#allocation8] sm:$0x1]
    %v373 = vmul.f32 %v368, 0.5
    %v374 = vmul.f32 %v369, 0.5
    %v375 = vmul.f32 %v370, 0.5
    %v376 = vmul.f32 %v371, 0.5
    %v377 = vmul.f32 %v368, 0.70710677
    %v378 = vmul.f32 %v369, 0.70710677
    %v379 = vmul.f32 %v370, 0.70710677
    %v380 = vmul.f32 %v371, 0.70710677
    %v381 = verf.f32.pop %v377
    %v382 = verf.f32.pop %v378
    %v383 = verf.f32.pop %v379
    %v384 = verf.f32.pop %v380
    %v385 = vadd.f32 %v381, 1.0
    %v386 = vadd.f32 %v382, 1.0
    %v387 = vadd.f32 %v383, 1.0
    %v388 = vadd.f32 %v384, 1.0
    %v389 = vmul.f32 %v373, %v385
    %v390 = vmul.f32 %v374, %v386
    %v391 = vmul.f32 %v375, %v387
    %v392 = vmul.f32 %v376, %v388
    %vm397 = vcmask 1040384
    %v398 = vrot.slane %v389, 7
    %v399 = vrot.slane %v390, 7
    %v400 = vsel %vm397, %v398, %v399
    %v401 = vrot.slane %v391, 7
    %v402 = vrot.slane %v392, 7
    %v403 = vsel %vm397, %v401, %v402
    %v408 = vsel %vm397, 0.0, %v398
    %v409 = vsel %vm397, 0.0, %v401
    %v410 = vsel %vm397, %v399, 0.0
    %v411 = vsel %vm397, %v402, 0.0
    %v412 = vld [vmem:[#allocation7] sm:$0xff]
    %v413 = vld [vmem:[#allocation7 + $0x8] sm:$0xff]
    %v414 = vld [vmem:[#allocation7 + $0x10] sm:$0xff]
    %v415 = vld [vmem:[#allocation7 + $0x18] sm:$0xff]
    %v416 = vld [vmem:[#allocation7 + $0x20] sm:$0xff]
    %v417 = vld [vmem:[#allocation7 + $0x28] sm:$0xff]
    %v418 = vld [vmem:[#allocation7 + $0x30] sm:$0xff]
    %v419 = vld [vmem:[#allocation7 + $0x38] sm:$0xff]
    %vm420 = vcmask 523264
    %v422 = vsel %vm420, %v408, 0
    %v424 = vsel %vm420, %v400, 0
    %v427 = vsel %vm420, %v409, 0
    %v429 = vsel %vm420, %v403, 0
    %431 = vmatprep.subr.mxu0 0.0
    %432 = vmatpush1.msra.mxu0 %v412
    %433 = vmatprep.subr.mxu0 0.0
    %434 = vmatpush1.msra.mxu0 %v413
    %435 = vmatprep.subr.mxu0 0.0
    %436 = vmatpush1.msra.mxu0 %v414
    %437 = vmatprep.subr.mxu0 0.0
    %438 = vmatpush1.msra.mxu0 %v415
    %439 = vmatprep.subr.mxu0 0.0
    %440 = vmatpush1.msra.mxu0 %v416
    %441 = vmatprep.subr.mxu0 0.0
    %442 = vmatpush1.msra.mxu0 %v417
    %443 = vmatprep.subr.mxu0 0.0
    %444 = vmatpush1.msra.mxu0 %v418
    %445 = vmatprep.subr.mxu0 0.0
    %446 = vmatpush1.msra.mxu0 %v419
    %447 = vmatprep.subr.mxu0 0.0
    %448 = vmatpush1.msra.mxu0 0.0
    %449 = vmatprep.subr.mxu0 0.0
    %450 = vmatpush1.msra.mxu0 0.0
    %451 = vmatprep.subr.mxu0 0.0
    %452 = vmatpush1.msra.mxu0 0.0
    %453 = vmatprep.subr.mxu0 0.0
    %454 = vmatpush1.msra.mxu0 0.0
    %455 = vmatprep.subr.mxu0 0.0
    %456 = vmatpush1.msra.mxu0 0.0
    %457 = vmatprep.subr.mxu0 0.0
    %458 = vmatpush1.msra.mxu0 0.0
    %459 = vmatprep.subr.mxu0 0.0
    %460 = vmatpush1.msra.mxu0 0.0
    %461 = vmatprep.subr.mxu0 0.0
    %462 = vmatpush1.msra.mxu0 0.0
    %463 = vmatprep.subr.mxu0 0.0
    %464 = vmatpush1.msra.mxu0 0.0
    %465 = vmatprep.subr.mxu0 0.0
    %466 = vmatpush1.msra.mxu0 0.0
    %467 = vmatprep.subr.mxu0 0.0
    %468 = vmatpush1.msra.mxu0 0.0
    %469 = vmatprep.subr.mxu0 0.0
    %470 = vmatpush1.msra.mxu0 0.0
    %471 = vmatprep.subr.mxu0 0.0
    %472 = vmatpush1.msra.mxu0 0.0
    %473 = vmatprep.subr.mxu0 0.0
    %474 = vmatpush1.msra.mxu0 0.0
    %475 = vmatprep.subr.mxu0 0.0
    %476 = vmatpush1.msra.mxu0 0.0
    %477 = vmatprep.subr.mxu0 0.0
    %478 = vmatpush1.msra.mxu0 0.0
    %479 = vmatprep.subr.mxu0 0.0
    %480 = vmatpush1.msra.mxu0 0.0
    %481 = vmatprep.subr.mxu0 0.0
    %482 = vmatpush1.msra.mxu0 0.0
    %483 = vmatprep.subr.mxu0 0.0
    %484 = vmatpush1.msra.mxu0 0.0
    %485 = vmatprep.subr.mxu0 0.0
    %486 = vmatpush1.msra.mxu0 0.0
    %487 = vmatprep.subr.mxu0 0.0
    %488 = vmatpush1.msra.mxu0 0.0
    %489 = vmatprep.subr.mxu0 0.0
    %490 = vmatpush1.msra.mxu0 0.0
    %491 = vmatprep.subr.mxu0 0.0
    %492 = vmatpush1.msra.mxu0 0.0
    %493 = vmatprep.subr.mxu0 0.0
    %494 = vmatpush1.msra.mxu0 0.0
    %495 = vmatprep.mubr.f32.mxu0 0.0
    %496 = vmatmul.mubr.f32.gmra.mrb[0].mxu0 %v422
    %v497 = vpop.f32.mrb[0].mxu0
    %v498 = vadd.f32 0.0, %v497
    %v499 = vpop.f32.mrb[0].mxu0
    %500 = vmatprep.mubr.f32.mxu0 0.0
    %501 = vmatmul.mubr.f32.gmra.mrb[0].mxu0 %v424
    %v502 = vpop.f32.mrb[0].mxu0
    %v503 = vadd.f32 0.0, %v502
    %v504 = vpop.f32.mrb[0].mxu0
    %505 = vmatprep.mubr.f32.mxu0 0.0
    %506 = vmatmul.mubr.f32.gmra.mrb[0].mxu0 %v427
    %v507 = vpop.f32.mrb[0].mxu0
    %v508 = vadd.f32 0.0, %v507
    %v509 = vpop.f32.mrb[0].mxu0
    %510 = vmatprep.mubr.f32.mxu0 0.0
    %511 = vmatmul.mubr.f32.gmra.mrb[0].mxu0 %v429
    %v512 = vpop.f32.mrb[0].mxu0
    %v513 = vadd.f32 0.0, %v512
    %v514 = vpop.f32.mrb[0].mxu0
    %515 = vdwg.mxu0
    %v517 = vlaneseq
    %v518 = vshrl.u32 %v517, 7
    %v519 = vsub.s32 0, %v518
    %v520 = vrot.slane %v372, %v519
    %v522 = vadd.f32 %v520, %v498
    %v523 = vadd.f32 %v520, %v503
    %v524 = vadd.f32 %v520, %v508
    %v525 = vadd.f32 %v520, %v513
    %vm528 = vcmask 1046528
    %v529 = vrot.slane %v408, 1
    %v530 = vrot.slane %v400, 1
    %v531 = vsel %vm528, %v529, %v530
    %v532 = vrot.slane %v410, 1
    %v533 = vsel %vm528, %v530, %v532
    %v534 = vrot.slane %v409, 1
    %v535 = vrot.slane %v403, 1
    %v536 = vsel %vm528, %v534, %v535
    %v537 = vrot.slane %v411, 1
    %v538 = vsel %vm528, %v535, %v537
    %s539 = scalar_lea.vmem [#allocation7], 64
    %v540 = vld [vmem:[%s539] sm:$0xff]
    %v541 = vld [vmem:[%s539 + $0x8] sm:$0xff]
    %v542 = vld [vmem:[%s539 + $0x10] sm:$0xff]
    %v543 = vld [vmem:[%s539 + $0x18] sm:$0xff]
    %v544 = vld [vmem:[%s539 + $0x20] sm:$0xff]
    %v545 = vld [vmem:[%s539 + $0x28] sm:$0xff]
    %v546 = vld [vmem:[%s539 + $0x30] sm:$0xff]
    %v547 = vld [vmem:[%s539 + $0x38] sm:$0xff]
    %v548 = vsel %vm420, %v531, 0
    %v550 = vsel %vm420, %v533, 0
    %v552 = vsel %vm420, %v536, 0
    %v554 = vsel %vm420, %v538, 0
    %556 = vmatprep.subr.mxu0 0.0
    %557 = vmatpush1.msra.mxu0 %v540
    %558 = vmatprep.subr.mxu0 0.0
    %559 = vmatpush1.msra.mxu0 %v541
    %560 = vmatprep.subr.mxu0 0.0
    %561 = vmatpush1.msra.mxu0 %v542
    %562 = vmatprep.subr.mxu0 0.0
    %563 = vmatpush1.msra.mxu0 %v543
    %564 = vmatprep.subr.mxu0 0.0
    %565 = vmatpush1.msra.mxu0 %v544
    %566 = vmatprep.subr.mxu0 0.0
    %567 = vmatpush1.msra.mxu0 %v545
    %568 = vmatprep.subr.mxu0 0.0
    %569 = vmatpush1.msra.mxu0 %v546
    %570 = vmatprep.subr.mxu0 0.0
    %571 = vmatpush1.msra.mxu0 %v547
    %572 = vmatprep.subr.mxu0 0.0
    %573 = vmatpush1.msra.mxu0 0.0
    %574 = vmatprep.subr.mxu0 0.0
    %575 = vmatpush1.msra.mxu0 0.0
    %576 = vmatprep.subr.mxu0 0.0
    %577 = vmatpush1.msra.mxu0 0.0
    %578 = vmatprep.subr.mxu0 0.0
    %579 = vmatpush1.msra.mxu0 0.0
    %580 = vmatprep.subr.mxu0 0.0
    %581 = vmatpush1.msra.mxu0 0.0
    %582 = vmatprep.subr.mxu0 0.0
    %583 = vmatpush1.msra.mxu0 0.0
    %584 = vmatprep.subr.mxu0 0.0
    %585 = vmatpush1.msra.mxu0 0.0
    %586 = vmatprep.subr.mxu0 0.0
    %587 = vmatpush1.msra.mxu0 0.0
    %588 = vmatprep.subr.mxu0 0.0
    %589 = vmatpush1.msra.mxu0 0.0
    %590 = vmatprep.subr.mxu0 0.0
    %591 = vmatpush1.msra.mxu0 0.0
    %592 = vmatprep.subr.mxu0 0.0
    %593 = vmatpush1.msra.mxu0 0.0
    %594 = vmatprep.subr.mxu0 0.0
    %595 = vmatpush1.msra.mxu0 0.0
    %596 = vmatprep.subr.mxu0 0.0
    %597 = vmatpush1.msra.mxu0 0.0
    %598 = vmatprep.subr.mxu0 0.0
    %599 = vmatpush1.msra.mxu0 0.0
    %600 = vmatprep.subr.mxu0 0.0
    %601 = vmatpush1.msra.mxu0 0.0
    %602 = vmatprep.subr.mxu0 0.0
    %603 = vmatpush1.msra.mxu0 0.0
    %604 = vmatprep.subr.mxu0 0.0
    %605 = vmatpush1.msra.mxu0 0.0
    %606 = vmatprep.subr.mxu0 0.0
    %607 = vmatpush1.msra.mxu0 0.0
    %608 = vmatprep.subr.mxu0 0.0
    %609 = vmatpush1.msra.mxu0 0.0
    %610 = vmatprep.subr.mxu0 0.0
    %611 = vmatpush1.msra.mxu0 0.0
    %612 = vmatprep.subr.mxu0 0.0
    %613 = vmatpush1.msra.mxu0 0.0
    %614 = vmatprep.subr.mxu0 0.0
    %615 = vmatpush1.msra.mxu0 0.0
    %616 = vmatprep.subr.mxu0 0.0
    %617 = vmatpush1.msra.mxu0 0.0
    %618 = vmatprep.subr.mxu0 0.0
    %619 = vmatpush1.msra.mxu0 0.0
    %620 = vmatprep.mubr.f32.mxu0 0.0
    %621 = vmatmul.mubr.f32.gmra.mrb[0].mxu0 %v548
    %v622 = vpop.f32.mrb[0].mxu0
    %v623 = vadd.f32 0.0, %v622
    %v624 = vpop.f32.mrb[0].mxu0
    %625 = vmatprep.mubr.f32.mxu0 0.0
    %626 = vmatmul.mubr.f32.gmra.mrb[0].mxu0 %v550
    %v627 = vpop.f32.mrb[0].mxu0
    %v628 = vadd.f32 0.0, %v627
    %v629 = vpop.f32.mrb[0].mxu0
    %630 = vmatprep.mubr.f32.mxu0 0.0
    %631 = vmatmul.mubr.f32.gmra.mrb[0].mxu0 %v552
    %v632 = vpop.f32.mrb[0].mxu0
    %v633 = vadd.f32 0.0, %v632
    %v634 = vpop.f32.mrb[0].mxu0
    %635 = vmatprep.mubr.f32.mxu0 0.0
    %636 = vmatmul.mubr.f32.gmra.mrb[0].mxu0 %v554
    %v637 = vpop.f32.mrb[0].mxu0
    %v638 = vadd.f32 0.0, %v637
    %v639 = vpop.f32.mrb[0].mxu0
    %640 = vdwg.mxu0
    %v641 = vadd.f32 %v522, %v623
    %v642 = vadd.f32 %v523, %v628
    %v643 = vadd.f32 %v524, %v633
    %v644 = vadd.f32 %v525, %v638
    %vm645 = vcmask 1045504
    %v646 = vrot.slane %v408, 2
    %v647 = vrot.slane %v400, 2
    %v648 = vsel %vm645, %v646, %v647
    %v649 = vrot.slane %v410, 2
    %v650 = vsel %vm645, %v647, %v649
    %v651 = vrot.slane %v409, 2
    %v652 = vrot.slane %v403, 2
    %v653 = vsel %vm645, %v651, %v652
    %v654 = vrot.slane %v411, 2
    %v655 = vsel %vm645, %v652, %v654
    %s656 = scalar_lea.vmem [#allocation7], 128
    %v657 = vld [vmem:[%s656] sm:$0xff]
    %v658 = vld [vmem:[%s656 + $0x8] sm:$0xff]
    %v659 = vld [vmem:[%s656 + $0x10] sm:$0xff]
    %v660 = vld [vmem:[%s656 + $0x18] sm:$0xff]
    %v661 = vld [vmem:[%s656 + $0x20] sm:$0xff]
    %v662 = vld [vmem:[%s656 + $0x28] sm:$0xff]
    %v663 = vld [vmem:[%s656 + $0x30] sm:$0xff]
    %v664 = vld [vmem:[%s656 + $0x38] sm:$0xff]
    %v665 = vsel %vm420, %v648, 0
    %v667 = vsel %vm420, %v650, 0
    %v669 = vsel %vm420, %v653, 0
    %v671 = vsel %vm420, %v655, 0
    %673 = vmatprep.subr.mxu0 0.0
    %674 = vmatpush1.msra.mxu0 %v657
    %675 = vmatprep.subr.mxu0 0.0
    %676 = vmatpush1.msra.mxu0 %v658
    %677 = vmatprep.subr.mxu0 0.0
    %678 = vmatpush1.msra.mxu0 %v659
    %679 = vmatprep.subr.mxu0 0.0
    %680 = vmatpush1.msra.mxu0 %v660
    %681 = vmatprep.subr.mxu0 0.0
    %682 = vmatpush1.msra.mxu0 %v661
    %683 = vmatprep.subr.mxu0 0.0
    %684 = vmatpush1.msra.mxu0 %v662
    %685 = vmatprep.subr.mxu0 0.0
    %686 = vmatpush1.msra.mxu0 %v663
    %687 = vmatprep.subr.mxu0 0.0
    %688 = vmatpush1.msra.mxu0 %v664
    %689 = vmatprep.subr.mxu0 0.0
    %690 = vmatpush1.msra.mxu0 0.0
    %691 = vmatprep.subr.mxu0 0.0
    %692 = vmatpush1.msra.mxu0 0.0
    %693 = vmatprep.subr.mxu0 0.0
    %694 = vmatpush1.msra.mxu0 0.0
    %695 = vmatprep.subr.mxu0 0.0
    %696 = vmatpush1.msra.mxu0 0.0
    %697 = vmatprep.subr.mxu0 0.0
    %698 = vmatpush1.msra.mxu0 0.0
    %699 = vmatprep.subr.mxu0 0.0
    %700 = vmatpush1.msra.mxu0 0.0
    %701 = vmatprep.subr.mxu0 0.0
    %702 = vmatpush1.msra.mxu0 0.0
    %703 = vmatprep.subr.mxu0 0.0
    %704 = vmatpush1.msra.mxu0 0.0
    %705 = vmatprep.subr.mxu0 0.0
    %706 = vmatpush1.msra.mxu0 0.0
    %707 = vmatprep.subr.mxu0 0.0
    %708 = vmatpush1.msra.mxu0 0.0
    %709 = vmatprep.subr.mxu0 0.0
    %710 = vmatpush1.msra.mxu0 0.0
    %711 = vmatprep.subr.mxu0 0.0
    %712 = vmatpush1.msra.mxu0 0.0
    %713 = vmatprep.subr.mxu0 0.0
    %714 = vmatpush1.msra.mxu0 0.0
    %715 = vmatprep.subr.mxu0 0.0
    %716 = vmatpush1.msra.mxu0 0.0
    %717 = vmatprep.subr.mxu0 0.0
    %718 = vmatpush1.msra.mxu0 0.0
    %719 = vmatprep.subr.mxu0 0.0
    %720 = vmatpush1.msra.mxu0 0.0
    %721 = vmatprep.subr.mxu0 0.0
    %722 = vmatpush1.msra.mxu0 0.0
    %723 = vmatprep.subr.mxu0 0.0
    %724 = vmatpush1.msra.mxu0 0.0
    %725 = vmatprep.subr.mxu0 0.0
    %726 = vmatpush1.msra.mxu0 0.0
    %727 = vmatprep.subr.mxu0 0.0
    %728 = vmatpush1.msra.mxu0 0.0
    %729 = vmatprep.subr.mxu0 0.0
    %730 = vmatpush1.msra.mxu0 0.0
    %731 = vmatprep.subr.mxu0 0.0
    %732 = vmatpush1.msra.mxu0 0.0
    %733 = vmatprep.subr.mxu0 0.0
    %734 = vmatpush1.msra.mxu0 0.0
    %735 = vmatprep.subr.mxu0 0.0
    %736 = vmatpush1.msra.mxu0 0.0
    %737 = vmatprep.mubr.f32.mxu0 0.0
    %738 = vmatmul.mubr.f32.gmra.mrb[0].mxu0 %v665
    %v739 = vpop.f32.mrb[0].mxu0
    %v740 = vadd.f32 0.0, %v739
    %v741 = vpop.f32.mrb[0].mxu0
    %742 = vmatprep.mubr.f32.mxu0 0.0
    %743 = vmatmul.mubr.f32.gmra.mrb[0].mxu0 %v667
    %v744 = vpop.f32.mrb[0].mxu0
    %v745 = vadd.f32 0.0, %v744
    %v746 = vpop.f32.mrb[0].mxu0
    %747 = vmatprep.mubr.f32.mxu0 0.0
    %748 = vmatmul.mubr.f32.gmra.mrb[0].mxu0 %v669
    %v749 = vpop.f32.mrb[0].mxu0
    %v750 = vadd.f32 0.0, %v749
    %v751 = vpop.f32.mrb[0].mxu0
    %752 = vmatprep.mubr.f32.mxu0 0.0
    %753 = vmatmul.mubr.f32.gmra.mrb[0].mxu0 %v671
    %v754 = vpop.f32.mrb[0].mxu0
    %v755 = vadd.f32 0.0, %v754
    %v756 = vpop.f32.mrb[0].mxu0
    %757 = vdwg.mxu0
    %v758 = vadd.f32 %v641, %v740
    %v759 = vadd.f32 %v642, %v745
    %v760 = vadd.f32 %v643, %v750
    %v761 = vadd.f32 %v644, %v755
    %v762 = vld [vmem:[#allocation11] sm:$0x1]
    %v763 = vmul.f32 %v758, 0.5
    %v764 = vmul.f32 %v759, 0.5
    %v765 = vmul.f32 %v760, 0.5
    %v766 = vmul.f32 %v761, 0.5
    %v767 = vmul.f32 %v758, 0.70710677
    %v768 = vmul.f32 %v759, 0.70710677
    %v769 = vmul.f32 %v760, 0.70710677
    %v770 = vmul.f32 %v761, 0.70710677
    %v771 = verf.f32.pop %v767
    %v772 = verf.f32.pop %v768
    %v773 = verf.f32.pop %v769
    %v774 = verf.f32.pop %v770
    %v775 = vadd.f32 %v771, 1.0
    %v776 = vadd.f32 %v772, 1.0
    %v777 = vadd.f32 %v773, 1.0
    %v778 = vadd.f32 %v774, 1.0
    %v779 = vmul.f32 %v763, %v775
    %v780 = vmul.f32 %v764, %v776
    %v781 = vmul.f32 %v765, %v777
    %v782 = vmul.f32 %v766, %v778
    %v787 = vrot.slane %v779, 7
    %v788 = vrot.slane %v780, 7
    %v789 = vsel %vm397, %v787, %v788
    %v790 = vrot.slane %v781, 7
    %v791 = vrot.slane %v782, 7
    %v792 = vsel %vm397, %v790, %v791
    %v797 = vsel %vm397, 0.0, %v787
    %v798 = vsel %vm397, 0.0, %v790
    %v799 = vsel %vm397, %v788, 0.0
    %v800 = vsel %vm397, %v791, 0.0
    %v801 = vld [vmem:[#allocation10] sm:$0xff]
    %v802 = vld [vmem:[#allocation10 + $0x8] sm:$0xff]
    %v803 = vld [vmem:[#allocation10 + $0x10] sm:$0xff]
    %v804 = vld [vmem:[#allocation10 + $0x18] sm:$0xff]
    %v805 = vld [vmem:[#allocation10 + $0x20] sm:$0xff]
    %v806 = vld [vmem:[#allocation10 + $0x28] sm:$0xff]
    %v807 = vld [vmem:[#allocation10 + $0x30] sm:$0xff]
    %v808 = vld [vmem:[#allocation10 + $0x38] sm:$0xff]
    %v810 = vsel %vm420, %v797, 0
    %v812 = vsel %vm420, %v789, 0
    %v815 = vsel %vm420, %v798, 0
    %v817 = vsel %vm420, %v792, 0
    %819 = vmatprep.subr.mxu0 0.0
    %820 = vmatpush1.msra.mxu0 %v801
    %821 = vmatprep.subr.mxu0 0.0
    %822 = vmatpush1.msra.mxu0 %v802
    %823 = vmatprep.subr.mxu0 0.0
    %824 = vmatpush1.msra.mxu0 %v803
    %825 = vmatprep.subr.mxu0 0.0
    %826 = vmatpush1.msra.mxu0 %v804
    %827 = vmatprep.subr.mxu0 0.0
    %828 = vmatpush1.msra.mxu0 %v805
    %829 = vmatprep.subr.mxu0 0.0
    %830 = vmatpush1.msra.mxu0 %v806
    %831 = vmatprep.subr.mxu0 0.0
    %832 = vmatpush1.msra.mxu0 %v807
    %833 = vmatprep.subr.mxu0 0.0
    %834 = vmatpush1.msra.mxu0 %v808
    %835 = vmatprep.subr.mxu0 0.0
    %836 = vmatpush1.msra.mxu0 0.0
    %837 = vmatprep.subr.mxu0 0.0
    %838 = vmatpush1.msra.mxu0 0.0
    %839 = vmatprep.subr.mxu0 0.0
    %840 = vmatpush1.msra.mxu0 0.0
    %841 = vmatprep.subr.mxu0 0.0
    %842 = vmatpush1.msra.mxu0 0.0
    %843 = vmatprep.subr.mxu0 0.0
    %844 = vmatpush1.msra.mxu0 0.0
    %845 = vmatprep.subr.mxu0 0.0
    %846 = vmatpush1.msra.mxu0 0.0
    %847 = vmatprep.subr.mxu0 0.0
    %848 = vmatpush1.msra.mxu0 0.0
    %849 = vmatprep.subr.mxu0 0.0
    %850 = vmatpush1.msra.mxu0 0.0
    %851 = vmatprep.subr.mxu0 0.0
    %852 = vmatpush1.msra.mxu0 0.0
    %853 = vmatprep.subr.mxu0 0.0
    %854 = vmatpush1.msra.mxu0 0.0
    %855 = vmatprep.subr.mxu0 0.0
    %856 = vmatpush1.msra.mxu0 0.0
    %857 = vmatprep.subr.mxu0 0.0
    %858 = vmatpush1.msra.mxu0 0.0
    %859 = vmatprep.subr.mxu0 0.0
    %860 = vmatpush1.msra.mxu0 0.0
    %861 = vmatprep.subr.mxu0 0.0
    %862 = vmatpush1.msra.mxu0 0.0
    %863 = vmatprep.subr.mxu0 0.0
    %864 = vmatpush1.msra.mxu0 0.0
    %865 = vmatprep.subr.mxu0 0.0
    %866 = vmatpush1.msra.mxu0 0.0
    %867 = vmatprep.subr.mxu0 0.0
    %868 = vmatpush1.msra.mxu0 0.0
    %869 = vmatprep.subr.mxu0 0.0
    %870 = vmatpush1.msra.mxu0 0.0
    %871 = vmatprep.subr.mxu0 0.0
    %872 = vmatpush1.msra.mxu0 0.0
    %873 = vmatprep.subr.mxu0 0.0
    %874 = vmatpush1.msra.mxu0 0.0
    %875 = vmatprep.subr.mxu0 0.0
    %876 = vmatpush1.msra.mxu0 0.0
    %877 = vmatprep.subr.mxu0 0.0
    %878 = vmatpush1.msra.mxu0 0.0
    %879 = vmatprep.subr.mxu0 0.0
    %880 = vmatpush1.msra.mxu0 0.0
    %881 = vmatprep.subr.mxu0 0.0
    %882 = vmatpush1.msra.mxu0 0.0
    %883 = vmatprep.mubr.f32.mxu0 0.0
    %884 = vmatmul.mubr.f32.gmra.mrb[0].mxu0 %v810
    %v885 = vpop.f32.mrb[0].mxu0
    %v886 = vadd.f32 0.0, %v885
    %v887 = vpop.f32.mrb[0].mxu0
    %888 = vmatprep.mubr.f32.mxu0 0.0
    %889 = vmatmul.mubr.f32.gmra.mrb[0].mxu0 %v812
    %v890 = vpop.f32.mrb[0].mxu0
    %v891 = vadd.f32 0.0, %v890
    %v892 = vpop.f32.mrb[0].mxu0
    %893 = vmatprep.mubr.f32.mxu0 0.0
    %894 = vmatmul.mubr.f32.gmra.mrb[0].mxu0 %v815
    %v895 = vpop.f32.mrb[0].mxu0
    %v896 = vadd.f32 0.0, %v895
    %v897 = vpop.f32.mrb[0].mxu0
    %898 = vmatprep.mubr.f32.mxu0 0.0
    %899 = vmatmul.mubr.f32.gmra.mrb[0].mxu0 %v817
    %v900 = vpop.f32.mrb[0].mxu0
    %v901 = vadd.f32 0.0, %v900
    %v902 = vpop.f32.mrb[0].mxu0
    %903 = vdwg.mxu0
    %v905 = vlaneseq
    %v906 = vshrl.u32 %v905, 7
    %v907 = vsub.s32 0, %v906
    %v908 = vrot.slane %v762, %v907
    %v910 = vadd.f32 %v908, %v886
    %v911 = vadd.f32 %v908, %v891
    %v912 = vadd.f32 %v908, %v896
    %v913 = vadd.f32 %v908, %v901
    %v916 = vrot.slane %v797, 1
    %v917 = vrot.slane %v789, 1
    %v918 = vsel %vm528, %v916, %v917
    %v919 = vrot.slane %v799, 1
    %v920 = vsel %vm528, %v917, %v919
    %v921 = vrot.slane %v798, 1
    %v922 = vrot.slane %v792, 1
    %v923 = vsel %vm528, %v921, %v922
    %v924 = vrot.slane %v800, 1
    %v925 = vsel %vm528, %v922, %v924
    %s926 = scalar_lea.vmem [#allocation10], 64
    %v927 = vld [vmem:[%s926] sm:$0xff]
    %v928 = vld [vmem:[%s926 + $0x8] sm:$0xff]
    %v929 = vld [vmem:[%s926 + $0x10] sm:$0xff]
    %v930 = vld [vmem:[%s926 + $0x18] sm:$0xff]
    %v931 = vld [vmem:[%s926 + $0x20] sm:$0xff]
    %v932 = vld [vmem:[%s926 + $0x28] sm:$0xff]
    %v933 = vld [vmem:[%s926 + $0x30] sm:$0xff]
    %v934 = vld [vmem:[%s926 + $0x38] sm:$0xff]
    %v935 = vsel %vm420, %v918, 0
    %v937 = vsel %vm420, %v920, 0
    %v939 = vsel %vm420, %v923, 0
    %v941 = vsel %vm420, %v925, 0
    %943 = vmatprep.subr.mxu0 0.0
    %944 = vmatpush1.msra.mxu0 %v927
    %945 = vmatprep.subr.mxu0 0.0
    %946 = vmatpush1.msra.mxu0 %v928
    %947 = vmatprep.subr.mxu0 0.0
    %948 = vmatpush1.msra.mxu0 %v929
    %949 = vmatprep.subr.mxu0 0.0
    %950 = vmatpush1.msra.mxu0 %v930
    %951 = vmatprep.subr.mxu0 0.0
    %952 = vmatpush1.msra.mxu0 %v931
    %953 = vmatprep.subr.mxu0 0.0
    %954 = vmatpush1.msra.mxu0 %v932
    %955 = vmatprep.subr.mxu0 0.0
    %956 = vmatpush1.msra.mxu0 %v933
    %957 = vmatprep.subr.mxu0 0.0
    %958 = vmatpush1.msra.mxu0 %v934
    %959 = vmatprep.subr.mxu0 0.0
    %960 = vmatpush1.msra.mxu0 0.0
    %961 = vmatprep.subr.mxu0 0.0
    %962 = vmatpush1.msra.mxu0 0.0
    %963 = vmatprep.subr.mxu0 0.0
    %964 = vmatpush1.msra.mxu0 0.0
    %965 = vmatprep.subr.mxu0 0.0
    %966 = vmatpush1.msra.mxu0 0.0
    %967 = vmatprep.subr.mxu0 0.0
    %968 = vmatpush1.msra.mxu0 0.0
    %969 = vmatprep.subr.mxu0 0.0
    %970 = vmatpush1.msra.mxu0 0.0
    %971 = vmatprep.subr.mxu0 0.0
    %972 = vmatpush1.msra.mxu0 0.0
    %973 = vmatprep.subr.mxu0 0.0
    %974 = vmatpush1.msra.mxu0 0.0
    %975 = vmatprep.subr.mxu0 0.0
    %976 = vmatpush1.msra.mxu0 0.0
    %977 = vmatprep.subr.mxu0 0.0
    %978 = vmatpush1.msra.mxu0 0.0
    %979 = vmatprep.subr.mxu0 0.0
    %980 = vmatpush1.msra.mxu0 0.0
    %981 = vmatprep.subr.mxu0 0.0
    %982 = vmatpush1.msra.mxu0 0.0
    %983 = vmatprep.subr.mxu0 0.0
    %984 = vmatpush1.msra.mxu0 0.0
    %985 = vmatprep.subr.mxu0 0.0
    %986 = vmatpush1.msra.mxu0 0.0
    %987 = vmatprep.subr.mxu0 0.0
    %988 = vmatpush1.msra.mxu0 0.0
    %989 = vmatprep.subr.mxu0 0.0
    %990 = vmatpush1.msra.mxu0 0.0
    %991 = vmatprep.subr.mxu0 0.0
    %992 = vmatpush1.msra.mxu0 0.0
    %993 = vmatprep.subr.mxu0 0.0
    %994 = vmatpush1.msra.mxu0 0.0
    %995 = vmatprep.subr.mxu0 0.0
    %996 = vmatpush1.msra.mxu0 0.0
    %997 = vmatprep.subr.mxu0 0.0
    %998 = vmatpush1.msra.mxu0 0.0
    %999 = vmatprep.subr.mxu0 0.0
    %1000 = vmatpush1.msra.mxu0 0.0
    %1001 = vmatprep.subr.mxu0 0.0
    %1002 = vmatpush1.msra.mxu0 0.0
    %1003 = vmatprep.subr.mxu0 0.0
    %1004 = vmatpush1.msra.mxu0 0.0
    %1005 = vmatprep.subr.mxu0 0.0
    %1006 = vmatpush1.msra.mxu0 0.0
    %1007 = vmatprep.mubr.f32.mxu0 0.0
    %1008 = vmatmul.mubr.f32.gmra.mrb[0].mxu0 %v935
    %v1009 = vpop.f32.mrb[0].mxu0
    %v1010 = vadd.f32 0.0, %v1009
    %v1011 = vpop.f32.mrb[0].mxu0
    %1012 = vmatprep.mubr.f32.mxu0 0.0
    %1013 = vmatmul.mubr.f32.gmra.mrb[0].mxu0 %v937
    %v1014 = vpop.f32.mrb[0].mxu0
    %v1015 = vadd.f32 0.0, %v1014
    %v1016 = vpop.f32.mrb[0].mxu0
    %1017 = vmatprep.mubr.f32.mxu0 0.0
    %1018 = vmatmul.mubr.f32.gmra.mrb[0].mxu0 %v939
    %v1019 = vpop.f32.mrb[0].mxu0
    %v1020 = vadd.f32 0.0, %v1019
    %v1021 = vpop.f32.mrb[0].mxu0
    %1022 = vmatprep.mubr.f32.mxu0 0.0
    %1023 = vmatmul.mubr.f32.gmra.mrb[0].mxu0 %v941
    %v1024 = vpop.f32.mrb[0].mxu0
    %v1025 = vadd.f32 0.0, %v1024
    %v1026 = vpop.f32.mrb[0].mxu0
    %1027 = vdwg.mxu0
    %v1028 = vadd.f32 %v910, %v1010
    %v1029 = vadd.f32 %v911, %v1015
    %v1030 = vadd.f32 %v912, %v1020
    %v1031 = vadd.f32 %v913, %v1025
    %v1032 = vrot.slane %v797, 2
    %v1033 = vrot.slane %v789, 2
    %v1034 = vsel %vm645, %v1032, %v1033
    %v1035 = vrot.slane %v799, 2
    %v1036 = vsel %vm645, %v1033, %v1035
    %v1037 = vrot.slane %v798, 2
    %v1038 = vrot.slane %v792, 2
    %v1039 = vsel %vm645, %v1037, %v1038
    %v1040 = vrot.slane %v800, 2
    %v1041 = vsel %vm645, %v1038, %v1040
    %s1042 = scalar_lea.vmem [#allocation10], 128
    %v1043 = vld [vmem:[%s1042] sm:$0xff]
    %v1044 = vld [vmem:[%s1042 + $0x8] sm:$0xff]
    %v1045 = vld [vmem:[%s1042 + $0x10] sm:$0xff]
    %v1046 = vld [vmem:[%s1042 + $0x18] sm:$0xff]
    %v1047 = vld [vmem:[%s1042 + $0x20] sm:$0xff]
    %v1048 = vld [vmem:[%s1042 + $0x28] sm:$0xff]
    %v1049 = vld [vmem:[%s1042 + $0x30] sm:$0xff]
    %v1050 = vld [vmem:[%s1042 + $0x38] sm:$0xff]
    %v1051 = vsel %vm420, %v1034, 0
    %v1053 = vsel %vm420, %v1036, 0
    %v1055 = vsel %vm420, %v1039, 0
    %v1057 = vsel %vm420, %v1041, 0
    %1059 = vmatprep.subr.mxu0 0.0
    %1060 = vmatpush1.msra.mxu0 %v1043
    %1061 = vmatprep.subr.mxu0 0.0
    %1062 = vmatpush1.msra.mxu0 %v1044
    %1063 = vmatprep.subr.mxu0 0.0
    %1064 = vmatpush1.msra.mxu0 %v1045
    %1065 = vmatprep.subr.mxu0 0.0
    %1066 = vmatpush1.msra.mxu0 %v1046
    %1067 = vmatprep.subr.mxu0 0.0
    %1068 = vmatpush1.msra.mxu0 %v1047
    %1069 = vmatprep.subr.mxu0 0.0
    %1070 = vmatpush1.msra.mxu0 %v1048
    %1071 = vmatprep.subr.mxu0 0.0
    %1072 = vmatpush1.msra.mxu0 %v1049
    %1073 = vmatprep.subr.mxu0 0.0
    %1074 = vmatpush1.msra.mxu0 %v1050
    %1075 = vmatprep.subr.mxu0 0.0
    %1076 = vmatpush1.msra.mxu0 0.0
    %1077 = vmatprep.subr.mxu0 0.0
    %1078 = vmatpush1.msra.mxu0 0.0
    %1079 = vmatprep.subr.mxu0 0.0
    %1080 = vmatpush1.msra.mxu0 0.0
    %1081 = vmatprep.subr.mxu0 0.0
    %1082 = vmatpush1.msra.mxu0 0.0
    %1083 = vmatprep.subr.mxu0 0.0
    %1084 = vmatpush1.msra.mxu0 0.0
    %1085 = vmatprep.subr.mxu0 0.0
    %1086 = vmatpush1.msra.mxu0 0.0
    %1087 = vmatprep.subr.mxu0 0.0
    %1088 = vmatpush1.msra.mxu0 0.0
    %1089 = vmatprep.subr.mxu0 0.0
    %1090 = vmatpush1.msra.mxu0 0.0
    %1091 = vmatprep.subr.mxu0 0.0
    %1092 = vmatpush1.msra.mxu0 0.0
    %1093 = vmatprep.subr.mxu0 0.0
    %1094 = vmatpush1.msra.mxu0 0.0
    %1095 = vmatprep.subr.mxu0 0.0
    %1096 = vmatpush1.msra.mxu0 0.0
    %1097 = vmatprep.subr.mxu0 0.0
    %1098 = vmatpush1.msra.mxu0 0.0
    %1099 = vmatprep.subr.mxu0 0.0
    %1100 = vmatpush1.msra.mxu0 0.0
    %1101 = vmatprep.subr.mxu0 0.0
    %1102 = vmatpush1.msra.mxu0 0.0
    %1103 = vmatprep.subr.mxu0 0.0
    %1104 = vmatpush1.msra.mxu0 0.0
    %1105 = vmatprep.subr.mxu0 0.0
    %1106 = vmatpush1.msra.mxu0 0.0
    %1107 = vmatprep.subr.mxu0 0.0
    %1108 = vmatpush1.msra.mxu0 0.0
    %1109 = vmatprep.subr.mxu0 0.0
    %1110 = vmatpush1.msra.mxu0 0.0
    %1111 = vmatprep.subr.mxu0 0.0
    %1112 = vmatpush1.msra.mxu0 0.0
    %1113 = vmatprep.subr.mxu0 0.0
    %1114 = vmatpush1.msra.mxu0 0.0
    %1115 = vmatprep.subr.mxu0 0.0
    %1116 = vmatpush1.msra.mxu0 0.0
    %1117 = vmatprep.subr.mxu0 0.0
    %1118 = vmatpush1.msra.mxu0 0.0
    %1119 = vmatprep.subr.mxu0 0.0
    %1120 = vmatpush1.msra.mxu0 0.0
    %1121 = vmatprep.subr.mxu0 0.0
    %1122 = vmatpush1.msra.mxu0 0.0
    %1123 = vmatprep.mubr.f32.mxu0 0.0
    %1124 = vmatmul.mubr.f32.gmra.mrb[0].mxu0 %v1051
    %v1125 = vpop.f32.mrb[0].mxu0
    %v1126 = vadd.f32 0.0, %v1125
    %v1127 = vpop.f32.mrb[0].mxu0
    %1128 = vmatprep.mubr.f32.mxu0 0.0
    %1129 = vmatmul.mubr.f32.gmra.mrb[0].mxu0 %v1053
    %v1130 = vpop.f32.mrb[0].mxu0
    %v1131 = vadd.f32 0.0, %v1130
    %v1132 = vpop.f32.mrb[0].mxu0
    %1133 = vmatprep.mubr.f32.mxu0 0.0
    %1134 = vmatmul.mubr.f32.gmra.mrb[0].mxu0 %v1055
    %v1135 = vpop.f32.mrb[0].mxu0
    %v1136 = vadd.f32 0.0, %v1135
    %v1137 = vpop.f32.mrb[0].mxu0
    %1138 = vmatprep.mubr.f32.mxu0 0.0
    %1139 = vmatmul.mubr.f32.gmra.mrb[0].mxu0 %v1057
    %v1140 = vpop.f32.mrb[0].mxu0
    %v1141 = vadd.f32 0.0, %v1140
    %v1142 = vpop.f32.mrb[0].mxu0
    %1143 = vdwg.mxu0
    %v1144 = vadd.f32 %v1028, %v1126
    %v1145 = vadd.f32 %v1029, %v1131
    %v1146 = vadd.f32 %v1030, %v1136
    %v1147 = vadd.f32 %v1031, %v1141
    %v1148 = vadd.f32 %v1144, %v368
    %v1149 = vadd.f32 %v1145, %v369
    %v1150 = vadd.f32 %v1146, %v370
    %v1151 = vadd.f32 %v1147, %v371
    %s1152 = scalar_lea.vmem [#allocation8], 1
    %v1153 = vld [vmem:[%s1152] sm:$0x1]
    %v1154 = vmul.f32 %v1148, 0.5
    %v1155 = vmul.f32 %v1149, 0.5
    %v1156 = vmul.f32 %v1150, 0.5
    %v1157 = vmul.f32 %v1151, 0.5
    %v1158 = vmul.f32 %v1148, 0.70710677
    %v1159 = vmul.f32 %v1149, 0.70710677
    %v1160 = vmul.f32 %v1150, 0.70710677
    %v1161 = vmul.f32 %v1151, 0.70710677
    %v1162 = verf.f32.pop %v1158
    %v1163 = verf.f32.pop %v1159
    %v1164 = verf.f32.pop %v1160
    %v1165 = verf.f32.pop %v1161
    %v1166 = vadd.f32 %v1162, 1.0
    %v1167 = vadd.f32 %v1163, 1.0
    %v1168 = vadd.f32 %v1164, 1.0
    %v1169 = vadd.f32 %v1165, 1.0
    %v1170 = vmul.f32 %v1154, %v1166
    %v1171 = vmul.f32 %v1155, %v1167
    %v1172 = vmul.f32 %v1156, %v1168
    %v1173 = vmul.f32 %v1157, %v1169
    %vm1178 = vcmask 1041408
    %v1179 = vrot.slane %v1170, 6
    %v1180 = vrot.slane %v1171, 6
    %v1181 = vsel %vm1178, %v1179, %v1180
    %v1182 = vrot.slane %v1172, 6
    %v1183 = vrot.slane %v1173, 6
    %v1184 = vsel %vm1178, %v1182, %v1183
    %v1189 = vsel %vm1178, 0.0, %v1179
    %v1190 = vsel %vm1178, 0.0, %v1182
    %v1191 = vsel %vm1178, %v1180, 0.0
    %v1192 = vsel %vm1178, %v1183, 0.0
    %s1193 = scalar_lea.vmem [#allocation7], 192
    %v1194 = vld [vmem:[%s1193] sm:$0xff]
    %v1195 = vld [vmem:[%s1193 + $0x8] sm:$0xff]
    %v1196 = vld [vmem:[%s1193 + $0x10] sm:$0xff]
    %v1197 = vld [vmem:[%s1193 + $0x18] sm:$0xff]
    %v1198 = vld [vmem:[%s1193 + $0x20] sm:$0xff]
    %v1199 = vld [vmem:[%s1193 + $0x28] sm:$0xff]
    %v1200 = vld [vmem:[%s1193 + $0x30] sm:$0xff]
    %v1201 = vld [vmem:[%s1193 + $0x38] sm:$0xff]
    %v1203 = vsel %vm420, %v1189, 0
    %v1205 = vsel %vm420, %v1181, 0
    %v1208 = vsel %vm420, %v1190, 0
    %v1210 = vsel %vm420, %v1184, 0
    %1212 = vmatprep.subr.mxu0 0.0
    %1213 = vmatpush1.msra.mxu0 %v1194
    %1214 = vmatprep.subr.mxu0 0.0
    %1215 = vmatpush1.msra.mxu0 %v1195
    %1216 = vmatprep.subr.mxu0 0.0
    %1217 = vmatpush1.msra.mxu0 %v1196
    %1218 = vmatprep.subr.mxu0 0.0
    %1219 = vmatpush1.msra.mxu0 %v1197
    %1220 = vmatprep.subr.mxu0 0.0
    %1221 = vmatpush1.msra.mxu0 %v1198
    %1222 = vmatprep.subr.mxu0 0.0
    %1223 = vmatpush1.msra.mxu0 %v1199
    %1224 = vmatprep.subr.mxu0 0.0
    %1225 = vmatpush1.msra.mxu0 %v1200
    %1226 = vmatprep.subr.mxu0 0.0
    %1227 = vmatpush1.msra.mxu0 %v1201
    %1228 = vmatprep.subr.mxu0 0.0
    %1229 = vmatpush1.msra.mxu0 0.0
    %1230 = vmatprep.subr.mxu0 0.0
    %1231 = vmatpush1.msra.mxu0 0.0
    %1232 = vmatprep.subr.mxu0 0.0
    %1233 = vmatpush1.msra.mxu0 0.0
    %1234 = vmatprep.subr.mxu0 0.0
    %1235 = vmatpush1.msra.mxu0 0.0
    %1236 = vmatprep.subr.mxu0 0.0
    %1237 = vmatpush1.msra.mxu0 0.0
    %1238 = vmatprep.subr.mxu0 0.0
    %1239 = vmatpush1.msra.mxu0 0.0
    %1240 = vmatprep.subr.mxu0 0.0
    %1241 = vmatpush1.msra.mxu0 0.0
    %1242 = vmatprep.subr.mxu0 0.0
    %1243 = vmatpush1.msra.mxu0 0.0
    %1244 = vmatprep.subr.mxu0 0.0
    %1245 = vmatpush1.msra.mxu0 0.0
    %1246 = vmatprep.subr.mxu0 0.0
    %1247 = vmatpush1.msra.mxu0 0.0
    %1248 = vmatprep.subr.mxu0 0.0
    %1249 = vmatpush1.msra.mxu0 0.0
    %1250 = vmatprep.subr.mxu0 0.0
    %1251 = vmatpush1.msra.mxu0 0.0
    %1252 = vmatprep.subr.mxu0 0.0
    %1253 = vmatpush1.msra.mxu0 0.0
    %1254 = vmatprep.subr.mxu0 0.0
    %1255 = vmatpush1.msra.mxu0 0.0
    %1256 = vmatprep.subr.mxu0 0.0
    %1257 = vmatpush1.msra.mxu0 0.0
    %1258 = vmatprep.subr.mxu0 0.0
    %1259 = vmatpush1.msra.mxu0 0.0
    %1260 = vmatprep.subr.mxu0 0.0
    %1261 = vmatpush1.msra.mxu0 0.0
    %1262 = vmatprep.subr.mxu0 0.0
    %1263 = vmatpush1.msra.mxu0 0.0
    %1264 = vmatprep.subr.mxu0 0.0
    %1265 = vmatpush1.msra.mxu0 0.0
    %1266 = vmatprep.subr.mxu0 0.0
    %1267 = vmatpush1.msra.mxu0 0.0
    %1268 = vmatprep.subr.mxu0 0.0
    %1269 = vmatpush1.msra.mxu0 0.0
    %1270 = vmatprep.subr.mxu0 0.0
    %1271 = vmatpush1.msra.mxu0 0.0
    %1272 = vmatprep.subr.mxu0 0.0
    %1273 = vmatpush1.msra.mxu0 0.0
    %1274 = vmatprep.subr.mxu0 0.0
    %1275 = vmatpush1.msra.mxu0 0.0
    %1276 = vmatprep.mubr.f32.mxu0 0.0
    %1277 = vmatmul.mubr.f32.gmra.mrb[0].mxu0 %v1203
    %v1278 = vpop.f32.mrb[0].mxu0
    %v1279 = vadd.f32 0.0, %v1278
    %v1280 = vpop.f32.mrb[0].mxu0
    %1281 = vmatprep.mubr.f32.mxu0 0.0
    %1282 = vmatmul.mubr.f32.gmra.mrb[0].mxu0 %v1205
    %v1283 = vpop.f32.mrb[0].mxu0
    %v1284 = vadd.f32 0.0, %v1283
    %v1285 = vpop.f32.mrb[0].mxu0
    %1286 = vmatprep.mubr.f32.mxu0 0.0
    %1287 = vmatmul.mubr.f32.gmra.mrb[0].mxu0 %v1208
    %v1288 = vpop.f32.mrb[0].mxu0
    %v1289 = vadd.f32 0.0, %v1288
    %v1290 = vpop.f32.mrb[0].mxu0
    %1291 = vmatprep.mubr.f32.mxu0 0.0
    %1292 = vmatmul.mubr.f32.gmra.mrb[0].mxu0 %v1210
    %v1293 = vpop.f32.mrb[0].mxu0
    %v1294 = vadd.f32 0.0, %v1293
    %v1295 = vpop.f32.mrb[0].mxu0
    %1296 = vdwg.mxu0
    %v1298 = vlaneseq
    %v1299 = vshrl.u32 %v1298, 7
    %v1300 = vsub.s32 0, %v1299
    %v1301 = vrot.slane %v1153, %v1300
    %v1303 = vadd.f32 %v1301, %v1279
    %v1304 = vadd.f32 %v1301, %v1284
    %v1305 = vadd.f32 %v1301, %v1289
    %v1306 = vadd.f32 %v1301, %v1294
    %v1309 = vrot.slane %v1189, 2
    %v1310 = vrot.slane %v1181, 2
    %v1311 = vsel %vm645, %v1309, %v1310
    %v1312 = vrot.slane %v1191, 2
    %v1313 = vsel %vm645, %v1310, %v1312
    %v1314 = vrot.slane %v1190, 2
    %v1315 = vrot.slane %v1184, 2
    %v1316 = vsel %vm645, %v1314, %v1315
    %v1317 = vrot.slane %v1192, 2
    %v1318 = vsel %vm645, %v1315, %v1317
    %s1319 = scalar_lea.vmem [#allocation7], 256
    %v1320 = vld [vmem:[%s1319] sm:$0xff]
    %v1321 = vld [vmem:[%s1319 + $0x8] sm:$0xff]
    %v1322 = vld [vmem:[%s1319 + $0x10] sm:$0xff]
    %v1323 = vld [vmem:[%s1319 + $0x18] sm:$0xff]
    %v1324 = vld [vmem:[%s1319 + $0x20] sm:$0xff]
    %v1325 = vld [vmem:[%s1319 + $0x28] sm:$0xff]
    %v1326 = vld [vmem:[%s1319 + $0x30] sm:$0xff]
    %v1327 = vld [vmem:[%s1319 + $0x38] sm:$0xff]
    %v1328 = vsel %vm420, %v1311, 0
    %v1330 = vsel %vm420, %v1313, 0
    %v1332 = vsel %vm420, %v1316, 0
    %v1334 = vsel %vm420, %v1318, 0
    %1336 = vmatprep.subr.mxu0 0.0
    %1337 = vmatpush1.msra.mxu0 %v1320
    %1338 = vmatprep.subr.mxu0 0.0
    %1339 = vmatpush1.msra.mxu0 %v1321
    %1340 = vmatprep.subr.mxu0 0.0
    %1341 = vmatpush1.msra.mxu0 %v1322
    %1342 = vmatprep.subr.mxu0 0.0
    %1343 = vmatpush1.msra.mxu0 %v1323
    %1344 = vmatprep.subr.mxu0 0.0
    %1345 = vmatpush1.msra.mxu0 %v1324
    %1346 = vmatprep.subr.mxu0 0.0
    %1347 = vmatpush1.msra.mxu0 %v1325
    %1348 = vmatprep.subr.mxu0 0.0
    %1349 = vmatpush1.msra.mxu0 %v1326
    %1350 = vmatprep.subr.mxu0 0.0
    %1351 = vmatpush1.msra.mxu0 %v1327
    %1352 = vmatprep.subr.mxu0 0.0
    %1353 = vmatpush1.msra.mxu0 0.0
    %1354 = vmatprep.subr.mxu0 0.0
    %1355 = vmatpush1.msra.mxu0 0.0
    %1356 = vmatprep.subr.mxu0 0.0
    %1357 = vmatpush1.msra.mxu0 0.0
    %1358 = vmatprep.subr.mxu0 0.0
    %1359 = vmatpush1.msra.mxu0 0.0
    %1360 = vmatprep.subr.mxu0 0.0
    %1361 = vmatpush1.msra.mxu0 0.0
    %1362 = vmatprep.subr.mxu0 0.0
    %1363 = vmatpush1.msra.mxu0 0.0
    %1364 = vmatprep.subr.mxu0 0.0
    %1365 = vmatpush1.msra.mxu0 0.0
    %1366 = vmatprep.subr.mxu0 0.0
    %1367 = vmatpush1.msra.mxu0 0.0
    %1368 = vmatprep.subr.mxu0 0.0
    %1369 = vmatpush1.msra.mxu0 0.0
    %1370 = vmatprep.subr.mxu0 0.0
    %1371 = vmatpush1.msra.mxu0 0.0
    %1372 = vmatprep.subr.mxu0 0.0
    %1373 = vmatpush1.msra.mxu0 0.0
    %1374 = vmatprep.subr.mxu0 0.0
    %1375 = vmatpush1.msra.mxu0 0.0
    %1376 = vmatprep.subr.mxu0 0.0
    %1377 = vmatpush1.msra.mxu0 0.0
    %1378 = vmatprep.subr.mxu0 0.0
    %1379 = vmatpush1.msra.mxu0 0.0
    %1380 = vmatprep.subr.mxu0 0.0
    %1381 = vmatpush1.msra.mxu0 0.0
    %1382 = vmatprep.subr.mxu0 0.0
    %1383 = vmatpush1.msra.mxu0 0.0
    %1384 = vmatprep.subr.mxu0 0.0
    %1385 = vmatpush1.msra.mxu0 0.0
    %1386 = vmatprep.subr.mxu0 0.0
    %1387 = vmatpush1.msra.mxu0 0.0
    %1388 = vmatprep.subr.mxu0 0.0
    %1389 = vmatpush1.msra.mxu0 0.0
    %1390 = vmatprep.subr.mxu0 0.0
    %1391 = vmatpush1.msra.mxu0 0.0
    %1392 = vmatprep.subr.mxu0 0.0
    %1393 = vmatpush1.msra.mxu0 0.0
    %1394 = vmatprep.subr.mxu0 0.0
    %1395 = vmatpush1.msra.mxu0 0.0
    %1396 = vmatprep.subr.mxu0 0.0
    %1397 = vmatpush1.msra.mxu0 0.0
    %1398 = vmatprep.subr.mxu0 0.0
    %1399 = vmatpush1.msra.mxu0 0.0
    %1400 = vmatprep.mubr.f32.mxu0 0.0
    %1401 = vmatmul.mubr.f32.gmra.mrb[0].mxu0 %v1328
    %v1402 = vpop.f32.mrb[0].mxu0
    %v1403 = vadd.f32 0.0, %v1402
    %v1404 = vpop.f32.mrb[0].mxu0
    %1405 = vmatprep.mubr.f32.mxu0 0.0
    %1406 = vmatmul.mubr.f32.gmra.mrb[0].mxu0 %v1330
    %v1407 = vpop.f32.mrb[0].mxu0
    %v1408 = vadd.f32 0.0, %v1407
    %v1409 = vpop.f32.mrb[0].mxu0
    %1410 = vmatprep.mubr.f32.mxu0 0.0
    %1411 = vmatmul.mubr.f32.gmra.mrb[0].mxu0 %v1332
    %v1412 = vpop.f32.mrb[0].mxu0
    %v1413 = vadd.f32 0.0, %v1412
    %v1414 = vpop.f32.mrb[0].mxu0
    %1415 = vmatprep.mubr.f32.mxu0 0.0
    %1416 = vmatmul.mubr.f32.gmra.mrb[0].mxu0 %v1334
    %v1417 = vpop.f32.mrb[0].mxu0
    %v1418 = vadd.f32 0.0, %v1417
    %v1419 = vpop.f32.mrb[0].mxu0
    %1420 = vdwg.mxu0
    %v1421 = vadd.f32 %v1303, %v1403
    %v1422 = vadd.f32 %v1304, %v1408
    %v1423 = vadd.f32 %v1305, %v1413
    %v1424 = vadd.f32 %v1306, %v1418
    %vm1425 = vcmask 1043456
    %v1426 = vrot.slane %v1189, 4
    %v1427 = vrot.slane %v1181, 4
    %v1428 = vsel %vm1425, %v1426, %v1427
    %v1429 = vrot.slane %v1191, 4
    %v1430 = vsel %vm1425, %v1427, %v1429
    %v1431 = vrot.slane %v1190, 4
    %v1432 = vrot.slane %v1184, 4
    %v1433 = vsel %vm1425, %v1431, %v1432
    %v1434 = vrot.slane %v1192, 4
    %v1435 = vsel %vm1425, %v1432, %v1434
    %s1436 = scalar_lea.vmem [#allocation7], 320
    %v1437 = vld [vmem:[%s1436] sm:$0xff]
    %v1438 = vld [vmem:[%s1436 + $0x8] sm:$0xff]
    %v1439 = vld [vmem:[%s1436 + $0x10] sm:$0xff]
    %v1440 = vld [vmem:[%s1436 + $0x18] sm:$0xff]
    %v1441 = vld [vmem:[%s1436 + $0x20] sm:$0xff]
    %v1442 = vld [vmem:[%s1436 + $0x28] sm:$0xff]
    %v1443 = vld [vmem:[%s1436 + $0x30] sm:$0xff]
    %v1444 = vld [vmem:[%s1436 + $0x38] sm:$0xff]
    %v1445 = vsel %vm420, %v1428, 0
    %v1447 = vsel %vm420, %v1430, 0
    %v1449 = vsel %vm420, %v1433, 0
    %v1451 = vsel %vm420, %v1435, 0
    %1453 = vmatprep.subr.mxu0 0.0
    %1454 = vmatpush1.msra.mxu0 %v1437
    %1455 = vmatprep.subr.mxu0 0.0
    %1456 = vmatpush1.msra.mxu0 %v1438
    %1457 = vmatprep.subr.mxu0 0.0
    %1458 = vmatpush1.msra.mxu0 %v1439
    %1459 = vmatprep.subr.mxu0 0.0
    %1460 = vmatpush1.msra.mxu0 %v1440
    %1461 = vmatprep.subr.mxu0 0.0
    %1462 = vmatpush1.msra.mxu0 %v1441
    %1463 = vmatprep.subr.mxu0 0.0
    %1464 = vmatpush1.msra.mxu0 %v1442
    %1465 = vmatprep.subr.mxu0 0.0
    %1466 = vmatpush1.msra.mxu0 %v1443
    %1467 = vmatprep.subr.mxu0 0.0
    %1468 = vmatpush1.msra.mxu0 %v1444
    %1469 = vmatprep.subr.mxu0 0.0
    %1470 = vmatpush1.msra.mxu0 0.0
    %1471 = vmatprep.subr.mxu0 0.0
    %1472 = vmatpush1.msra.mxu0 0.0
    %1473 = vmatprep.subr.mxu0 0.0
    %1474 = vmatpush1.msra.mxu0 0.0
    %1475 = vmatprep.subr.mxu0 0.0
    %1476 = vmatpush1.msra.mxu0 0.0
    %1477 = vmatprep.subr.mxu0 0.0
    %1478 = vmatpush1.msra.mxu0 0.0
    %1479 = vmatprep.subr.mxu0 0.0
    %1480 = vmatpush1.msra.mxu0 0.0
    %1481 = vmatprep.subr.mxu0 0.0
    %1482 = vmatpush1.msra.mxu0 0.0
    %1483 = vmatprep.subr.mxu0 0.0
    %1484 = vmatpush1.msra.mxu0 0.0
    %1485 = vmatprep.subr.mxu0 0.0
    %1486 = vmatpush1.msra.mxu0 0.0
    %1487 = vmatprep.subr.mxu0 0.0
    %1488 = vmatpush1.msra.mxu0 0.0
    %1489 = vmatprep.subr.mxu0 0.0
    %1490 = vmatpush1.msra.mxu0 0.0
    %1491 = vmatprep.subr.mxu0 0.0
    %1492 = vmatpush1.msra.mxu0 0.0
    %1493 = vmatprep.subr.mxu0 0.0
    %1494 = vmatpush1.msra.mxu0 0.0
    %1495 = vmatprep.subr.mxu0 0.0
    %1496 = vmatpush1.msra.mxu0 0.0
    %1497 = vmatprep.subr.mxu0 0.0
    %1498 = vmatpush1.msra.mxu0 0.0
    %1499 = vmatprep.subr.mxu0 0.0
    %1500 = vmatpush1.msra.mxu0 0.0
    %1501 = vmatprep.subr.mxu0 0.0
    %1502 = vmatpush1.msra.mxu0 0.0
    %1503 = vmatprep.subr.mxu0 0.0
    %1504 = vmatpush1.msra.mxu0 0.0
    %1505 = vmatprep.subr.mxu0 0.0
    %1506 = vmatpush1.msra.mxu0 0.0
    %1507 = vmatprep.subr.mxu0 0.0
    %1508 = vmatpush1.msra.mxu0 0.0
    %1509 = vmatprep.subr.mxu0 0.0
    %1510 = vmatpush1.msra.mxu0 0.0
    %1511 = vmatprep.subr.mxu0 0.0
    %1512 = vmatpush1.msra.mxu0 0.0
    %1513 = vmatprep.subr.mxu0 0.0
    %1514 = vmatpush1.msra.mxu0 0.0
    %1515 = vmatprep.subr.mxu0 0.0
    %1516 = vmatpush1.msra.mxu0 0.0
    %1517 = vmatprep.mubr.f32.mxu0 0.0
    %1518 = vmatmul.mubr.f32.gmra.mrb[0].mxu0 %v1445
    %v1519 = vpop.f32.mrb[0].mxu0
    %v1520 = vadd.f32 0.0, %v1519
    %v1521 = vpop.f32.mrb[0].mxu0
    %1522 = vmatprep.mubr.f32.mxu0 0.0
    %1523 = vmatmul.mubr.f32.gmra.mrb[0].mxu0 %v1447
    %v1524 = vpop.f32.mrb[0].mxu0
    %v1525 = vadd.f32 0.0, %v1524
    %v1526 = vpop.f32.mrb[0].mxu0
    %1527 = vmatprep.mubr.f32.mxu0 0.0
    %1528 = vmatmul.mubr.f32.gmra.mrb[0].mxu0 %v1449
    %v1529 = vpop.f32.mrb[0].mxu0
    %v1530 = vadd.f32 0.0, %v1529
    %v1531 = vpop.f32.mrb[0].mxu0
    %1532 = vmatprep.mubr.f32.mxu0 0.0
    %1533 = vmatmul.mubr.f32.gmra.mrb[0].mxu0 %v1451
    %v1534 = vpop.f32.mrb[0].mxu0
    %v1535 = vadd.f32 0.0, %v1534
    %v1536 = vpop.f32.mrb[0].mxu0
    %1537 = vdwg.mxu0
    %v1538 = vadd.f32 %v1421, %v1520
    %v1539 = vadd.f32 %v1422, %v1525
    %v1540 = vadd.f32 %v1423, %v1530
    %v1541 = vadd.f32 %v1424, %v1535
    %s1542 = scalar_lea.vmem [#allocation11], 1
    %v1543 = vld [vmem:[%s1542] sm:$0x1]
    %v1544 = vmul.f32 %v1538, 0.5
    %v1545 = vmul.f32 %v1539, 0.5
    %v1546 = vmul.f32 %v1540, 0.5
    %v1547 = vmul.f32 %v1541, 0.5
    %v1548 = vmul.f32 %v1538, 0.70710677
    %v1549 = vmul.f32 %v1539, 0.70710677
    %v1550 = vmul.f32 %v1540, 0.70710677
    %v1551 = vmul.f32 %v1541, 0.70710677
    %v1552 = verf.f32.pop %v1548
    %v1553 = verf.f32.pop %v1549
    %v1554 = verf.f32.pop %v1550
    %v1555 = verf.f32.pop %v1551
    %v1556 = vadd.f32 %v1552, 1.0
    %v1557 = vadd.f32 %v1553, 1.0
    %v1558 = vadd.f32 %v1554, 1.0
    %v1559 = vadd.f32 %v1555, 1.0
    %v1560 = vmul.f32 %v1544, %v1556
    %v1561 = vmul.f32 %v1545, %v1557
    %v1562 = vmul.f32 %v1546, %v1558
    %v1563 = vmul.f32 %v1547, %v1559
    %v1568 = vrot.slane %v1560, 6
    %v1569 = vrot.slane %v1561, 6
    %v1570 = vsel %vm1178, %v1568, %v1569
    %v1571 = vrot.slane %v1562, 6
    %v1572 = vrot.slane %v1563, 6
    %v1573 = vsel %vm1178, %v1571, %v1572
    %v1578 = vsel %vm1178, 0.0, %v1568
    %v1579 = vsel %vm1178, 0.0, %v1571
    %v1580 = vsel %vm1178, %v1569, 0.0
    %v1581 = vsel %vm1178, %v1572, 0.0
    %s1582 = scalar_lea.vmem [#allocation10], 192
    %v1583 = vld [vmem:[%s1582] sm:$0xff]
    %v1584 = vld [vmem:[%s1582 + $0x8] sm:$0xff]
    %v1585 = vld [vmem:[%s1582 + $0x10] sm:$0xff]
    %v1586 = vld [vmem:[%s1582 + $0x18] sm:$0xff]
    %v1587 = vld [vmem:[%s1582 + $0x20] sm:$0xff]
    %v1588 = vld [vmem:[%s1582 + $0x28] sm:$0xff]
    %v1589 = vld [vmem:[%s1582 + $0x30] sm:$0xff]
    %v1590 = vld [vmem:[%s1582 + $0x38] sm:$0xff]
    %v1592 = vsel %vm420, %v1578, 0
    %v1594 = vsel %vm420, %v1570, 0
    %v1597 = vsel %vm420, %v1579, 0
    %v1599 = vsel %vm420, %v1573, 0
    %1601 = vmatprep.subr.mxu0 0.0
    %1602 = vmatpush1.msra.mxu0 %v1583
    %1603 = vmatprep.subr.mxu0 0.0
    %1604 = vmatpush1.msra.mxu0 %v1584
    %1605 = vmatprep.subr.mxu0 0.0
    %1606 = vmatpush1.msra.mxu0 %v1585
    %1607 = vmatprep.subr.mxu0 0.0
    %1608 = vmatpush1.msra.mxu0 %v1586
    %1609 = vmatprep.subr.mxu0 0.0
    %1610 = vmatpush1.msra.mxu0 %v1587
    %1611 = vmatprep.subr.mxu0 0.0
    %1612 = vmatpush1.msra.mxu0 %v1588
    %1613 = vmatprep.subr.mxu0 0.0
    %1614 = vmatpush1.msra.mxu0 %v1589
    %1615 = vmatprep.subr.mxu0 0.0
    %1616 = vmatpush1.msra.mxu0 %v1590
    %1617 = vmatprep.subr.mxu0 0.0
    %1618 = vmatpush1.msra.mxu0 0.0
    %1619 = vmatprep.subr.mxu0 0.0
    %1620 = vmatpush1.msra.mxu0 0.0
    %1621 = vmatprep.subr.mxu0 0.0
    %1622 = vmatpush1.msra.mxu0 0.0
    %1623 = vmatprep.subr.mxu0 0.0
    %1624 = vmatpush1.msra.mxu0 0.0
    %1625 = vmatprep.subr.mxu0 0.0
    %1626 = vmatpush1.msra.mxu0 0.0
    %1627 = vmatprep.subr.mxu0 0.0
    %1628 = vmatpush1.msra.mxu0 0.0
    %1629 = vmatprep.subr.mxu0 0.0
    %1630 = vmatpush1.msra.mxu0 0.0
    %1631 = vmatprep.subr.mxu0 0.0
    %1632 = vmatpush1.msra.mxu0 0.0
    %1633 = vmatprep.subr.mxu0 0.0
    %1634 = vmatpush1.msra.mxu0 0.0
    %1635 = vmatprep.subr.mxu0 0.0
    %1636 = vmatpush1.msra.mxu0 0.0
    %1637 = vmatprep.subr.mxu0 0.0
    %1638 = vmatpush1.msra.mxu0 0.0
    %1639 = vmatprep.subr.mxu0 0.0
    %1640 = vmatpush1.msra.mxu0 0.0
    %1641 = vmatprep.subr.mxu0 0.0
    %1642 = vmatpush1.msra.mxu0 0.0
    %1643 = vmatprep.subr.mxu0 0.0
    %1644 = vmatpush1.msra.mxu0 0.0
    %1645 = vmatprep.subr.mxu0 0.0
    %1646 = vmatpush1.msra.mxu0 0.0
    %1647 = vmatprep.subr.mxu0 0.0
    %1648 = vmatpush1.msra.mxu0 0.0
    %1649 = vmatprep.subr.mxu0 0.0
    %1650 = vmatpush1.msra.mxu0 0.0
    %1651 = vmatprep.subr.mxu0 0.0
    %1652 = vmatpush1.msra.mxu0 0.0
    %1653 = vmatprep.subr.mxu0 0.0
    %1654 = vmatpush1.msra.mxu0 0.0
    %1655 = vmatprep.subr.mxu0 0.0
    %1656 = vmatpush1.msra.mxu0 0.0
    %1657 = vmatprep.subr.mxu0 0.0
    %1658 = vmatpush1.msra.mxu0 0.0
    %1659 = vmatprep.subr.mxu0 0.0
    %1660 = vmatpush1.msra.mxu0 0.0
    %1661 = vmatprep.subr.mxu0 0.0
    %1662 = vmatpush1.msra.mxu0 0.0
    %1663 = vmatprep.subr.mxu0 0.0
    %1664 = vmatpush1.msra.mxu0 0.0
    %1665 = vmatprep.mubr.f32.mxu0 0.0
    %1666 = vmatmul.mubr.f32.gmra.mrb[0].mxu0 %v1592
    %v1667 = vpop.f32.mrb[0].mxu0
    %v1668 = vadd.f32 0.0, %v1667
    %v1669 = vpop.f32.mrb[0].mxu0
    %1670 = vmatprep.mubr.f32.mxu0 0.0
    %1671 = vmatmul.mubr.f32.gmra.mrb[0].mxu0 %v1594
    %v1672 = vpop.f32.mrb[0].mxu0
    %v1673 = vadd.f32 0.0, %v1672
    %v1674 = vpop.f32.mrb[0].mxu0
    %1675 = vmatprep.mubr.f32.mxu0 0.0
    %1676 = vmatmul.mubr.f32.gmra.mrb[0].mxu0 %v1597
    %v1677 = vpop.f32.mrb[0].mxu0
    %v1678 = vadd.f32 0.0, %v1677
    %v1679 = vpop.f32.mrb[0].mxu0
    %1680 = vmatprep.mubr.f32.mxu0 0.0
    %1681 = vmatmul.mubr.f32.gmra.mrb[0].mxu0 %v1599
    %v1682 = vpop.f32.mrb[0].mxu0
    %v1683 = vadd.f32 0.0, %v1682
    %v1684 = vpop.f32.mrb[0].mxu0
    %1685 = vdwg.mxu0
    %v1687 = vlaneseq
    %v1688 = vshrl.u32 %v1687, 7
    %v1689 = vsub.s32 0, %v1688
    %v1690 = vrot.slane %v1543, %v1689
    %v1692 = vadd.f32 %v1690, %v1668
    %v1693 = vadd.f32 %v1690, %v1673
    %v1694 = vadd.f32 %v1690, %v1678
    %v1695 = vadd.f32 %v1690, %v1683
    %v1698 = vrot.slane %v1578, 2
    %v1699 = vrot.slane %v1570, 2
    %v1700 = vsel %vm645, %v1698, %v1699
    %v1701 = vrot.slane %v1580, 2
    %v1702 = vsel %vm645, %v1699, %v1701
    %v1703 = vrot.slane %v1579, 2
    %v1704 = vrot.slane %v1573, 2
    %v1705 = vsel %vm645, %v1703, %v1704
    %v1706 = vrot.slane %v1581, 2
    %v1707 = vsel %vm645, %v1704, %v1706
    %s1708 = scalar_lea.vmem [#allocation10], 256
    %v1709 = vld [vmem:[%s1708] sm:$0xff]
    %v1710 = vld [vmem:[%s1708 + $0x8] sm:$0xff]
    %v1711 = vld [vmem:[%s1708 + $0x10] sm:$0xff]
    %v1712 = vld [vmem:[%s1708 + $0x18] sm:$0xff]
    %v1713 = vld [vmem:[%s1708 + $0x20] sm:$0xff]
    %v1714 = vld [vmem:[%s1708 + $0x28] sm:$0xff]
    %v1715 = vld [vmem:[%s1708 + $0x30] sm:$0xff]
    %v1716 = vld [vmem:[%s1708 + $0x38] sm:$0xff]
    %v1717 = vsel %vm420, %v1700, 0
    %v1719 = vsel %vm420, %v1702, 0
    %v1721 = vsel %vm420, %v1705, 0
    %v1723 = vsel %vm420, %v1707, 0
    %1725 = vmatprep.subr.mxu0 0.0
    %1726 = vmatpush1.msra.mxu0 %v1709
    %1727 = vmatprep.subr.mxu0 0.0
    %1728 = vmatpush1.msra.mxu0 %v1710
    %1729 = vmatprep.subr.mxu0 0.0
    %1730 = vmatpush1.msra.mxu0 %v1711
    %1731 = vmatprep.subr.mxu0 0.0
    %1732 = vmatpush1.msra.mxu0 %v1712
    %1733 = vmatprep.subr.mxu0 0.0
    %1734 = vmatpush1.msra.mxu0 %v1713
    %1735 = vmatprep.subr.mxu0 0.0
    %1736 = vmatpush1.msra.mxu0 %v1714
    %1737 = vmatprep.subr.mxu0 0.0
    %1738 = vmatpush1.msra.mxu0 %v1715
    %1739 = vmatprep.subr.mxu0 0.0
    %1740 = vmatpush1.msra.mxu0 %v1716
    %1741 = vmatprep.subr.mxu0 0.0
    %1742 = vmatpush1.msra.mxu0 0.0
    %1743 = vmatprep.subr.mxu0 0.0
    %1744 = vmatpush1.msra.mxu0 0.0
    %1745 = vmatprep.subr.mxu0 0.0
    %1746 = vmatpush1.msra.mxu0 0.0
    %1747 = vmatprep.subr.mxu0 0.0
    %1748 = vmatpush1.msra.mxu0 0.0
    %1749 = vmatprep.subr.mxu0 0.0
    %1750 = vmatpush1.msra.mxu0 0.0
    %1751 = vmatprep.subr.mxu0 0.0
    %1752 = vmatpush1.msra.mxu0 0.0
    %1753 = vmatprep.subr.mxu0 0.0
    %1754 = vmatpush1.msra.mxu0 0.0
    %1755 = vmatprep.subr.mxu0 0.0
    %1756 = vmatpush1.msra.mxu0 0.0
    %1757 = vmatprep.subr.mxu0 0.0
    %1758 = vmatpush1.msra.mxu0 0.0
    %1759 = vmatprep.subr.mxu0 0.0
    %1760 = vmatpush1.msra.mxu0 0.0
    %1761 = vmatprep.subr.mxu0 0.0
    %1762 = vmatpush1.msra.mxu0 0.0
    %1763 = vmatprep.subr.mxu0 0.0
    %1764 = vmatpush1.msra.mxu0 0.0
    %1765 = vmatprep.subr.mxu0 0.0
    %1766 = vmatpush1.msra.mxu0 0.0
    %1767 = vmatprep.subr.mxu0 0.0
    %1768 = vmatpush1.msra.mxu0 0.0
    %1769 = vmatprep.subr.mxu0 0.0
    %1770 = vmatpush1.msra.mxu0 0.0
    %1771 = vmatprep.subr.mxu0 0.0
    %1772 = vmatpush1.msra.mxu0 0.0
    %1773 = vmatprep.subr.mxu0 0.0
    %1774 = vmatpush1.msra.mxu0 0.0
    %1775 = vmatprep.subr.mxu0 0.0
    %1776 = vmatpush1.msra.mxu0 0.0
    %1777 = vmatprep.subr.mxu0 0.0
    %1778 = vmatpush1.msra.mxu0 0.0
    %1779 = vmatprep.subr.mxu0 0.0
    %1780 = vmatpush1.msra.mxu0 0.0
    %1781 = vmatprep.subr.mxu0 0.0
    %1782 = vmatpush1.msra.mxu0 0.0
    %1783 = vmatprep.subr.mxu0 0.0
    %1784 = vmatpush1.msra.mxu0 0.0
    %1785 = vmatprep.subr.mxu0 0.0
    %1786 = vmatpush1.msra.mxu0 0.0
    %1787 = vmatprep.subr.mxu0 0.0
    %1788 = vmatpush1.msra.mxu0 0.0
    %1789 = vmatprep.mubr.f32.mxu0 0.0
    %1790 = vmatmul.mubr.f32.gmra.mrb[0].mxu0 %v1717
    %v1791 = vpop.f32.mrb[0].mxu0
    %v1792 = vadd.f32 0.0, %v1791
    %v1793 = vpop.f32.mrb[0].mxu0
    %1794 = vmatprep.mubr.f32.mxu0 0.0
    %1795 = vmatmul.mubr.f32.gmra.mrb[0].mxu0 %v1719
    %v1796 = vpop.f32.mrb[0].mxu0
    %v1797 = vadd.f32 0.0, %v1796
    %v1798 = vpop.f32.mrb[0].mxu0
    %1799 = vmatprep.mubr.f32.mxu0 0.0
    %1800 = vmatmul.mubr.f32.gmra.mrb[0].mxu0 %v1721
    %v1801 = vpop.f32.mrb[0].mxu0
    %v1802 = vadd.f32 0.0, %v1801
    %v1803 = vpop.f32.mrb[0].mxu0
    %1804 = vmatprep.mubr.f32.mxu0 0.0
    %1805 = vmatmul.mubr.f32.gmra.mrb[0].mxu0 %v1723
    %v1806 = vpop.f32.mrb[0].mxu0
    %v1807 = vadd.f32 0.0, %v1806
    %v1808 = vpop.f32.mrb[0].mxu0
    %1809 = vdwg.mxu0
    %v1810 = vadd.f32 %v1692, %v1792
    %v1811 = vadd.f32 %v1693, %v1797
    %v1812 = vadd.f32 %v1694, %v1802
    %v1813 = vadd.f32 %v1695, %v1807
    %v1814 = vrot.slane %v1578, 4
    %v1815 = vrot.slane %v1570, 4
    %v1816 = vsel %vm1425, %v1814, %v1815
    %v1817 = vrot.slane %v1580, 4
    %v1818 = vsel %vm1425, %v1815, %v1817
    %v1819 = vrot.slane %v1579, 4
    %v1820 = vrot.slane %v1573, 4
    %v1821 = vsel %vm1425, %v1819, %v1820
    %v1822 = vrot.slane %v1581, 4
    %v1823 = vsel %vm1425, %v1820, %v1822
    %s1824 = scalar_lea.vmem [#allocation10], 320
    %v1825 = vld [vmem:[%s1824] sm:$0xff]
    %v1826 = vld [vmem:[%s1824 + $0x8] sm:$0xff]
    %v1827 = vld [vmem:[%s1824 + $0x10] sm:$0xff]
    %v1828 = vld [vmem:[%s1824 + $0x18] sm:$0xff]
    %v1829 = vld [vmem:[%s1824 + $0x20] sm:$0xff]
    %v1830 = vld [vmem:[%s1824 + $0x28] sm:$0xff]
    %v1831 = vld [vmem:[%s1824 + $0x30] sm:$0xff]
    %v1832 = vld [vmem:[%s1824 + $0x38] sm:$0xff]
    %v1833 = vsel %vm420, %v1816, 0
    %v1835 = vsel %vm420, %v1818, 0
    %v1837 = vsel %vm420, %v1821, 0
    %v1839 = vsel %vm420, %v1823, 0
    %1841 = vmatprep.subr.mxu0 0.0
    %1842 = vmatpush1.msra.mxu0 %v1825
    %1843 = vmatprep.subr.mxu0 0.0
    %1844 = vmatpush1.msra.mxu0 %v1826
    %1845 = vmatprep.subr.mxu0 0.0
    %1846 = vmatpush1.msra.mxu0 %v1827
    %1847 = vmatprep.subr.mxu0 0.0
    %1848 = vmatpush1.msra.mxu0 %v1828
    %1849 = vmatprep.subr.mxu0 0.0
    %1850 = vmatpush1.msra.mxu0 %v1829
    %1851 = vmatprep.subr.mxu0 0.0
    %1852 = vmatpush1.msra.mxu0 %v1830
    %1853 = vmatprep.subr.mxu0 0.0
    %1854 = vmatpush1.msra.mxu0 %v1831
    %1855 = vmatprep.subr.mxu0 0.0
    %1856 = vmatpush1.msra.mxu0 %v1832
    %1857 = vmatprep.subr.mxu0 0.0
    %1858 = vmatpush1.msra.mxu0 0.0
    %1859 = vmatprep.subr.mxu0 0.0
    %1860 = vmatpush1.msra.mxu0 0.0
    %1861 = vmatprep.subr.mxu0 0.0
    %1862 = vmatpush1.msra.mxu0 0.0
    %1863 = vmatprep.subr.mxu0 0.0
    %1864 = vmatpush1.msra.mxu0 0.0
    %1865 = vmatprep.subr.mxu0 0.0
    %1866 = vmatpush1.msra.mxu0 0.0
    %1867 = vmatprep.subr.mxu0 0.0
    %1868 = vmatpush1.msra.mxu0 0.0
    %1869 = vmatprep.subr.mxu0 0.0
    %1870 = vmatpush1.msra.mxu0 0.0
    %1871 = vmatprep.subr.mxu0 0.0
    %1872 = vmatpush1.msra.mxu0 0.0
    %1873 = vmatprep.subr.mxu0 0.0
    %1874 = vmatpush1.msra.mxu0 0.0
    %1875 = vmatprep.subr.mxu0 0.0
    %1876 = vmatpush1.msra.mxu0 0.0
    %1877 = vmatprep.subr.mxu0 0.0
    %1878 = vmatpush1.msra.mxu0 0.0
    %1879 = vmatprep.subr.mxu0 0.0
    %1880 = vmatpush1.msra.mxu0 0.0
    %1881 = vmatprep.subr.mxu0 0.0
    %1882 = vmatpush1.msra.mxu0 0.0
    %1883 = vmatprep.subr.mxu0 0.0
    %1884 = vmatpush1.msra.mxu0 0.0
    %1885 = vmatprep.subr.mxu0 0.0
    %1886 = vmatpush1.msra.mxu0 0.0
    %1887 = vmatprep.subr.mxu0 0.0
    %1888 = vmatpush1.msra.mxu0 0.0
    %1889 = vmatprep.subr.mxu0 0.0
    %1890 = vmatpush1.msra.mxu0 0.0
    %1891 = vmatprep.subr.mxu0 0.0
    %1892 = vmatpush1.msra.mxu0 0.0
    %1893 = vmatprep.subr.mxu0 0.0
    %1894 = vmatpush1.msra.mxu0 0.0
    %1895 = vmatprep.subr.mxu0 0.0
    %1896 = vmatpush1.msra.mxu0 0.0
    %1897 = vmatprep.subr.mxu0 0.0
    %1898 = vmatpush1.msra.mxu0 0.0
    %1899 = vmatprep.subr.mxu0 0.0
    %1900 = vmatpush1.msra.mxu0 0.0
    %1901 = vmatprep.subr.mxu0 0.0
    %1902 = vmatpush1.msra.mxu0 0.0
    %1903 = vmatprep.subr.mxu0 0.0
    %1904 = vmatpush1.msra.mxu0 0.0
    %1905 = vmatprep.mubr.f32.mxu0 0.0
    %1906 = vmatmul.mubr.f32.gmra.mrb[0].mxu0 %v1833
    %v1907 = vpop.f32.mrb[0].mxu0
    %v1908 = vadd.f32 0.0, %v1907
    %v1909 = vpop.f32.mrb[0].mxu0
    %1910 = vmatprep.mubr.f32.mxu0 0.0
    %1911 = vmatmul.mubr.f32.gmra.mrb[0].mxu0 %v1835
    %v1912 = vpop.f32.mrb[0].mxu0
    %v1913 = vadd.f32 0.0, %v1912
    %v1914 = vpop.f32.mrb[0].mxu0
    %1915 = vmatprep.mubr.f32.mxu0 0.0
    %1916 = vmatmul.mubr.f32.gmra.mrb[0].mxu0 %v1837
    %v1917 = vpop.f32.mrb[0].mxu0
    %v1918 = vadd.f32 0.0, %v1917
    %v1919 = vpop.f32.mrb[0].mxu0
    %1920 = vmatprep.mubr.f32.mxu0 0.0
    %1921 = vmatmul.mubr.f32.gmra.mrb[0].mxu0 %v1839
    %v1922 = vpop.f32.mrb[0].mxu0
    %v1923 = vadd.f32 0.0, %v1922
    %v1924 = vpop.f32.mrb[0].mxu0
    %1925 = vdwg.mxu0
    %v1926 = vadd.f32 %v1810, %v1908
    %v1927 = vadd.f32 %v1811, %v1913
    %v1928 = vadd.f32 %v1812, %v1918
    %v1929 = vadd.f32 %v1813, %v1923
    %v1930 = vadd.f32 %v1926, %v1148
    %v1931 = vadd.f32 %v1927, %v1149
    %v1932 = vadd.f32 %v1928, %v1150
    %v1933 = vadd.f32 %v1929, %v1151
    %s1934 = scalar_lea.vmem [#allocation8], 2
    %v1935 = vld [vmem:[%s1934] sm:$0x1]
    %v1936 = vmul.f32 %v1930, 0.5
    %v1937 = vmul.f32 %v1931, 0.5
    %v1938 = vmul.f32 %v1932, 0.5
    %v1939 = vmul.f32 %v1933, 0.5
    %v1940 = vmul.f32 %v1930, 0.70710677
    %v1941 = vmul.f32 %v1931, 0.70710677
    %v1942 = vmul.f32 %v1932, 0.70710677
    %v1943 = vmul.f32 %v1933, 0.70710677
    %v1944 = verf.f32.pop %v1940
    %v1945 = verf.f32.pop %v1941
    %v1946 = verf.f32.pop %v1942
    %v1947 = verf.f32.pop %v1943
    %v1948 = vadd.f32 %v1944, 1.0
    %v1949 = vadd.f32 %v1945, 1.0
    %v1950 = vadd.f32 %v1946, 1.0
    %v1951 = vadd.f32 %v1947, 1.0
    %v1952 = vmul.f32 %v1936, %v1948
    %v1953 = vmul.f32 %v1937, %v1949
    %v1954 = vmul.f32 %v1938, %v1950
    %v1955 = vmul.f32 %v1939, %v1951
    %v1960 = vrot.slane %v1952, 4
    %v1961 = vrot.slane %v1953, 4
    %v1962 = vsel %vm1425, %v1960, %v1961
    %v1963 = vrot.slane %v1954, 4
    %v1964 = vrot.slane %v1955, 4
    %v1965 = vsel %vm1425, %v1963, %v1964
    %v1970 = vsel %vm1425, 0.0, %v1960
    %v1971 = vsel %vm1425, 0.0, %v1963
    %v1972 = vsel %vm1425, %v1961, 0.0
    %v1973 = vsel %vm1425, %v1964, 0.0
    %s1974 = scalar_lea.vmem [#allocation7], 384
    %v1975 = vld [vmem:[%s1974] sm:$0xff]
    %v1976 = vld [vmem:[%s1974 + $0x8] sm:$0xff]
    %v1977 = vld [vmem:[%s1974 + $0x10] sm:$0xff]
    %v1978 = vld [vmem:[%s1974 + $0x18] sm:$0xff]
    %v1979 = vld [vmem:[%s1974 + $0x20] sm:$0xff]
    %v1980 = vld [vmem:[%s1974 + $0x28] sm:$0xff]
    %v1981 = vld [vmem:[%s1974 + $0x30] sm:$0xff]
    %v1982 = vld [vmem:[%s1974 + $0x38] sm:$0xff]
    %v1984 = vsel %vm420, %v1970, 0
    %v1986 = vsel %vm420, %v1962, 0
    %v1989 = vsel %vm420, %v1971, 0
    %v1991 = vsel %vm420, %v1965, 0
    %1993 = vmatprep.subr.mxu0 0.0
    %1994 = vmatpush1.msra.mxu0 %v1975
    %1995 = vmatprep.subr.mxu0 0.0
    %1996 = vmatpush1.msra.mxu0 %v1976
    %1997 = vmatprep.subr.mxu0 0.0
    %1998 = vmatpush1.msra.mxu0 %v1977
    %1999 = vmatprep.subr.mxu0 0.0
    %2000 = vmatpush1.msra.mxu0 %v1978
    %2001 = vmatprep.subr.mxu0 0.0
    %2002 = vmatpush1.msra.mxu0 %v1979
    %2003 = vmatprep.subr.mxu0 0.0
    %2004 = vmatpush1.msra.mxu0 %v1980
    %2005 = vmatprep.subr.mxu0 0.0
    %2006 = vmatpush1.msra.mxu0 %v1981
    %2007 = vmatprep.subr.mxu0 0.0
    %2008 = vmatpush1.msra.mxu0 %v1982
    %2009 = vmatprep.subr.mxu0 0.0
    %2010 = vmatpush1.msra.mxu0 0.0
    %2011 = vmatprep.subr.mxu0 0.0
    %2012 = vmatpush1.msra.mxu0 0.0
    %2013 = vmatprep.subr.mxu0 0.0
    %2014 = vmatpush1.msra.mxu0 0.0
    %2015 = vmatprep.subr.mxu0 0.0
    %2016 = vmatpush1.msra.mxu0 0.0
    %2017 = vmatprep.subr.mxu0 0.0
    %2018 = vmatpush1.msra.mxu0 0.0
    %2019 = vmatprep.subr.mxu0 0.0
    %2020 = vmatpush1.msra.mxu0 0.0
    %2021 = vmatprep.subr.mxu0 0.0
    %2022 = vmatpush1.msra.mxu0 0.0
    %2023 = vmatprep.subr.mxu0 0.0
    %2024 = vmatpush1.msra.mxu0 0.0
    %2025 = vmatprep.subr.mxu0 0.0
    %2026 = vmatpush1.msra.mxu0 0.0
    %2027 = vmatprep.subr.mxu0 0.0
    %2028 = vmatpush1.msra.mxu0 0.0
    %2029 = vmatprep.subr.mxu0 0.0
    %2030 = vmatpush1.msra.mxu0 0.0
    %2031 = vmatprep.subr.mxu0 0.0
    %2032 = vmatpush1.msra.mxu0 0.0
    %2033 = vmatprep.subr.mxu0 0.0
    %2034 = vmatpush1.msra.mxu0 0.0
    %2035 = vmatprep.subr.mxu0 0.0
    %2036 = vmatpush1.msra.mxu0 0.0
    %2037 = vmatprep.subr.mxu0 0.0
    %2038 = vmatpush1.msra.mxu0 0.0
    %2039 = vmatprep.subr.mxu0 0.0
    %2040 = vmatpush1.msra.mxu0 0.0
    %2041 = vmatprep.subr.mxu0 0.0
    %2042 = vmatpush1.msra.mxu0 0.0
    %2043 = vmatprep.subr.mxu0 0.0
    %2044 = vmatpush1.msra.mxu0 0.0
    %2045 = vmatprep.subr.mxu0 0.0
    %2046 = vmatpush1.msra.mxu0 0.0
    %2047 = vmatprep.subr.mxu0 0.0
    %2048 = vmatpush1.msra.mxu0 0.0
    %2049 = vmatprep.subr.mxu0 0.0
    %2050 = vmatpush1.msra.mxu0 0.0
    %2051 = vmatprep.subr.mxu0 0.0
    %2052 = vmatpush1.msra.mxu0 0.0
    %2053 = vmatprep.subr.mxu0 0.0
    %2054 = vmatpush1.msra.mxu0 0.0
    %2055 = vmatprep.subr.mxu0 0.0
    %2056 = vmatpush1.msra.mxu0 0.0
    %2057 = vmatprep.mubr.f32.mxu0 0.0
    %2058 = vmatmul.mubr.f32.gmra.mrb[0].mxu0 %v1984
    %v2059 = vpop.f32.mrb[0].mxu0
    %v2060 = vadd.f32 0.0, %v2059
    %v2061 = vpop.f32.mrb[0].mxu0
    %2062 = vmatprep.mubr.f32.mxu0 0.0
    %2063 = vmatmul.mubr.f32.gmra.mrb[0].mxu0 %v1986
    %v2064 = vpop.f32.mrb[0].mxu0
    %v2065 = vadd.f32 0.0, %v2064
    %v2066 = vpop.f32.mrb[0].mxu0
    %2067 = vmatprep.mubr.f32.mxu0 0.0
    %2068 = vmatmul.mubr.f32.gmra.mrb[0].mxu0 %v1989
    %v2069 = vpop.f32.mrb[0].mxu0
    %v2070 = vadd.f32 0.0, %v2069
    %v2071 = vpop.f32.mrb[0].mxu0
    %2072 = vmatprep.mubr.f32.mxu0 0.0
    %2073 = vmatmul.mubr.f32.gmra.mrb[0].mxu0 %v1991
    %v2074 = vpop.f32.mrb[0].mxu0
    %v2075 = vadd.f32 0.0, %v2074
    %v2076 = vpop.f32.mrb[0].mxu0
    %2077 = vdwg.mxu0
    %v2079 = vlaneseq
    %v2080 = vshrl.u32 %v2079, 7
    %v2081 = vsub.s32 0, %v2080
    %v2082 = vrot.slane %v1935, %v2081
    %v2084 = vadd.f32 %v2082, %v2060
    %v2085 = vadd.f32 %v2082, %v2065
    %v2086 = vadd.f32 %v2082, %v2070
    %v2087 = vadd.f32 %v2082, %v2075
    %v2090 = vrot.slane %v1970, 4
    %v2091 = vrot.slane %v1962, 4
    %v2092 = vsel %vm1425, %v2090, %v2091
    %v2093 = vrot.slane %v1972, 4
    %v2094 = vsel %vm1425, %v2091, %v2093
    %v2095 = vrot.slane %v1971, 4
    %v2096 = vrot.slane %v1965, 4
    %v2097 = vsel %vm1425, %v2095, %v2096
    %v2098 = vrot.slane %v1973, 4
    %v2099 = vsel %vm1425, %v2096, %v2098
    %s2100 = scalar_lea.vmem [#allocation7], 448
    %v2101 = vld [vmem:[%s2100] sm:$0xff]
    %v2102 = vld [vmem:[%s2100 + $0x8] sm:$0xff]
    %v2103 = vld [vmem:[%s2100 + $0x10] sm:$0xff]
    %v2104 = vld [vmem:[%s2100 + $0x18] sm:$0xff]
    %v2105 = vld [vmem:[%s2100 + $0x20] sm:$0xff]
    %v2106 = vld [vmem:[%s2100 + $0x28] sm:$0xff]
    %v2107 = vld [vmem:[%s2100 + $0x30] sm:$0xff]
    %v2108 = vld [vmem:[%s2100 + $0x38] sm:$0xff]
    %v2109 = vsel %vm420, %v2092, 0
    %v2111 = vsel %vm420, %v2094, 0
    %v2113 = vsel %vm420, %v2097, 0
    %v2115 = vsel %vm420, %v2099, 0
    %2117 = vmatprep.subr.mxu0 0.0
    %2118 = vmatpush1.msra.mxu0 %v2101
    %2119 = vmatprep.subr.mxu0 0.0
    %2120 = vmatpush1.msra.mxu0 %v2102
    %2121 = vmatprep.subr.mxu0 0.0
    %2122 = vmatpush1.msra.mxu0 %v2103
    %2123 = vmatprep.subr.mxu0 0.0
    %2124 = vmatpush1.msra.mxu0 %v2104
    %2125 = vmatprep.subr.mxu0 0.0
    %2126 = vmatpush1.msra.mxu0 %v2105
    %2127 = vmatprep.subr.mxu0 0.0
    %2128 = vmatpush1.msra.mxu0 %v2106
    %2129 = vmatprep.subr.mxu0 0.0
    %2130 = vmatpush1.msra.mxu0 %v2107
    %2131 = vmatprep.subr.mxu0 0.0
    %2132 = vmatpush1.msra.mxu0 %v2108
    %2133 = vmatprep.subr.mxu0 0.0
    %2134 = vmatpush1.msra.mxu0 0.0
    %2135 = vmatprep.subr.mxu0 0.0
    %2136 = vmatpush1.msra.mxu0 0.0
    %2137 = vmatprep.subr.mxu0 0.0
    %2138 = vmatpush1.msra.mxu0 0.0
    %2139 = vmatprep.subr.mxu0 0.0
    %2140 = vmatpush1.msra.mxu0 0.0
    %2141 = vmatprep.subr.mxu0 0.0
    %2142 = vmatpush1.msra.mxu0 0.0
    %2143 = vmatprep.subr.mxu0 0.0
    %2144 = vmatpush1.msra.mxu0 0.0
    %2145 = vmatprep.subr.mxu0 0.0
    %2146 = vmatpush1.msra.mxu0 0.0
    %2147 = vmatprep.subr.mxu0 0.0
    %2148 = vmatpush1.msra.mxu0 0.0
    %2149 = vmatprep.subr.mxu0 0.0
    %2150 = vmatpush1.msra.mxu0 0.0
    %2151 = vmatprep.subr.mxu0 0.0
    %2152 = vmatpush1.msra.mxu0 0.0
    %2153 = vmatprep.subr.mxu0 0.0
    %2154 = vmatpush1.msra.mxu0 0.0
    %2155 = vmatprep.subr.mxu0 0.0
    %2156 = vmatpush1.msra.mxu0 0.0
    %2157 = vmatprep.subr.mxu0 0.0
    %2158 = vmatpush1.msra.mxu0 0.0
    %2159 = vmatprep.subr.mxu0 0.0
    %2160 = vmatpush1.msra.mxu0 0.0
    %2161 = vmatprep.subr.mxu0 0.0
    %2162 = vmatpush1.msra.mxu0 0.0
    %2163 = vmatprep.subr.mxu0 0.0
    %2164 = vmatpush1.msra.mxu0 0.0
    %2165 = vmatprep.subr.mxu0 0.0
    %2166 = vmatpush1.msra.mxu0 0.0
    %2167 = vmatprep.subr.mxu0 0.0
    %2168 = vmatpush1.msra.mxu0 0.0
    %2169 = vmatprep.subr.mxu0 0.0
    %2170 = vmatpush1.msra.mxu0 0.0
    %2171 = vmatprep.subr.mxu0 0.0
    %2172 = vmatpush1.msra.mxu0 0.0
    %2173 = vmatprep.subr.mxu0 0.0
    %2174 = vmatpush1.msra.mxu0 0.0
    %2175 = vmatprep.subr.mxu0 0.0
    %2176 = vmatpush1.msra.mxu0 0.0
    %2177 = vmatprep.subr.mxu0 0.0
    %2178 = vmatpush1.msra.mxu0 0.0
    %2179 = vmatprep.subr.mxu0 0.0
    %2180 = vmatpush1.msra.mxu0 0.0
    %2181 = vmatprep.mubr.f32.mxu0 0.0
    %2182 = vmatmul.mubr.f32.gmra.mrb[0].mxu0 %v2109
    %v2183 = vpop.f32.mrb[0].mxu0
    %v2184 = vadd.f32 0.0, %v2183
    %v2185 = vpop.f32.mrb[0].mxu0
    %2186 = vmatprep.mubr.f32.mxu0 0.0
    %2187 = vmatmul.mubr.f32.gmra.mrb[0].mxu0 %v2111
    %v2188 = vpop.f32.mrb[0].mxu0
    %v2189 = vadd.f32 0.0, %v2188
    %v2190 = vpop.f32.mrb[0].mxu0
    %2191 = vmatprep.mubr.f32.mxu0 0.0
    %2192 = vmatmul.mubr.f32.gmra.mrb[0].mxu0 %v2113
    %v2193 = vpop.f32.mrb[0].mxu0
    %v2194 = vadd.f32 0.0, %v2193
    %v2195 = vpop.f32.mrb[0].mxu0
    %2196 = vmatprep.mubr.f32.mxu0 0.0
    %2197 = vmatmul.mubr.f32.gmra.mrb[0].mxu0 %v2115
    %v2198 = vpop.f32.mrb[0].mxu0
    %v2199 = vadd.f32 0.0, %v2198
    %v2200 = vpop.f32.mrb[0].mxu0
    %2201 = vdwg.mxu0
    %v2202 = vadd.f32 %v2084, %v2184
    %v2203 = vadd.f32 %v2085, %v2189
    %v2204 = vadd.f32 %v2086, %v2194
    %v2205 = vadd.f32 %v2087, %v2199
    %s2206 = scalar_lea.vmem [#allocation7], 512
    %v2207 = vld [vmem:[%s2206] sm:$0xff]
    %v2208 = vld [vmem:[%s2206 + $0x8] sm:$0xff]
    %v2209 = vld [vmem:[%s2206 + $0x10] sm:$0xff]
    %v2210 = vld [vmem:[%s2206 + $0x18] sm:$0xff]
    %v2211 = vld [vmem:[%s2206 + $0x20] sm:$0xff]
    %v2212 = vld [vmem:[%s2206 + $0x28] sm:$0xff]
    %v2213 = vld [vmem:[%s2206 + $0x30] sm:$0xff]
    %v2214 = vld [vmem:[%s2206 + $0x38] sm:$0xff]
    %v2215 = vsel %vm420, %v1972, 0
    %v2217 = vsel %vm420, %v1973, 0
    %2219 = vmatprep.subr.mxu0 0.0
    %2220 = vmatpush1.msra.mxu0 %v2207
    %2221 = vmatprep.subr.mxu0 0.0
    %2222 = vmatpush1.msra.mxu0 %v2208
    %2223 = vmatprep.subr.mxu0 0.0
    %2224 = vmatpush1.msra.mxu0 %v2209
    %2225 = vmatprep.subr.mxu0 0.0
    %2226 = vmatpush1.msra.mxu0 %v2210
    %2227 = vmatprep.subr.mxu0 0.0
    %2228 = vmatpush1.msra.mxu0 %v2211
    %2229 = vmatprep.subr.mxu0 0.0
    %2230 = vmatpush1.msra.mxu0 %v2212
    %2231 = vmatprep.subr.mxu0 0.0
    %2232 = vmatpush1.msra.mxu0 %v2213
    %2233 = vmatprep.subr.mxu0 0.0
    %2234 = vmatpush1.msra.mxu0 %v2214
    %2235 = vmatprep.subr.mxu0 0.0
    %2236 = vmatpush1.msra.mxu0 0.0
    %2237 = vmatprep.subr.mxu0 0.0
    %2238 = vmatpush1.msra.mxu0 0.0
    %2239 = vmatprep.subr.mxu0 0.0
    %2240 = vmatpush1.msra.mxu0 0.0
    %2241 = vmatprep.subr.mxu0 0.0
    %2242 = vmatpush1.msra.mxu0 0.0
    %2243 = vmatprep.subr.mxu0 0.0
    %2244 = vmatpush1.msra.mxu0 0.0
    %2245 = vmatprep.subr.mxu0 0.0
    %2246 = vmatpush1.msra.mxu0 0.0
    %2247 = vmatprep.subr.mxu0 0.0
    %2248 = vmatpush1.msra.mxu0 0.0
    %2249 = vmatprep.subr.mxu0 0.0
    %2250 = vmatpush1.msra.mxu0 0.0
    %2251 = vmatprep.subr.mxu0 0.0
    %2252 = vmatpush1.msra.mxu0 0.0
    %2253 = vmatprep.subr.mxu0 0.0
    %2254 = vmatpush1.msra.mxu0 0.0
    %2255 = vmatprep.subr.mxu0 0.0
    %2256 = vmatpush1.msra.mxu0 0.0
    %2257 = vmatprep.subr.mxu0 0.0
    %2258 = vmatpush1.msra.mxu0 0.0
    %2259 = vmatprep.subr.mxu0 0.0
    %2260 = vmatpush1.msra.mxu0 0.0
    %2261 = vmatprep.subr.mxu0 0.0
    %2262 = vmatpush1.msra.mxu0 0.0
    %2263 = vmatprep.subr.mxu0 0.0
    %2264 = vmatpush1.msra.mxu0 0.0
    %2265 = vmatprep.subr.mxu0 0.0
    %2266 = vmatpush1.msra.mxu0 0.0
    %2267 = vmatprep.subr.mxu0 0.0
    %2268 = vmatpush1.msra.mxu0 0.0
    %2269 = vmatprep.subr.mxu0 0.0
    %2270 = vmatpush1.msra.mxu0 0.0
    %2271 = vmatprep.subr.mxu0 0.0
    %2272 = vmatpush1.msra.mxu0 0.0
    %2273 = vmatprep.subr.mxu0 0.0
    %2274 = vmatpush1.msra.mxu0 0.0
    %2275 = vmatprep.subr.mxu0 0.0
    %2276 = vmatpush1.msra.mxu0 0.0
    %2277 = vmatprep.subr.mxu0 0.0
    %2278 = vmatpush1.msra.mxu0 0.0
    %2279 = vmatprep.subr.mxu0 0.0
    %2280 = vmatpush1.msra.mxu0 0.0
    %2281 = vmatprep.subr.mxu0 0.0
    %2282 = vmatpush1.msra.mxu0 0.0
    %2283 = vmatprep.mubr.f32.mxu0 0.0
    %2284 = vmatmul.mubr.f32.gmra.mrb[0].mxu0 %v1986
    %v2285 = vpop.f32.mrb[0].mxu0
    %v2286 = vadd.f32 0.0, %v2285
    %v2287 = vpop.f32.mrb[0].mxu0
    %2288 = vmatprep.mubr.f32.mxu0 0.0
    %2289 = vmatmul.mubr.f32.gmra.mrb[0].mxu0 %v2215
    %v2290 = vpop.f32.mrb[0].mxu0
    %v2291 = vadd.f32 0.0, %v2290
    %v2292 = vpop.f32.mrb[0].mxu0
    %2293 = vmatprep.mubr.f32.mxu0 0.0
    %2294 = vmatmul.mubr.f32.gmra.mrb[0].mxu0 %v1991
    %v2295 = vpop.f32.mrb[0].mxu0
    %v2296 = vadd.f32 0.0, %v2295
    %v2297 = vpop.f32.mrb[0].mxu0
    %2298 = vmatprep.mubr.f32.mxu0 0.0
    %2299 = vmatmul.mubr.f32.gmra.mrb[0].mxu0 %v2217
    %v2300 = vpop.f32.mrb[0].mxu0
    %v2301 = vadd.f32 0.0, %v2300
    %v2302 = vpop.f32.mrb[0].mxu0
    %2303 = vdwg.mxu0
    %v2304 = vadd.f32 %v2202, %v2286
    %v2305 = vadd.f32 %v2203, %v2291
    %v2306 = vadd.f32 %v2204, %v2296
    %v2307 = vadd.f32 %v2205, %v2301
    %s2308 = scalar_lea.vmem [#allocation11], 2
    %v2309 = vld [vmem:[%s2308] sm:$0x1]
    %v2310 = vmul.f32 %v2304, 0.5
    %v2311 = vmul.f32 %v2305, 0.5
    %v2312 = vmul.f32 %v2306, 0.5
    %v2313 = vmul.f32 %v2307, 0.5
    %v2314 = vmul.f32 %v2304, 0.70710677
    %v2315 = vmul.f32 %v2305, 0.70710677
    %v2316 = vmul.f32 %v2306, 0.70710677
    %v2317 = vmul.f32 %v2307, 0.70710677
    %v2318 = verf.f32.pop %v2314
    %v2319 = verf.f32.pop %v2315
    %v2320 = verf.f32.pop %v2316
    %v2321 = verf.f32.pop %v2317
    %v2322 = vadd.f32 %v2318, 1.0
    %v2323 = vadd.f32 %v2319, 1.0
    %v2324 = vadd.f32 %v2320, 1.0
    %v2325 = vadd.f32 %v2321, 1.0
    %v2326 = vmul.f32 %v2310, %v2322
    %v2327 = vmul.f32 %v2311, %v2323
    %v2328 = vmul.f32 %v2312, %v2324
    %v2329 = vmul.f32 %v2313, %v2325
    %v2334 = vrot.slane %v2326, 4
    %v2335 = vrot.slane %v2327, 4
    %v2336 = vsel %vm1425, %v2334, %v2335
    %v2337 = vrot.slane %v2328, 4
    %v2338 = vrot.slane %v2329, 4
    %v2339 = vsel %vm1425, %v2337, %v2338
    %v2344 = vsel %vm1425, 0.0, %v2334
    %v2345 = vsel %vm1425, 0.0, %v2337
    %v2346 = vsel %vm1425, %v2335, 0.0
    %v2347 = vsel %vm1425, %v2338, 0.0
    %s2348 = scalar_lea.vmem [#allocation10], 384
    %v2349 = vld [vmem:[%s2348] sm:$0xff]
    %v2350 = vld [vmem:[%s2348 + $0x8] sm:$0xff]
    %v2351 = vld [vmem:[%s2348 + $0x10] sm:$0xff]
    %v2352 = vld [vmem:[%s2348 + $0x18] sm:$0xff]
    %v2353 = vld [vmem:[%s2348 + $0x20] sm:$0xff]
    %v2354 = vld [vmem:[%s2348 + $0x28] sm:$0xff]
    %v2355 = vld [vmem:[%s2348 + $0x30] sm:$0xff]
    %v2356 = vld [vmem:[%s2348 + $0x38] sm:$0xff]
    %v2358 = vsel %vm420, %v2344, 0
    %v2360 = vsel %vm420, %v2336, 0
    %v2363 = vsel %vm420, %v2345, 0
    %v2365 = vsel %vm420, %v2339, 0
    %2367 = vmatprep.subr.mxu0 0.0
    %2368 = vmatpush1.msra.mxu0 %v2349
    %2369 = vmatprep.subr.mxu0 0.0
    %2370 = vmatpush1.msra.mxu0 %v2350
    %2371 = vmatprep.subr.mxu0 0.0
    %2372 = vmatpush1.msra.mxu0 %v2351
    %2373 = vmatprep.subr.mxu0 0.0
    %2374 = vmatpush1.msra.mxu0 %v2352
    %2375 = vmatprep.subr.mxu0 0.0
    %2376 = vmatpush1.msra.mxu0 %v2353
    %2377 = vmatprep.subr.mxu0 0.0
    %2378 = vmatpush1.msra.mxu0 %v2354
    %2379 = vmatprep.subr.mxu0 0.0
    %2380 = vmatpush1.msra.mxu0 %v2355
    %2381 = vmatprep.subr.mxu0 0.0
    %2382 = vmatpush1.msra.mxu0 %v2356
    %2383 = vmatprep.subr.mxu0 0.0
    %2384 = vmatpush1.msra.mxu0 0.0
    %2385 = vmatprep.subr.mxu0 0.0
    %2386 = vmatpush1.msra.mxu0 0.0
    %2387 = vmatprep.subr.mxu0 0.0
    %2388 = vmatpush1.msra.mxu0 0.0
    %2389 = vmatprep.subr.mxu0 0.0
    %2390 = vmatpush1.msra.mxu0 0.0
    %2391 = vmatprep.subr.mxu0 0.0
    %2392 = vmatpush1.msra.mxu0 0.0
    %2393 = vmatprep.subr.mxu0 0.0
    %2394 = vmatpush1.msra.mxu0 0.0
    %2395 = vmatprep.subr.mxu0 0.0
    %2396 = vmatpush1.msra.mxu0 0.0
    %2397 = vmatprep.subr.mxu0 0.0
    %2398 = vmatpush1.msra.mxu0 0.0
    %2399 = vmatprep.subr.mxu0 0.0
    %2400 = vmatpush1.msra.mxu0 0.0
    %2401 = vmatprep.subr.mxu0 0.0
    %2402 = vmatpush1.msra.mxu0 0.0
    %2403 = vmatprep.subr.mxu0 0.0
    %2404 = vmatpush1.msra.mxu0 0.0
    %2405 = vmatprep.subr.mxu0 0.0
    %2406 = vmatpush1.msra.mxu0 0.0
    %2407 = vmatprep.subr.mxu0 0.0
    %2408 = vmatpush1.msra.mxu0 0.0
    %2409 = vmatprep.subr.mxu0 0.0
    %2410 = vmatpush1.msra.mxu0 0.0
    %2411 = vmatprep.subr.mxu0 0.0
    %2412 = vmatpush1.msra.mxu0 0.0
    %2413 = vmatprep.subr.mxu0 0.0
    %2414 = vmatpush1.msra.mxu0 0.0
    %2415 = vmatprep.subr.mxu0 0.0
    %2416 = vmatpush1.msra.mxu0 0.0
    %2417 = vmatprep.subr.mxu0 0.0
    %2418 = vmatpush1.msra.mxu0 0.0
    %2419 = vmatprep.subr.mxu0 0.0
    %2420 = vmatpush1.msra.mxu0 0.0
    %2421 = vmatprep.subr.mxu0 0.0
    %2422 = vmatpush1.msra.mxu0 0.0
    %2423 = vmatprep.subr.mxu0 0.0
    %2424 = vmatpush1.msra.mxu0 0.0
    %2425 = vmatprep.subr.mxu0 0.0
    %2426 = vmatpush1.msra.mxu0 0.0
    %2427 = vmatprep.subr.mxu0 0.0
    %2428 = vmatpush1.msra.mxu0 0.0
    %2429 = vmatprep.subr.mxu0 0.0
    %2430 = vmatpush1.msra.mxu0 0.0
    %2431 = vmatprep.mubr.f32.mxu0 0.0
    %2432 = vmatmul.mubr.f32.gmra.mrb[0].mxu0 %v2358
    %v2433 = vpop.f32.mrb[0].mxu0
    %v2434 = vadd.f32 0.0, %v2433
    %v2435 = vpop.f32.mrb[0].mxu0
    %2436 = vmatprep.mubr.f32.mxu0 0.0
    %2437 = vmatmul.mubr.f32.gmra.mrb[0].mxu0 %v2360
    %v2438 = vpop.f32.mrb[0].mxu0
    %v2439 = vadd.f32 0.0, %v2438
    %v2440 = vpop.f32.mrb[0].mxu0
    %2441 = vmatprep.mubr.f32.mxu0 0.0
    %2442 = vmatmul.mubr.f32.gmra.mrb[0].mxu0 %v2363
    %v2443 = vpop.f32.mrb[0].mxu0
    %v2444 = vadd.f32 0.0, %v2443
    %v2445 = vpop.f32.mrb[0].mxu0
    %2446 = vmatprep.mubr.f32.mxu0 0.0
    %2447 = vmatmul.mubr.f32.gmra.mrb[0].mxu0 %v2365
    %v2448 = vpop.f32.mrb[0].mxu0
    %v2449 = vadd.f32 0.0, %v2448
    %v2450 = vpop.f32.mrb[0].mxu0
    %2451 = vdwg.mxu0
    %v2453 = vlaneseq
    %v2454 = vshrl.u32 %v2453, 7
    %v2455 = vsub.s32 0, %v2454
    %v2456 = vrot.slane %v2309, %v2455
    %v2458 = vadd.f32 %v2456, %v2434
    %v2459 = vadd.f32 %v2456, %v2439
    %v2460 = vadd.f32 %v2456, %v2444
    %v2461 = vadd.f32 %v2456, %v2449
    %v2464 = vrot.slane %v2344, 4
    %v2465 = vrot.slane %v2336, 4
    %v2466 = vsel %vm1425, %v2464, %v2465
    %v2467 = vrot.slane %v2346, 4
    %v2468 = vsel %vm1425, %v2465, %v2467
    %v2469 = vrot.slane %v2345, 4
    %v2470 = vrot.slane %v2339, 4
    %v2471 = vsel %vm1425, %v2469, %v2470
    %v2472 = vrot.slane %v2347, 4
    %v2473 = vsel %vm1425, %v2470, %v2472
    %s2474 = scalar_lea.vmem [#allocation10], 448
    %v2475 = vld [vmem:[%s2474] sm:$0xff]
    %v2476 = vld [vmem:[%s2474 + $0x8] sm:$0xff]
    %v2477 = vld [vmem:[%s2474 + $0x10] sm:$0xff]
    %v2478 = vld [vmem:[%s2474 + $0x18] sm:$0xff]
    %v2479 = vld [vmem:[%s2474 + $0x20] sm:$0xff]
    %v2480 = vld [vmem:[%s2474 + $0x28] sm:$0xff]
    %v2481 = vld [vmem:[%s2474 + $0x30] sm:$0xff]
    %v2482 = vld [vmem:[%s2474 + $0x38] sm:$0xff]
    %v2483 = vsel %vm420, %v2466, 0
    %v2485 = vsel %vm420, %v2468, 0
    %v2487 = vsel %vm420, %v2471, 0
    %v2489 = vsel %vm420, %v2473, 0
    %2491 = vmatprep.subr.mxu0 0.0
    %2492 = vmatpush1.msra.mxu0 %v2475
    %2493 = vmatprep.subr.mxu0 0.0
    %2494 = vmatpush1.msra.mxu0 %v2476
    %2495 = vmatprep.subr.mxu0 0.0
    %2496 = vmatpush1.msra.mxu0 %v2477
    %2497 = vmatprep.subr.mxu0 0.0
    %2498 = vmatpush1.msra.mxu0 %v2478
    %2499 = vmatprep.subr.mxu0 0.0
    %2500 = vmatpush1.msra.mxu0 %v2479
    %2501 = vmatprep.subr.mxu0 0.0
    %2502 = vmatpush1.msra.mxu0 %v2480
    %2503 = vmatprep.subr.mxu0 0.0
    %2504 = vmatpush1.msra.mxu0 %v2481
    %2505 = vmatprep.subr.mxu0 0.0
    %2506 = vmatpush1.msra.mxu0 %v2482
    %2507 = vmatprep.subr.mxu0 0.0
    %2508 = vmatpush1.msra.mxu0 0.0
    %2509 = vmatprep.subr.mxu0 0.0
    %2510 = vmatpush1.msra.mxu0 0.0
    %2511 = vmatprep.subr.mxu0 0.0
    %2512 = vmatpush1.msra.mxu0 0.0
    %2513 = vmatprep.subr.mxu0 0.0
    %2514 = vmatpush1.msra.mxu0 0.0
    %2515 = vmatprep.subr.mxu0 0.0
    %2516 = vmatpush1.msra.mxu0 0.0
    %2517 = vmatprep.subr.mxu0 0.0
    %2518 = vmatpush1.msra.mxu0 0.0
    %2519 = vmatprep.subr.mxu0 0.0
    %2520 = vmatpush1.msra.mxu0 0.0
    %2521 = vmatprep.subr.mxu0 0.0
    %2522 = vmatpush1.msra.mxu0 0.0
    %2523 = vmatprep.subr.mxu0 0.0
    %2524 = vmatpush1.msra.mxu0 0.0
    %2525 = vmatprep.subr.mxu0 0.0
    %2526 = vmatpush1.msra.mxu0 0.0
    %2527 = vmatprep.subr.mxu0 0.0
    %2528 = vmatpush1.msra.mxu0 0.0
    %2529 = vmatprep.subr.mxu0 0.0
    %2530 = vmatpush1.msra.mxu0 0.0
    %2531 = vmatprep.subr.mxu0 0.0
    %2532 = vmatpush1.msra.mxu0 0.0
    %2533 = vmatprep.subr.mxu0 0.0
    %2534 = vmatpush1.msra.mxu0 0.0
    %2535 = vmatprep.subr.mxu0 0.0
    %2536 = vmatpush1.msra.mxu0 0.0
    %2537 = vmatprep.subr.mxu0 0.0
    %2538 = vmatpush1.msra.mxu0 0.0
    %2539 = vmatprep.subr.mxu0 0.0
    %2540 = vmatpush1.msra.mxu0 0.0
    %2541 = vmatprep.subr.mxu0 0.0
    %2542 = vmatpush1.msra.mxu0 0.0
    %2543 = vmatprep.subr.mxu0 0.0
    %2544 = vmatpush1.msra.mxu0 0.0
    %2545 = vmatprep.subr.mxu0 0.0
    %2546 = vmatpush1.msra.mxu0 0.0
    %2547 = vmatprep.subr.mxu0 0.0
    %2548 = vmatpush1.msra.mxu0 0.0
    %2549 = vmatprep.subr.mxu0 0.0
    %2550 = vmatpush1.msra.mxu0 0.0
    %2551 = vmatprep.subr.mxu0 0.0
    %2552 = vmatpush1.msra.mxu0 0.0
    %2553 = vmatprep.subr.mxu0 0.0
    %2554 = vmatpush1.msra.mxu0 0.0
    %2555 = vmatprep.mubr.f32.mxu0 0.0
    %2556 = vmatmul.mubr.f32.gmra.mrb[0].mxu0 %v2483
    %v2557 = vpop.f32.mrb[0].mxu0
    %v2558 = vadd.f32 0.0, %v2557
    %v2559 = vpop.f32.mrb[0].mxu0
    %2560 = vmatprep.mubr.f32.mxu0 0.0
    %2561 = vmatmul.mubr.f32.gmra.mrb[0].mxu0 %v2485
    %v2562 = vpop.f32.mrb[0].mxu0
    %v2563 = vadd.f32 0.0, %v2562
    %v2564 = vpop.f32.mrb[0].mxu0
    %2565 = vmatprep.mubr.f32.mxu0 0.0
    %2566 = vmatmul.mubr.f32.gmra.mrb[0].mxu0 %v2487
    %v2567 = vpop.f32.mrb[0].mxu0
    %v2568 = vadd.f32 0.0, %v2567
    %v2569 = vpop.f32.mrb[0].mxu0
    %2570 = vmatprep.mubr.f32.mxu0 0.0
    %2571 = vmatmul.mubr.f32.gmra.mrb[0].mxu0 %v2489
    %v2572 = vpop.f32.mrb[0].mxu0
    %v2573 = vadd.f32 0.0, %v2572
    %v2574 = vpop.f32.mrb[0].mxu0
    %2575 = vdwg.mxu0
    %v2576 = vadd.f32 %v2458, %v2558
    %v2577 = vadd.f32 %v2459, %v2563
    %v2578 = vadd.f32 %v2460, %v2568
    %v2579 = vadd.f32 %v2461, %v2573
    %s2580 = scalar_lea.vmem [#allocation10], 512
    %v2581 = vld [vmem:[%s2580] sm:$0xff]
    %v2582 = vld [vmem:[%s2580 + $0x8] sm:$0xff]
    %v2583 = vld [vmem:[%s2580 + $0x10] sm:$0xff]
    %v2584 = vld [vmem:[%s2580 + $0x18] sm:$0xff]
    %v2585 = vld [vmem:[%s2580 + $0x20] sm:$0xff]
    %v2586 = vld [vmem:[%s2580 + $0x28] sm:$0xff]
    %v2587 = vld [vmem:[%s2580 + $0x30] sm:$0xff]
    %v2588 = vld [vmem:[%s2580 + $0x38] sm:$0xff]
    %v2589 = vsel %vm420, %v2346, 0
    %v2591 = vsel %vm420, %v2347, 0
    %2593 = vmatprep.subr.mxu0 0.0
    %2594 = vmatpush1.msra.mxu0 %v2581
    %2595 = vmatprep.subr.mxu0 0.0
    %2596 = vmatpush1.msra.mxu0 %v2582
    %2597 = vmatprep.subr.mxu0 0.0
    %2598 = vmatpush1.msra.mxu0 %v2583
    %2599 = vmatprep.subr.mxu0 0.0
    %2600 = vmatpush1.msra.mxu0 %v2584
    %2601 = vmatprep.subr.mxu0 0.0
    %2602 = vmatpush1.msra.mxu0 %v2585
    %2603 = vmatprep.subr.mxu0 0.0
    %2604 = vmatpush1.msra.mxu0 %v2586
    %2605 = vmatprep.subr.mxu0 0.0
    %2606 = vmatpush1.msra.mxu0 %v2587
    %2607 = vmatprep.subr.mxu0 0.0
    %2608 = vmatpush1.msra.mxu0 %v2588
    %2609 = vmatprep.subr.mxu0 0.0
    %2610 = vmatpush1.msra.mxu0 0.0
    %2611 = vmatprep.subr.mxu0 0.0
    %2612 = vmatpush1.msra.mxu0 0.0
    %2613 = vmatprep.subr.mxu0 0.0
    %2614 = vmatpush1.msra.mxu0 0.0
    %2615 = vmatprep.subr.mxu0 0.0
    %2616 = vmatpush1.msra.mxu0 0.0
    %2617 = vmatprep.subr.mxu0 0.0
    %2618 = vmatpush1.msra.mxu0 0.0
    %2619 = vmatprep.subr.mxu0 0.0
    %2620 = vmatpush1.msra.mxu0 0.0
    %2621 = vmatprep.subr.mxu0 0.0
    %2622 = vmatpush1.msra.mxu0 0.0
    %2623 = vmatprep.subr.mxu0 0.0
    %2624 = vmatpush1.msra.mxu0 0.0
    %2625 = vmatprep.subr.mxu0 0.0
    %2626 = vmatpush1.msra.mxu0 0.0
    %2627 = vmatprep.subr.mxu0 0.0
    %2628 = vmatpush1.msra.mxu0 0.0
    %2629 = vmatprep.subr.mxu0 0.0
    %2630 = vmatpush1.msra.mxu0 0.0
    %2631 = vmatprep.subr.mxu0 0.0
    %2632 = vmatpush1.msra.mxu0 0.0
    %2633 = vmatprep.subr.mxu0 0.0
    %2634 = vmatpush1.msra.mxu0 0.0
    %2635 = vmatprep.subr.mxu0 0.0
    %2636 = vmatpush1.msra.mxu0 0.0
    %2637 = vmatprep.subr.mxu0 0.0
    %2638 = vmatpush1.msra.mxu0 0.0
    %2639 = vmatprep.subr.mxu0 0.0
    %2640 = vmatpush1.msra.mxu0 0.0
    %2641 = vmatprep.subr.mxu0 0.0
    %2642 = vmatpush1.msra.mxu0 0.0
    %2643 = vmatprep.subr.mxu0 0.0
    %2644 = vmatpush1.msra.mxu0 0.0
    %2645 = vmatprep.subr.mxu0 0.0
    %2646 = vmatpush1.msra.mxu0 0.0
    %2647 = vmatprep.subr.mxu0 0.0
    %2648 = vmatpush1.msra.mxu0 0.0
    %2649 = vmatprep.subr.mxu0 0.0
    %2650 = vmatpush1.msra.mxu0 0.0
    %2651 = vmatprep.subr.mxu0 0.0
    %2652 = vmatpush1.msra.mxu0 0.0
    %2653 = vmatprep.subr.mxu0 0.0
    %2654 = vmatpush1.msra.mxu0 0.0
    %2655 = vmatprep.subr.mxu0 0.0
    %2656 = vmatpush1.msra.mxu0 0.0
    %2657 = vmatprep.mubr.f32.mxu0 0.0
    %2658 = vmatmul.mubr.f32.gmra.mrb[0].mxu0 %v2360
    %v2659 = vpop.f32.mrb[0].mxu0
    %v2660 = vadd.f32 0.0, %v2659
    %v2661 = vpop.f32.mrb[0].mxu0
    %2662 = vmatprep.mubr.f32.mxu0 0.0
    %2663 = vmatmul.mubr.f32.gmra.mrb[0].mxu0 %v2589
    %v2664 = vpop.f32.mrb[0].mxu0
    %v2665 = vadd.f32 0.0, %v2664
    %v2666 = vpop.f32.mrb[0].mxu0
    %2667 = vmatprep.mubr.f32.mxu0 0.0
    %2668 = vmatmul.mubr.f32.gmra.mrb[0].mxu0 %v2365
    %v2669 = vpop.f32.mrb[0].mxu0
    %v2670 = vadd.f32 0.0, %v2669
    %v2671 = vpop.f32.mrb[0].mxu0
    %2672 = vmatprep.mubr.f32.mxu0 0.0
    %2673 = vmatmul.mubr.f32.gmra.mrb[0].mxu0 %v2591
    %v2674 = vpop.f32.mrb[0].mxu0
    %v2675 = vadd.f32 0.0, %v2674
    %v2676 = vpop.f32.mrb[0].mxu0
    %2677 = vdwg.mxu0
    %v2678 = vadd.f32 %v2576, %v2660
    %v2679 = vadd.f32 %v2577, %v2665
    %v2680 = vadd.f32 %v2578, %v2670
    %v2681 = vadd.f32 %v2579, %v2675
    %v2682 = vadd.f32 %v2678, %v1930
    %v2683 = vadd.f32 %v2679, %v1931
    %v2684 = vadd.f32 %v2680, %v1932
    %v2685 = vadd.f32 %v2681, %v1933
    %s2686 = scalar_lea.vmem [#allocation8], 3
    %v2687 = vld [vmem:[%s2686] sm:$0x1]
    %v2688 = vmul.f32 %v2682, 0.5
    %v2689 = vmul.f32 %v2683, 0.5
    %v2690 = vmul.f32 %v2684, 0.5
    %v2691 = vmul.f32 %v2685, 0.5
    %v2692 = vmul.f32 %v2682, 0.70710677
    %v2693 = vmul.f32 %v2683, 0.70710677
    %v2694 = vmul.f32 %v2684, 0.70710677
    %v2695 = vmul.f32 %v2685, 0.70710677
    %v2696 = verf.f32.pop %v2692
    %v2697 = verf.f32.pop %v2693
    %v2698 = verf.f32.pop %v2694
    %v2699 = verf.f32.pop %v2695
    %v2700 = vadd.f32 %v2696, 1.0
    %v2701 = vadd.f32 %v2697, 1.0
    %v2702 = vadd.f32 %v2698, 1.0
    %v2703 = vadd.f32 %v2699, 1.0
    %v2704 = vmul.f32 %v2688, %v2700
    %v2705 = vmul.f32 %v2689, %v2701
    %v2706 = vmul.f32 %v2690, %v2702
    %v2707 = vmul.f32 %v2691, %v2703
    %s2708 = scalar_lea.vmem [#allocation7], 576
    %v2709 = vld [vmem:[%s2708] sm:$0xff]
    %v2710 = vld [vmem:[%s2708 + $0x8] sm:$0xff]
    %v2711 = vld [vmem:[%s2708 + $0x10] sm:$0xff]
    %v2712 = vld [vmem:[%s2708 + $0x18] sm:$0xff]
    %v2713 = vld [vmem:[%s2708 + $0x20] sm:$0xff]
    %v2714 = vld [vmem:[%s2708 + $0x28] sm:$0xff]
    %v2715 = vld [vmem:[%s2708 + $0x30] sm:$0xff]
    %v2716 = vld [vmem:[%s2708 + $0x38] sm:$0xff]
    %v2718 = vsel %vm420, 0.0, 0
    %v2721 = vsel %vm420, %v2704, 0
    %v2724 = vsel %vm420, %v2706, 0
    %2726 = vmatprep.subr.mxu0 0.0
    %2727 = vmatpush1.msra.mxu0 %v2709
    %2728 = vmatprep.subr.mxu0 0.0
    %2729 = vmatpush1.msra.mxu0 %v2710
    %2730 = vmatprep.subr.mxu0 0.0
    %2731 = vmatpush1.msra.mxu0 %v2711
    %2732 = vmatprep.subr.mxu0 0.0
    %2733 = vmatpush1.msra.mxu0 %v2712
    %2734 = vmatprep.subr.mxu0 0.0
    %2735 = vmatpush1.msra.mxu0 %v2713
    %2736 = vmatprep.subr.mxu0 0.0
    %2737 = vmatpush1.msra.mxu0 %v2714
    %2738 = vmatprep.subr.mxu0 0.0
    %2739 = vmatpush1.msra.mxu0 %v2715
    %2740 = vmatprep.subr.mxu0 0.0
    %2741 = vmatpush1.msra.mxu0 %v2716
    %2742 = vmatprep.subr.mxu0 0.0
    %2743 = vmatpush1.msra.mxu0 0.0
    %2744 = vmatprep.subr.mxu0 0.0
    %2745 = vmatpush1.msra.mxu0 0.0
    %2746 = vmatprep.subr.mxu0 0.0
    %2747 = vmatpush1.msra.mxu0 0.0
    %2748 = vmatprep.subr.mxu0 0.0
    %2749 = vmatpush1.msra.mxu0 0.0
    %2750 = vmatprep.subr.mxu0 0.0
    %2751 = vmatpush1.msra.mxu0 0.0
    %2752 = vmatprep.subr.mxu0 0.0
    %2753 = vmatpush1.msra.mxu0 0.0
    %2754 = vmatprep.subr.mxu0 0.0
    %2755 = vmatpush1.msra.mxu0 0.0
    %2756 = vmatprep.subr.mxu0 0.0
    %2757 = vmatpush1.msra.mxu0 0.0
    %2758 = vmatprep.subr.mxu0 0.0
    %2759 = vmatpush1.msra.mxu0 0.0
    %2760 = vmatprep.subr.mxu0 0.0
    %2761 = vmatpush1.msra.mxu0 0.0
    %2762 = vmatprep.subr.mxu0 0.0
    %2763 = vmatpush1.msra.mxu0 0.0
    %2764 = vmatprep.subr.mxu0 0.0
    %2765 = vmatpush1.msra.mxu0 0.0
    %2766 = vmatprep.subr.mxu0 0.0
    %2767 = vmatpush1.msra.mxu0 0.0
    %2768 = vmatprep.subr.mxu0 0.0
    %2769 = vmatpush1.msra.mxu0 0.0
    %2770 = vmatprep.subr.mxu0 0.0
    %2771 = vmatpush1.msra.mxu0 0.0
    %2772 = vmatprep.subr.mxu0 0.0
    %2773 = vmatpush1.msra.mxu0 0.0
    %2774 = vmatprep.subr.mxu0 0.0
    %2775 = vmatpush1.msra.mxu0 0.0
    %2776 = vmatprep.subr.mxu0 0.0
    %2777 = vmatpush1.msra.mxu0 0.0
    %2778 = vmatprep.subr.mxu0 0.0
    %2779 = vmatpush1.msra.mxu0 0.0
    %2780 = vmatprep.subr.mxu0 0.0
    %2781 = vmatpush1.msra.mxu0 0.0
    %2782 = vmatprep.subr.mxu0 0.0
    %2783 = vmatpush1.msra.mxu0 0.0
    %2784 = vmatprep.subr.mxu0 0.0
    %2785 = vmatpush1.msra.mxu0 0.0
    %2786 = vmatprep.subr.mxu0 0.0
    %2787 = vmatpush1.msra.mxu0 0.0
    %2788 = vmatprep.subr.mxu0 0.0
    %2789 = vmatpush1.msra.mxu0 0.0
    %2790 = vmatprep.mubr.f32.mxu0 0.0
    %2791 = vmatmul.mubr.f32.gmra.mrb[0].mxu0 %v2718
    %v2792 = vpop.f32.mrb[0].mxu0
    %v2793 = vadd.f32 0.0, %v2792
    %v2794 = vpop.f32.mrb[0].mxu0
    %2795 = vmatprep.mubr.f32.mxu0 0.0
    %2796 = vmatmul.mubr.f32.gmra.mrb[0].mxu0 %v2721
    %v2797 = vpop.f32.mrb[0].mxu0
    %v2798 = vadd.f32 0.0, %v2797
    %v2799 = vpop.f32.mrb[0].mxu0
    %2800 = vmatprep.mubr.f32.mxu0 0.0
    %2801 = vmatmul.mubr.f32.gmra.mrb[0].mxu0 %v2718
    %v2802 = vpop.f32.mrb[0].mxu0
    %v2803 = vadd.f32 0.0, %v2802
    %v2804 = vpop.f32.mrb[0].mxu0
    %2805 = vmatprep.mubr.f32.mxu0 0.0
    %2806 = vmatmul.mubr.f32.gmra.mrb[0].mxu0 %v2724
    %v2807 = vpop.f32.mrb[0].mxu0
    %v2808 = vadd.f32 0.0, %v2807
    %v2809 = vpop.f32.mrb[0].mxu0
    %2810 = vdwg.mxu0
    %v2812 = vlaneseq
    %v2813 = vshrl.u32 %v2812, 7
    %v2814 = vsub.s32 0, %v2813
    %v2815 = vrot.slane %v2687, %v2814
    %v2817 = vadd.f32 %v2815, %v2793
    %v2818 = vadd.f32 %v2815, %v2798
    %v2819 = vadd.f32 %v2815, %v2803
    %v2820 = vadd.f32 %v2815, %v2808
    %s2821 = scalar_lea.vmem [#allocation7], 640
    %v2822 = vld [vmem:[%s2821] sm:$0xff]
    %v2823 = vld [vmem:[%s2821 + $0x8] sm:$0xff]
    %v2824 = vld [vmem:[%s2821 + $0x10] sm:$0xff]
    %v2825 = vld [vmem:[%s2821 + $0x18] sm:$0xff]
    %v2826 = vld [vmem:[%s2821 + $0x20] sm:$0xff]
    %v2827 = vld [vmem:[%s2821 + $0x28] sm:$0xff]
    %v2828 = vld [vmem:[%s2821 + $0x30] sm:$0xff]
    %v2829 = vld [vmem:[%s2821 + $0x38] sm:$0xff]
    %v2831 = vsel %vm420, %v2705, 0
    %v2834 = vsel %vm420, %v2707, 0
    %2836 = vmatprep.subr.mxu0 0.0
    %2837 = vmatpush1.msra.mxu0 %v2822
    %2838 = vmatprep.subr.mxu0 0.0
    %2839 = vmatpush1.msra.mxu0 %v2823
    %2840 = vmatprep.subr.mxu0 0.0
    %2841 = vmatpush1.msra.mxu0 %v2824
    %2842 = vmatprep.subr.mxu0 0.0
    %2843 = vmatpush1.msra.mxu0 %v2825
    %2844 = vmatprep.subr.mxu0 0.0
    %2845 = vmatpush1.msra.mxu0 %v2826
    %2846 = vmatprep.subr.mxu0 0.0
    %2847 = vmatpush1.msra.mxu0 %v2827
    %2848 = vmatprep.subr.mxu0 0.0
    %2849 = vmatpush1.msra.mxu0 %v2828
    %2850 = vmatprep.subr.mxu0 0.0
    %2851 = vmatpush1.msra.mxu0 %v2829
    %2852 = vmatprep.subr.mxu0 0.0
    %2853 = vmatpush1.msra.mxu0 0.0
    %2854 = vmatprep.subr.mxu0 0.0
    %2855 = vmatpush1.msra.mxu0 0.0
    %2856 = vmatprep.subr.mxu0 0.0
    %2857 = vmatpush1.msra.mxu0 0.0
    %2858 = vmatprep.subr.mxu0 0.0
    %2859 = vmatpush1.msra.mxu0 0.0
    %2860 = vmatprep.subr.mxu0 0.0
    %2861 = vmatpush1.msra.mxu0 0.0
    %2862 = vmatprep.subr.mxu0 0.0
    %2863 = vmatpush1.msra.mxu0 0.0
    %2864 = vmatprep.subr.mxu0 0.0
    %2865 = vmatpush1.msra.mxu0 0.0
    %2866 = vmatprep.subr.mxu0 0.0
    %2867 = vmatpush1.msra.mxu0 0.0
    %2868 = vmatprep.subr.mxu0 0.0
    %2869 = vmatpush1.msra.mxu0 0.0
    %2870 = vmatprep.subr.mxu0 0.0
    %2871 = vmatpush1.msra.mxu0 0.0
    %2872 = vmatprep.subr.mxu0 0.0
    %2873 = vmatpush1.msra.mxu0 0.0
    %2874 = vmatprep.subr.mxu0 0.0
    %2875 = vmatpush1.msra.mxu0 0.0
    %2876 = vmatprep.subr.mxu0 0.0
    %2877 = vmatpush1.msra.mxu0 0.0
    %2878 = vmatprep.subr.mxu0 0.0
    %2879 = vmatpush1.msra.mxu0 0.0
    %2880 = vmatprep.subr.mxu0 0.0
    %2881 = vmatpush1.msra.mxu0 0.0
    %2882 = vmatprep.subr.mxu0 0.0
    %2883 = vmatpush1.msra.mxu0 0.0
    %2884 = vmatprep.subr.mxu0 0.0
    %2885 = vmatpush1.msra.mxu0 0.0
    %2886 = vmatprep.subr.mxu0 0.0
    %2887 = vmatpush1.msra.mxu0 0.0
    %2888 = vmatprep.subr.mxu0 0.0
    %2889 = vmatpush1.msra.mxu0 0.0
    %2890 = vmatprep.subr.mxu0 0.0
    %2891 = vmatpush1.msra.mxu0 0.0
    %2892 = vmatprep.subr.mxu0 0.0
    %2893 = vmatpush1.msra.mxu0 0.0
    %2894 = vmatprep.subr.mxu0 0.0
    %2895 = vmatpush1.msra.mxu0 0.0
    %2896 = vmatprep.subr.mxu0 0.0
    %2897 = vmatpush1.msra.mxu0 0.0
    %2898 = vmatprep.subr.mxu0 0.0
    %2899 = vmatpush1.msra.mxu0 0.0
    %2900 = vmatprep.mubr.f32.mxu0 0.0
    %2901 = vmatmul.mubr.f32.gmra.mrb[0].mxu0 %v2721
    %v2902 = vpop.f32.mrb[0].mxu0
    %v2903 = vadd.f32 0.0, %v2902
    %v2904 = vpop.f32.mrb[0].mxu0
    %2905 = vmatprep.mubr.f32.mxu0 0.0
    %2906 = vmatmul.mubr.f32.gmra.mrb[0].mxu0 %v2831
    %v2907 = vpop.f32.mrb[0].mxu0
    %v2908 = vadd.f32 0.0, %v2907
    %v2909 = vpop.f32.mrb[0].mxu0
    %2910 = vmatprep.mubr.f32.mxu0 0.0
    %2911 = vmatmul.mubr.f32.gmra.mrb[0].mxu0 %v2724
    %v2912 = vpop.f32.mrb[0].mxu0
    %v2913 = vadd.f32 0.0, %v2912
    %v2914 = vpop.f32.mrb[0].mxu0
    %2915 = vmatprep.mubr.f32.mxu0 0.0
    %2916 = vmatmul.mubr.f32.gmra.mrb[0].mxu0 %v2834
    %v2917 = vpop.f32.mrb[0].mxu0
    %v2918 = vadd.f32 0.0, %v2917
    %v2919 = vpop.f32.mrb[0].mxu0
    %2920 = vdwg.mxu0
    %v2921 = vadd.f32 %v2817, %v2903
    %v2922 = vadd.f32 %v2818, %v2908
    %v2923 = vadd.f32 %v2819, %v2913
    %v2924 = vadd.f32 %v2820, %v2918
    %s2925 = scalar_lea.vmem [#allocation7], 704
    %v2926 = vld [vmem:[%s2925] sm:$0xff]
    %v2927 = vld [vmem:[%s2925 + $0x8] sm:$0xff]
    %v2928 = vld [vmem:[%s2925 + $0x10] sm:$0xff]
    %v2929 = vld [vmem:[%s2925 + $0x18] sm:$0xff]
    %v2930 = vld [vmem:[%s2925 + $0x20] sm:$0xff]
    %v2931 = vld [vmem:[%s2925 + $0x28] sm:$0xff]
    %v2932 = vld [vmem:[%s2925 + $0x30] sm:$0xff]
    %v2933 = vld [vmem:[%s2925 + $0x38] sm:$0xff]
    %2934 = vmatprep.subr.mxu0 0.0
    %2935 = vmatpush1.msra.mxu0 %v2926
    %2936 = vmatprep.subr.mxu0 0.0
    %2937 = vmatpush1.msra.mxu0 %v2927
    %2938 = vmatprep.subr.mxu0 0.0
    %2939 = vmatpush1.msra.mxu0 %v2928
    %2940 = vmatprep.subr.mxu0 0.0
    %2941 = vmatpush1.msra.mxu0 %v2929
    %2942 = vmatprep.subr.mxu0 0.0
    %2943 = vmatpush1.msra.mxu0 %v2930
    %2944 = vmatprep.subr.mxu0 0.0
    %2945 = vmatpush1.msra.mxu0 %v2931
    %2946 = vmatprep.subr.mxu0 0.0
    %2947 = vmatpush1.msra.mxu0 %v2932
    %2948 = vmatprep.subr.mxu0 0.0
    %2949 = vmatpush1.msra.mxu0 %v2933
    %2950 = vmatprep.subr.mxu0 0.0
    %2951 = vmatpush1.msra.mxu0 0.0
    %2952 = vmatprep.subr.mxu0 0.0
    %2953 = vmatpush1.msra.mxu0 0.0
    %2954 = vmatprep.subr.mxu0 0.0
    %2955 = vmatpush1.msra.mxu0 0.0
    %2956 = vmatprep.subr.mxu0 0.0
    %2957 = vmatpush1.msra.mxu0 0.0
    %2958 = vmatprep.subr.mxu0 0.0
    %2959 = vmatpush1.msra.mxu0 0.0
    %2960 = vmatprep.subr.mxu0 0.0
    %2961 = vmatpush1.msra.mxu0 0.0
    %2962 = vmatprep.subr.mxu0 0.0
    %2963 = vmatpush1.msra.mxu0 0.0
    %2964 = vmatprep.subr.mxu0 0.0
    %2965 = vmatpush1.msra.mxu0 0.0
    %2966 = vmatprep.subr.mxu0 0.0
    %2967 = vmatpush1.msra.mxu0 0.0
    %2968 = vmatprep.subr.mxu0 0.0
    %2969 = vmatpush1.msra.mxu0 0.0
    %2970 = vmatprep.subr.mxu0 0.0
    %2971 = vmatpush1.msra.mxu0 0.0
    %2972 = vmatprep.subr.mxu0 0.0
    %2973 = vmatpush1.msra.mxu0 0.0
    %2974 = vmatprep.subr.mxu0 0.0
    %2975 = vmatpush1.msra.mxu0 0.0
    %2976 = vmatprep.subr.mxu0 0.0
    %2977 = vmatpush1.msra.mxu0 0.0
    %2978 = vmatprep.subr.mxu0 0.0
    %2979 = vmatpush1.msra.mxu0 0.0
    %2980 = vmatprep.subr.mxu0 0.0
    %2981 = vmatpush1.msra.mxu0 0.0
    %2982 = vmatprep.subr.mxu0 0.0
    %2983 = vmatpush1.msra.mxu0 0.0
    %2984 = vmatprep.subr.mxu0 0.0
    %2985 = vmatpush1.msra.mxu0 0.0
    %2986 = vmatprep.subr.mxu0 0.0
    %2987 = vmatpush1.msra.mxu0 0.0
    %2988 = vmatprep.subr.mxu0 0.0
    %2989 = vmatpush1.msra.mxu0 0.0
    %2990 = vmatprep.subr.mxu0 0.0
    %2991 = vmatpush1.msra.mxu0 0.0
    %2992 = vmatprep.subr.mxu0 0.0
    %2993 = vmatpush1.msra.mxu0 0.0
    %2994 = vmatprep.subr.mxu0 0.0
    %2995 = vmatpush1.msra.mxu0 0.0
    %2996 = vmatprep.subr.mxu0 0.0
    %2997 = vmatpush1.msra.mxu0 0.0
    %2998 = vmatprep.mubr.f32.mxu0 0.0
    %2999 = vmatmul.mubr.f32.gmra.mrb[0].mxu0 %v2831
    %v3000 = vpop.f32.mrb[0].mxu0
    %v3001 = vadd.f32 0.0, %v3000
    %v3002 = vpop.f32.mrb[0].mxu0
    %3003 = vmatprep.mubr.f32.mxu0 0.0
    %3004 = vmatmul.mubr.f32.gmra.mrb[0].mxu0 %v2718
    %v3005 = vpop.f32.mrb[0].mxu0
    %v3006 = vadd.f32 0.0, %v3005
    %v3007 = vpop.f32.mrb[0].mxu0
    %3008 = vmatprep.mubr.f32.mxu0 0.0
    %3009 = vmatmul.mubr.f32.gmra.mrb[0].mxu0 %v2834
    %v3010 = vpop.f32.mrb[0].mxu0
    %v3011 = vadd.f32 0.0, %v3010
    %v3012 = vpop.f32.mrb[0].mxu0
    %3013 = vmatprep.mubr.f32.mxu0 0.0
    %3014 = vmatmul.mubr.f32.gmra.mrb[0].mxu0 %v2718
    %v3015 = vpop.f32.mrb[0].mxu0
    %v3016 = vadd.f32 0.0, %v3015
    %v3017 = vpop.f32.mrb[0].mxu0
    %3018 = vdwg.mxu0
    %v3019 = vadd.f32 %v2921, %v3001
    %v3020 = vadd.f32 %v2922, %v3006
    %v3021 = vadd.f32 %v2923, %v3011
    %v3022 = vadd.f32 %v2924, %v3016
    %s3023 = scalar_lea.vmem [#allocation11], 3
    %v3024 = vld [vmem:[%s3023] sm:$0x1]
    %v3025 = vmul.f32 %v3019, 0.5
    %v3026 = vmul.f32 %v3020, 0.5
    %v3027 = vmul.f32 %v3021, 0.5
    %v3028 = vmul.f32 %v3022, 0.5
    %v3029 = vmul.f32 %v3019, 0.70710677
    %v3030 = vmul.f32 %v3020, 0.70710677
    %v3031 = vmul.f32 %v3021, 0.70710677
    %v3032 = vmul.f32 %v3022, 0.70710677
    %v3033 = verf.f32.pop %v3029
    %v3034 = verf.f32.pop %v3030
    %v3035 = verf.f32.pop %v3031
    %v3036 = verf.f32.pop %v3032
    %v3037 = vadd.f32 %v3033, 1.0
    %v3038 = vadd.f32 %v3034, 1.0
    %v3039 = vadd.f32 %v3035, 1.0
    %v3040 = vadd.f32 %v3036, 1.0
    %v3041 = vmul.f32 %v3025, %v3037
    %v3042 = vmul.f32 %v3026, %v3038
    %v3043 = vmul.f32 %v3027, %v3039
    %v3044 = vmul.f32 %v3028, %v3040
    %s3045 = scalar_lea.vmem [#allocation10], 576
    %v3046 = vld [vmem:[%s3045] sm:$0xff]
    %v3047 = vld [vmem:[%s3045 + $0x8] sm:$0xff]
    %v3048 = vld [vmem:[%s3045 + $0x10] sm:$0xff]
    %v3049 = vld [vmem:[%s3045 + $0x18] sm:$0xff]
    %v3050 = vld [vmem:[%s3045 + $0x20] sm:$0xff]
    %v3051 = vld [vmem:[%s3045 + $0x28] sm:$0xff]
    %v3052 = vld [vmem:[%s3045 + $0x30] sm:$0xff]
    %v3053 = vld [vmem:[%s3045 + $0x38] sm:$0xff]
    %v3055 = vsel %vm420, %v3041, 0
    %v3058 = vsel %vm420, %v3043, 0
    %3060 = vmatprep.subr.mxu0 0.0
    %3061 = vmatpush1.msra.mxu0 %v3046
    %3062 = vmatprep.subr.mxu0 0.0
    %3063 = vmatpush1.msra.mxu0 %v3047
    %3064 = vmatprep.subr.mxu0 0.0
    %3065 = vmatpush1.msra.mxu0 %v3048
    %3066 = vmatprep.subr.mxu0 0.0
    %3067 = vmatpush1.msra.mxu0 %v3049
    %3068 = vmatprep.subr.mxu0 0.0
    %3069 = vmatpush1.msra.mxu0 %v3050
    %3070 = vmatprep.subr.mxu0 0.0
    %3071 = vmatpush1.msra.mxu0 %v3051
    %3072 = vmatprep.subr.mxu0 0.0
    %3073 = vmatpush1.msra.mxu0 %v3052
    %3074 = vmatprep.subr.mxu0 0.0
    %3075 = vmatpush1.msra.mxu0 %v3053
    %3076 = vmatprep.subr.mxu0 0.0
    %3077 = vmatpush1.msra.mxu0 0.0
    %3078 = vmatprep.subr.mxu0 0.0
    %3079 = vmatpush1.msra.mxu0 0.0
    %3080 = vmatprep.subr.mxu0 0.0
    %3081 = vmatpush1.msra.mxu0 0.0
    %3082 = vmatprep.subr.mxu0 0.0
    %3083 = vmatpush1.msra.mxu0 0.0
    %3084 = vmatprep.subr.mxu0 0.0
    %3085 = vmatpush1.msra.mxu0 0.0
    %3086 = vmatprep.subr.mxu0 0.0
    %3087 = vmatpush1.msra.mxu0 0.0
    %3088 = vmatprep.subr.mxu0 0.0
    %3089 = vmatpush1.msra.mxu0 0.0
    %3090 = vmatprep.subr.mxu0 0.0
    %3091 = vmatpush1.msra.mxu0 0.0
    %3092 = vmatprep.subr.mxu0 0.0
    %3093 = vmatpush1.msra.mxu0 0.0
    %3094 = vmatprep.subr.mxu0 0.0
    %3095 = vmatpush1.msra.mxu0 0.0
    %3096 = vmatprep.subr.mxu0 0.0
    %3097 = vmatpush1.msra.mxu0 0.0
    %3098 = vmatprep.subr.mxu0 0.0
    %3099 = vmatpush1.msra.mxu0 0.0
    %3100 = vmatprep.subr.mxu0 0.0
    %3101 = vmatpush1.msra.mxu0 0.0
    %3102 = vmatprep.subr.mxu0 0.0
    %3103 = vmatpush1.msra.mxu0 0.0
    %3104 = vmatprep.subr.mxu0 0.0
    %3105 = vmatpush1.msra.mxu0 0.0
    %3106 = vmatprep.subr.mxu0 0.0
    %3107 = vmatpush1.msra.mxu0 0.0
    %3108 = vmatprep.subr.mxu0 0.0
    %3109 = vmatpush1.msra.mxu0 0.0
    %3110 = vmatprep.subr.mxu0 0.0
    %3111 = vmatpush1.msra.mxu0 0.0
    %3112 = vmatprep.subr.mxu0 0.0
    %3113 = vmatpush1.msra.mxu0 0.0
    %3114 = vmatprep.subr.mxu0 0.0
    %3115 = vmatpush1.msra.mxu0 0.0
    %3116 = vmatprep.subr.mxu0 0.0
    %3117 = vmatpush1.msra.mxu0 0.0
    %3118 = vmatprep.subr.mxu0 0.0
    %3119 = vmatpush1.msra.mxu0 0.0
    %3120 = vmatprep.subr.mxu0 0.0
    %3121 = vmatpush1.msra.mxu0 0.0
    %3122 = vmatprep.subr.mxu0 0.0
    %3123 = vmatpush1.msra.mxu0 0.0
    %3124 = vmatprep.mubr.f32.mxu0 0.0
    %3125 = vmatmul.mubr.f32.gmra.mrb[0].mxu0 %v2718
    %v3126 = vpop.f32.mrb[0].mxu0
    %v3127 = vadd.f32 0.0, %v3126
    %v3128 = vpop.f32.mrb[0].mxu0
    %3129 = vmatprep.mubr.f32.mxu0 0.0
    %3130 = vmatmul.mubr.f32.gmra.mrb[0].mxu0 %v3055
    %v3131 = vpop.f32.mrb[0].mxu0
    %v3132 = vadd.f32 0.0, %v3131
    %v3133 = vpop.f32.mrb[0].mxu0
    %3134 = vmatprep.mubr.f32.mxu0 0.0
    %3135 = vmatmul.mubr.f32.gmra.mrb[0].mxu0 %v2718
    %v3136 = vpop.f32.mrb[0].mxu0
    %v3137 = vadd.f32 0.0, %v3136
    %v3138 = vpop.f32.mrb[0].mxu0
    %3139 = vmatprep.mubr.f32.mxu0 0.0
    %3140 = vmatmul.mubr.f32.gmra.mrb[0].mxu0 %v3058
    %v3141 = vpop.f32.mrb[0].mxu0
    %v3142 = vadd.f32 0.0, %v3141
    %v3143 = vpop.f32.mrb[0].mxu0
    %3144 = vdwg.mxu0
    %v3146 = vlaneseq
    %v3147 = vshrl.u32 %v3146, 7
    %v3148 = vsub.s32 0, %v3147
    %v3149 = vrot.slane %v3024, %v3148
    %v3151 = vadd.f32 %v3149, %v3127
    %v3152 = vadd.f32 %v3149, %v3132
    %v3153 = vadd.f32 %v3149, %v3137
    %v3154 = vadd.f32 %v3149, %v3142
    %s3155 = scalar_lea.vmem [#allocation10], 640
    %v3156 = vld [vmem:[%s3155] sm:$0xff]
    %v3157 = vld [vmem:[%s3155 + $0x8] sm:$0xff]
    %v3158 = vld [vmem:[%s3155 + $0x10] sm:$0xff]
    %v3159 = vld [vmem:[%s3155 + $0x18] sm:$0xff]
    %v3160 = vld [vmem:[%s3155 + $0x20] sm:$0xff]
    %v3161 = vld [vmem:[%s3155 + $0x28] sm:$0xff]
    %v3162 = vld [vmem:[%s3155 + $0x30] sm:$0xff]
    %v3163 = vld [vmem:[%s3155 + $0x38] sm:$0xff]
    %v3165 = vsel %vm420, %v3042, 0
    %v3168 = vsel %vm420, %v3044, 0
    %3170 = vmatprep.subr.mxu0 0.0
    %3171 = vmatpush1.msra.mxu0 %v3156
    %3172 = vmatprep.subr.mxu0 0.0
    %3173 = vmatpush1.msra.mxu0 %v3157
    %3174 = vmatprep.subr.mxu0 0.0
    %3175 = vmatpush1.msra.mxu0 %v3158
    %3176 = vmatprep.subr.mxu0 0.0
    %3177 = vmatpush1.msra.mxu0 %v3159
    %3178 = vmatprep.subr.mxu0 0.0
    %3179 = vmatpush1.msra.mxu0 %v3160
    %3180 = vmatprep.subr.mxu0 0.0
    %3181 = vmatpush1.msra.mxu0 %v3161
    %3182 = vmatprep.subr.mxu0 0.0
    %3183 = vmatpush1.msra.mxu0 %v3162
    %3184 = vmatprep.subr.mxu0 0.0
    %3185 = vmatpush1.msra.mxu0 %v3163
    %3186 = vmatprep.subr.mxu0 0.0
    %3187 = vmatpush1.msra.mxu0 0.0
    %3188 = vmatprep.subr.mxu0 0.0
    %3189 = vmatpush1.msra.mxu0 0.0
    %3190 = vmatprep.subr.mxu0 0.0
    %3191 = vmatpush1.msra.mxu0 0.0
    %3192 = vmatprep.subr.mxu0 0.0
    %3193 = vmatpush1.msra.mxu0 0.0
    %3194 = vmatprep.subr.mxu0 0.0
    %3195 = vmatpush1.msra.mxu0 0.0
    %3196 = vmatprep.subr.mxu0 0.0
    %3197 = vmatpush1.msra.mxu0 0.0
    %3198 = vmatprep.subr.mxu0 0.0
    %3199 = vmatpush1.msra.mxu0 0.0
    %3200 = vmatprep.subr.mxu0 0.0
    %3201 = vmatpush1.msra.mxu0 0.0
    %3202 = vmatprep.subr.mxu0 0.0
    %3203 = vmatpush1.msra.mxu0 0.0
    %3204 = vmatprep.subr.mxu0 0.0
    %3205 = vmatpush1.msra.mxu0 0.0
    %3206 = vmatprep.subr.mxu0 0.0
    %3207 = vmatpush1.msra.mxu0 0.0
    %3208 = vmatprep.subr.mxu0 0.0
    %3209 = vmatpush1.msra.mxu0 0.0
    %3210 = vmatprep.subr.mxu0 0.0
    %3211 = vmatpush1.msra.mxu0 0.0
    %3212 = vmatprep.subr.mxu0 0.0
    %3213 = vmatpush1.msra.mxu0 0.0
    %3214 = vmatprep.subr.mxu0 0.0
    %3215 = vmatpush1.msra.mxu0 0.0
    %3216 = vmatprep.subr.mxu0 0.0
    %3217 = vmatpush1.msra.mxu0 0.0
    %3218 = vmatprep.subr.mxu0 0.0
    %3219 = vmatpush1.msra.mxu0 0.0
    %3220 = vmatprep.subr.mxu0 0.0
    %3221 = vmatpush1.msra.mxu0 0.0
    %3222 = vmatprep.subr.mxu0 0.0
    %3223 = vmatpush1.msra.mxu0 0.0
    %3224 = vmatprep.subr.mxu0 0.0
    %3225 = vmatpush1.msra.mxu0 0.0
    %3226 = vmatprep.subr.mxu0 0.0
    %3227 = vmatpush1.msra.mxu0 0.0
    %3228 = vmatprep.subr.mxu0 0.0
    %3229 = vmatpush1.msra.mxu0 0.0
    %3230 = vmatprep.subr.mxu0 0.0
    %3231 = vmatpush1.msra.mxu0 0.0
    %3232 = vmatprep.subr.mxu0 0.0
    %3233 = vmatpush1.msra.mxu0 0.0
    %3234 = vmatprep.mubr.f32.mxu0 0.0
    %3235 = vmatmul.mubr.f32.gmra.mrb[0].mxu0 %v3055
    %v3236 = vpop.f32.mrb[0].mxu0
    %v3237 = vadd.f32 0.0, %v3236
    %v3238 = vpop.f32.mrb[0].mxu0
    %3239 = vmatprep.mubr.f32.mxu0 0.0
    %3240 = vmatmul.mubr.f32.gmra.mrb[0].mxu0 %v3165
    %v3241 = vpop.f32.mrb[0].mxu0
    %v3242 = vadd.f32 0.0, %v3241
    %v3243 = vpop.f32.mrb[0].mxu0
    %3244 = vmatprep.mubr.f32.mxu0 0.0
    %3245 = vmatmul.mubr.f32.gmra.mrb[0].mxu0 %v3058
    %v3246 = vpop.f32.mrb[0].mxu0
    %v3247 = vadd.f32 0.0, %v3246
    %v3248 = vpop.f32.mrb[0].mxu0
    %3249 = vmatprep.mubr.f32.mxu0 0.0
    %3250 = vmatmul.mubr.f32.gmra.mrb[0].mxu0 %v3168
    %v3251 = vpop.f32.mrb[0].mxu0
    %v3252 = vadd.f32 0.0, %v3251
    %v3253 = vpop.f32.mrb[0].mxu0
    %3254 = vdwg.mxu0
    %v3255 = vadd.f32 %v3151, %v3237
    %v3256 = vadd.f32 %v3152, %v3242
    %v3257 = vadd.f32 %v3153, %v3247
    %v3258 = vadd.f32 %v3154, %v3252
    %s3259 = scalar_lea.vmem [#allocation10], 704
    %v3260 = vld [vmem:[%s3259] sm:$0xff]
    %v3261 = vld [vmem:[%s3259 + $0x8] sm:$0xff]
    %v3262 = vld [vmem:[%s3259 + $0x10] sm:$0xff]
    %v3263 = vld [vmem:[%s3259 + $0x18] sm:$0xff]
    %v3264 = vld [vmem:[%s3259 + $0x20] sm:$0xff]
    %v3265 = vld [vmem:[%s3259 + $0x28] sm:$0xff]
    %v3266 = vld [vmem:[%s3259 + $0x30] sm:$0xff]
    %v3267 = vld [vmem:[%s3259 + $0x38] sm:$0xff]
    %3268 = vmatprep.subr.mxu0 0.0
    %3269 = vmatpush1.msra.mxu0 %v3260
    %3270 = vmatprep.subr.mxu0 0.0
    %3271 = vmatpush1.msra.mxu0 %v3261
    %3272 = vmatprep.subr.mxu0 0.0
    %3273 = vmatpush1.msra.mxu0 %v3262
    %3274 = vmatprep.subr.mxu0 0.0
    %3275 = vmatpush1.msra.mxu0 %v3263
    %3276 = vmatprep.subr.mxu0 0.0
    %3277 = vmatpush1.msra.mxu0 %v3264
    %3278 = vmatprep.subr.mxu0 0.0
    %3279 = vmatpush1.msra.mxu0 %v3265
    %3280 = vmatprep.subr.mxu0 0.0
    %3281 = vmatpush1.msra.mxu0 %v3266
    %3282 = vmatprep.subr.mxu0 0.0
    %3283 = vmatpush1.msra.mxu0 %v3267
    %3284 = vmatprep.subr.mxu0 0.0
    %3285 = vmatpush1.msra.mxu0 0.0
    %3286 = vmatprep.subr.mxu0 0.0
    %3287 = vmatpush1.msra.mxu0 0.0
    %3288 = vmatprep.subr.mxu0 0.0
    %3289 = vmatpush1.msra.mxu0 0.0
    %3290 = vmatprep.subr.mxu0 0.0
    %3291 = vmatpush1.msra.mxu0 0.0
    %3292 = vmatprep.subr.mxu0 0.0
    %3293 = vmatpush1.msra.mxu0 0.0
    %3294 = vmatprep.subr.mxu0 0.0
    %3295 = vmatpush1.msra.mxu0 0.0
    %3296 = vmatprep.subr.mxu0 0.0
    %3297 = vmatpush1.msra.mxu0 0.0
    %3298 = vmatprep.subr.mxu0 0.0
    %3299 = vmatpush1.msra.mxu0 0.0
    %3300 = vmatprep.subr.mxu0 0.0
    %3301 = vmatpush1.msra.mxu0 0.0
    %3302 = vmatprep.subr.mxu0 0.0
    %3303 = vmatpush1.msra.mxu0 0.0
    %3304 = vmatprep.subr.mxu0 0.0
    %3305 = vmatpush1.msra.mxu0 0.0
    %3306 = vmatprep.subr.mxu0 0.0
    %3307 = vmatpush1.msra.mxu0 0.0
    %3308 = vmatprep.subr.mxu0 0.0
    %3309 = vmatpush1.msra.mxu0 0.0
    %3310 = vmatprep.subr.mxu0 0.0
    %3311 = vmatpush1.msra.mxu0 0.0
    %3312 = vmatprep.subr.mxu0 0.0
    %3313 = vmatpush1.msra.mxu0 0.0
    %3314 = vmatprep.subr.mxu0 0.0
    %3315 = vmatpush1.msra.mxu0 0.0
    %3316 = vmatprep.subr.mxu0 0.0
    %3317 = vmatpush1.msra.mxu0 0.0
    %3318 = vmatprep.subr.mxu0 0.0
    %3319 = vmatpush1.msra.mxu0 0.0
    %3320 = vmatprep.subr.mxu0 0.0
    %3321 = vmatpush1.msra.mxu0 0.0
    %3322 = vmatprep.subr.mxu0 0.0
    %3323 = vmatpush1.msra.mxu0 0.0
    %3324 = vmatprep.subr.mxu0 0.0
    %3325 = vmatpush1.msra.mxu0 0.0
    %3326 = vmatprep.subr.mxu0 0.0
    %3327 = vmatpush1.msra.mxu0 0.0
    %3328 = vmatprep.subr.mxu0 0.0
    %3329 = vmatpush1.msra.mxu0 0.0
    %3330 = vmatprep.subr.mxu0 0.0
    %3331 = vmatpush1.msra.mxu0 0.0
    %3332 = vmatprep.mubr.f32.mxu0 0.0
    %3333 = vmatmul.mubr.f32.gmra.mrb[0].mxu0 %v3165
    %v3334 = vpop.f32.mrb[0].mxu0
    %v3335 = vadd.f32 0.0, %v3334
    %v3336 = vpop.f32.mrb[0].mxu0
    %3337 = vmatprep.mubr.f32.mxu0 0.0
    %3338 = vmatmul.mubr.f32.gmra.mrb[0].mxu0 %v2718
    %v3339 = vpop.f32.mrb[0].mxu0
    %v3340 = vadd.f32 0.0, %v3339
    %v3341 = vpop.f32.mrb[0].mxu0
    %3342 = vmatprep.mubr.f32.mxu0 0.0
    %3343 = vmatmul.mubr.f32.gmra.mrb[0].mxu0 %v3168
    %v3344 = vpop.f32.mrb[0].mxu0
    %v3345 = vadd.f32 0.0, %v3344
    %v3346 = vpop.f32.mrb[0].mxu0
    %3347 = vmatprep.mubr.f32.mxu0 0.0
    %3348 = vmatmul.mubr.f32.gmra.mrb[0].mxu0 %v2718
    %v3349 = vpop.f32.mrb[0].mxu0
    %v3350 = vadd.f32 0.0, %v3349
    %v3351 = vpop.f32.mrb[0].mxu0
    %3352 = vdwg.mxu0
    %v3353 = vadd.f32 %v3255, %v3335
    %v3354 = vadd.f32 %v3256, %v3340
    %v3355 = vadd.f32 %v3257, %v3345
    %v3356 = vadd.f32 %v3258, %v3350
    %v3357 = vadd.f32 %v3353, %v2682
    %v3358 = vadd.f32 %v3354, %v2683
    %v3359 = vadd.f32 %v3355, %v2684
    %v3360 = vadd.f32 %v3356, %v2685
    %s3361 = scalar_lea.vmem [#allocation8], 4
    %v3362 = vld [vmem:[%s3361] sm:$0x1]
    %v3363 = vmul.f32 %v3357, 0.5
    %v3364 = vmul.f32 %v3358, 0.5
    %v3365 = vmul.f32 %v3359, 0.5
    %v3366 = vmul.f32 %v3360, 0.5
    %v3367 = vmul.f32 %v3357, 0.70710677
    %v3368 = vmul.f32 %v3358, 0.70710677
    %v3369 = vmul.f32 %v3359, 0.70710677
    %v3370 = vmul.f32 %v3360, 0.70710677
    %v3371 = verf.f32.pop %v3367
    %v3372 = verf.f32.pop %v3368
    %v3373 = verf.f32.pop %v3369
    %v3374 = verf.f32.pop %v3370
    %v3375 = vadd.f32 %v3371, 1.0
    %v3376 = vadd.f32 %v3372, 1.0
    %v3377 = vadd.f32 %v3373, 1.0
    %v3378 = vadd.f32 %v3374, 1.0
    %v3379 = vmul.f32 %v3363, %v3375
    %v3380 = vmul.f32 %v3364, %v3376
    %v3381 = vmul.f32 %v3365, %v3377
    %v3382 = vmul.f32 %v3366, %v3378
    %s3383 = scalar_lea.vmem [#allocation7], 832
    %v3384 = vld [vmem:[%s3383] sm:$0xff]
    %v3385 = vld [vmem:[%s3383 + $0x8] sm:$0xff]
    %v3386 = vld [vmem:[%s3383 + $0x10] sm:$0xff]
    %v3387 = vld [vmem:[%s3383 + $0x18] sm:$0xff]
    %v3388 = vld [vmem:[%s3383 + $0x20] sm:$0xff]
    %v3389 = vld [vmem:[%s3383 + $0x28] sm:$0xff]
    %v3390 = vld [vmem:[%s3383 + $0x30] sm:$0xff]
    %v3391 = vld [vmem:[%s3383 + $0x38] sm:$0xff]
    %v3393 = vlaneseq
    %v3394 = vshrl.u32 %v3393, 7
    %v3395 = vsub.s32 0, %v3394
    %v3396 = vrot.slane %v3362, %v3395
    %v3399 = vsel %vm420, %v3379, 0
    %v3402 = vsel %vm420, %v3380, 0
    %v3405 = vsel %vm420, %v3381, 0
    %v3408 = vsel %vm420, %v3382, 0
    %3410 = vmatprep.subr.mxu0 0.0
    %3411 = vmatpush1.msra.mxu0 %v3384
    %3412 = vmatprep.subr.mxu0 0.0
    %3413 = vmatpush1.msra.mxu0 %v3385
    %3414 = vmatprep.subr.mxu0 0.0
    %3415 = vmatpush1.msra.mxu0 %v3386
    %3416 = vmatprep.subr.mxu0 0.0
    %3417 = vmatpush1.msra.mxu0 %v3387
    %3418 = vmatprep.subr.mxu0 0.0
    %3419 = vmatpush1.msra.mxu0 %v3388
    %3420 = vmatprep.subr.mxu0 0.0
    %3421 = vmatpush1.msra.mxu0 %v3389
    %3422 = vmatprep.subr.mxu0 0.0
    %3423 = vmatpush1.msra.mxu0 %v3390
    %3424 = vmatprep.subr.mxu0 0.0
    %3425 = vmatpush1.msra.mxu0 %v3391
    %3426 = vmatprep.subr.mxu0 0.0
    %3427 = vmatpush1.msra.mxu0 0.0
    %3428 = vmatprep.subr.mxu0 0.0
    %3429 = vmatpush1.msra.mxu0 0.0
    %3430 = vmatprep.subr.mxu0 0.0
    %3431 = vmatpush1.msra.mxu0 0.0
    %3432 = vmatprep.subr.mxu0 0.0
    %3433 = vmatpush1.msra.mxu0 0.0
    %3434 = vmatprep.subr.mxu0 0.0
    %3435 = vmatpush1.msra.mxu0 0.0
    %3436 = vmatprep.subr.mxu0 0.0
    %3437 = vmatpush1.msra.mxu0 0.0
    %3438 = vmatprep.subr.mxu0 0.0
    %3439 = vmatpush1.msra.mxu0 0.0
    %3440 = vmatprep.subr.mxu0 0.0
    %3441 = vmatpush1.msra.mxu0 0.0
    %3442 = vmatprep.subr.mxu0 0.0
    %3443 = vmatpush1.msra.mxu0 0.0
    %3444 = vmatprep.subr.mxu0 0.0
    %3445 = vmatpush1.msra.mxu0 0.0
    %3446 = vmatprep.subr.mxu0 0.0
    %3447 = vmatpush1.msra.mxu0 0.0
    %3448 = vmatprep.subr.mxu0 0.0
    %3449 = vmatpush1.msra.mxu0 0.0
    %3450 = vmatprep.subr.mxu0 0.0
    %3451 = vmatpush1.msra.mxu0 0.0
    %3452 = vmatprep.subr.mxu0 0.0
    %3453 = vmatpush1.msra.mxu0 0.0
    %3454 = vmatprep.subr.mxu0 0.0
    %3455 = vmatpush1.msra.mxu0 0.0
    %3456 = vmatprep.subr.mxu0 0.0
    %3457 = vmatpush1.msra.mxu0 0.0
    %3458 = vmatprep.subr.mxu0 0.0
    %3459 = vmatpush1.msra.mxu0 0.0
    %3460 = vmatprep.subr.mxu0 0.0
    %3461 = vmatpush1.msra.mxu0 0.0
    %3462 = vmatprep.subr.mxu0 0.0
    %3463 = vmatpush1.msra.mxu0 0.0
    %3464 = vmatprep.subr.mxu0 0.0
    %3465 = vmatpush1.msra.mxu0 0.0
    %3466 = vmatprep.subr.mxu0 0.0
    %3467 = vmatpush1.msra.mxu0 0.0
    %3468 = vmatprep.subr.mxu0 0.0
    %3469 = vmatpush1.msra.mxu0 0.0
    %3470 = vmatprep.subr.mxu0 0.0
    %3471 = vmatpush1.msra.mxu0 0.0
    %3472 = vmatprep.subr.mxu0 0.0
    %3473 = vmatpush1.msra.mxu0 0.0
    %3474 = vmatprep.mubr.f32.mxu0 0.0
    %3475 = vmatmul.mubr.f32.gmra.mrb[0].mxu0 %v3399
    %v3476 = vpop.f32.mrb[0].mxu0
    %v3477 = vadd.f32 %v3396, %v3476
    %v3478 = vpop.f32.mrb[0].mxu0
    %3479 = vmatprep.mubr.f32.mxu0 0.0
    %3480 = vmatmul.mubr.f32.gmra.mrb[0].mxu0 %v3402
    %v3481 = vpop.f32.mrb[0].mxu0
    %v3482 = vadd.f32 %v3396, %v3481
    %v3483 = vpop.f32.mrb[0].mxu0
    %3484 = vmatprep.mubr.f32.mxu0 0.0
    %3485 = vmatmul.mubr.f32.gmra.mrb[0].mxu0 %v3405
    %v3486 = vpop.f32.mrb[0].mxu0
    %v3487 = vadd.f32 %v3396, %v3486
    %v3488 = vpop.f32.mrb[0].mxu0
    %3489 = vmatprep.mubr.f32.mxu0 0.0
    %3490 = vmatmul.mubr.f32.gmra.mrb[0].mxu0 %v3408
    %v3491 = vpop.f32.mrb[0].mxu0
    %v3492 = vadd.f32 %v3396, %v3491
    %v3493 = vpop.f32.mrb[0].mxu0
    %3494 = vdwg.mxu0
    %s3495 = scalar_lea.vmem [#allocation11], 4
    %v3496 = vld [vmem:[%s3495] sm:$0x1]
    %v3497 = vmul.f32 %v3477, 0.5
    %v3498 = vmul.f32 %v3482, 0.5
    %v3499 = vmul.f32 %v3487, 0.5
    %v3500 = vmul.f32 %v3492, 0.5
    %v3501 = vmul.f32 %v3477, 0.70710677
    %v3502 = vmul.f32 %v3482, 0.70710677
    %v3503 = vmul.f32 %v3487, 0.70710677
    %v3504 = vmul.f32 %v3492, 0.70710677
    %v3505 = verf.f32.pop %v3501
    %v3506 = verf.f32.pop %v3502
    %v3507 = verf.f32.pop %v3503
    %v3508 = verf.f32.pop %v3504
    %v3509 = vadd.f32 %v3505, 1.0
    %v3510 = vadd.f32 %v3506, 1.0
    %v3511 = vadd.f32 %v3507, 1.0
    %v3512 = vadd.f32 %v3508, 1.0
    %v3513 = vmul.f32 %v3497, %v3509
    %v3514 = vmul.f32 %v3498, %v3510
    %v3515 = vmul.f32 %v3499, %v3511
    %v3516 = vmul.f32 %v3500, %v3512
    %s3517 = scalar_lea.vmem [#allocation10], 832
    %v3518 = vld [vmem:[%s3517] sm:$0xff]
    %v3519 = vld [vmem:[%s3517 + $0x8] sm:$0xff]
    %v3520 = vld [vmem:[%s3517 + $0x10] sm:$0xff]
    %v3521 = vld [vmem:[%s3517 + $0x18] sm:$0xff]
    %v3522 = vld [vmem:[%s3517 + $0x20] sm:$0xff]
    %v3523 = vld [vmem:[%s3517 + $0x28] sm:$0xff]
    %v3524 = vld [vmem:[%s3517 + $0x30] sm:$0xff]
    %v3525 = vld [vmem:[%s3517 + $0x38] sm:$0xff]
    %v3527 = vlaneseq
    %v3528 = vshrl.u32 %v3527, 7
    %v3529 = vsub.s32 0, %v3528
    %v3530 = vrot.slane %v3496, %v3529
    %v3533 = vsel %vm420, %v3513, 0
    %v3536 = vsel %vm420, %v3514, 0
    %v3539 = vsel %vm420, %v3515, 0
    %v3542 = vsel %vm420, %v3516, 0
    %3544 = vmatprep.subr.mxu0 0.0
    %3545 = vmatpush1.msra.mxu0 %v3518
    %3546 = vmatprep.subr.mxu0 0.0
    %3547 = vmatpush1.msra.mxu0 %v3519
    %3548 = vmatprep.subr.mxu0 0.0
    %3549 = vmatpush1.msra.mxu0 %v3520
    %3550 = vmatprep.subr.mxu0 0.0
    %3551 = vmatpush1.msra.mxu0 %v3521
    %3552 = vmatprep.subr.mxu0 0.0
    %3553 = vmatpush1.msra.mxu0 %v3522
    %3554 = vmatprep.subr.mxu0 0.0
    %3555 = vmatpush1.msra.mxu0 %v3523
    %3556 = vmatprep.subr.mxu0 0.0
    %3557 = vmatpush1.msra.mxu0 %v3524
    %3558 = vmatprep.subr.mxu0 0.0
    %3559 = vmatpush1.msra.mxu0 %v3525
    %3560 = vmatprep.subr.mxu0 0.0
    %3561 = vmatpush1.msra.mxu0 0.0
    %3562 = vmatprep.subr.mxu0 0.0
    %3563 = vmatpush1.msra.mxu0 0.0
    %3564 = vmatprep.subr.mxu0 0.0
    %3565 = vmatpush1.msra.mxu0 0.0
    %3566 = vmatprep.subr.mxu0 0.0
    %3567 = vmatpush1.msra.mxu0 0.0
    %3568 = vmatprep.subr.mxu0 0.0
    %3569 = vmatpush1.msra.mxu0 0.0
    %3570 = vmatprep.subr.mxu0 0.0
    %3571 = vmatpush1.msra.mxu0 0.0
    %3572 = vmatprep.subr.mxu0 0.0
    %3573 = vmatpush1.msra.mxu0 0.0
    %3574 = vmatprep.subr.mxu0 0.0
    %3575 = vmatpush1.msra.mxu0 0.0
    %3576 = vmatprep.subr.mxu0 0.0
    %3577 = vmatpush1.msra.mxu0 0.0
    %3578 = vmatprep.subr.mxu0 0.0
    %3579 = vmatpush1.msra.mxu0 0.0
    %3580 = vmatprep.subr.mxu0 0.0
    %3581 = vmatpush1.msra.mxu0 0.0
    %3582 = vmatprep.subr.mxu0 0.0
    %3583 = vmatpush1.msra.mxu0 0.0
    %3584 = vmatprep.subr.mxu0 0.0
    %3585 = vmatpush1.msra.mxu0 0.0
    %3586 = vmatprep.subr.mxu0 0.0
    %3587 = vmatpush1.msra.mxu0 0.0
    %3588 = vmatprep.subr.mxu0 0.0
    %3589 = vmatpush1.msra.mxu0 0.0
    %3590 = vmatprep.subr.mxu0 0.0
    %3591 = vmatpush1.msra.mxu0 0.0
    %3592 = vmatprep.subr.mxu0 0.0
    %3593 = vmatpush1.msra.mxu0 0.0
    %3594 = vmatprep.subr.mxu0 0.0
    %3595 = vmatpush1.msra.mxu0 0.0
    %3596 = vmatprep.subr.mxu0 0.0
    %3597 = vmatpush1.msra.mxu0 0.0
    %3598 = vmatprep.subr.mxu0 0.0
    %3599 = vmatpush1.msra.mxu0 0.0
    %3600 = vmatprep.subr.mxu0 0.0
    %3601 = vmatpush1.msra.mxu0 0.0
    %3602 = vmatprep.subr.mxu0 0.0
    %3603 = vmatpush1.msra.mxu0 0.0
    %3604 = vmatprep.subr.mxu0 0.0
    %3605 = vmatpush1.msra.mxu0 0.0
    %3606 = vmatprep.subr.mxu0 0.0
    %3607 = vmatpush1.msra.mxu0 0.0
    %3608 = vmatprep.mubr.f32.mxu0 0.0
    %3609 = vmatmul.mubr.f32.gmra.mrb[0].mxu0 %v3533
    %v3610 = vpop.f32.mrb[0].mxu0
    %v3611 = vadd.f32 %v3530, %v3610
    %v3612 = vpop.f32.mrb[0].mxu0
    %3613 = vmatprep.mubr.f32.mxu0 0.0
    %3614 = vmatmul.mubr.f32.gmra.mrb[0].mxu0 %v3536
    %v3615 = vpop.f32.mrb[0].mxu0
    %v3616 = vadd.f32 %v3530, %v3615
    %v3617 = vpop.f32.mrb[0].mxu0
    %3618 = vmatprep.mubr.f32.mxu0 0.0
    %3619 = vmatmul.mubr.f32.gmra.mrb[0].mxu0 %v3539
    %v3620 = vpop.f32.mrb[0].mxu0
    %v3621 = vadd.f32 %v3530, %v3620
    %v3622 = vpop.f32.mrb[0].mxu0
    %3623 = vmatprep.mubr.f32.mxu0 0.0
    %3624 = vmatmul.mubr.f32.gmra.mrb[0].mxu0 %v3542
    %v3625 = vpop.f32.mrb[0].mxu0
    %v3626 = vadd.f32 %v3530, %v3625
    %v3627 = vpop.f32.mrb[0].mxu0
    %3628 = vdwg.mxu0
    %v3629 = vadd.f32 %v3611, %v3357
    %v3630 = vadd.f32 %v3616, %v3358
    %v3631 = vadd.f32 %v3621, %v3359
    %v3632 = vadd.f32 %v3626, %v3360
    %s3633 = scalar_lea.vmem [#allocation8], 5
    %v3634 = vld [vmem:[%s3633] sm:$0x1]
    %v3635 = vmul.f32 %v3629, 0.5
    %v3636 = vmul.f32 %v3630, 0.5
    %v3637 = vmul.f32 %v3631, 0.5
    %v3638 = vmul.f32 %v3632, 0.5
    %v3639 = vmul.f32 %v3629, 0.70710677
    %v3640 = vmul.f32 %v3630, 0.70710677
    %v3641 = vmul.f32 %v3631, 0.70710677
    %v3642 = vmul.f32 %v3632, 0.70710677
    %v3643 = verf.f32.pop %v3639
    %v3644 = verf.f32.pop %v3640
    %v3645 = verf.f32.pop %v3641
    %v3646 = verf.f32.pop %v3642
    %v3647 = vadd.f32 %v3643, 1.0
    %v3648 = vadd.f32 %v3644, 1.0
    %v3649 = vadd.f32 %v3645, 1.0
    %v3650 = vadd.f32 %v3646, 1.0
    %v3651 = vmul.f32 %v3635, %v3647
    %v3652 = vmul.f32 %v3636, %v3648
    %v3653 = vmul.f32 %v3637, %v3649
    %v3654 = vmul.f32 %v3638, %v3650
    %s3655 = scalar_lea.vmem [#allocation7], 1024
    %v3656 = vld [vmem:[%s3655] sm:$0xff]
    %v3657 = vld [vmem:[%s3655 + $0x8] sm:$0xff]
    %v3658 = vld [vmem:[%s3655 + $0x10] sm:$0xff]
    %v3659 = vld [vmem:[%s3655 + $0x18] sm:$0xff]
    %v3660 = vld [vmem:[%s3655 + $0x20] sm:$0xff]
    %v3661 = vld [vmem:[%s3655 + $0x28] sm:$0xff]
    %v3662 = vld [vmem:[%s3655 + $0x30] sm:$0xff]
    %v3663 = vld [vmem:[%s3655 + $0x38] sm:$0xff]
    %v3665 = vlaneseq
    %v3666 = vshrl.u32 %v3665, 7
    %v3667 = vsub.s32 0, %v3666
    %v3668 = vrot.slane %v3634, %v3667
    %v3671 = vsel %vm420, %v3651, 0
    %v3674 = vsel %vm420, %v3652, 0
    %v3677 = vsel %vm420, %v3653, 0
    %v3680 = vsel %vm420, %v3654, 0
    %3682 = vmatprep.subr.mxu0 0.0
    %3683 = vmatpush1.msra.mxu0 %v3656
    %3684 = vmatprep.subr.mxu0 0.0
    %3685 = vmatpush1.msra.mxu0 %v3657
    %3686 = vmatprep.subr.mxu0 0.0
    %3687 = vmatpush1.msra.mxu0 %v3658
    %3688 = vmatprep.subr.mxu0 0.0
    %3689 = vmatpush1.msra.mxu0 %v3659
    %3690 = vmatprep.subr.mxu0 0.0
    %3691 = vmatpush1.msra.mxu0 %v3660
    %3692 = vmatprep.subr.mxu0 0.0
    %3693 = vmatpush1.msra.mxu0 %v3661
    %3694 = vmatprep.subr.mxu0 0.0
    %3695 = vmatpush1.msra.mxu0 %v3662
    %3696 = vmatprep.subr.mxu0 0.0
    %3697 = vmatpush1.msra.mxu0 %v3663
    %3698 = vmatprep.subr.mxu0 0.0
    %3699 = vmatpush1.msra.mxu0 0.0
    %3700 = vmatprep.subr.mxu0 0.0
    %3701 = vmatpush1.msra.mxu0 0.0
    %3702 = vmatprep.subr.mxu0 0.0
    %3703 = vmatpush1.msra.mxu0 0.0
    %3704 = vmatprep.subr.mxu0 0.0
    %3705 = vmatpush1.msra.mxu0 0.0
    %3706 = vmatprep.subr.mxu0 0.0
    %3707 = vmatpush1.msra.mxu0 0.0
    %3708 = vmatprep.subr.mxu0 0.0
    %3709 = vmatpush1.msra.mxu0 0.0
    %3710 = vmatprep.subr.mxu0 0.0
    %3711 = vmatpush1.msra.mxu0 0.0
    %3712 = vmatprep.subr.mxu0 0.0
    %3713 = vmatpush1.msra.mxu0 0.0
    %3714 = vmatprep.subr.mxu0 0.0
    %3715 = vmatpush1.msra.mxu0 0.0
    %3716 = vmatprep.subr.mxu0 0.0
    %3717 = vmatpush1.msra.mxu0 0.0
    %3718 = vmatprep.subr.mxu0 0.0
    %3719 = vmatpush1.msra.mxu0 0.0
    %3720 = vmatprep.subr.mxu0 0.0
    %3721 = vmatpush1.msra.mxu0 0.0
    %3722 = vmatprep.subr.mxu0 0.0
    %3723 = vmatpush1.msra.mxu0 0.0
    %3724 = vmatprep.subr.mxu0 0.0
    %3725 = vmatpush1.msra.mxu0 0.0
    %3726 = vmatprep.subr.mxu0 0.0
    %3727 = vmatpush1.msra.mxu0 0.0
    %3728 = vmatprep.subr.mxu0 0.0
    %3729 = vmatpush1.msra.mxu0 0.0
    %3730 = vmatprep.subr.mxu0 0.0
    %3731 = vmatpush1.msra.mxu0 0.0
    %3732 = vmatprep.subr.mxu0 0.0
    %3733 = vmatpush1.msra.mxu0 0.0
    %3734 = vmatprep.subr.mxu0 0.0
    %3735 = vmatpush1.msra.mxu0 0.0
    %3736 = vmatprep.subr.mxu0 0.0
    %3737 = vmatpush1.msra.mxu0 0.0
    %3738 = vmatprep.subr.mxu0 0.0
    %3739 = vmatpush1.msra.mxu0 0.0
    %3740 = vmatprep.subr.mxu0 0.0
    %3741 = vmatpush1.msra.mxu0 0.0
    %3742 = vmatprep.subr.mxu0 0.0
    %3743 = vmatpush1.msra.mxu0 0.0
    %3744 = vmatprep.subr.mxu0 0.0
    %3745 = vmatpush1.msra.mxu0 0.0
    %3746 = vmatprep.mubr.f32.mxu0 0.0
    %3747 = vmatmul.mubr.f32.gmra.mrb[0].mxu0 %v3671
    %v3748 = vpop.f32.mrb[0].mxu0
    %v3749 = vadd.f32 %v3668, %v3748
    %v3750 = vpop.f32.mrb[0].mxu0
    %3751 = vmatprep.mubr.f32.mxu0 0.0
    %3752 = vmatmul.mubr.f32.gmra.mrb[0].mxu0 %v3674
    %v3753 = vpop.f32.mrb[0].mxu0
    %v3754 = vadd.f32 %v3668, %v3753
    %v3755 = vpop.f32.mrb[0].mxu0
    %3756 = vmatprep.mubr.f32.mxu0 0.0
    %3757 = vmatmul.mubr.f32.gmra.mrb[0].mxu0 %v3677
    %v3758 = vpop.f32.mrb[0].mxu0
    %v3759 = vadd.f32 %v3668, %v3758
    %v3760 = vpop.f32.mrb[0].mxu0
    %3761 = vmatprep.mubr.f32.mxu0 0.0
    %3762 = vmatmul.mubr.f32.gmra.mrb[0].mxu0 %v3680
    %v3763 = vpop.f32.mrb[0].mxu0
    %v3764 = vadd.f32 %v3668, %v3763
    %v3765 = vpop.f32.mrb[0].mxu0
    %3766 = vdwg.mxu0
    %s3767 = scalar_lea.vmem [#allocation11], 5
    %v3768 = vld [vmem:[%s3767] sm:$0x1]
    %v3769 = vmul.f32 %v3749, 0.5
    %v3770 = vmul.f32 %v3754, 0.5
    %v3771 = vmul.f32 %v3759, 0.5
    %v3772 = vmul.f32 %v3764, 0.5
    %v3773 = vmul.f32 %v3749, 0.70710677
    %v3774 = vmul.f32 %v3754, 0.70710677
    %v3775 = vmul.f32 %v3759, 0.70710677
    %v3776 = vmul.f32 %v3764, 0.70710677
    %v3777 = verf.f32.pop %v3773
    %v3778 = verf.f32.pop %v3774
    %v3779 = verf.f32.pop %v3775
    %v3780 = verf.f32.pop %v3776
    %v3781 = vadd.f32 %v3777, 1.0
    %v3782 = vadd.f32 %v3778, 1.0
    %v3783 = vadd.f32 %v3779, 1.0
    %v3784 = vadd.f32 %v3780, 1.0
    %v3785 = vmul.f32 %v3769, %v3781
    %v3786 = vmul.f32 %v3770, %v3782
    %v3787 = vmul.f32 %v3771, %v3783
    %v3788 = vmul.f32 %v3772, %v3784
    %s3789 = scalar_lea.vmem [#allocation10], 1024
    %v3790 = vld [vmem:[%s3789] sm:$0xff]
    %v3791 = vld [vmem:[%s3789 + $0x8] sm:$0xff]
    %v3792 = vld [vmem:[%s3789 + $0x10] sm:$0xff]
    %v3793 = vld [vmem:[%s3789 + $0x18] sm:$0xff]
    %v3794 = vld [vmem:[%s3789 + $0x20] sm:$0xff]
    %v3795 = vld [vmem:[%s3789 + $0x28] sm:$0xff]
    %v3796 = vld [vmem:[%s3789 + $0x30] sm:$0xff]
    %v3797 = vld [vmem:[%s3789 + $0x38] sm:$0xff]
    %v3799 = vlaneseq
    %v3800 = vshrl.u32 %v3799, 7
    %v3801 = vsub.s32 0, %v3800
    %v3802 = vrot.slane %v3768, %v3801
    %v3805 = vsel %vm420, %v3785, 0
    %v3808 = vsel %vm420, %v3786, 0
    %v3811 = vsel %vm420, %v3787, 0
    %v3814 = vsel %vm420, %v3788, 0
    %3816 = vmatprep.subr.mxu0 0.0
    %3817 = vmatpush1.msra.mxu0 %v3790
    %3818 = vmatprep.subr.mxu0 0.0
    %3819 = vmatpush1.msra.mxu0 %v3791
    %3820 = vmatprep.subr.mxu0 0.0
    %3821 = vmatpush1.msra.mxu0 %v3792
    %3822 = vmatprep.subr.mxu0 0.0
    %3823 = vmatpush1.msra.mxu0 %v3793
    %3824 = vmatprep.subr.mxu0 0.0
    %3825 = vmatpush1.msra.mxu0 %v3794
    %3826 = vmatprep.subr.mxu0 0.0
    %3827 = vmatpush1.msra.mxu0 %v3795
    %3828 = vmatprep.subr.mxu0 0.0
    %3829 = vmatpush1.msra.mxu0 %v3796
    %3830 = vmatprep.subr.mxu0 0.0
    %3831 = vmatpush1.msra.mxu0 %v3797
    %3832 = vmatprep.subr.mxu0 0.0
    %3833 = vmatpush1.msra.mxu0 0.0
    %3834 = vmatprep.subr.mxu0 0.0
    %3835 = vmatpush1.msra.mxu0 0.0
    %3836 = vmatprep.subr.mxu0 0.0
    %3837 = vmatpush1.msra.mxu0 0.0
    %3838 = vmatprep.subr.mxu0 0.0
    %3839 = vmatpush1.msra.mxu0 0.0
    %3840 = vmatprep.subr.mxu0 0.0
    %3841 = vmatpush1.msra.mxu0 0.0
    %3842 = vmatprep.subr.mxu0 0.0
    %3843 = vmatpush1.msra.mxu0 0.0
    %3844 = vmatprep.subr.mxu0 0.0
    %3845 = vmatpush1.msra.mxu0 0.0
    %3846 = vmatprep.subr.mxu0 0.0
    %3847 = vmatpush1.msra.mxu0 0.0
    %3848 = vmatprep.subr.mxu0 0.0
    %3849 = vmatpush1.msra.mxu0 0.0
    %3850 = vmatprep.subr.mxu0 0.0
    %3851 = vmatpush1.msra.mxu0 0.0
    %3852 = vmatprep.subr.mxu0 0.0
    %3853 = vmatpush1.msra.mxu0 0.0
    %3854 = vmatprep.subr.mxu0 0.0
    %3855 = vmatpush1.msra.mxu0 0.0
    %3856 = vmatprep.subr.mxu0 0.0
    %3857 = vmatpush1.msra.mxu0 0.0
    %3858 = vmatprep.subr.mxu0 0.0
    %3859 = vmatpush1.msra.mxu0 0.0
    %3860 = vmatprep.subr.mxu0 0.0
    %3861 = vmatpush1.msra.mxu0 0.0
    %3862 = vmatprep.subr.mxu0 0.0
    %3863 = vmatpush1.msra.mxu0 0.0
    %3864 = vmatprep.subr.mxu0 0.0
    %3865 = vmatpush1.msra.mxu0 0.0
    %3866 = vmatprep.subr.mxu0 0.0
    %3867 = vmatpush1.msra.mxu0 0.0
    %3868 = vmatprep.subr.mxu0 0.0
    %3869 = vmatpush1.msra.mxu0 0.0
    %3870 = vmatprep.subr.mxu0 0.0
    %3871 = vmatpush1.msra.mxu0 0.0
    %3872 = vmatprep.subr.mxu0 0.0
    %3873 = vmatpush1.msra.mxu0 0.0
    %3874 = vmatprep.subr.mxu0 0.0
    %3875 = vmatpush1.msra.mxu0 0.0
    %3876 = vmatprep.subr.mxu0 0.0
    %3877 = vmatpush1.msra.mxu0 0.0
    %3878 = vmatprep.subr.mxu0 0.0
    %3879 = vmatpush1.msra.mxu0 0.0
    %3880 = vmatprep.mubr.f32.mxu0 0.0
    %3881 = vmatmul.mubr.f32.gmra.mrb[0].mxu0 %v3805
    %v3882 = vpop.f32.mrb[0].mxu0
    %v3883 = vadd.f32 %v3802, %v3882
    %v3884 = vpop.f32.mrb[0].mxu0
    %3885 = vmatprep.mubr.f32.mxu0 0.0
    %3886 = vmatmul.mubr.f32.gmra.mrb[0].mxu0 %v3808
    %v3887 = vpop.f32.mrb[0].mxu0
    %v3888 = vadd.f32 %v3802, %v3887
    %v3889 = vpop.f32.mrb[0].mxu0
    %3890 = vmatprep.mubr.f32.mxu0 0.0
    %3891 = vmatmul.mubr.f32.gmra.mrb[0].mxu0 %v3811
    %v3892 = vpop.f32.mrb[0].mxu0
    %v3893 = vadd.f32 %v3802, %v3892
    %v3894 = vpop.f32.mrb[0].mxu0
    %3895 = vmatprep.mubr.f32.mxu0 0.0
    %3896 = vmatmul.mubr.f32.gmra.mrb[0].mxu0 %v3814
    %v3897 = vpop.f32.mrb[0].mxu0
    %v3898 = vadd.f32 %v3802, %v3897
    %v3899 = vpop.f32.mrb[0].mxu0
    %3900 = vdwg.mxu0
    %v3901 = vadd.f32 %v3883, %v3629
    %v3902 = vadd.f32 %v3888, %v3630
    %v3903 = vadd.f32 %v3893, %v3631
    %v3904 = vadd.f32 %v3898, %v3632
    %s3905 = scalar_lea.vmem [#allocation8], 6
    %v3906 = vld [vmem:[%s3905] sm:$0x1]
    %v3907 = vmul.f32 %v3901, 0.5
    %v3908 = vmul.f32 %v3902, 0.5
    %v3909 = vmul.f32 %v3903, 0.5
    %v3910 = vmul.f32 %v3904, 0.5
    %v3911 = vmul.f32 %v3901, 0.70710677
    %v3912 = vmul.f32 %v3902, 0.70710677
    %v3913 = vmul.f32 %v3903, 0.70710677
    %v3914 = vmul.f32 %v3904, 0.70710677
    %v3915 = verf.f32.pop %v3911
    %v3916 = verf.f32.pop %v3912
    %v3917 = verf.f32.pop %v3913
    %v3918 = verf.f32.pop %v3914
    %v3919 = vadd.f32 %v3915, 1.0
    %v3920 = vadd.f32 %v3916, 1.0
    %v3921 = vadd.f32 %v3917, 1.0
    %v3922 = vadd.f32 %v3918, 1.0
    %v3923 = vmul.f32 %v3907, %v3919
    %v3924 = vmul.f32 %v3908, %v3920
    %v3925 = vmul.f32 %v3909, %v3921
    %v3926 = vmul.f32 %v3910, %v3922
    %s3927 = scalar_lea.vmem [#allocation7], 1216
    %v3928 = vld [vmem:[%s3927] sm:$0xff]
    %v3929 = vld [vmem:[%s3927 + $0x8] sm:$0xff]
    %v3930 = vld [vmem:[%s3927 + $0x10] sm:$0xff]
    %v3931 = vld [vmem:[%s3927 + $0x18] sm:$0xff]
    %v3932 = vld [vmem:[%s3927 + $0x20] sm:$0xff]
    %v3933 = vld [vmem:[%s3927 + $0x28] sm:$0xff]
    %v3934 = vld [vmem:[%s3927 + $0x30] sm:$0xff]
    %v3935 = vld [vmem:[%s3927 + $0x38] sm:$0xff]
    %v3937 = vlaneseq
    %v3938 = vshrl.u32 %v3937, 7
    %v3939 = vsub.s32 0, %v3938
    %v3940 = vrot.slane %v3906, %v3939
    %v3943 = vsel %vm420, %v3923, 0
    %v3946 = vsel %vm420, %v3924, 0
    %v3949 = vsel %vm420, %v3925, 0
    %v3952 = vsel %vm420, %v3926, 0
    %3954 = vmatprep.subr.mxu0 0.0
    %3955 = vmatpush1.msra.mxu0 %v3928
    %3956 = vmatprep.subr.mxu0 0.0
    %3957 = vmatpush1.msra.mxu0 %v3929
    %3958 = vmatprep.subr.mxu0 0.0
    %3959 = vmatpush1.msra.mxu0 %v3930
    %3960 = vmatprep.subr.mxu0 0.0
    %3961 = vmatpush1.msra.mxu0 %v3931
    %3962 = vmatprep.subr.mxu0 0.0
    %3963 = vmatpush1.msra.mxu0 %v3932
    %3964 = vmatprep.subr.mxu0 0.0
    %3965 = vmatpush1.msra.mxu0 %v3933
    %3966 = vmatprep.subr.mxu0 0.0
    %3967 = vmatpush1.msra.mxu0 %v3934
    %3968 = vmatprep.subr.mxu0 0.0
    %3969 = vmatpush1.msra.mxu0 %v3935
    %3970 = vmatprep.subr.mxu0 0.0
    %3971 = vmatpush1.msra.mxu0 0.0
    %3972 = vmatprep.subr.mxu0 0.0
    %3973 = vmatpush1.msra.mxu0 0.0
    %3974 = vmatprep.subr.mxu0 0.0
    %3975 = vmatpush1.msra.mxu0 0.0
    %3976 = vmatprep.subr.mxu0 0.0
    %3977 = vmatpush1.msra.mxu0 0.0
    %3978 = vmatprep.subr.mxu0 0.0
    %3979 = vmatpush1.msra.mxu0 0.0
    %3980 = vmatprep.subr.mxu0 0.0
    %3981 = vmatpush1.msra.mxu0 0.0
    %3982 = vmatprep.subr.mxu0 0.0
    %3983 = vmatpush1.msra.mxu0 0.0
    %3984 = vmatprep.subr.mxu0 0.0
    %3985 = vmatpush1.msra.mxu0 0.0
    %3986 = vmatprep.subr.mxu0 0.0
    %3987 = vmatpush1.msra.mxu0 0.0
    %3988 = vmatprep.subr.mxu0 0.0
    %3989 = vmatpush1.msra.mxu0 0.0
    %3990 = vmatprep.subr.mxu0 0.0
    %3991 = vmatpush1.msra.mxu0 0.0
    %3992 = vmatprep.subr.mxu0 0.0
    %3993 = vmatpush1.msra.mxu0 0.0
    %3994 = vmatprep.subr.mxu0 0.0
    %3995 = vmatpush1.msra.mxu0 0.0
    %3996 = vmatprep.subr.mxu0 0.0
    %3997 = vmatpush1.msra.mxu0 0.0
    %3998 = vmatprep.subr.mxu0 0.0
    %3999 = vmatpush1.msra.mxu0 0.0
    %4000 = vmatprep.subr.mxu0 0.0
    %4001 = vmatpush1.msra.mxu0 0.0
    %4002 = vmatprep.subr.mxu0 0.0
    %4003 = vmatpush1.msra.mxu0 0.0
    %4004 = vmatprep.subr.mxu0 0.0
    %4005 = vmatpush1.msra.mxu0 0.0
    %4006 = vmatprep.subr.mxu0 0.0
    %4007 = vmatpush1.msra.mxu0 0.0
    %4008 = vmatprep.subr.mxu0 0.0
    %4009 = vmatpush1.msra.mxu0 0.0
    %4010 = vmatprep.subr.mxu0 0.0
    %4011 = vmatpush1.msra.mxu0 0.0
    %4012 = vmatprep.subr.mxu0 0.0
    %4013 = vmatpush1.msra.mxu0 0.0
    %4014 = vmatprep.subr.mxu0 0.0
    %4015 = vmatpush1.msra.mxu0 0.0
    %4016 = vmatprep.subr.mxu0 0.0
    %4017 = vmatpush1.msra.mxu0 0.0
    %4018 = vmatprep.mubr.f32.mxu0 0.0
    %4019 = vmatmul.mubr.f32.gmra.mrb[0].mxu0 %v3943
    %v4020 = vpop.f32.mrb[0].mxu0
    %v4021 = vadd.f32 %v3940, %v4020
    %v4022 = vpop.f32.mrb[0].mxu0
    %4023 = vmatprep.mubr.f32.mxu0 0.0
    %4024 = vmatmul.mubr.f32.gmra.mrb[0].mxu0 %v3946
    %v4025 = vpop.f32.mrb[0].mxu0
    %v4026 = vadd.f32 %v3940, %v4025
    %v4027 = vpop.f32.mrb[0].mxu0
    %4028 = vmatprep.mubr.f32.mxu0 0.0
    %4029 = vmatmul.mubr.f32.gmra.mrb[0].mxu0 %v3949
    %v4030 = vpop.f32.mrb[0].mxu0
    %v4031 = vadd.f32 %v3940, %v4030
    %v4032 = vpop.f32.mrb[0].mxu0
    %4033 = vmatprep.mubr.f32.mxu0 0.0
    %4034 = vmatmul.mubr.f32.gmra.mrb[0].mxu0 %v3952
    %v4035 = vpop.f32.mrb[0].mxu0
    %v4036 = vadd.f32 %v3940, %v4035
    %v4037 = vpop.f32.mrb[0].mxu0
    %4038 = vdwg.mxu0
    %s4039 = scalar_lea.vmem [#allocation11], 6
    %v4040 = vld [vmem:[%s4039] sm:$0x1]
    %v4041 = vmul.f32 %v4021, 0.5
    %v4042 = vmul.f32 %v4026, 0.5
    %v4043 = vmul.f32 %v4031, 0.5
    %v4044 = vmul.f32 %v4036, 0.5
    %v4045 = vmul.f32 %v4021, 0.70710677
    %v4046 = vmul.f32 %v4026, 0.70710677
    %v4047 = vmul.f32 %v4031, 0.70710677
    %v4048 = vmul.f32 %v4036, 0.70710677
    %v4049 = verf.f32.pop %v4045
    %v4050 = verf.f32.pop %v4046
    %v4051 = verf.f32.pop %v4047
    %v4052 = verf.f32.pop %v4048
    %v4053 = vadd.f32 %v4049, 1.0
    %v4054 = vadd.f32 %v4050, 1.0
    %v4055 = vadd.f32 %v4051, 1.0
    %v4056 = vadd.f32 %v4052, 1.0
    %v4057 = vmul.f32 %v4041, %v4053
    %v4058 = vmul.f32 %v4042, %v4054
    %v4059 = vmul.f32 %v4043, %v4055
    %v4060 = vmul.f32 %v4044, %v4056
    %s4061 = scalar_lea.vmem [#allocation10], 1216
    %v4062 = vld [vmem:[%s4061] sm:$0xff]
    %v4063 = vld [vmem:[%s4061 + $0x8] sm:$0xff]
    %v4064 = vld [vmem:[%s4061 + $0x10] sm:$0xff]
    %v4065 = vld [vmem:[%s4061 + $0x18] sm:$0xff]
    %v4066 = vld [vmem:[%s4061 + $0x20] sm:$0xff]
    %v4067 = vld [vmem:[%s4061 + $0x28] sm:$0xff]
    %v4068 = vld [vmem:[%s4061 + $0x30] sm:$0xff]
    %v4069 = vld [vmem:[%s4061 + $0x38] sm:$0xff]
    %v4071 = vlaneseq
    %v4072 = vshrl.u32 %v4071, 7
    %v4073 = vsub.s32 0, %v4072
    %v4074 = vrot.slane %v4040, %v4073
    %v4077 = vsel %vm420, %v4057, 0
    %v4080 = vsel %vm420, %v4058, 0
    %v4083 = vsel %vm420, %v4059, 0
    %v4086 = vsel %vm420, %v4060, 0
    %4088 = vmatprep.subr.mxu0 0.0
    %4089 = vmatpush1.msra.mxu0 %v4062
    %4090 = vmatprep.subr.mxu0 0.0
    %4091 = vmatpush1.msra.mxu0 %v4063
    %4092 = vmatprep.subr.mxu0 0.0
    %4093 = vmatpush1.msra.mxu0 %v4064
    %4094 = vmatprep.subr.mxu0 0.0
    %4095 = vmatpush1.msra.mxu0 %v4065
    %4096 = vmatprep.subr.mxu0 0.0
    %4097 = vmatpush1.msra.mxu0 %v4066
    %4098 = vmatprep.subr.mxu0 0.0
    %4099 = vmatpush1.msra.mxu0 %v4067
    %4100 = vmatprep.subr.mxu0 0.0
    %4101 = vmatpush1.msra.mxu0 %v4068
    %4102 = vmatprep.subr.mxu0 0.0
    %4103 = vmatpush1.msra.mxu0 %v4069
    %4104 = vmatprep.subr.mxu0 0.0
    %4105 = vmatpush1.msra.mxu0 0.0
    %4106 = vmatprep.subr.mxu0 0.0
    %4107 = vmatpush1.msra.mxu0 0.0
    %4108 = vmatprep.subr.mxu0 0.0
    %4109 = vmatpush1.msra.mxu0 0.0
    %4110 = vmatprep.subr.mxu0 0.0
    %4111 = vmatpush1.msra.mxu0 0.0
    %4112 = vmatprep.subr.mxu0 0.0
    %4113 = vmatpush1.msra.mxu0 0.0
    %4114 = vmatprep.subr.mxu0 0.0
    %4115 = vmatpush1.msra.mxu0 0.0
    %4116 = vmatprep.subr.mxu0 0.0
    %4117 = vmatpush1.msra.mxu0 0.0
    %4118 = vmatprep.subr.mxu0 0.0
    %4119 = vmatpush1.msra.mxu0 0.0
    %4120 = vmatprep.subr.mxu0 0.0
    %4121 = vmatpush1.msra.mxu0 0.0
    %4122 = vmatprep.subr.mxu0 0.0
    %4123 = vmatpush1.msra.mxu0 0.0
    %4124 = vmatprep.subr.mxu0 0.0
    %4125 = vmatpush1.msra.mxu0 0.0
    %4126 = vmatprep.subr.mxu0 0.0
    %4127 = vmatpush1.msra.mxu0 0.0
    %4128 = vmatprep.subr.mxu0 0.0
    %4129 = vmatpush1.msra.mxu0 0.0
    %4130 = vmatprep.subr.mxu0 0.0
    %4131 = vmatpush1.msra.mxu0 0.0
    %4132 = vmatprep.subr.mxu0 0.0
    %4133 = vmatpush1.msra.mxu0 0.0
    %4134 = vmatprep.subr.mxu0 0.0
    %4135 = vmatpush1.msra.mxu0 0.0
    %4136 = vmatprep.subr.mxu0 0.0
    %4137 = vmatpush1.msra.mxu0 0.0
    %4138 = vmatprep.subr.mxu0 0.0
    %4139 = vmatpush1.msra.mxu0 0.0
    %4140 = vmatprep.subr.mxu0 0.0
    %4141 = vmatpush1.msra.mxu0 0.0
    %4142 = vmatprep.subr.mxu0 0.0
    %4143 = vmatpush1.msra.mxu0 0.0
    %4144 = vmatprep.subr.mxu0 0.0
    %4145 = vmatpush1.msra.mxu0 0.0
    %4146 = vmatprep.subr.mxu0 0.0
    %4147 = vmatpush1.msra.mxu0 0.0
    %4148 = vmatprep.subr.mxu0 0.0
    %4149 = vmatpush1.msra.mxu0 0.0
    %4150 = vmatprep.subr.mxu0 0.0
    %4151 = vmatpush1.msra.mxu0 0.0
    %4152 = vmatprep.mubr.f32.mxu0 0.0
    %4153 = vmatmul.mubr.f32.gmra.mrb[0].mxu0 %v4077
    %v4154 = vpop.f32.mrb[0].mxu0
    %v4155 = vadd.f32 %v4074, %v4154
    %v4156 = vpop.f32.mrb[0].mxu0
    %4157 = vmatprep.mubr.f32.mxu0 0.0
    %4158 = vmatmul.mubr.f32.gmra.mrb[0].mxu0 %v4080
    %v4159 = vpop.f32.mrb[0].mxu0
    %v4160 = vadd.f32 %v4074, %v4159
    %v4161 = vpop.f32.mrb[0].mxu0
    %4162 = vmatprep.mubr.f32.mxu0 0.0
    %4163 = vmatmul.mubr.f32.gmra.mrb[0].mxu0 %v4083
    %v4164 = vpop.f32.mrb[0].mxu0
    %v4165 = vadd.f32 %v4074, %v4164
    %v4166 = vpop.f32.mrb[0].mxu0
    %4167 = vmatprep.mubr.f32.mxu0 0.0
    %4168 = vmatmul.mubr.f32.gmra.mrb[0].mxu0 %v4086
    %v4169 = vpop.f32.mrb[0].mxu0
    %v4170 = vadd.f32 %v4074, %v4169
    %v4171 = vpop.f32.mrb[0].mxu0
    %4172 = vdwg.mxu0
    %v4173 = vadd.f32 %v4155, %v3901
    %v4174 = vadd.f32 %v4160, %v3902
    %v4175 = vadd.f32 %v4165, %v3903
    %v4176 = vadd.f32 %v4170, %v3904
    %s4177 = scalar_lea.vmem [#allocation8], 7
    %v4178 = vld [vmem:[%s4177] sm:$0x1]
    %v4179 = vmul.f32 %v4173, 0.5
    %v4180 = vmul.f32 %v4174, 0.5
    %v4181 = vmul.f32 %v4175, 0.5
    %v4182 = vmul.f32 %v4176, 0.5
    %v4183 = vmul.f32 %v4173, 0.70710677
    %v4184 = vmul.f32 %v4174, 0.70710677
    %v4185 = vmul.f32 %v4175, 0.70710677
    %v4186 = vmul.f32 %v4176, 0.70710677
    %v4187 = verf.f32.pop %v4183
    %v4188 = verf.f32.pop %v4184
    %v4189 = verf.f32.pop %v4185
    %v4190 = verf.f32.pop %v4186
    %v4191 = vadd.f32 %v4187, 1.0
    %v4192 = vadd.f32 %v4188, 1.0
    %v4193 = vadd.f32 %v4189, 1.0
    %v4194 = vadd.f32 %v4190, 1.0
    %v4195 = vmul.f32 %v4179, %v4191
    %v4196 = vmul.f32 %v4180, %v4192
    %v4197 = vmul.f32 %v4181, %v4193
    %v4198 = vmul.f32 %v4182, %v4194
    %s4199 = scalar_lea.vmem [#allocation7], 1408
    %v4200 = vld [vmem:[%s4199] sm:$0xff]
    %v4201 = vld [vmem:[%s4199 + $0x8] sm:$0xff]
    %v4202 = vld [vmem:[%s4199 + $0x10] sm:$0xff]
    %v4203 = vld [vmem:[%s4199 + $0x18] sm:$0xff]
    %v4204 = vld [vmem:[%s4199 + $0x20] sm:$0xff]
    %v4205 = vld [vmem:[%s4199 + $0x28] sm:$0xff]
    %v4206 = vld [vmem:[%s4199 + $0x30] sm:$0xff]
    %v4207 = vld [vmem:[%s4199 + $0x38] sm:$0xff]
    %v4209 = vlaneseq
    %v4210 = vshrl.u32 %v4209, 7
    %v4211 = vsub.s32 0, %v4210
    %v4212 = vrot.slane %v4178, %v4211
    %v4215 = vsel %vm420, %v4195, 0
    %v4218 = vsel %vm420, %v4196, 0
    %v4221 = vsel %vm420, %v4197, 0
    %v4224 = vsel %vm420, %v4198, 0
    %4226 = vmatprep.subr.mxu0 0.0
    %4227 = vmatpush1.msra.mxu0 %v4200
    %4228 = vmatprep.subr.mxu0 0.0
    %4229 = vmatpush1.msra.mxu0 %v4201
    %4230 = vmatprep.subr.mxu0 0.0
    %4231 = vmatpush1.msra.mxu0 %v4202
    %4232 = vmatprep.subr.mxu0 0.0
    %4233 = vmatpush1.msra.mxu0 %v4203
    %4234 = vmatprep.subr.mxu0 0.0
    %4235 = vmatpush1.msra.mxu0 %v4204
    %4236 = vmatprep.subr.mxu0 0.0
    %4237 = vmatpush1.msra.mxu0 %v4205
    %4238 = vmatprep.subr.mxu0 0.0
    %4239 = vmatpush1.msra.mxu0 %v4206
    %4240 = vmatprep.subr.mxu0 0.0
    %4241 = vmatpush1.msra.mxu0 %v4207
    %4242 = vmatprep.subr.mxu0 0.0
    %4243 = vmatpush1.msra.mxu0 0.0
    %4244 = vmatprep.subr.mxu0 0.0
    %4245 = vmatpush1.msra.mxu0 0.0
    %4246 = vmatprep.subr.mxu0 0.0
    %4247 = vmatpush1.msra.mxu0 0.0
    %4248 = vmatprep.subr.mxu0 0.0
    %4249 = vmatpush1.msra.mxu0 0.0
    %4250 = vmatprep.subr.mxu0 0.0
    %4251 = vmatpush1.msra.mxu0 0.0
    %4252 = vmatprep.subr.mxu0 0.0
    %4253 = vmatpush1.msra.mxu0 0.0
    %4254 = vmatprep.subr.mxu0 0.0
    %4255 = vmatpush1.msra.mxu0 0.0
    %4256 = vmatprep.subr.mxu0 0.0
    %4257 = vmatpush1.msra.mxu0 0.0
    %4258 = vmatprep.subr.mxu0 0.0
    %4259 = vmatpush1.msra.mxu0 0.0
    %4260 = vmatprep.subr.mxu0 0.0
    %4261 = vmatpush1.msra.mxu0 0.0
    %4262 = vmatprep.subr.mxu0 0.0
    %4263 = vmatpush1.msra.mxu0 0.0
    %4264 = vmatprep.subr.mxu0 0.0
    %4265 = vmatpush1.msra.mxu0 0.0
    %4266 = vmatprep.subr.mxu0 0.0
    %4267 = vmatpush1.msra.mxu0 0.0
    %4268 = vmatprep.subr.mxu0 0.0
    %4269 = vmatpush1.msra.mxu0 0.0
    %4270 = vmatprep.subr.mxu0 0.0
    %4271 = vmatpush1.msra.mxu0 0.0
    %4272 = vmatprep.subr.mxu0 0.0
    %4273 = vmatpush1.msra.mxu0 0.0
    %4274 = vmatprep.subr.mxu0 0.0
    %4275 = vmatpush1.msra.mxu0 0.0
    %4276 = vmatprep.subr.mxu0 0.0
    %4277 = vmatpush1.msra.mxu0 0.0
    %4278 = vmatprep.subr.mxu0 0.0
    %4279 = vmatpush1.msra.mxu0 0.0
    %4280 = vmatprep.subr.mxu0 0.0
    %4281 = vmatpush1.msra.mxu0 0.0
    %4282 = vmatprep.subr.mxu0 0.0
    %4283 = vmatpush1.msra.mxu0 0.0
    %4284 = vmatprep.subr.mxu0 0.0
    %4285 = vmatpush1.msra.mxu0 0.0
    %4286 = vmatprep.subr.mxu0 0.0
    %4287 = vmatpush1.msra.mxu0 0.0
    %4288 = vmatprep.subr.mxu0 0.0
    %4289 = vmatpush1.msra.mxu0 0.0
    %4290 = vmatprep.mubr.f32.mxu0 0.0
    %4291 = vmatmul.mubr.f32.gmra.mrb[0].mxu0 %v4215
    %v4292 = vpop.f32.mrb[0].mxu0
    %v4293 = vadd.f32 %v4212, %v4292
    %v4294 = vpop.f32.mrb[0].mxu0
    %4295 = vmatprep.mubr.f32.mxu0 0.0
    %4296 = vmatmul.mubr.f32.gmra.mrb[0].mxu0 %v4218
    %v4297 = vpop.f32.mrb[0].mxu0
    %v4298 = vadd.f32 %v4212, %v4297
    %v4299 = vpop.f32.mrb[0].mxu0
    %4300 = vmatprep.mubr.f32.mxu0 0.0
    %4301 = vmatmul.mubr.f32.gmra.mrb[0].mxu0 %v4221
    %v4302 = vpop.f32.mrb[0].mxu0
    %v4303 = vadd.f32 %v4212, %v4302
    %v4304 = vpop.f32.mrb[0].mxu0
    %4305 = vmatprep.mubr.f32.mxu0 0.0
    %4306 = vmatmul.mubr.f32.gmra.mrb[0].mxu0 %v4224
    %v4307 = vpop.f32.mrb[0].mxu0
    %v4308 = vadd.f32 %v4212, %v4307
    %v4309 = vpop.f32.mrb[0].mxu0
    %4310 = vdwg.mxu0
    %s4311 = scalar_lea.vmem [#allocation11], 7
    %v4312 = vld [vmem:[%s4311] sm:$0x1]
    %v4313 = vmul.f32 %v4293, 0.5
    %v4314 = vmul.f32 %v4298, 0.5
    %v4315 = vmul.f32 %v4303, 0.5
    %v4316 = vmul.f32 %v4308, 0.5
    %v4317 = vmul.f32 %v4293, 0.70710677
    %v4318 = vmul.f32 %v4298, 0.70710677
    %v4319 = vmul.f32 %v4303, 0.70710677
    %v4320 = vmul.f32 %v4308, 0.70710677
    %v4321 = verf.f32.pop %v4317
    %v4322 = verf.f32.pop %v4318
    %v4323 = verf.f32.pop %v4319
    %v4324 = verf.f32.pop %v4320
    %v4325 = vadd.f32 %v4321, 1.0
    %v4326 = vadd.f32 %v4322, 1.0
    %v4327 = vadd.f32 %v4323, 1.0
    %v4328 = vadd.f32 %v4324, 1.0
    %v4329 = vmul.f32 %v4313, %v4325
    %v4330 = vmul.f32 %v4314, %v4326
    %v4331 = vmul.f32 %v4315, %v4327
    %v4332 = vmul.f32 %v4316, %v4328
    %s4333 = scalar_lea.vmem [#allocation10], 1408
    %v4334 = vld [vmem:[%s4333] sm:$0xff]
    %v4335 = vld [vmem:[%s4333 + $0x8] sm:$0xff]
    %v4336 = vld [vmem:[%s4333 + $0x10] sm:$0xff]
    %v4337 = vld [vmem:[%s4333 + $0x18] sm:$0xff]
    %v4338 = vld [vmem:[%s4333 + $0x20] sm:$0xff]
    %v4339 = vld [vmem:[%s4333 + $0x28] sm:$0xff]
    %v4340 = vld [vmem:[%s4333 + $0x30] sm:$0xff]
    %v4341 = vld [vmem:[%s4333 + $0x38] sm:$0xff]
    %v4343 = vlaneseq
    %v4344 = vshrl.u32 %v4343, 7
    %v4345 = vsub.s32 0, %v4344
    %v4346 = vrot.slane %v4312, %v4345
    %v4349 = vsel %vm420, %v4329, 0
    %v4352 = vsel %vm420, %v4330, 0
    %v4355 = vsel %vm420, %v4331, 0
    %v4358 = vsel %vm420, %v4332, 0
    %4360 = vmatprep.subr.mxu0 0.0
    %4361 = vmatpush1.msra.mxu0 %v4334
    %4362 = vmatprep.subr.mxu0 0.0
    %4363 = vmatpush1.msra.mxu0 %v4335
    %4364 = vmatprep.subr.mxu0 0.0
    %4365 = vmatpush1.msra.mxu0 %v4336
    %4366 = vmatprep.subr.mxu0 0.0
    %4367 = vmatpush1.msra.mxu0 %v4337
    %4368 = vmatprep.subr.mxu0 0.0
    %4369 = vmatpush1.msra.mxu0 %v4338
    %4370 = vmatprep.subr.mxu0 0.0
    %4371 = vmatpush1.msra.mxu0 %v4339
    %4372 = vmatprep.subr.mxu0 0.0
    %4373 = vmatpush1.msra.mxu0 %v4340
    %4374 = vmatprep.subr.mxu0 0.0
    %4375 = vmatpush1.msra.mxu0 %v4341
    %4376 = vmatprep.subr.mxu0 0.0
    %4377 = vmatpush1.msra.mxu0 0.0
    %4378 = vmatprep.subr.mxu0 0.0
    %4379 = vmatpush1.msra.mxu0 0.0
    %4380 = vmatprep.subr.mxu0 0.0
    %4381 = vmatpush1.msra.mxu0 0.0
    %4382 = vmatprep.subr.mxu0 0.0
    %4383 = vmatpush1.msra.mxu0 0.0
    %4384 = vmatprep.subr.mxu0 0.0
    %4385 = vmatpush1.msra.mxu0 0.0
    %4386 = vmatprep.subr.mxu0 0.0
    %4387 = vmatpush1.msra.mxu0 0.0
    %4388 = vmatprep.subr.mxu0 0.0
    %4389 = vmatpush1.msra.mxu0 0.0
    %4390 = vmatprep.subr.mxu0 0.0
    %4391 = vmatpush1.msra.mxu0 0.0
    %4392 = vmatprep.subr.mxu0 0.0
    %4393 = vmatpush1.msra.mxu0 0.0
    %4394 = vmatprep.subr.mxu0 0.0
    %4395 = vmatpush1.msra.mxu0 0.0
    %4396 = vmatprep.subr.mxu0 0.0
    %4397 = vmatpush1.msra.mxu0 0.0
    %4398 = vmatprep.subr.mxu0 0.0
    %4399 = vmatpush1.msra.mxu0 0.0
    %4400 = vmatprep.subr.mxu0 0.0
    %4401 = vmatpush1.msra.mxu0 0.0
    %4402 = vmatprep.subr.mxu0 0.0
    %4403 = vmatpush1.msra.mxu0 0.0
    %4404 = vmatprep.subr.mxu0 0.0
    %4405 = vmatpush1.msra.mxu0 0.0
    %4406 = vmatprep.subr.mxu0 0.0
    %4407 = vmatpush1.msra.mxu0 0.0
    %4408 = vmatprep.subr.mxu0 0.0
    %4409 = vmatpush1.msra.mxu0 0.0
    %4410 = vmatprep.subr.mxu0 0.0
    %4411 = vmatpush1.msra.mxu0 0.0
    %4412 = vmatprep.subr.mxu0 0.0
    %4413 = vmatpush1.msra.mxu0 0.0
    %4414 = vmatprep.subr.mxu0 0.0
    %4415 = vmatpush1.msra.mxu0 0.0
    %4416 = vmatprep.subr.mxu0 0.0
    %4417 = vmatpush1.msra.mxu0 0.0
    %4418 = vmatprep.subr.mxu0 0.0
    %4419 = vmatpush1.msra.mxu0 0.0
    %4420 = vmatprep.subr.mxu0 0.0
    %4421 = vmatpush1.msra.mxu0 0.0
    %4422 = vmatprep.subr.mxu0 0.0
    %4423 = vmatpush1.msra.mxu0 0.0
    %4424 = vmatprep.mubr.f32.mxu0 0.0
    %4425 = vmatmul.mubr.f32.gmra.mrb[0].mxu0 %v4349
    %v4426 = vpop.f32.mrb[0].mxu0
    %v4427 = vadd.f32 %v4346, %v4426
    %v4428 = vpop.f32.mrb[0].mxu0
    %4429 = vmatprep.mubr.f32.mxu0 0.0
    %4430 = vmatmul.mubr.f32.gmra.mrb[0].mxu0 %v4352
    %v4431 = vpop.f32.mrb[0].mxu0
    %v4432 = vadd.f32 %v4346, %v4431
    %v4433 = vpop.f32.mrb[0].mxu0
    %4434 = vmatprep.mubr.f32.mxu0 0.0
    %4435 = vmatmul.mubr.f32.gmra.mrb[0].mxu0 %v4355
    %v4436 = vpop.f32.mrb[0].mxu0
    %v4437 = vadd.f32 %v4346, %v4436
    %v4438 = vpop.f32.mrb[0].mxu0
    %4439 = vmatprep.mubr.f32.mxu0 0.0
    %4440 = vmatmul.mubr.f32.gmra.mrb[0].mxu0 %v4358
    %v4441 = vpop.f32.mrb[0].mxu0
    %v4442 = vadd.f32 %v4346, %v4441
    %v4443 = vpop.f32.mrb[0].mxu0
    %4444 = vdwg.mxu0
    %v4445 = vadd.f32 %v4427, %v4173
    %v4446 = vadd.f32 %v4432, %v4174
    %v4447 = vadd.f32 %v4437, %v4175
    %v4448 = vadd.f32 %v4442, %v4176
    %s4449 = scalar_lea.vmem [#allocation8], 8
    %v4450 = vld [vmem:[%s4449] sm:$0x1]
    %v4451 = vmul.f32 %v4445, 0.5
    %v4452 = vmul.f32 %v4446, 0.5
    %v4453 = vmul.f32 %v4447, 0.5
    %v4454 = vmul.f32 %v4448, 0.5
    %v4455 = vmul.f32 %v4445, 0.70710677
    %v4456 = vmul.f32 %v4446, 0.70710677
    %v4457 = vmul.f32 %v4447, 0.70710677
    %v4458 = vmul.f32 %v4448, 0.70710677
    %v4459 = verf.f32.pop %v4455
    %v4460 = verf.f32.pop %v4456
    %v4461 = verf.f32.pop %v4457
    %v4462 = verf.f32.pop %v4458
    %v4463 = vadd.f32 %v4459, 1.0
    %v4464 = vadd.f32 %v4460, 1.0
    %v4465 = vadd.f32 %v4461, 1.0
    %v4466 = vadd.f32 %v4462, 1.0
    %v4467 = vmul.f32 %v4451, %v4463
    %v4468 = vmul.f32 %v4452, %v4464
    %v4469 = vmul.f32 %v4453, %v4465
    %v4470 = vmul.f32 %v4454, %v4466
    %s4471 = scalar_lea.vmem [#allocation7], 1600
    %v4472 = vld [vmem:[%s4471] sm:$0xff]
    %v4473 = vld [vmem:[%s4471 + $0x8] sm:$0xff]
    %v4474 = vld [vmem:[%s4471 + $0x10] sm:$0xff]
    %v4475 = vld [vmem:[%s4471 + $0x18] sm:$0xff]
    %v4476 = vld [vmem:[%s4471 + $0x20] sm:$0xff]
    %v4477 = vld [vmem:[%s4471 + $0x28] sm:$0xff]
    %v4478 = vld [vmem:[%s4471 + $0x30] sm:$0xff]
    %v4479 = vld [vmem:[%s4471 + $0x38] sm:$0xff]
    %v4481 = vlaneseq
    %v4482 = vshrl.u32 %v4481, 7
    %v4483 = vsub.s32 0, %v4482
    %v4484 = vrot.slane %v4450, %v4483
    %v4487 = vsel %vm420, %v4467, 0
    %v4490 = vsel %vm420, %v4468, 0
    %v4493 = vsel %vm420, %v4469, 0
    %v4496 = vsel %vm420, %v4470, 0
    %4498 = vmatprep.subr.mxu0 0.0
    %4499 = vmatpush1.msra.mxu0 %v4472
    %4500 = vmatprep.subr.mxu0 0.0
    %4501 = vmatpush1.msra.mxu0 %v4473
    %4502 = vmatprep.subr.mxu0 0.0
    %4503 = vmatpush1.msra.mxu0 %v4474
    %4504 = vmatprep.subr.mxu0 0.0
    %4505 = vmatpush1.msra.mxu0 %v4475
    %4506 = vmatprep.subr.mxu0 0.0
    %4507 = vmatpush1.msra.mxu0 %v4476
    %4508 = vmatprep.subr.mxu0 0.0
    %4509 = vmatpush1.msra.mxu0 %v4477
    %4510 = vmatprep.subr.mxu0 0.0
    %4511 = vmatpush1.msra.mxu0 %v4478
    %4512 = vmatprep.subr.mxu0 0.0
    %4513 = vmatpush1.msra.mxu0 %v4479
    %4514 = vmatprep.subr.mxu0 0.0
    %4515 = vmatpush1.msra.mxu0 0.0
    %4516 = vmatprep.subr.mxu0 0.0
    %4517 = vmatpush1.msra.mxu0 0.0
    %4518 = vmatprep.subr.mxu0 0.0
    %4519 = vmatpush1.msra.mxu0 0.0
    %4520 = vmatprep.subr.mxu0 0.0
    %4521 = vmatpush1.msra.mxu0 0.0
    %4522 = vmatprep.subr.mxu0 0.0
    %4523 = vmatpush1.msra.mxu0 0.0
    %4524 = vmatprep.subr.mxu0 0.0
    %4525 = vmatpush1.msra.mxu0 0.0
    %4526 = vmatprep.subr.mxu0 0.0
    %4527 = vmatpush1.msra.mxu0 0.0
    %4528 = vmatprep.subr.mxu0 0.0
    %4529 = vmatpush1.msra.mxu0 0.0
    %4530 = vmatprep.subr.mxu0 0.0
    %4531 = vmatpush1.msra.mxu0 0.0
    %4532 = vmatprep.subr.mxu0 0.0
    %4533 = vmatpush1.msra.mxu0 0.0
    %4534 = vmatprep.subr.mxu0 0.0
    %4535 = vmatpush1.msra.mxu0 0.0
    %4536 = vmatprep.subr.mxu0 0.0
    %4537 = vmatpush1.msra.mxu0 0.0
    %4538 = vmatprep.subr.mxu0 0.0
    %4539 = vmatpush1.msra.mxu0 0.0
    %4540 = vmatprep.subr.mxu0 0.0
    %4541 = vmatpush1.msra.mxu0 0.0
    %4542 = vmatprep.subr.mxu0 0.0
    %4543 = vmatpush1.msra.mxu0 0.0
    %4544 = vmatprep.subr.mxu0 0.0
    %4545 = vmatpush1.msra.mxu0 0.0
    %4546 = vmatprep.subr.mxu0 0.0
    %4547 = vmatpush1.msra.mxu0 0.0
    %4548 = vmatprep.subr.mxu0 0.0
    %4549 = vmatpush1.msra.mxu0 0.0
    %4550 = vmatprep.subr.mxu0 0.0
    %4551 = vmatpush1.msra.mxu0 0.0
    %4552 = vmatprep.subr.mxu0 0.0
    %4553 = vmatpush1.msra.mxu0 0.0
    %4554 = vmatprep.subr.mxu0 0.0
    %4555 = vmatpush1.msra.mxu0 0.0
    %4556 = vmatprep.subr.mxu0 0.0
    %4557 = vmatpush1.msra.mxu0 0.0
    %4558 = vmatprep.subr.mxu0 0.0
    %4559 = vmatpush1.msra.mxu0 0.0
    %4560 = vmatprep.subr.mxu0 0.0
    %4561 = vmatpush1.msra.mxu0 0.0
    %4562 = vmatprep.mubr.f32.mxu0 0.0
    %4563 = vmatmul.mubr.f32.gmra.mrb[0].mxu0 %v4487
    %v4564 = vpop.f32.mrb[0].mxu0
    %v4565 = vadd.f32 %v4484, %v4564
    %v4566 = vpop.f32.mrb[0].mxu0
    %4567 = vmatprep.mubr.f32.mxu0 0.0
    %4568 = vmatmul.mubr.f32.gmra.mrb[0].mxu0 %v4490
    %v4569 = vpop.f32.mrb[0].mxu0
    %v4570 = vadd.f32 %v4484, %v4569
    %v4571 = vpop.f32.mrb[0].mxu0
    %4572 = vmatprep.mubr.f32.mxu0 0.0
    %4573 = vmatmul.mubr.f32.gmra.mrb[0].mxu0 %v4493
    %v4574 = vpop.f32.mrb[0].mxu0
    %v4575 = vadd.f32 %v4484, %v4574
    %v4576 = vpop.f32.mrb[0].mxu0
    %4577 = vmatprep.mubr.f32.mxu0 0.0
    %4578 = vmatmul.mubr.f32.gmra.mrb[0].mxu0 %v4496
    %v4579 = vpop.f32.mrb[0].mxu0
    %v4580 = vadd.f32 %v4484, %v4579
    %v4581 = vpop.f32.mrb[0].mxu0
    %4582 = vdwg.mxu0
    %s4583 = scalar_lea.vmem [#allocation11], 8
    %v4584 = vld [vmem:[%s4583] sm:$0x1]
    %v4585 = vmul.f32 %v4565, 0.5
    %v4586 = vmul.f32 %v4570, 0.5
    %v4587 = vmul.f32 %v4575, 0.5
    %v4588 = vmul.f32 %v4580, 0.5
    %v4589 = vmul.f32 %v4565, 0.70710677
    %v4590 = vmul.f32 %v4570, 0.70710677
    %v4591 = vmul.f32 %v4575, 0.70710677
    %v4592 = vmul.f32 %v4580, 0.70710677
    %v4593 = verf.f32.pop %v4589
    %v4594 = verf.f32.pop %v4590
    %v4595 = verf.f32.pop %v4591
    %v4596 = verf.f32.pop %v4592
    %v4597 = vadd.f32 %v4593, 1.0
    %v4598 = vadd.f32 %v4594, 1.0
    %v4599 = vadd.f32 %v4595, 1.0
    %v4600 = vadd.f32 %v4596, 1.0
    %v4601 = vmul.f32 %v4585, %v4597
    %v4602 = vmul.f32 %v4586, %v4598
    %v4603 = vmul.f32 %v4587, %v4599
    %v4604 = vmul.f32 %v4588, %v4600
    %s4605 = scalar_lea.vmem [#allocation10], 1600
    %v4606 = vld [vmem:[%s4605] sm:$0xff]
    %v4607 = vld [vmem:[%s4605 + $0x8] sm:$0xff]
    %v4608 = vld [vmem:[%s4605 + $0x10] sm:$0xff]
    %v4609 = vld [vmem:[%s4605 + $0x18] sm:$0xff]
    %v4610 = vld [vmem:[%s4605 + $0x20] sm:$0xff]
    %v4611 = vld [vmem:[%s4605 + $0x28] sm:$0xff]
    %v4612 = vld [vmem:[%s4605 + $0x30] sm:$0xff]
    %v4613 = vld [vmem:[%s4605 + $0x38] sm:$0xff]
    %v4615 = vlaneseq
    %v4616 = vshrl.u32 %v4615, 7
    %v4617 = vsub.s32 0, %v4616
    %v4618 = vrot.slane %v4584, %v4617
    %v4621 = vsel %vm420, %v4601, 0
    %v4624 = vsel %vm420, %v4602, 0
    %v4627 = vsel %vm420, %v4603, 0
    %v4630 = vsel %vm420, %v4604, 0
    %4632 = vmatprep.subr.mxu0 0.0
    %4633 = vmatpush1.msra.mxu0 %v4606
    %4634 = vmatprep.subr.mxu0 0.0
    %4635 = vmatpush1.msra.mxu0 %v4607
    %4636 = vmatprep.subr.mxu0 0.0
    %4637 = vmatpush1.msra.mxu0 %v4608
    %4638 = vmatprep.subr.mxu0 0.0
    %4639 = vmatpush1.msra.mxu0 %v4609
    %4640 = vmatprep.subr.mxu0 0.0
    %4641 = vmatpush1.msra.mxu0 %v4610
    %4642 = vmatprep.subr.mxu0 0.0
    %4643 = vmatpush1.msra.mxu0 %v4611
    %4644 = vmatprep.subr.mxu0 0.0
    %4645 = vmatpush1.msra.mxu0 %v4612
    %4646 = vmatprep.subr.mxu0 0.0
    %4647 = vmatpush1.msra.mxu0 %v4613
    %4648 = vmatprep.subr.mxu0 0.0
    %4649 = vmatpush1.msra.mxu0 0.0
    %4650 = vmatprep.subr.mxu0 0.0
    %4651 = vmatpush1.msra.mxu0 0.0
    %4652 = vmatprep.subr.mxu0 0.0
    %4653 = vmatpush1.msra.mxu0 0.0
    %4654 = vmatprep.subr.mxu0 0.0
    %4655 = vmatpush1.msra.mxu0 0.0
    %4656 = vmatprep.subr.mxu0 0.0
    %4657 = vmatpush1.msra.mxu0 0.0
    %4658 = vmatprep.subr.mxu0 0.0
    %4659 = vmatpush1.msra.mxu0 0.0
    %4660 = vmatprep.subr.mxu0 0.0
    %4661 = vmatpush1.msra.mxu0 0.0
    %4662 = vmatprep.subr.mxu0 0.0
    %4663 = vmatpush1.msra.mxu0 0.0
    %4664 = vmatprep.subr.mxu0 0.0
    %4665 = vmatpush1.msra.mxu0 0.0
    %4666 = vmatprep.subr.mxu0 0.0
    %4667 = vmatpush1.msra.mxu0 0.0
    %4668 = vmatprep.subr.mxu0 0.0
    %4669 = vmatpush1.msra.mxu0 0.0
    %4670 = vmatprep.subr.mxu0 0.0
    %4671 = vmatpush1.msra.mxu0 0.0
    %4672 = vmatprep.subr.mxu0 0.0
    %4673 = vmatpush1.msra.mxu0 0.0
    %4674 = vmatprep.subr.mxu0 0.0
    %4675 = vmatpush1.msra.mxu0 0.0
    %4676 = vmatprep.subr.mxu0 0.0
    %4677 = vmatpush1.msra.mxu0 0.0
    %4678 = vmatprep.subr.mxu0 0.0
    %4679 = vmatpush1.msra.mxu0 0.0
    %4680 = vmatprep.subr.mxu0 0.0
    %4681 = vmatpush1.msra.mxu0 0.0
    %4682 = vmatprep.subr.mxu0 0.0
    %4683 = vmatpush1.msra.mxu0 0.0
    %4684 = vmatprep.subr.mxu0 0.0
    %4685 = vmatpush1.msra.mxu0 0.0
    %4686 = vmatprep.subr.mxu0 0.0
    %4687 = vmatpush1.msra.mxu0 0.0
    %4688 = vmatprep.subr.mxu0 0.0
    %4689 = vmatpush1.msra.mxu0 0.0
    %4690 = vmatprep.subr.mxu0 0.0
    %4691 = vmatpush1.msra.mxu0 0.0
    %4692 = vmatprep.subr.mxu0 0.0
    %4693 = vmatpush1.msra.mxu0 0.0
    %4694 = vmatprep.subr.mxu0 0.0
    %4695 = vmatpush1.msra.mxu0 0.0
    %4696 = vmatprep.mubr.f32.mxu0 0.0
    %4697 = vmatmul.mubr.f32.gmra.mrb[0].mxu0 %v4621
    %v4698 = vpop.f32.mrb[0].mxu0
    %v4699 = vadd.f32 %v4618, %v4698
    %v4700 = vpop.f32.mrb[0].mxu0
    %4701 = vmatprep.mubr.f32.mxu0 0.0
    %4702 = vmatmul.mubr.f32.gmra.mrb[0].mxu0 %v4624
    %v4703 = vpop.f32.mrb[0].mxu0
    %v4704 = vadd.f32 %v4618, %v4703
    %v4705 = vpop.f32.mrb[0].mxu0
    %4706 = vmatprep.mubr.f32.mxu0 0.0
    %4707 = vmatmul.mubr.f32.gmra.mrb[0].mxu0 %v4627
    %v4708 = vpop.f32.mrb[0].mxu0
    %v4709 = vadd.f32 %v4618, %v4708
    %v4710 = vpop.f32.mrb[0].mxu0
    %4711 = vmatprep.mubr.f32.mxu0 0.0
    %4712 = vmatmul.mubr.f32.gmra.mrb[0].mxu0 %v4630
    %v4713 = vpop.f32.mrb[0].mxu0
    %v4714 = vadd.f32 %v4618, %v4713
    %v4715 = vpop.f32.mrb[0].mxu0
    %4716 = vdwg.mxu0
    %v4717 = vadd.f32 %v4699, %v4445
    %v4718 = vadd.f32 %v4704, %v4446
    %v4719 = vadd.f32 %v4709, %v4447
    %v4720 = vadd.f32 %v4714, %v4448
    %s4721 = scalar_lea.vmem [#allocation8], 9
    %v4722 = vld [vmem:[%s4721] sm:$0x1]
    %v4723 = vmul.f32 %v4717, 0.5
    %v4724 = vmul.f32 %v4718, 0.5
    %v4725 = vmul.f32 %v4719, 0.5
    %v4726 = vmul.f32 %v4720, 0.5
    %v4727 = vmul.f32 %v4717, 0.70710677
    %v4728 = vmul.f32 %v4718, 0.70710677
    %v4729 = vmul.f32 %v4719, 0.70710677
    %v4730 = vmul.f32 %v4720, 0.70710677
    %v4731 = verf.f32.pop %v4727
    %v4732 = verf.f32.pop %v4728
    %v4733 = verf.f32.pop %v4729
    %v4734 = verf.f32.pop %v4730
    %v4735 = vadd.f32 %v4731, 1.0
    %v4736 = vadd.f32 %v4732, 1.0
    %v4737 = vadd.f32 %v4733, 1.0
    %v4738 = vadd.f32 %v4734, 1.0
    %v4739 = vmul.f32 %v4723, %v4735
    %v4740 = vmul.f32 %v4724, %v4736
    %v4741 = vmul.f32 %v4725, %v4737
    %v4742 = vmul.f32 %v4726, %v4738
    %s4743 = scalar_lea.vmem [#allocation7], 1792
    %v4744 = vld [vmem:[%s4743] sm:$0xff]
    %v4745 = vld [vmem:[%s4743 + $0x8] sm:$0xff]
    %v4746 = vld [vmem:[%s4743 + $0x10] sm:$0xff]
    %v4747 = vld [vmem:[%s4743 + $0x18] sm:$0xff]
    %v4748 = vld [vmem:[%s4743 + $0x20] sm:$0xff]
    %v4749 = vld [vmem:[%s4743 + $0x28] sm:$0xff]
    %v4750 = vld [vmem:[%s4743 + $0x30] sm:$0xff]
    %v4751 = vld [vmem:[%s4743 + $0x38] sm:$0xff]
    %v4753 = vlaneseq
    %v4754 = vshrl.u32 %v4753, 7
    %v4755 = vsub.s32 0, %v4754
    %v4756 = vrot.slane %v4722, %v4755
    %v4759 = vsel %vm420, %v4739, 0
    %v4762 = vsel %vm420, %v4740, 0
    %v4765 = vsel %vm420, %v4741, 0
    %v4768 = vsel %vm420, %v4742, 0
    %4770 = vmatprep.subr.mxu0 0.0
    %4771 = vmatpush1.msra.mxu0 %v4744
    %4772 = vmatprep.subr.mxu0 0.0
    %4773 = vmatpush1.msra.mxu0 %v4745
    %4774 = vmatprep.subr.mxu0 0.0
    %4775 = vmatpush1.msra.mxu0 %v4746
    %4776 = vmatprep.subr.mxu0 0.0
    %4777 = vmatpush1.msra.mxu0 %v4747
    %4778 = vmatprep.subr.mxu0 0.0
    %4779 = vmatpush1.msra.mxu0 %v4748
    %4780 = vmatprep.subr.mxu0 0.0
    %4781 = vmatpush1.msra.mxu0 %v4749
    %4782 = vmatprep.subr.mxu0 0.0
    %4783 = vmatpush1.msra.mxu0 %v4750
    %4784 = vmatprep.subr.mxu0 0.0
    %4785 = vmatpush1.msra.mxu0 %v4751
    %4786 = vmatprep.subr.mxu0 0.0
    %4787 = vmatpush1.msra.mxu0 0.0
    %4788 = vmatprep.subr.mxu0 0.0
    %4789 = vmatpush1.msra.mxu0 0.0
    %4790 = vmatprep.subr.mxu0 0.0
    %4791 = vmatpush1.msra.mxu0 0.0
    %4792 = vmatprep.subr.mxu0 0.0
    %4793 = vmatpush1.msra.mxu0 0.0
    %4794 = vmatprep.subr.mxu0 0.0
    %4795 = vmatpush1.msra.mxu0 0.0
    %4796 = vmatprep.subr.mxu0 0.0
    %4797 = vmatpush1.msra.mxu0 0.0
    %4798 = vmatprep.subr.mxu0 0.0
    %4799 = vmatpush1.msra.mxu0 0.0
    %4800 = vmatprep.subr.mxu0 0.0
    %4801 = vmatpush1.msra.mxu0 0.0
    %4802 = vmatprep.subr.mxu0 0.0
    %4803 = vmatpush1.msra.mxu0 0.0
    %4804 = vmatprep.subr.mxu0 0.0
    %4805 = vmatpush1.msra.mxu0 0.0
    %4806 = vmatprep.subr.mxu0 0.0
    %4807 = vmatpush1.msra.mxu0 0.0
    %4808 = vmatprep.subr.mxu0 0.0
    %4809 = vmatpush1.msra.mxu0 0.0
    %4810 = vmatprep.subr.mxu0 0.0
    %4811 = vmatpush1.msra.mxu0 0.0
    %4812 = vmatprep.subr.mxu0 0.0
    %4813 = vmatpush1.msra.mxu0 0.0
    %4814 = vmatprep.subr.mxu0 0.0
    %4815 = vmatpush1.msra.mxu0 0.0
    %4816 = vmatprep.subr.mxu0 0.0
    %4817 = vmatpush1.msra.mxu0 0.0
    %4818 = vmatprep.subr.mxu0 0.0
    %4819 = vmatpush1.msra.mxu0 0.0
    %4820 = vmatprep.subr.mxu0 0.0
    %4821 = vmatpush1.msra.mxu0 0.0
    %4822 = vmatprep.subr.mxu0 0.0
    %4823 = vmatpush1.msra.mxu0 0.0
    %4824 = vmatprep.subr.mxu0 0.0
    %4825 = vmatpush1.msra.mxu0 0.0
    %4826 = vmatprep.subr.mxu0 0.0
    %4827 = vmatpush1.msra.mxu0 0.0
    %4828 = vmatprep.subr.mxu0 0.0
    %4829 = vmatpush1.msra.mxu0 0.0
    %4830 = vmatprep.subr.mxu0 0.0
    %4831 = vmatpush1.msra.mxu0 0.0
    %4832 = vmatprep.subr.mxu0 0.0
    %4833 = vmatpush1.msra.mxu0 0.0
    %4834 = vmatprep.mubr.f32.mxu0 0.0
    %4835 = vmatmul.mubr.f32.gmra.mrb[0].mxu0 %v4759
    %v4836 = vpop.f32.mrb[0].mxu0
    %v4837 = vadd.f32 %v4756, %v4836
    %v4838 = vpop.f32.mrb[0].mxu0
    %4839 = vmatprep.mubr.f32.mxu0 0.0
    %4840 = vmatmul.mubr.f32.gmra.mrb[0].mxu0 %v4762
    %v4841 = vpop.f32.mrb[0].mxu0
    %v4842 = vadd.f32 %v4756, %v4841
    %v4843 = vpop.f32.mrb[0].mxu0
    %4844 = vmatprep.mubr.f32.mxu0 0.0
    %4845 = vmatmul.mubr.f32.gmra.mrb[0].mxu0 %v4765
    %v4846 = vpop.f32.mrb[0].mxu0
    %v4847 = vadd.f32 %v4756, %v4846
    %v4848 = vpop.f32.mrb[0].mxu0
    %4849 = vmatprep.mubr.f32.mxu0 0.0
    %4850 = vmatmul.mubr.f32.gmra.mrb[0].mxu0 %v4768
    %v4851 = vpop.f32.mrb[0].mxu0
    %v4852 = vadd.f32 %v4756, %v4851
    %v4853 = vpop.f32.mrb[0].mxu0
    %4854 = vdwg.mxu0
    %s4855 = scalar_lea.vmem [#allocation11], 9
    %v4856 = vld [vmem:[%s4855] sm:$0x1]
    %v4857 = vmul.f32 %v4837, 0.5
    %v4858 = vmul.f32 %v4842, 0.5
    %v4859 = vmul.f32 %v4847, 0.5
    %v4860 = vmul.f32 %v4852, 0.5
    %v4861 = vmul.f32 %v4837, 0.70710677
    %v4862 = vmul.f32 %v4842, 0.70710677
    %v4863 = vmul.f32 %v4847, 0.70710677
    %v4864 = vmul.f32 %v4852, 0.70710677
    %v4865 = verf.f32.pop %v4861
    %v4866 = verf.f32.pop %v4862
    %v4867 = verf.f32.pop %v4863
    %v4868 = verf.f32.pop %v4864
    %v4869 = vadd.f32 %v4865, 1.0
    %v4870 = vadd.f32 %v4866, 1.0
    %v4871 = vadd.f32 %v4867, 1.0
    %v4872 = vadd.f32 %v4868, 1.0
    %v4873 = vmul.f32 %v4857, %v4869
    %v4874 = vmul.f32 %v4858, %v4870
    %v4875 = vmul.f32 %v4859, %v4871
    %v4876 = vmul.f32 %v4860, %v4872
    %s4877 = scalar_lea.vmem [#allocation10], 1792
    %v4878 = vld [vmem:[%s4877] sm:$0xff]
    %v4879 = vld [vmem:[%s4877 + $0x8] sm:$0xff]
    %v4880 = vld [vmem:[%s4877 + $0x10] sm:$0xff]
    %v4881 = vld [vmem:[%s4877 + $0x18] sm:$0xff]
    %v4882 = vld [vmem:[%s4877 + $0x20] sm:$0xff]
    %v4883 = vld [vmem:[%s4877 + $0x28] sm:$0xff]
    %v4884 = vld [vmem:[%s4877 + $0x30] sm:$0xff]
    %v4885 = vld [vmem:[%s4877 + $0x38] sm:$0xff]
    %v4887 = vlaneseq
    %v4888 = vshrl.u32 %v4887, 7
    %v4889 = vsub.s32 0, %v4888
    %v4890 = vrot.slane %v4856, %v4889
    %v4893 = vsel %vm420, %v4873, 0
    %v4896 = vsel %vm420, %v4874, 0
    %v4899 = vsel %vm420, %v4875, 0
    %v4902 = vsel %vm420, %v4876, 0
    %4904 = vmatprep.subr.mxu0 0.0
    %4905 = vmatpush1.msra.mxu0 %v4878
    %4906 = vmatprep.subr.mxu0 0.0
    %4907 = vmatpush1.msra.mxu0 %v4879
    %4908 = vmatprep.subr.mxu0 0.0
    %4909 = vmatpush1.msra.mxu0 %v4880
    %4910 = vmatprep.subr.mxu0 0.0
    %4911 = vmatpush1.msra.mxu0 %v4881
    %4912 = vmatprep.subr.mxu0 0.0
    %4913 = vmatpush1.msra.mxu0 %v4882
    %4914 = vmatprep.subr.mxu0 0.0
    %4915 = vmatpush1.msra.mxu0 %v4883
    %4916 = vmatprep.subr.mxu0 0.0
    %4917 = vmatpush1.msra.mxu0 %v4884
    %4918 = vmatprep.subr.mxu0 0.0
    %4919 = vmatpush1.msra.mxu0 %v4885
    %4920 = vmatprep.subr.mxu0 0.0
    %4921 = vmatpush1.msra.mxu0 0.0
    %4922 = vmatprep.subr.mxu0 0.0
    %4923 = vmatpush1.msra.mxu0 0.0
    %4924 = vmatprep.subr.mxu0 0.0
    %4925 = vmatpush1.msra.mxu0 0.0
    %4926 = vmatprep.subr.mxu0 0.0
    %4927 = vmatpush1.msra.mxu0 0.0
    %4928 = vmatprep.subr.mxu0 0.0
    %4929 = vmatpush1.msra.mxu0 0.0
    %4930 = vmatprep.subr.mxu0 0.0
    %4931 = vmatpush1.msra.mxu0 0.0
    %4932 = vmatprep.subr.mxu0 0.0
    %4933 = vmatpush1.msra.mxu0 0.0
    %4934 = vmatprep.subr.mxu0 0.0
    %4935 = vmatpush1.msra.mxu0 0.0
    %4936 = vmatprep.subr.mxu0 0.0
    %4937 = vmatpush1.msra.mxu0 0.0
    %4938 = vmatprep.subr.mxu0 0.0
    %4939 = vmatpush1.msra.mxu0 0.0
    %4940 = vmatprep.subr.mxu0 0.0
    %4941 = vmatpush1.msra.mxu0 0.0
    %4942 = vmatprep.subr.mxu0 0.0
    %4943 = vmatpush1.msra.mxu0 0.0
    %4944 = vmatprep.subr.mxu0 0.0
    %4945 = vmatpush1.msra.mxu0 0.0
    %4946 = vmatprep.subr.mxu0 0.0
    %4947 = vmatpush1.msra.mxu0 0.0
    %4948 = vmatprep.subr.mxu0 0.0
    %4949 = vmatpush1.msra.mxu0 0.0
    %4950 = vmatprep.subr.mxu0 0.0
    %4951 = vmatpush1.msra.mxu0 0.0
    %4952 = vmatprep.subr.mxu0 0.0
    %4953 = vmatpush1.msra.mxu0 0.0
    %4954 = vmatprep.subr.mxu0 0.0
    %4955 = vmatpush1.msra.mxu0 0.0
    %4956 = vmatprep.subr.mxu0 0.0
    %4957 = vmatpush1.msra.mxu0 0.0
    %4958 = vmatprep.subr.mxu0 0.0
    %4959 = vmatpush1.msra.mxu0 0.0
    %4960 = vmatprep.subr.mxu0 0.0
    %4961 = vmatpush1.msra.mxu0 0.0
    %4962 = vmatprep.subr.mxu0 0.0
    %4963 = vmatpush1.msra.mxu0 0.0
    %4964 = vmatprep.subr.mxu0 0.0
    %4965 = vmatpush1.msra.mxu0 0.0
    %4966 = vmatprep.subr.mxu0 0.0
    %4967 = vmatpush1.msra.mxu0 0.0
    %4968 = vmatprep.mubr.f32.mxu0 0.0
    %4969 = vmatmul.mubr.f32.gmra.mrb[0].mxu0 %v4893
    %v4970 = vpop.f32.mrb[0].mxu0
    %v4971 = vadd.f32 %v4890, %v4970
    %v4972 = vpop.f32.mrb[0].mxu0
    %4973 = vmatprep.mubr.f32.mxu0 0.0
    %4974 = vmatmul.mubr.f32.gmra.mrb[0].mxu0 %v4896
    %v4975 = vpop.f32.mrb[0].mxu0
    %v4976 = vadd.f32 %v4890, %v4975
    %v4977 = vpop.f32.mrb[0].mxu0
    %4978 = vmatprep.mubr.f32.mxu0 0.0
    %4979 = vmatmul.mubr.f32.gmra.mrb[0].mxu0 %v4899
    %v4980 = vpop.f32.mrb[0].mxu0
    %v4981 = vadd.f32 %v4890, %v4980
    %v4982 = vpop.f32.mrb[0].mxu0
    %4983 = vmatprep.mubr.f32.mxu0 0.0
    %4984 = vmatmul.mubr.f32.gmra.mrb[0].mxu0 %v4902
    %v4985 = vpop.f32.mrb[0].mxu0
    %v4986 = vadd.f32 %v4890, %v4985
    %v4987 = vpop.f32.mrb[0].mxu0
    %4988 = vdwg.mxu0
    %v4989 = vadd.f32 %v4971, %v4717
    %v4990 = vadd.f32 %v4976, %v4718
    %v4991 = vadd.f32 %v4981, %v4719
    %v4992 = vadd.f32 %v4986, %v4720
    %v4993 = vld [vmem:[#allocation13] sm:$0xff]
    %v4994 = vld [vmem:[#allocation13 + $0x8] sm:$0xff]
    %v4995 = vld [vmem:[#allocation13 + $0x10] sm:$0xff]
    %v4996 = vld [vmem:[#allocation13 + $0x18] sm:$0xff]
    %v4997 = vld [vmem:[#allocation13 + $0x20] sm:$0xff]
    %v4998 = vld [vmem:[#allocation13 + $0x28] sm:$0xff]
    %v4999 = vld [vmem:[#allocation13 + $0x30] sm:$0xff]
    %v5000 = vld [vmem:[#allocation13 + $0x38] sm:$0xff]
    %v5001 = vld [vmem:[#allocation13 + $0x40] sm:$0xff]
    %v5002 = vld [vmem:[#allocation13 + $0x48] sm:$0xff]
    %v5003 = vld [vmem:[#allocation13 + $0x50] sm:$0xff]
    %v5004 = vld [vmem:[#allocation13 + $0x58] sm:$0xff]
    %v5005 = vld [vmem:[#allocation13 + $0x60] sm:$0xff]
    %v5006 = vld [vmem:[#allocation13 + $0x68] sm:$0xff]
    %v5007 = vld [vmem:[#allocation13 + $0x70] sm:$0xff]
    %v5008 = vld [vmem:[#allocation13 + $0x78] sm:$0xff]
    %v5009 = vld [vmem:[#allocation13 + $0x80] sm:$0xff]
    %v5010 = vld [vmem:[#allocation13 + $0x88] sm:$0xff]
    %v5011 = vld [vmem:[#allocation13 + $0x90] sm:$0xff]
    %v5012 = vld [vmem:[#allocation13 + $0x98] sm:$0xff]
    %v5013 = vld [vmem:[#allocation13 + $0xa0] sm:$0xff]
    %v5014 = vld [vmem:[#allocation13 + $0xa8] sm:$0xff]
    %v5015 = vld [vmem:[#allocation13 + $0xb0] sm:$0xff]
    %v5016 = vld [vmem:[#allocation13 + $0xb8] sm:$0xff]
    %v5017 = vld [vmem:[#allocation14] sm:$0x7]
    %v5019 = vlaneseq
    %v5020 = vshrl.u32 %v5019, 7
    %v5021 = vsub.s32 0, %v5020
    %v5022 = vrot.slane %v5017, %v5021
    %v5023 = vlaneseq
    %v5024 = vshrl.u32 %v5023, 7
    %v5025 = vsub.s32 1, %v5024
    %v5026 = vrot.slane %v5017, %v5025
    %v5027 = vlaneseq
    %v5028 = vshrl.u32 %v5027, 7
    %v5029 = vsub.s32 2, %v5028
    %v5030 = vrot.slane %v5017, %v5029
    %v5035 = vsel %vm420, %v4989, 0
    %v5038 = vsel %vm420, %v4990, 0
    %v5041 = vsel %vm420, %v4991, 0
    %v5044 = vsel %vm420, %v4992, 0
    %5046 = vmatprep.subr.mxu0 %v4994
    %5047 = vmatpush1.msra.mxu0 %v4993
    %5048 = vmatprep.subr.mxu0 %v4997
    %5049 = vmatpush1.msra.mxu0 %v4996
    %5050 = vmatprep.subr.mxu0 %v5000
    %5051 = vmatpush1.msra.mxu0 %v4999
    %5052 = vmatprep.subr.mxu0 %v5003
    %5053 = vmatpush1.msra.mxu0 %v5002
    %5054 = vmatprep.subr.mxu0 %v5006
    %5055 = vmatpush1.msra.mxu0 %v5005
    %5056 = vmatprep.subr.mxu0 %v5009
    %5057 = vmatpush1.msra.mxu0 %v5008
    %5058 = vmatprep.subr.mxu0 %v5012
    %5059 = vmatpush1.msra.mxu0 %v5011
    %5060 = vmatprep.subr.mxu0 %v5015
    %5061 = vmatpush1.msra.mxu0 %v5014
    %5062 = vmatprep.subr.mxu0 0.0
    %5063 = vmatpush1.msra.mxu0 0.0
    %5064 = vmatprep.subr.mxu0 0.0
    %5065 = vmatpush1.msra.mxu0 0.0
    %5066 = vmatprep.subr.mxu0 0.0
    %5067 = vmatpush1.msra.mxu0 0.0
    %5068 = vmatprep.subr.mxu0 0.0
    %5069 = vmatpush1.msra.mxu0 0.0
    %5070 = vmatprep.subr.mxu0 0.0
    %5071 = vmatpush1.msra.mxu0 0.0
    %5072 = vmatprep.subr.mxu0 0.0
    %5073 = vmatpush1.msra.mxu0 0.0
    %5074 = vmatprep.subr.mxu0 0.0
    %5075 = vmatpush1.msra.mxu0 0.0
    %5076 = vmatprep.subr.mxu0 0.0
    %5077 = vmatpush1.msra.mxu0 0.0
    %5078 = vmatprep.subr.mxu0 0.0
    %5079 = vmatpush1.msra.mxu0 0.0
    %5080 = vmatprep.subr.mxu0 0.0
    %5081 = vmatpush1.msra.mxu0 0.0
    %5082 = vmatprep.subr.mxu0 0.0
    %5083 = vmatpush1.msra.mxu0 0.0
    %5084 = vmatprep.subr.mxu0 0.0
    %5085 = vmatpush1.msra.mxu0 0.0
    %5086 = vmatprep.subr.mxu0 0.0
    %5087 = vmatpush1.msra.mxu0 0.0
    %5088 = vmatprep.subr.mxu0 0.0
    %5089 = vmatpush1.msra.mxu0 0.0
    %5090 = vmatprep.subr.mxu0 0.0
    %5091 = vmatpush1.msra.mxu0 0.0
    %5092 = vmatprep.subr.mxu0 0.0
    %5093 = vmatpush1.msra.mxu0 0.0
    %5094 = vmatprep.subr.mxu0 0.0
    %5095 = vmatpush1.msra.mxu0 0.0
    %5096 = vmatprep.subr.mxu0 0.0
    %5097 = vmatpush1.msra.mxu0 0.0
    %5098 = vmatprep.subr.mxu0 0.0
    %5099 = vmatpush1.msra.mxu0 0.0
    %5100 = vmatprep.subr.mxu0 0.0
    %5101 = vmatpush1.msra.mxu0 0.0
    %5102 = vmatprep.subr.mxu0 0.0
    %5103 = vmatpush1.msra.mxu0 0.0
    %5104 = vmatprep.subr.mxu0 0.0
    %5105 = vmatpush1.msra.mxu0 0.0
    %5106 = vmatprep.subr.mxu0 0.0
    %5107 = vmatpush1.msra.mxu0 0.0
    %5108 = vmatprep.subr.mxu0 0.0
    %5109 = vmatpush1.msra.mxu0 0.0
    %5110 = vmatprep.mubr.f32.mxu0 0.0
    %5111 = vmatmul.mubr.f32.gmra.mrb[0].mxu0 %v5035
    %v5112 = vpop.f32.mrb[0].mxu0
    %v5113 = vpop.f32.mrb[0].mxu0
    %5114 = vmatprep.mubr.f32.mxu0 0.0
    %5115 = vmatmul.mubr.f32.gmra.mrb[0].mxu0 %v5038
    %v5116 = vpop.f32.mrb[0].mxu0
    %v5117 = vadd.f32 %v5022, %v5116
    %v5118 = vpop.f32.mrb[0].mxu0
    %v5119 = vadd.f32 %v5026, %v5118
    %5120 = vmatprep.mubr.f32.mxu0 0.0
    %5121 = vmatmul.mubr.f32.gmra.mrb[0].mxu0 %v5041
    %v5122 = vpop.f32.mrb[0].mxu0
    %v5123 = vpop.f32.mrb[0].mxu0
    %5124 = vmatprep.mubr.f32.mxu0 0.0
    %5125 = vmatmul.mubr.f32.gmra.mrb[0].mxu0 %v5044
    %v5126 = vpop.f32.mrb[0].mxu0
    %v5127 = vadd.f32 %v5022, %v5126
    %v5128 = vpop.f32.mrb[0].mxu0
    %v5129 = vadd.f32 %v5026, %v5128
    %5130 = vdwg.mxu0
    %5131 = vmatprep.subr.mxu0 0.0
    %5132 = vmatpush1.msra.mxu0 %v4995
    %5133 = vmatprep.subr.mxu0 0.0
    %5134 = vmatpush1.msra.mxu0 %v4998
    %5135 = vmatprep.subr.mxu0 0.0
    %5136 = vmatpush1.msra.mxu0 %v5001
    %5137 = vmatprep.subr.mxu0 0.0
    %5138 = vmatpush1.msra.mxu0 %v5004
    %5139 = vmatprep.subr.mxu0 0.0
    %5140 = vmatpush1.msra.mxu0 %v5007
    %5141 = vmatprep.subr.mxu0 0.0
    %5142 = vmatpush1.msra.mxu0 %v5010
    %5143 = vmatprep.subr.mxu0 0.0
    %5144 = vmatpush1.msra.mxu0 %v5013
    %5145 = vmatprep.subr.mxu0 0.0
    %5146 = vmatpush1.msra.mxu0 %v5016
    %5147 = vmatprep.subr.mxu0 0.0
    %5148 = vmatpush1.msra.mxu0 0.0
    %5149 = vmatprep.subr.mxu0 0.0
    %5150 = vmatpush1.msra.mxu0 0.0
    %5151 = vmatprep.subr.mxu0 0.0
    %5152 = vmatpush1.msra.mxu0 0.0
    %5153 = vmatprep.subr.mxu0 0.0
    %5154 = vmatpush1.msra.mxu0 0.0
    %5155 = vmatprep.subr.mxu0 0.0
    %5156 = vmatpush1.msra.mxu0 0.0
    %5157 = vmatprep.subr.mxu0 0.0
    %5158 = vmatpush1.msra.mxu0 0.0
    %5159 = vmatprep.subr.mxu0 0.0
    %5160 = vmatpush1.msra.mxu0 0.0
    %5161 = vmatprep.subr.mxu0 0.0
    %5162 = vmatpush1.msra.mxu0 0.0
    %5163 = vmatprep.subr.mxu0 0.0
    %5164 = vmatpush1.msra.mxu0 0.0
    %5165 = vmatprep.subr.mxu0 0.0
    %5166 = vmatpush1.msra.mxu0 0.0
    %5167 = vmatprep.subr.mxu0 0.0
    %5168 = vmatpush1.msra.mxu0 0.0
    %5169 = vmatprep.subr.mxu0 0.0
    %5170 = vmatpush1.msra.mxu0 0.0
    %5171 = vmatprep.subr.mxu0 0.0
    %5172 = vmatpush1.msra.mxu0 0.0
    %5173 = vmatprep.subr.mxu0 0.0
    %5174 = vmatpush1.msra.mxu0 0.0
    %5175 = vmatprep.subr.mxu0 0.0
    %5176 = vmatpush1.msra.mxu0 0.0
    %5177 = vmatprep.subr.mxu0 0.0
    %5178 = vmatpush1.msra.mxu0 0.0
    %5179 = vmatprep.subr.mxu0 0.0
    %5180 = vmatpush1.msra.mxu0 0.0
    %5181 = vmatprep.subr.mxu0 0.0
    %5182 = vmatpush1.msra.mxu0 0.0
    %5183 = vmatprep.subr.mxu0 0.0
    %5184 = vmatpush1.msra.mxu0 0.0
    %5185 = vmatprep.subr.mxu0 0.0
    %5186 = vmatpush1.msra.mxu0 0.0
    %5187 = vmatprep.subr.mxu0 0.0
    %5188 = vmatpush1.msra.mxu0 0.0
    %5189 = vmatprep.subr.mxu0 0.0
    %5190 = vmatpush1.msra.mxu0 0.0
    %5191 = vmatprep.subr.mxu0 0.0
    %5192 = vmatpush1.msra.mxu0 0.0
    %5193 = vmatprep.subr.mxu0 0.0
    %5194 = vmatpush1.msra.mxu0 0.0
    %5195 = vmatprep.mubr.f32.mxu0 0.0
    %5196 = vmatmul.mubr.f32.gmra.mrb[0].mxu0 %v5035
    %v5197 = vpop.f32.mrb[0].mxu0
    %v5198 = vpop.f32.mrb[0].mxu0
    %5199 = vmatprep.mubr.f32.mxu0 0.0
    %5200 = vmatmul.mubr.f32.gmra.mrb[0].mxu0 %v5038
    %v5201 = vpop.f32.mrb[0].mxu0
    %v5202 = vadd.f32 %v5030, %v5201
    %v5203 = vpop.f32.mrb[0].mxu0
    %5204 = vmatprep.mubr.f32.mxu0 0.0
    %5205 = vmatmul.mubr.f32.gmra.mrb[0].mxu0 %v5041
    %v5206 = vpop.f32.mrb[0].mxu0
    %v5207 = vpop.f32.mrb[0].mxu0
    %5208 = vmatprep.mubr.f32.mxu0 0.0
    %5209 = vmatmul.mubr.f32.gmra.mrb[0].mxu0 %v5044
    %v5210 = vpop.f32.mrb[0].mxu0
    %v5211 = vadd.f32 %v5030, %v5210
    %v5212 = vpop.f32.mrb[0].mxu0
    %5213 = vdwg.mxu0
    %v5214 = vld [vmem:[#allocation17] sm:$0x7]
    %v5215 = vmul.f32 %v4989, 0.5
    %v5216 = vmul.f32 %v4990, 0.5
    %v5217 = vmul.f32 %v4991, 0.5
    %v5218 = vmul.f32 %v4992, 0.5
    %v5219 = vmul.f32 %v4989, 0.70710677
    %v5220 = vmul.f32 %v4990, 0.70710677
    %v5221 = vmul.f32 %v4991, 0.70710677
    %v5222 = vmul.f32 %v4992, 0.70710677
    %v5223 = verf.f32.pop %v5219
    %v5224 = verf.f32.pop %v5220
    %v5225 = verf.f32.pop %v5221
    %v5226 = verf.f32.pop %v5222
    %v5227 = vadd.f32 %v5223, 1.0
    %v5228 = vadd.f32 %v5224, 1.0
    %v5229 = vadd.f32 %v5225, 1.0
    %v5230 = vadd.f32 %v5226, 1.0
    %v5231 = vmul.f32 %v5215, %v5227
    %v5232 = vmul.f32 %v5216, %v5228
    %v5233 = vmul.f32 %v5217, %v5229
    %v5234 = vmul.f32 %v5218, %v5230
    %s5235 = scalar_lea.vmem [#allocation16], 192
    %v5236 = vld [vmem:[%s5235] sm:$0xff]
    %v5237 = vld [vmem:[%s5235 + $0x8] sm:$0xff]
    %v5238 = vld [vmem:[%s5235 + $0x10] sm:$0xff]
    %v5239 = vld [vmem:[%s5235 + $0x18] sm:$0xff]
    %v5240 = vld [vmem:[%s5235 + $0x20] sm:$0xff]
    %v5241 = vld [vmem:[%s5235 + $0x28] sm:$0xff]
    %v5242 = vld [vmem:[%s5235 + $0x30] sm:$0xff]
    %v5243 = vld [vmem:[%s5235 + $0x38] sm:$0xff]
    %v5244 = vld [vmem:[%s5235 + $0x40] sm:$0xff]
    %v5245 = vld [vmem:[%s5235 + $0x48] sm:$0xff]
    %v5246 = vld [vmem:[%s5235 + $0x50] sm:$0xff]
    %v5247 = vld [vmem:[%s5235 + $0x58] sm:$0xff]
    %v5248 = vld [vmem:[%s5235 + $0x60] sm:$0xff]
    %v5249 = vld [vmem:[%s5235 + $0x68] sm:$0xff]
    %v5250 = vld [vmem:[%s5235 + $0x70] sm:$0xff]
    %v5251 = vld [vmem:[%s5235 + $0x78] sm:$0xff]
    %v5252 = vld [vmem:[%s5235 + $0x80] sm:$0xff]
    %v5253 = vld [vmem:[%s5235 + $0x88] sm:$0xff]
    %v5254 = vld [vmem:[%s5235 + $0x90] sm:$0xff]
    %v5255 = vld [vmem:[%s5235 + $0x98] sm:$0xff]
    %v5256 = vld [vmem:[%s5235 + $0xa0] sm:$0xff]
    %v5257 = vld [vmem:[%s5235 + $0xa8] sm:$0xff]
    %v5258 = vld [vmem:[%s5235 + $0xb0] sm:$0xff]
    %v5259 = vld [vmem:[%s5235 + $0xb8] sm:$0xff]
    %v5261 = vlaneseq
    %v5262 = vshrl.u32 %v5261, 7
    %v5263 = vsub.s32 0, %v5262
    %v5264 = vrot.slane %v5214, %v5263
    %v5265 = vlaneseq
    %v5266 = vshrl.u32 %v5265, 7
    %v5267 = vsub.s32 1, %v5266
    %v5268 = vrot.slane %v5214, %v5267
    %v5269 = vlaneseq
    %v5270 = vshrl.u32 %v5269, 7
    %v5271 = vsub.s32 2, %v5270
    %v5272 = vrot.slane %v5214, %v5271
    %v5277 = vsel %vm420, %v5231, 0
    %v5280 = vsel %vm420, %v5232, 0
    %v5283 = vsel %vm420, %v5233, 0
    %v5286 = vsel %vm420, %v5234, 0
    %5288 = vmatprep.subr.mxu0 %v5237
    %5289 = vmatpush1.msra.mxu0 %v5236
    %5290 = vmatprep.subr.mxu0 %v5240
    %5291 = vmatpush1.msra.mxu0 %v5239
    %5292 = vmatprep.subr.mxu0 %v5243
    %5293 = vmatpush1.msra.mxu0 %v5242
    %5294 = vmatprep.subr.mxu0 %v5246
    %5295 = vmatpush1.msra.mxu0 %v5245
    %5296 = vmatprep.subr.mxu0 %v5249
    %5297 = vmatpush1.msra.mxu0 %v5248
    %5298 = vmatprep.subr.mxu0 %v5252
    %5299 = vmatpush1.msra.mxu0 %v5251
    %5300 = vmatprep.subr.mxu0 %v5255
    %5301 = vmatpush1.msra.mxu0 %v5254
    %5302 = vmatprep.subr.mxu0 %v5258
    %5303 = vmatpush1.msra.mxu0 %v5257
    %5304 = vmatprep.subr.mxu0 0.0
    %5305 = vmatpush1.msra.mxu0 0.0
    %5306 = vmatprep.subr.mxu0 0.0
    %5307 = vmatpush1.msra.mxu0 0.0
    %5308 = vmatprep.subr.mxu0 0.0
    %5309 = vmatpush1.msra.mxu0 0.0
    %5310 = vmatprep.subr.mxu0 0.0
    %5311 = vmatpush1.msra.mxu0 0.0
    %5312 = vmatprep.subr.mxu0 0.0
    %5313 = vmatpush1.msra.mxu0 0.0
    %5314 = vmatprep.subr.mxu0 0.0
    %5315 = vmatpush1.msra.mxu0 0.0
    %5316 = vmatprep.subr.mxu0 0.0
    %5317 = vmatpush1.msra.mxu0 0.0
    %5318 = vmatprep.subr.mxu0 0.0
    %5319 = vmatpush1.msra.mxu0 0.0
    %5320 = vmatprep.subr.mxu0 0.0
    %5321 = vmatpush1.msra.mxu0 0.0
    %5322 = vmatprep.subr.mxu0 0.0
    %5323 = vmatpush1.msra.mxu0 0.0
    %5324 = vmatprep.subr.mxu0 0.0
    %5325 = vmatpush1.msra.mxu0 0.0
    %5326 = vmatprep.subr.mxu0 0.0
    %5327 = vmatpush1.msra.mxu0 0.0
    %5328 = vmatprep.subr.mxu0 0.0
    %5329 = vmatpush1.msra.mxu0 0.0
    %5330 = vmatprep.subr.mxu0 0.0
    %5331 = vmatpush1.msra.mxu0 0.0
    %5332 = vmatprep.subr.mxu0 0.0
    %5333 = vmatpush1.msra.mxu0 0.0
    %5334 = vmatprep.subr.mxu0 0.0
    %5335 = vmatpush1.msra.mxu0 0.0
    %5336 = vmatprep.subr.mxu0 0.0
    %5337 = vmatpush1.msra.mxu0 0.0
    %5338 = vmatprep.subr.mxu0 0.0
    %5339 = vmatpush1.msra.mxu0 0.0
    %5340 = vmatprep.subr.mxu0 0.0
    %5341 = vmatpush1.msra.mxu0 0.0
    %5342 = vmatprep.subr.mxu0 0.0
    %5343 = vmatpush1.msra.mxu0 0.0
    %5344 = vmatprep.subr.mxu0 0.0
    %5345 = vmatpush1.msra.mxu0 0.0
    %5346 = vmatprep.subr.mxu0 0.0
    %5347 = vmatpush1.msra.mxu0 0.0
    %5348 = vmatprep.subr.mxu0 0.0
    %5349 = vmatpush1.msra.mxu0 0.0
    %5350 = vmatprep.subr.mxu0 0.0
    %5351 = vmatpush1.msra.mxu0 0.0
    %5352 = vmatprep.mubr.f32.mxu0 0.0
    %5353 = vmatmul.mubr.f32.gmra.mrb[0].mxu0 %v5277
    %v5354 = vpop.f32.mrb[0].mxu0
    %v5355 = vadd.f32 %v5264, %v5354
    %v5356 = vpop.f32.mrb[0].mxu0
    %v5357 = vadd.f32 %v5268, %v5356
    %5358 = vmatprep.mubr.f32.mxu0 0.0
    %5359 = vmatmul.mubr.f32.gmra.mrb[0].mxu0 %v5280
    %v5360 = vpop.f32.mrb[0].mxu0
    %v5361 = vadd.f32 %v5264, %v5360
    %v5362 = vpop.f32.mrb[0].mxu0
    %v5363 = vadd.f32 %v5268, %v5362
    %5364 = vmatprep.mubr.f32.mxu0 0.0
    %5365 = vmatmul.mubr.f32.gmra.mrb[0].mxu0 %v5283
    %v5366 = vpop.f32.mrb[0].mxu0
    %v5367 = vadd.f32 %v5264, %v5366
    %v5368 = vpop.f32.mrb[0].mxu0
    %v5369 = vadd.f32 %v5268, %v5368
    %5370 = vmatprep.mubr.f32.mxu0 0.0
    %5371 = vmatmul.mubr.f32.gmra.mrb[0].mxu0 %v5286
    %v5372 = vpop.f32.mrb[0].mxu0
    %v5373 = vadd.f32 %v5264, %v5372
    %v5374 = vpop.f32.mrb[0].mxu0
    %v5375 = vadd.f32 %v5268, %v5374
    %5376 = vdwg.mxu0
    %5377 = vmatprep.subr.mxu0 0.0
    %5378 = vmatpush1.msra.mxu0 %v5238
    %5379 = vmatprep.subr.mxu0 0.0
    %5380 = vmatpush1.msra.mxu0 %v5241
    %5381 = vmatprep.subr.mxu0 0.0
    %5382 = vmatpush1.msra.mxu0 %v5244
    %5383 = vmatprep.subr.mxu0 0.0
    %5384 = vmatpush1.msra.mxu0 %v5247
    %5385 = vmatprep.subr.mxu0 0.0
    %5386 = vmatpush1.msra.mxu0 %v5250
    %5387 = vmatprep.subr.mxu0 0.0
    %5388 = vmatpush1.msra.mxu0 %v5253
    %5389 = vmatprep.subr.mxu0 0.0
    %5390 = vmatpush1.msra.mxu0 %v5256
    %5391 = vmatprep.subr.mxu0 0.0
    %5392 = vmatpush1.msra.mxu0 %v5259
    %5393 = vmatprep.subr.mxu0 0.0
    %5394 = vmatpush1.msra.mxu0 0.0
    %5395 = vmatprep.subr.mxu0 0.0
    %5396 = vmatpush1.msra.mxu0 0.0
    %5397 = vmatprep.subr.mxu0 0.0
    %5398 = vmatpush1.msra.mxu0 0.0
    %5399 = vmatprep.subr.mxu0 0.0
    %5400 = vmatpush1.msra.mxu0 0.0
    %5401 = vmatprep.subr.mxu0 0.0
    %5402 = vmatpush1.msra.mxu0 0.0
    %5403 = vmatprep.subr.mxu0 0.0
    %5404 = vmatpush1.msra.mxu0 0.0
    %5405 = vmatprep.subr.mxu0 0.0
    %5406 = vmatpush1.msra.mxu0 0.0
    %5407 = vmatprep.subr.mxu0 0.0
    %5408 = vmatpush1.msra.mxu0 0.0
    %5409 = vmatprep.subr.mxu0 0.0
    %5410 = vmatpush1.msra.mxu0 0.0
    %5411 = vmatprep.subr.mxu0 0.0
    %5412 = vmatpush1.msra.mxu0 0.0
    %5413 = vmatprep.subr.mxu0 0.0
    %5414 = vmatpush1.msra.mxu0 0.0
    %5415 = vmatprep.subr.mxu0 0.0
    %5416 = vmatpush1.msra.mxu0 0.0
    %5417 = vmatprep.subr.mxu0 0.0
    %5418 = vmatpush1.msra.mxu0 0.0
    %5419 = vmatprep.subr.mxu0 0.0
    %5420 = vmatpush1.msra.mxu0 0.0
    %5421 = vmatprep.subr.mxu0 0.0
    %5422 = vmatpush1.msra.mxu0 0.0
    %5423 = vmatprep.subr.mxu0 0.0
    %5424 = vmatpush1.msra.mxu0 0.0
    %5425 = vmatprep.subr.mxu0 0.0
    %5426 = vmatpush1.msra.mxu0 0.0
    %5427 = vmatprep.subr.mxu0 0.0
    %5428 = vmatpush1.msra.mxu0 0.0
    %5429 = vmatprep.subr.mxu0 0.0
    %5430 = vmatpush1.msra.mxu0 0.0
    %5431 = vmatprep.subr.mxu0 0.0
    %5432 = vmatpush1.msra.mxu0 0.0
    %5433 = vmatprep.subr.mxu0 0.0
    %5434 = vmatpush1.msra.mxu0 0.0
    %5435 = vmatprep.subr.mxu0 0.0
    %5436 = vmatpush1.msra.mxu0 0.0
    %5437 = vmatprep.subr.mxu0 0.0
    %5438 = vmatpush1.msra.mxu0 0.0
    %5439 = vmatprep.subr.mxu0 0.0
    %5440 = vmatpush1.msra.mxu0 0.0
    %5441 = vmatprep.mubr.f32.mxu0 0.0
    %5442 = vmatmul.mubr.f32.gmra.mrb[0].mxu0 %v5277
    %v5443 = vpop.f32.mrb[0].mxu0
    %v5444 = vadd.f32 %v5272, %v5443
    %v5445 = vpop.f32.mrb[0].mxu0
    %5446 = vmatprep.mubr.f32.mxu0 0.0
    %5447 = vmatmul.mubr.f32.gmra.mrb[0].mxu0 %v5280
    %v5448 = vpop.f32.mrb[0].mxu0
    %v5449 = vadd.f32 %v5272, %v5448
    %v5450 = vpop.f32.mrb[0].mxu0
    %5451 = vmatprep.mubr.f32.mxu0 0.0
    %5452 = vmatmul.mubr.f32.gmra.mrb[0].mxu0 %v5283
    %v5453 = vpop.f32.mrb[0].mxu0
    %v5454 = vadd.f32 %v5272, %v5453
    %v5455 = vpop.f32.mrb[0].mxu0
    %5456 = vmatprep.mubr.f32.mxu0 0.0
    %5457 = vmatmul.mubr.f32.gmra.mrb[0].mxu0 %v5286
    %v5458 = vpop.f32.mrb[0].mxu0
    %v5459 = vadd.f32 %v5272, %v5458
    %v5460 = vpop.f32.mrb[0].mxu0
    %5461 = vdwg.mxu0
    %v5462 = vld [vmem:[#allocation20] sm:$0x7]
    %v5463 = vmul.f32 %v5355, 0.5
    %v5464 = vmul.f32 %v5357, 0.5
    %v5465 = vmul.f32 %v5444, 0.5
    %v5466 = vmul.f32 %v5361, 0.5
    %v5467 = vmul.f32 %v5363, 0.5
    %v5468 = vmul.f32 %v5449, 0.5
    %v5469 = vmul.f32 %v5367, 0.5
    %v5470 = vmul.f32 %v5369, 0.5
    %v5471 = vmul.f32 %v5454, 0.5
    %v5472 = vmul.f32 %v5373, 0.5
    %v5473 = vmul.f32 %v5375, 0.5
    %v5474 = vmul.f32 %v5459, 0.5
    %v5475 = vmul.f32 %v5355, 0.70710677
    %v5476 = vmul.f32 %v5357, 0.70710677
    %v5477 = vmul.f32 %v5444, 0.70710677
    %v5478 = vmul.f32 %v5361, 0.70710677
    %v5479 = vmul.f32 %v5363, 0.70710677
    %v5480 = vmul.f32 %v5449, 0.70710677
    %v5481 = vmul.f32 %v5367, 0.70710677
    %v5482 = vmul.f32 %v5369, 0.70710677
    %v5483 = vmul.f32 %v5454, 0.70710677
    %v5484 = vmul.f32 %v5373, 0.70710677
    %v5485 = vmul.f32 %v5375, 0.70710677
    %v5486 = vmul.f32 %v5459, 0.70710677
    %v5487 = verf.f32.pop %v5475
    %v5488 = verf.f32.pop %v5476
    %v5489 = verf.f32.pop %v5477
    %v5490 = verf.f32.pop %v5478
    %v5491 = verf.f32.pop %v5479
    %v5492 = verf.f32.pop %v5480
    %v5493 = verf.f32.pop %v5481
    %v5494 = verf.f32.pop %v5482
    %v5495 = verf.f32.pop %v5483
    %v5496 = verf.f32.pop %v5484
    %v5497 = verf.f32.pop %v5485
    %v5498 = verf.f32.pop %v5486
    %v5499 = vadd.f32 %v5487, 1.0
    %v5500 = vadd.f32 %v5488, 1.0
    %v5501 = vadd.f32 %v5489, 1.0
    %v5502 = vadd.f32 %v5490, 1.0
    %v5503 = vadd.f32 %v5491, 1.0
    %v5504 = vadd.f32 %v5492, 1.0
    %v5505 = vadd.f32 %v5493, 1.0
    %v5506 = vadd.f32 %v5494, 1.0
    %v5507 = vadd.f32 %v5495, 1.0
    %v5508 = vadd.f32 %v5496, 1.0
    %v5509 = vadd.f32 %v5497, 1.0
    %v5510 = vadd.f32 %v5498, 1.0
    %v5511 = vmul.f32 %v5463, %v5499
    %v5512 = vmul.f32 %v5464, %v5500
    %v5513 = vmul.f32 %v5465, %v5501
    %v5514 = vmul.f32 %v5466, %v5502
    %v5515 = vmul.f32 %v5467, %v5503
    %v5516 = vmul.f32 %v5468, %v5504
    %v5517 = vmul.f32 %v5469, %v5505
    %v5518 = vmul.f32 %v5470, %v5506
    %v5519 = vmul.f32 %v5471, %v5507
    %v5520 = vmul.f32 %v5472, %v5508
    %v5521 = vmul.f32 %v5473, %v5509
    %v5522 = vmul.f32 %v5474, %v5510
    %s5523 = scalar_lea.vmem [#allocation19], 960
    %v5524 = vld [vmem:[%s5523] sm:$0xff]
    %v5525 = vld [vmem:[%s5523 + $0x8] sm:$0xff]
    %v5526 = vld [vmem:[%s5523 + $0x10] sm:$0xff]
    %v5527 = vld [vmem:[%s5523 + $0x18] sm:$0xff]
    %v5528 = vld [vmem:[%s5523 + $0x20] sm:$0xff]
    %v5529 = vld [vmem:[%s5523 + $0x28] sm:$0xff]
    %v5530 = vld [vmem:[%s5523 + $0x30] sm:$0xff]
    %v5531 = vld [vmem:[%s5523 + $0x38] sm:$0xff]
    %v5532 = vld [vmem:[%s5523 + $0x40] sm:$0xff]
    %v5533 = vld [vmem:[%s5523 + $0x48] sm:$0xff]
    %v5534 = vld [vmem:[%s5523 + $0x50] sm:$0xff]
    %v5535 = vld [vmem:[%s5523 + $0x58] sm:$0xff]
    %v5536 = vld [vmem:[%s5523 + $0x60] sm:$0xff]
    %v5537 = vld [vmem:[%s5523 + $0x68] sm:$0xff]
    %v5538 = vld [vmem:[%s5523 + $0x70] sm:$0xff]
    %v5539 = vld [vmem:[%s5523 + $0x78] sm:$0xff]
    %v5540 = vld [vmem:[%s5523 + $0x80] sm:$0xff]
    %v5541 = vld [vmem:[%s5523 + $0x88] sm:$0xff]
    %v5542 = vld [vmem:[%s5523 + $0x90] sm:$0xff]
    %v5543 = vld [vmem:[%s5523 + $0x98] sm:$0xff]
    %v5544 = vld [vmem:[%s5523 + $0xa0] sm:$0xff]
    %v5545 = vld [vmem:[%s5523 + $0xa8] sm:$0xff]
    %v5546 = vld [vmem:[%s5523 + $0xb0] sm:$0xff]
    %v5547 = vld [vmem:[%s5523 + $0xb8] sm:$0xff]
    %v5548 = vld [vmem:[%s5523 + $0xc0] sm:$0xff]
    %v5549 = vld [vmem:[%s5523 + $0xc8] sm:$0xff]
    %v5550 = vld [vmem:[%s5523 + $0xd0] sm:$0xff]
    %v5551 = vld [vmem:[%s5523 + $0xd8] sm:$0xff]
    %v5552 = vld [vmem:[%s5523 + $0xe0] sm:$0xff]
    %v5553 = vld [vmem:[%s5523 + $0xe8] sm:$0xff]
    %v5554 = vld [vmem:[%s5523 + $0xf0] sm:$0xff]
    %v5555 = vld [vmem:[%s5523 + $0xf8] sm:$0xff]
    %v5556 = vld [vmem:[%s5523 + $0x100] sm:$0xff]
    %v5557 = vld [vmem:[%s5523 + $0x108] sm:$0xff]
    %v5558 = vld [vmem:[%s5523 + $0x110] sm:$0xff]
    %v5559 = vld [vmem:[%s5523 + $0x118] sm:$0xff]
    %v5560 = vld [vmem:[%s5523 + $0x120] sm:$0xff]
    %v5561 = vld [vmem:[%s5523 + $0x128] sm:$0xff]
    %v5562 = vld [vmem:[%s5523 + $0x130] sm:$0xff]
    %v5563 = vld [vmem:[%s5523 + $0x138] sm:$0xff]
    %v5564 = vld [vmem:[%s5523 + $0x140] sm:$0xff]
    %v5565 = vld [vmem:[%s5523 + $0x148] sm:$0xff]
    %v5566 = vld [vmem:[%s5523 + $0x150] sm:$0xff]
    %v5567 = vld [vmem:[%s5523 + $0x158] sm:$0xff]
    %v5568 = vld [vmem:[%s5523 + $0x160] sm:$0xff]
    %v5569 = vld [vmem:[%s5523 + $0x168] sm:$0xff]
    %v5570 = vld [vmem:[%s5523 + $0x170] sm:$0xff]
    %v5571 = vld [vmem:[%s5523 + $0x178] sm:$0xff]
    %v5572 = vld [vmem:[%s5523 + $0x180] sm:$0xff]
    %v5573 = vld [vmem:[%s5523 + $0x188] sm:$0xff]
    %v5574 = vld [vmem:[%s5523 + $0x190] sm:$0xff]
    %v5575 = vld [vmem:[%s5523 + $0x198] sm:$0xff]
    %v5576 = vld [vmem:[%s5523 + $0x1a0] sm:$0xff]
    %v5577 = vld [vmem:[%s5523 + $0x1a8] sm:$0xff]
    %v5578 = vld [vmem:[%s5523 + $0x1b0] sm:$0xff]
    %v5579 = vld [vmem:[%s5523 + $0x1b8] sm:$0xff]
    %v5580 = vld [vmem:[%s5523 + $0x1c0] sm:$0xff]
    %v5581 = vld [vmem:[%s5523 + $0x1c8] sm:$0xff]
    %v5582 = vld [vmem:[%s5523 + $0x1d0] sm:$0xff]
    %v5583 = vld [vmem:[%s5523 + $0x1d8] sm:$0xff]
    %v5584 = vld [vmem:[%s5523 + $0x1e0] sm:$0xff]
    %v5585 = vld [vmem:[%s5523 + $0x1e8] sm:$0xff]
    %v5586 = vld [vmem:[%s5523 + $0x1f0] sm:$0xff]
    %v5587 = vld [vmem:[%s5523 + $0x1f8] sm:$0xff]
    %v5588 = vld [vmem:[%s5523 + $0x200] sm:$0xff]
    %v5589 = vld [vmem:[%s5523 + $0x208] sm:$0xff]
    %v5590 = vld [vmem:[%s5523 + $0x210] sm:$0xff]
    %v5591 = vld [vmem:[%s5523 + $0x218] sm:$0xff]
    %v5592 = vld [vmem:[%s5523 + $0x220] sm:$0xff]
    %v5593 = vld [vmem:[%s5523 + $0x228] sm:$0xff]
    %v5594 = vld [vmem:[%s5523 + $0x230] sm:$0xff]
    %v5595 = vld [vmem:[%s5523 + $0x238] sm:$0xff]
    %v5596 = vld [vmem:[%s5523 + $0x240] sm:$0xff]
    %v5597 = vld [vmem:[%s5523 + $0x248] sm:$0xff]
    %v5598 = vld [vmem:[%s5523 + $0x250] sm:$0xff]
    %v5599 = vld [vmem:[%s5523 + $0x258] sm:$0xff]
    %v5600 = vld [vmem:[%s5523 + $0x260] sm:$0xff]
    %v5601 = vld [vmem:[%s5523 + $0x268] sm:$0xff]
    %v5602 = vld [vmem:[%s5523 + $0x270] sm:$0xff]
    %v5603 = vld [vmem:[%s5523 + $0x278] sm:$0xff]
    %v5604 = vld [vmem:[%s5523 + $0x280] sm:$0xff]
    %v5605 = vld [vmem:[%s5523 + $0x288] sm:$0xff]
    %v5606 = vld [vmem:[%s5523 + $0x290] sm:$0xff]
    %v5607 = vld [vmem:[%s5523 + $0x298] sm:$0xff]
    %v5608 = vld [vmem:[%s5523 + $0x2a0] sm:$0xff]
    %v5609 = vld [vmem:[%s5523 + $0x2a8] sm:$0xff]
    %v5610 = vld [vmem:[%s5523 + $0x2b0] sm:$0xff]
    %v5611 = vld [vmem:[%s5523 + $0x2b8] sm:$0xff]
    %v5612 = vld [vmem:[%s5523 + $0x2c0] sm:$0xff]
    %v5613 = vld [vmem:[%s5523 + $0x2c8] sm:$0xff]
    %v5614 = vld [vmem:[%s5523 + $0x2d0] sm:$0xff]
    %v5615 = vld [vmem:[%s5523 + $0x2d8] sm:$0xff]
    %v5616 = vld [vmem:[%s5523 + $0x2e0] sm:$0xff]
    %v5617 = vld [vmem:[%s5523 + $0x2e8] sm:$0xff]
    %v5618 = vld [vmem:[%s5523 + $0x2f0] sm:$0xff]
    %v5619 = vld [vmem:[%s5523 + $0x2f8] sm:$0xff]
    %v5620 = vld [vmem:[%s5523 + $0x300] sm:$0xff]
    %v5621 = vld [vmem:[%s5523 + $0x308] sm:$0xff]
    %v5622 = vld [vmem:[%s5523 + $0x310] sm:$0xff]
    %v5623 = vld [vmem:[%s5523 + $0x318] sm:$0xff]
    %v5624 = vld [vmem:[%s5523 + $0x320] sm:$0xff]
    %v5625 = vld [vmem:[%s5523 + $0x328] sm:$0xff]
    %v5626 = vld [vmem:[%s5523 + $0x330] sm:$0xff]
    %v5627 = vld [vmem:[%s5523 + $0x338] sm:$0xff]
    %v5628 = vld [vmem:[%s5523 + $0x340] sm:$0xff]
    %v5629 = vld [vmem:[%s5523 + $0x348] sm:$0xff]
    %v5630 = vld [vmem:[%s5523 + $0x350] sm:$0xff]
    %v5631 = vld [vmem:[%s5523 + $0x358] sm:$0xff]
    %v5632 = vld [vmem:[%s5523 + $0x360] sm:$0xff]
    %v5633 = vld [vmem:[%s5523 + $0x368] sm:$0xff]
    %v5634 = vld [vmem:[%s5523 + $0x370] sm:$0xff]
    %v5635 = vld [vmem:[%s5523 + $0x378] sm:$0xff]
    %v5636 = vld [vmem:[%s5523 + $0x380] sm:$0xff]
    %v5637 = vld [vmem:[%s5523 + $0x388] sm:$0xff]
    %v5638 = vld [vmem:[%s5523 + $0x390] sm:$0xff]
    %v5639 = vld [vmem:[%s5523 + $0x398] sm:$0xff]
    %v5640 = vld [vmem:[%s5523 + $0x3a0] sm:$0xff]
    %v5641 = vld [vmem:[%s5523 + $0x3a8] sm:$0xff]
    %v5642 = vld [vmem:[%s5523 + $0x3b0] sm:$0xff]
    %v5643 = vld [vmem:[%s5523 + $0x3b8] sm:$0xff]
    %v5645 = vlaneseq
    %v5646 = vshrl.u32 %v5645, 7
    %v5647 = vsub.s32 0, %v5646
    %v5648 = vrot.slane %v5462, %v5647
    %v5649 = vlaneseq
    %v5650 = vshrl.u32 %v5649, 7
    %v5651 = vsub.s32 1, %v5650
    %v5652 = vrot.slane %v5462, %v5651
    %v5653 = vlaneseq
    %v5654 = vshrl.u32 %v5653, 7
    %v5655 = vsub.s32 2, %v5654
    %v5656 = vrot.slane %v5462, %v5655
    %v5661 = vsel %vm420, %v5513, 0
    %v5664 = vsel %vm420, %v5516, 0
    %v5667 = vsel %vm420, %v5519, 0
    %v5670 = vsel %vm420, %v5522, 0
    %5672 = vmatprep.subr.mxu0 %v5525
    %5673 = vmatpush1.msra.mxu0 %v5524
    %5674 = vmatprep.subr.mxu0 %v5528
    %5675 = vmatpush1.msra.mxu0 %v5527
    %5676 = vmatprep.subr.mxu0 %v5531
    %5677 = vmatpush1.msra.mxu0 %v5530
    %5678 = vmatprep.subr.mxu0 %v5534
    %5679 = vmatpush1.msra.mxu0 %v5533
    %5680 = vmatprep.subr.mxu0 %v5537
    %5681 = vmatpush1.msra.mxu0 %v5536
    %5682 = vmatprep.subr.mxu0 %v5540
    %5683 = vmatpush1.msra.mxu0 %v5539
    %5684 = vmatprep.subr.mxu0 %v5543
    %5685 = vmatpush1.msra.mxu0 %v5542
    %5686 = vmatprep.subr.mxu0 %v5546
    %5687 = vmatpush1.msra.mxu0 %v5545
    %5688 = vmatprep.subr.mxu0 %v5549
    %5689 = vmatpush1.msra.mxu0 %v5548
    %5690 = vmatprep.subr.mxu0 %v5552
    %5691 = vmatpush1.msra.mxu0 %v5551
    %5692 = vmatprep.subr.mxu0 %v5555
    %5693 = vmatpush1.msra.mxu0 %v5554
    %5694 = vmatprep.subr.mxu0 %v5558
    %5695 = vmatpush1.msra.mxu0 %v5557
    %5696 = vmatprep.subr.mxu0 %v5561
    %5697 = vmatpush1.msra.mxu0 %v5560
    %5698 = vmatprep.subr.mxu0 %v5564
    %5699 = vmatpush1.msra.mxu0 %v5563
    %5700 = vmatprep.subr.mxu0 %v5567
    %5701 = vmatpush1.msra.mxu0 %v5566
    %5702 = vmatprep.subr.mxu0 %v5570
    %5703 = vmatpush1.msra.mxu0 %v5569
    %5704 = vmatprep.subr.mxu0 %v5573
    %5705 = vmatpush1.msra.mxu0 %v5572
    %5706 = vmatprep.subr.mxu0 %v5576
    %5707 = vmatpush1.msra.mxu0 %v5575
    %5708 = vmatprep.subr.mxu0 %v5579
    %5709 = vmatpush1.msra.mxu0 %v5578
    %5710 = vmatprep.subr.mxu0 %v5582
    %5711 = vmatpush1.msra.mxu0 %v5581
    %5712 = vmatprep.subr.mxu0 %v5585
    %5713 = vmatpush1.msra.mxu0 %v5584
    %5714 = vmatprep.subr.mxu0 %v5588
    %5715 = vmatpush1.msra.mxu0 %v5587
    %5716 = vmatprep.subr.mxu0 %v5591
    %5717 = vmatpush1.msra.mxu0 %v5590
    %5718 = vmatprep.subr.mxu0 %v5594
    %5719 = vmatpush1.msra.mxu0 %v5593
    %5720 = vmatprep.subr.mxu0 %v5597
    %5721 = vmatpush1.msra.mxu0 %v5596
    %5722 = vmatprep.subr.mxu0 %v5600
    %5723 = vmatpush1.msra.mxu0 %v5599
    %5724 = vmatprep.subr.mxu0 %v5603
    %5725 = vmatpush1.msra.mxu0 %v5602
    %5726 = vmatprep.subr.mxu0 %v5606
    %5727 = vmatpush1.msra.mxu0 %v5605
    %5728 = vmatprep.subr.mxu0 %v5609
    %5729 = vmatpush1.msra.mxu0 %v5608
    %5730 = vmatprep.subr.mxu0 %v5612
    %5731 = vmatpush1.msra.mxu0 %v5611
    %5732 = vmatprep.subr.mxu0 %v5615
    %5733 = vmatpush1.msra.mxu0 %v5614
    %5734 = vmatprep.subr.mxu0 %v5618
    %5735 = vmatpush1.msra.mxu0 %v5617
    %5736 = vmatprep.mubr.f32.mxu0 %v5512
    %5737 = vmatmul.mubr.f32.gmra.mrb[0].mxu0 %v5511
    %v5738 = vpop.f32.mrb[0].mxu0
    %v5739 = vpop.f32.mrb[0].mxu0
    %5740 = vmatprep.mubr.f32.mxu0 %v5515
    %5741 = vmatmul.mubr.f32.gmra.mrb[0].mxu0 %v5514
    %v5742 = vpop.f32.mrb[0].mxu0
    %v5743 = vadd.f32 %v5648, %v5742
    %v5744 = vpop.f32.mrb[0].mxu0
    %v5745 = vadd.f32 %v5652, %v5744
    %5746 = vmatprep.mubr.f32.mxu0 %v5518
    %5747 = vmatmul.mubr.f32.gmra.mrb[0].mxu0 %v5517
    %v5748 = vpop.f32.mrb[0].mxu0
    %v5749 = vpop.f32.mrb[0].mxu0
    %5750 = vmatprep.mubr.f32.mxu0 %v5521
    %5751 = vmatmul.mubr.f32.gmra.mrb[0].mxu0 %v5520
    %v5752 = vpop.f32.mrb[0].mxu0
    %v5753 = vadd.f32 %v5648, %v5752
    %v5754 = vpop.f32.mrb[0].mxu0
    %v5755 = vadd.f32 %v5652, %v5754
    %5756 = vdwg.mxu0
    %5757 = vmatprep.subr.mxu0 %v5621
    %5758 = vmatpush1.msra.mxu0 %v5620
    %5759 = vmatprep.subr.mxu0 %v5624
    %5760 = vmatpush1.msra.mxu0 %v5623
    %5761 = vmatprep.subr.mxu0 %v5627
    %5762 = vmatpush1.msra.mxu0 %v5626
    %5763 = vmatprep.subr.mxu0 %v5630
    %5764 = vmatpush1.msra.mxu0 %v5629
    %5765 = vmatprep.subr.mxu0 %v5633
    %5766 = vmatpush1.msra.mxu0 %v5632
    %5767 = vmatprep.subr.mxu0 %v5636
    %5768 = vmatpush1.msra.mxu0 %v5635
    %5769 = vmatprep.subr.mxu0 %v5639
    %5770 = vmatpush1.msra.mxu0 %v5638
    %5771 = vmatprep.subr.mxu0 %v5642
    %5772 = vmatpush1.msra.mxu0 %v5641
    %5773 = vmatprep.subr.mxu0 0.0
    %5774 = vmatpush1.msra.mxu0 0.0
    %5775 = vmatprep.subr.mxu0 0.0
    %5776 = vmatpush1.msra.mxu0 0.0
    %5777 = vmatprep.subr.mxu0 0.0
    %5778 = vmatpush1.msra.mxu0 0.0
    %5779 = vmatprep.subr.mxu0 0.0
    %5780 = vmatpush1.msra.mxu0 0.0
    %5781 = vmatprep.subr.mxu0 0.0
    %5782 = vmatpush1.msra.mxu0 0.0
    %5783 = vmatprep.subr.mxu0 0.0
    %5784 = vmatpush1.msra.mxu0 0.0
    %5785 = vmatprep.subr.mxu0 0.0
    %5786 = vmatpush1.msra.mxu0 0.0
    %5787 = vmatprep.subr.mxu0 0.0
    %5788 = vmatpush1.msra.mxu0 0.0
    %5789 = vmatprep.subr.mxu0 0.0
    %5790 = vmatpush1.msra.mxu0 0.0
    %5791 = vmatprep.subr.mxu0 0.0
    %5792 = vmatpush1.msra.mxu0 0.0
    %5793 = vmatprep.subr.mxu0 0.0
    %5794 = vmatpush1.msra.mxu0 0.0
    %5795 = vmatprep.subr.mxu0 0.0
    %5796 = vmatpush1.msra.mxu0 0.0
    %5797 = vmatprep.subr.mxu0 0.0
    %5798 = vmatpush1.msra.mxu0 0.0
    %5799 = vmatprep.subr.mxu0 0.0
    %5800 = vmatpush1.msra.mxu0 0.0
    %5801 = vmatprep.subr.mxu0 0.0
    %5802 = vmatpush1.msra.mxu0 0.0
    %5803 = vmatprep.subr.mxu0 0.0
    %5804 = vmatpush1.msra.mxu0 0.0
    %5805 = vmatprep.subr.mxu0 0.0
    %5806 = vmatpush1.msra.mxu0 0.0
    %5807 = vmatprep.subr.mxu0 0.0
    %5808 = vmatpush1.msra.mxu0 0.0
    %5809 = vmatprep.subr.mxu0 0.0
    %5810 = vmatpush1.msra.mxu0 0.0
    %5811 = vmatprep.subr.mxu0 0.0
    %5812 = vmatpush1.msra.mxu0 0.0
    %5813 = vmatprep.subr.mxu0 0.0
    %5814 = vmatpush1.msra.mxu0 0.0
    %5815 = vmatprep.subr.mxu0 0.0
    %5816 = vmatpush1.msra.mxu0 0.0
    %5817 = vmatprep.subr.mxu0 0.0
    %5818 = vmatpush1.msra.mxu0 0.0
    %5819 = vmatprep.subr.mxu0 0.0
    %5820 = vmatpush1.msra.mxu0 0.0
    %5821 = vmatprep.mubr.f32.mxu0 0.0
    %5822 = vmatmul.mubr.f32.gmra.mrb[0].mxu0 %v5661
    %v5823 = vpop.f32.mrb[0].mxu0
    %v5824 = vpop.f32.mrb[0].mxu0
    %5825 = vmatprep.mubr.f32.mxu0 0.0
    %5826 = vmatmul.mubr.f32.gmra.mrb[0].mxu0 %v5664
    %v5827 = vpop.f32.mrb[0].mxu0
    %v5828 = vadd.f32 %v5743, %v5827
    %v5829 = vpop.f32.mrb[0].mxu0
    %v5830 = vadd.f32 %v5745, %v5829
    %5831 = vmatprep.mubr.f32.mxu0 0.0
    %5832 = vmatmul.mubr.f32.gmra.mrb[0].mxu0 %v5667
    %v5833 = vpop.f32.mrb[0].mxu0
    %v5834 = vpop.f32.mrb[0].mxu0
    %5835 = vmatprep.mubr.f32.mxu0 0.0
    %5836 = vmatmul.mubr.f32.gmra.mrb[0].mxu0 %v5670
    %v5837 = vpop.f32.mrb[0].mxu0
    %v5838 = vadd.f32 %v5753, %v5837
    %v5839 = vpop.f32.mrb[0].mxu0
    %v5840 = vadd.f32 %v5755, %v5839
    %5841 = vdwg.mxu0
    %5842 = vmatprep.subr.mxu0 0.0
    %5843 = vmatpush1.msra.mxu0 %v5526
    %5844 = vmatprep.subr.mxu0 0.0
    %5845 = vmatpush1.msra.mxu0 %v5529
    %5846 = vmatprep.subr.mxu0 0.0
    %5847 = vmatpush1.msra.mxu0 %v5532
    %5848 = vmatprep.subr.mxu0 0.0
    %5849 = vmatpush1.msra.mxu0 %v5535
    %5850 = vmatprep.subr.mxu0 0.0
    %5851 = vmatpush1.msra.mxu0 %v5538
    %5852 = vmatprep.subr.mxu0 0.0
    %5853 = vmatpush1.msra.mxu0 %v5541
    %5854 = vmatprep.subr.mxu0 0.0
    %5855 = vmatpush1.msra.mxu0 %v5544
    %5856 = vmatprep.subr.mxu0 0.0
    %5857 = vmatpush1.msra.mxu0 %v5547
    %5858 = vmatprep.subr.mxu0 0.0
    %5859 = vmatpush1.msra.mxu0 %v5550
    %5860 = vmatprep.subr.mxu0 0.0
    %5861 = vmatpush1.msra.mxu0 %v5553
    %5862 = vmatprep.subr.mxu0 0.0
    %5863 = vmatpush1.msra.mxu0 %v5556
    %5864 = vmatprep.subr.mxu0 0.0
    %5865 = vmatpush1.msra.mxu0 %v5559
    %5866 = vmatprep.subr.mxu0 0.0
    %5867 = vmatpush1.msra.mxu0 %v5562
    %5868 = vmatprep.subr.mxu0 0.0
    %5869 = vmatpush1.msra.mxu0 %v5565
    %5870 = vmatprep.subr.mxu0 0.0
    %5871 = vmatpush1.msra.mxu0 %v5568
    %5872 = vmatprep.subr.mxu0 0.0
    %5873 = vmatpush1.msra.mxu0 %v5571
    %5874 = vmatprep.subr.mxu0 0.0
    %5875 = vmatpush1.msra.mxu0 %v5574
    %5876 = vmatprep.subr.mxu0 0.0
    %5877 = vmatpush1.msra.mxu0 %v5577
    %5878 = vmatprep.subr.mxu0 0.0
    %5879 = vmatpush1.msra.mxu0 %v5580
    %5880 = vmatprep.subr.mxu0 0.0
    %5881 = vmatpush1.msra.mxu0 %v5583
    %5882 = vmatprep.subr.mxu0 0.0
    %5883 = vmatpush1.msra.mxu0 %v5586
    %5884 = vmatprep.subr.mxu0 0.0
    %5885 = vmatpush1.msra.mxu0 %v5589
    %5886 = vmatprep.subr.mxu0 0.0
    %5887 = vmatpush1.msra.mxu0 %v5592
    %5888 = vmatprep.subr.mxu0 0.0
    %5889 = vmatpush1.msra.mxu0 %v5595
    %5890 = vmatprep.subr.mxu0 0.0
    %5891 = vmatpush1.msra.mxu0 %v5598
    %5892 = vmatprep.subr.mxu0 0.0
    %5893 = vmatpush1.msra.mxu0 %v5601
    %5894 = vmatprep.subr.mxu0 0.0
    %5895 = vmatpush1.msra.mxu0 %v5604
    %5896 = vmatprep.subr.mxu0 0.0
    %5897 = vmatpush1.msra.mxu0 %v5607
    %5898 = vmatprep.subr.mxu0 0.0
    %5899 = vmatpush1.msra.mxu0 %v5610
    %5900 = vmatprep.subr.mxu0 0.0
    %5901 = vmatpush1.msra.mxu0 %v5613
    %5902 = vmatprep.subr.mxu0 0.0
    %5903 = vmatpush1.msra.mxu0 %v5616
    %5904 = vmatprep.subr.mxu0 0.0
    %5905 = vmatpush1.msra.mxu0 %v5619
    %5906 = vmatprep.mubr.f32.mxu0 %v5512
    %5907 = vmatmul.mubr.f32.gmra.mrb[0].mxu0 %v5511
    %v5908 = vpop.f32.mrb[0].mxu0
    %v5909 = vpop.f32.mrb[0].mxu0
    %5910 = vmatprep.mubr.f32.mxu0 %v5515
    %5911 = vmatmul.mubr.f32.gmra.mrb[0].mxu0 %v5514
    %v5912 = vpop.f32.mrb[0].mxu0
    %v5913 = vadd.f32 %v5656, %v5912
    %v5914 = vpop.f32.mrb[0].mxu0
    %5915 = vmatprep.mubr.f32.mxu0 %v5518
    %5916 = vmatmul.mubr.f32.gmra.mrb[0].mxu0 %v5517
    %v5917 = vpop.f32.mrb[0].mxu0
    %v5918 = vpop.f32.mrb[0].mxu0
    %5919 = vmatprep.mubr.f32.mxu0 %v5521
    %5920 = vmatmul.mubr.f32.gmra.mrb[0].mxu0 %v5520
    %v5921 = vpop.f32.mrb[0].mxu0
    %v5922 = vadd.f32 %v5656, %v5921
    %v5923 = vpop.f32.mrb[0].mxu0
    %5924 = vdwg.mxu0
    %5925 = vmatprep.subr.mxu0 0.0
    %5926 = vmatpush1.msra.mxu0 %v5622
    %5927 = vmatprep.subr.mxu0 0.0
    %5928 = vmatpush1.msra.mxu0 %v5625
    %5929 = vmatprep.subr.mxu0 0.0
    %5930 = vmatpush1.msra.mxu0 %v5628
    %5931 = vmatprep.subr.mxu0 0.0
    %5932 = vmatpush1.msra.mxu0 %v5631
    %5933 = vmatprep.subr.mxu0 0.0
    %5934 = vmatpush1.msra.mxu0 %v5634
    %5935 = vmatprep.subr.mxu0 0.0
    %5936 = vmatpush1.msra.mxu0 %v5637
    %5937 = vmatprep.subr.mxu0 0.0
    %5938 = vmatpush1.msra.mxu0 %v5640
    %5939 = vmatprep.subr.mxu0 0.0
    %5940 = vmatpush1.msra.mxu0 %v5643
    %5941 = vmatprep.subr.mxu0 0.0
    %5942 = vmatpush1.msra.mxu0 0.0
    %5943 = vmatprep.subr.mxu0 0.0
    %5944 = vmatpush1.msra.mxu0 0.0
    %5945 = vmatprep.subr.mxu0 0.0
    %5946 = vmatpush1.msra.mxu0 0.0
    %5947 = vmatprep.subr.mxu0 0.0
    %5948 = vmatpush1.msra.mxu0 0.0
    %5949 = vmatprep.subr.mxu0 0.0
    %5950 = vmatpush1.msra.mxu0 0.0
    %5951 = vmatprep.subr.mxu0 0.0
    %5952 = vmatpush1.msra.mxu0 0.0
    %5953 = vmatprep.subr.mxu0 0.0
    %5954 = vmatpush1.msra.mxu0 0.0
    %5955 = vmatprep.subr.mxu0 0.0
    %5956 = vmatpush1.msra.mxu0 0.0
    %5957 = vmatprep.subr.mxu0 0.0
    %5958 = vmatpush1.msra.mxu0 0.0
    %5959 = vmatprep.subr.mxu0 0.0
    %5960 = vmatpush1.msra.mxu0 0.0
    %5961 = vmatprep.subr.mxu0 0.0
    %5962 = vmatpush1.msra.mxu0 0.0
    %5963 = vmatprep.subr.mxu0 0.0
    %5964 = vmatpush1.msra.mxu0 0.0
    %5965 = vmatprep.subr.mxu0 0.0
    %5966 = vmatpush1.msra.mxu0 0.0
    %5967 = vmatprep.subr.mxu0 0.0
    %5968 = vmatpush1.msra.mxu0 0.0
    %5969 = vmatprep.subr.mxu0 0.0
    %5970 = vmatpush1.msra.mxu0 0.0
    %5971 = vmatprep.subr.mxu0 0.0
    %5972 = vmatpush1.msra.mxu0 0.0
    %5973 = vmatprep.subr.mxu0 0.0
    %5974 = vmatpush1.msra.mxu0 0.0
    %5975 = vmatprep.subr.mxu0 0.0
    %5976 = vmatpush1.msra.mxu0 0.0
    %5977 = vmatprep.subr.mxu0 0.0
    %5978 = vmatpush1.msra.mxu0 0.0
    %5979 = vmatprep.subr.mxu0 0.0
    %5980 = vmatpush1.msra.mxu0 0.0
    %5981 = vmatprep.subr.mxu0 0.0
    %5982 = vmatpush1.msra.mxu0 0.0
    %5983 = vmatprep.subr.mxu0 0.0
    %5984 = vmatpush1.msra.mxu0 0.0
    %5985 = vmatprep.subr.mxu0 0.0
    %5986 = vmatpush1.msra.mxu0 0.0
    %5987 = vmatprep.subr.mxu0 0.0
    %5988 = vmatpush1.msra.mxu0 0.0
    %5989 = vmatprep.mubr.f32.mxu0 0.0
    %5990 = vmatmul.mubr.f32.gmra.mrb[0].mxu0 %v5661
    %v5991 = vpop.f32.mrb[0].mxu0
    %v5992 = vpop.f32.mrb[0].mxu0
    %5993 = vmatprep.mubr.f32.mxu0 0.0
    %5994 = vmatmul.mubr.f32.gmra.mrb[0].mxu0 %v5664
    %v5995 = vpop.f32.mrb[0].mxu0
    %v5996 = vadd.f32 %v5913, %v5995
    %v5997 = vpop.f32.mrb[0].mxu0
    %5998 = vmatprep.mubr.f32.mxu0 0.0
    %5999 = vmatmul.mubr.f32.gmra.mrb[0].mxu0 %v5667
    %v6000 = vpop.f32.mrb[0].mxu0
    %v6001 = vpop.f32.mrb[0].mxu0
    %6002 = vmatprep.mubr.f32.mxu0 0.0
    %6003 = vmatmul.mubr.f32.gmra.mrb[0].mxu0 %v5670
    %v6004 = vpop.f32.mrb[0].mxu0
    %v6005 = vadd.f32 %v5922, %v6004
    %v6006 = vpop.f32.mrb[0].mxu0
    %6007 = vdwg.mxu0
    %v6008 = vadd.f32 %v5828, %v5117
    %v6009 = vadd.f32 %v5830, %v5119
    %v6010 = vadd.f32 %v5996, %v5202
    %v6011 = vadd.f32 %v5838, %v5127
    %v6012 = vadd.f32 %v5840, %v5129
    %v6013 = vadd.f32 %v6005, %v5211
    %v6014 = vld [vmem:[%s13] sm:$0xff]
    %v6015 = vld [vmem:[%s13 + $0x8] sm:$0xff]
    %v6016 = vld [vmem:[%s13 + $0x10] sm:$0xff]
    %v6017 = vld [vmem:[%s13 + $0x18] sm:$0xff]
    %v6018 = vld [vmem:[%s13 + $0x20] sm:$0xff]
    %v6019 = vld [vmem:[%s13 + $0x28] sm:$0xff]
    %v6020 = vld [vmem:[%s13 + $0x30] sm:$0xff]
    %v6021 = vld [vmem:[%s13 + $0x38] sm:$0xff]
    %v6022 = vld [vmem:[%s13 + $0x40] sm:$0xff]
    %v6023 = vld [vmem:[%s13 + $0x48] sm:$0xff]
    %v6024 = vld [vmem:[%s13 + $0x50] sm:$0xff]
    %v6025 = vld [vmem:[%s13 + $0x58] sm:$0xff]
    %v6026 = vld [vmem:[%s13 + $0x60] sm:$0xff]
    %v6027 = vld [vmem:[%s13 + $0x68] sm:$0xff]
    %v6028 = vld [vmem:[%s13 + $0x70] sm:$0xff]
    %v6029 = vld [vmem:[%s13 + $0x78] sm:$0xff]
    %v6030 = vld [vmem:[%s13 + $0x80] sm:$0xff]
    %v6031 = vld [vmem:[%s13 + $0x88] sm:$0xff]
    %v6032 = vld [vmem:[%s13 + $0x90] sm:$0xff]
    %v6033 = vld [vmem:[%s13 + $0x98] sm:$0xff]
    %v6034 = vld [vmem:[%s13 + $0xa0] sm:$0xff]
    %v6035 = vld [vmem:[%s13 + $0xa8] sm:$0xff]
    %v6036 = vld [vmem:[%s13 + $0xb0] sm:$0xff]
    %v6037 = vld [vmem:[%s13 + $0xb8] sm:$0xff]
    %v6038 = vld [vmem:[%s13 + $0xc0] sm:$0xff]
    %v6039 = vld [vmem:[%s13 + $0xc8] sm:$0xff]
    %v6040 = vld [vmem:[%s13 + $0xd0] sm:$0xff]
    %v6041 = vld [vmem:[%s13 + $0xd8] sm:$0xff]
    %v6042 = vld [vmem:[%s13 + $0xe0] sm:$0xff]
    %v6043 = vld [vmem:[%s13 + $0xe8] sm:$0xff]
    %v6044 = vld [vmem:[%s13 + $0xf0] sm:$0xff]
    %v6045 = vld [vmem:[%s13 + $0xf8] sm:$0xff]
    %v6046 = vld [vmem:[%s13 + $0x100] sm:$0xff]
    %v6047 = vld [vmem:[%s13 + $0x108] sm:$0xff]
    %v6048 = vld [vmem:[%s13 + $0x110] sm:$0xff]
    %v6049 = vld [vmem:[%s13 + $0x118] sm:$0xff]
    %v6050 = vld [vmem:[%s13 + $0x120] sm:$0xff]
    %v6051 = vld [vmem:[%s13 + $0x128] sm:$0xff]
    %v6052 = vld [vmem:[%s13 + $0x130] sm:$0xff]
    %v6053 = vld [vmem:[%s13 + $0x138] sm:$0xff]
    %v6054 = vld [vmem:[#allocation22] sm:$0x1]
    %v6056 = vlaneseq
    %v6057 = vshrl.u32 %v6056, 7
    %v6058 = vsub.s32 0, %v6057
    %v6059 = vrot.slane %v6054, %v6058
    %v6067 = vrot.slane %v6008, 7
    %v6068 = vrot.slane %v6011, 6
    %vm6069 = vcmask 1041409
    %v6070 = vsel %vm6069, %v6068, %v6067
    %v6071 = vrot.slane %v6009, 7
    %v6072 = vrot.slane %v6012, 6
    %v6073 = vsel %vm6069, %v6072, %v6071
    %v6074 = vrot.slane %v6010, 7
    %v6075 = vrot.slane %v6013, 6
    %v6076 = vsel %vm6069, %v6075, %v6074
    %v6079 = vsel %vm420, %v6076, 0
    %6081 = vmatprep.subr.mxu0 0.0
    %6082 = vmatpush1.msra.mxu0 %v6014
    %6083 = vmatprep.subr.mxu0 0.0
    %6084 = vmatpush1.msra.mxu0 %v6015
    %6085 = vmatprep.subr.mxu0 0.0
    %6086 = vmatpush1.msra.mxu0 %v6016
    %6087 = vmatprep.subr.mxu0 0.0
    %6088 = vmatpush1.msra.mxu0 %v6017
    %6089 = vmatprep.subr.mxu0 0.0
    %6090 = vmatpush1.msra.mxu0 %v6018
    %6091 = vmatprep.subr.mxu0 0.0
    %6092 = vmatpush1.msra.mxu0 %v6019
    %6093 = vmatprep.subr.mxu0 0.0
    %6094 = vmatpush1.msra.mxu0 %v6020
    %6095 = vmatprep.subr.mxu0 0.0
    %6096 = vmatpush1.msra.mxu0 %v6021
    %6097 = vmatprep.subr.mxu0 0.0
    %6098 = vmatpush1.msra.mxu0 %v6022
    %6099 = vmatprep.subr.mxu0 0.0
    %6100 = vmatpush1.msra.mxu0 %v6023
    %6101 = vmatprep.subr.mxu0 0.0
    %6102 = vmatpush1.msra.mxu0 %v6024
    %6103 = vmatprep.subr.mxu0 0.0
    %6104 = vmatpush1.msra.mxu0 %v6025
    %6105 = vmatprep.subr.mxu0 0.0
    %6106 = vmatpush1.msra.mxu0 %v6026
    %6107 = vmatprep.subr.mxu0 0.0
    %6108 = vmatpush1.msra.mxu0 %v6027
    %6109 = vmatprep.subr.mxu0 0.0
    %6110 = vmatpush1.msra.mxu0 %v6028
    %6111 = vmatprep.subr.mxu0 0.0
    %6112 = vmatpush1.msra.mxu0 %v6029
    %6113 = vmatprep.subr.mxu0 0.0
    %6114 = vmatpush1.msra.mxu0 %v6030
    %6115 = vmatprep.subr.mxu0 0.0
    %6116 = vmatpush1.msra.mxu0 %v6031
    %6117 = vmatprep.subr.mxu0 0.0
    %6118 = vmatpush1.msra.mxu0 %v6032
    %6119 = vmatprep.subr.mxu0 0.0
    %6120 = vmatpush1.msra.mxu0 %v6033
    %6121 = vmatprep.subr.mxu0 0.0
    %6122 = vmatpush1.msra.mxu0 %v6034
    %6123 = vmatprep.subr.mxu0 0.0
    %6124 = vmatpush1.msra.mxu0 %v6035
    %6125 = vmatprep.subr.mxu0 0.0
    %6126 = vmatpush1.msra.mxu0 %v6036
    %6127 = vmatprep.subr.mxu0 0.0
    %6128 = vmatpush1.msra.mxu0 %v6037
    %6129 = vmatprep.subr.mxu0 0.0
    %6130 = vmatpush1.msra.mxu0 %v6038
    %6131 = vmatprep.subr.mxu0 0.0
    %6132 = vmatpush1.msra.mxu0 %v6039
    %6133 = vmatprep.subr.mxu0 0.0
    %6134 = vmatpush1.msra.mxu0 %v6040
    %6135 = vmatprep.subr.mxu0 0.0
    %6136 = vmatpush1.msra.mxu0 %v6041
    %6137 = vmatprep.subr.mxu0 0.0
    %6138 = vmatpush1.msra.mxu0 %v6042
    %6139 = vmatprep.subr.mxu0 0.0
    %6140 = vmatpush1.msra.mxu0 %v6043
    %6141 = vmatprep.subr.mxu0 0.0
    %6142 = vmatpush1.msra.mxu0 %v6044
    %6143 = vmatprep.subr.mxu0 0.0
    %6144 = vmatpush1.msra.mxu0 %v6045
    %6145 = vmatprep.mubr.f32.mxu0 %v6073
    %6146 = vmatmul.mubr.f32.gmra.mrb[0].mxu0 %v6070
    %v6147 = vpop.f32.mrb[0].mxu0
    %v6148 = vadd.f32 %v6059, %v6147
    %v6149 = vpop.f32.mrb[0].mxu0
    %6150 = vdwg.mxu0
    %6151 = vmatprep.subr.mxu0 0.0
    %6152 = vmatpush1.msra.mxu0 %v6046
    %6153 = vmatprep.subr.mxu0 0.0
    %6154 = vmatpush1.msra.mxu0 %v6047
    %6155 = vmatprep.subr.mxu0 0.0
    %6156 = vmatpush1.msra.mxu0 %v6048
    %6157 = vmatprep.subr.mxu0 0.0
    %6158 = vmatpush1.msra.mxu0 %v6049
    %6159 = vmatprep.subr.mxu0 0.0
    %6160 = vmatpush1.msra.mxu0 %v6050
    %6161 = vmatprep.subr.mxu0 0.0
    %6162 = vmatpush1.msra.mxu0 %v6051
    %6163 = vmatprep.subr.mxu0 0.0
    %6164 = vmatpush1.msra.mxu0 %v6052
    %6165 = vmatprep.subr.mxu0 0.0
    %6166 = vmatpush1.msra.mxu0 %v6053
    %6167 = vmatprep.subr.mxu0 0.0
    %6168 = vmatpush1.msra.mxu0 0.0
    %6169 = vmatprep.subr.mxu0 0.0
    %6170 = vmatpush1.msra.mxu0 0.0
    %6171 = vmatprep.subr.mxu0 0.0
    %6172 = vmatpush1.msra.mxu0 0.0
    %6173 = vmatprep.subr.mxu0 0.0
    %6174 = vmatpush1.msra.mxu0 0.0
    %6175 = vmatprep.subr.mxu0 0.0
    %6176 = vmatpush1.msra.mxu0 0.0
    %6177 = vmatprep.subr.mxu0 0.0
    %6178 = vmatpush1.msra.mxu0 0.0
    %6179 = vmatprep.subr.mxu0 0.0
    %6180 = vmatpush1.msra.mxu0 0.0
    %6181 = vmatprep.subr.mxu0 0.0
    %6182 = vmatpush1.msra.mxu0 0.0
    %6183 = vmatprep.subr.mxu0 0.0
    %6184 = vmatpush1.msra.mxu0 0.0
    %6185 = vmatprep.subr.mxu0 0.0
    %6186 = vmatpush1.msra.mxu0 0.0
    %6187 = vmatprep.subr.mxu0 0.0
    %6188 = vmatpush1.msra.mxu0 0.0
    %6189 = vmatprep.subr.mxu0 0.0
    %6190 = vmatpush1.msra.mxu0 0.0
    %6191 = vmatprep.subr.mxu0 0.0
    %6192 = vmatpush1.msra.mxu0 0.0
    %6193 = vmatprep.subr.mxu0 0.0
    %6194 = vmatpush1.msra.mxu0 0.0
    %6195 = vmatprep.subr.mxu0 0.0
    %6196 = vmatpush1.msra.mxu0 0.0
    %6197 = vmatprep.subr.mxu0 0.0
    %6198 = vmatpush1.msra.mxu0 0.0
    %6199 = vmatprep.subr.mxu0 0.0
    %6200 = vmatpush1.msra.mxu0 0.0
    %6201 = vmatprep.subr.mxu0 0.0
    %6202 = vmatpush1.msra.mxu0 0.0
    %6203 = vmatprep.subr.mxu0 0.0
    %6204 = vmatpush1.msra.mxu0 0.0
    %6205 = vmatprep.subr.mxu0 0.0
    %6206 = vmatpush1.msra.mxu0 0.0
    %6207 = vmatprep.subr.mxu0 0.0
    %6208 = vmatpush1.msra.mxu0 0.0
    %6209 = vmatprep.subr.mxu0 0.0
    %6210 = vmatpush1.msra.mxu0 0.0
    %6211 = vmatprep.subr.mxu0 0.0
    %6212 = vmatpush1.msra.mxu0 0.0
    %6213 = vmatprep.subr.mxu0 0.0
    %6214 = vmatpush1.msra.mxu0 0.0
    %6215 = vmatprep.mubr.f32.mxu0 0.0
    %6216 = vmatmul.mubr.f32.gmra.mrb[0].mxu0 %v6079
    %v6217 = vpop.f32.mrb[0].mxu0
    %v6218 = vadd.f32 %v6148, %v6217
    %v6219 = vpop.f32.mrb[0].mxu0
    %6220 = vdwg.mxu0
    %vm6221 = vcmask 222208
    %6222 = vst.msk [vmem:[#allocation23] sm:$0x3] %vm6221, %v6218
    // Predicated region
    $region114: #{tpu_custom_call.1} parent=1 // pred_check
      _
    $region115: #{tpu_custom_call.1} parent=1 // pred_check_branch
      %6224 = sbr.rel (0) target = $region117
    $region116: #{tpu_custom_call.1} parent=1 // pred_region
      %s6226 = ssub.s32 32, 32
      %6227 = vsyncadd [#allocation4], %s6226
      %s6229 = sshll.u32 [#allocation23], 4
      %s6230 = int_to_ptr.vmem [resolvable:$true] %s6229
      %6232 = dma.vmem_to_hbm [thread:$0]  %s6230, 32, %s15, [#allocation4]
    $region117: #{tpu_custom_call.1} parent=1 // pred_fallthru
      _
    // Predicated region
    $region118: #{tpu_custom_call.1} parent=1 // pred_check
      _
    $region119: #{tpu_custom_call.1} parent=1 // pred_check_branch
      %6234 = sbr.rel (0) target = $region121
    $region120: #{tpu_custom_call.1} parent=1 // pred_region
      %6235 = dma.done [#allocation4], 32
    $region121: #{tpu_custom_call.1} parent=1 // pred_fallthru
      _
    %6236 = vsyncpa [#allocation3], 1
    %6237 = vsyncpa [#allocation6], 1
    %6238 = vsyncpa [#allocation9], 1
    %6239 = vsyncpa [#allocation12], 1
    %6240 = vsyncpa [#allocation15], 1
    %6241 = vsyncpa [#allocation18], 1
    %6242 = vsyncpa [#allocation21], 1
    %6243 = vsyncpa [#allocation4], 1

</llo_original>
